<compile_context>
chip_gen: v7x
topology: tpu7x:2x2x1
jax: 0.10.0
libtpu: 0.0.40
codegen_flags: <defaults>
</compile_context>

<pallas_src>
import functools

import numpy as np
import jax
import jax.numpy as jnp
from jax.experimental import pallas as pl
from jax.experimental.pallas import tpu as pltpu


# ----------------------------------------------------------------------------
# helpers
# ----------------------------------------------------------------------------
def _round_up(x, m):
    return ((x + m - 1) // m) * m


def precalc_spline_matrix(n):
    """NeuralSpline._precalc: natural-cubic-spline second-derivative matrix."""
    step = 1.0 / (n - 1.0)
    mat = 4 * np.eye(n - 2)
    np.fill_diagonal(mat[1:, :-1], 1)
    np.fill_diagonal(mat[:-1, 1:], 1)
    A = 6 * np.linalg.inv(mat) / step ** 2
    z = np.zeros(n - 2)
    A = np.vstack([z, A, z])
    Bm = np.zeros([n - 2, n])
    np.fill_diagonal(Bm, 1)
    np.fill_diagonal(Bm[:, 1:], -2)
    np.fill_diagonal(Bm[:, 2:], 1)
    return jnp.asarray(np.dot(A, Bm), dtype=jnp.float32)


# ----------------------------------------------------------------------------
# Pallas kernel 1: fused matmul + bias + (ReLU) + (folded eval BatchNorm)
#   used for every conv layer (via im2col) and the fused expert FC heads.
# ----------------------------------------------------------------------------
def _fused_mm_kernel(a_ref, w_ref, b_ref, g_ref, s_ref, o_ref, *, relu):
    z = jnp.dot(a_ref[...], w_ref[...], preferred_element_type=jnp.float32)
    z = z + b_ref[...]
    if relu:
        z = jnp.maximum(z, 0.0)
    o_ref[...] = z * g_ref[...] + s_ref[...]


def fused_matmul(a, w, bias, gamma, beta, *, relu):
    """a: (M, K), w: (K, N) -> relu(a @ w + bias) * gamma + beta, shape (M, N).

    No host-side padding: grid = cdiv(M, tm); Pallas clips the partial last
    block (padded compute rows are masked off on the store).
    """
    M, K = a.shape
    N = w.shape[1]
    # Full-dim block when small (valid even if not a multiple of 8), else 512.
    tm = M if M <= 512 else 512
    grid_m = pl.cdiv(M, tm)
    return pl.pallas_call(
        functools.partial(_fused_mm_kernel, relu=relu),
        out_shape=jax.ShapeDtypeStruct((M, N), jnp.float32),
        grid=(grid_m,),
        in_specs=[
            pl.BlockSpec((tm, K), lambda i: (i, 0)),
            pl.BlockSpec((K, N), lambda i: (0, 0)),
            pl.BlockSpec((1, N), lambda i: (0, 0)),
            pl.BlockSpec((1, N), lambda i: (0, 0)),
            pl.BlockSpec((1, N), lambda i: (0, 0)),
        ],
        out_specs=pl.BlockSpec((tm, N), lambda i: (i, 0)),
        compiler_params=pltpu.CompilerParams(dimension_semantics=("parallel",)),
    )(a, w,
      bias.reshape(1, N).astype(jnp.float32),
      gamma.reshape(1, N).astype(jnp.float32),
      beta.reshape(1, N).astype(jnp.float32))


def _im2col_nhwc(x, k, s):
    """x: (B, H, W, C) -> (B*OH*OW, k*k*C) patches, column order (kh, kw, cin)."""
    B, H, W, C = x.shape
    OH = (H - k) // s + 1
    OW = (W - k) // s + 1
    cols = []
    for i in range(k):
        for j in range(k):
            cols.append(x[:, i:i + s * OH:s, j:j + s * OW:s, :])   # (B,OH,OW,C)
    p = jnp.stack(cols, axis=3)                                    # (B,OH,OW,k*k,C)
    return p.reshape(B * OH * OW, k * k * C), OH, OW


def conv_relu_bn_nhwc(x, w, b, gamma, beta, stride):
    """PyTorch Conv2d (stride, no pad) + ReLU + eval BatchNorm, NHWC in/out."""
    Cout, Cin, k, _ = w.shape
    patches, OH, OW = _im2col_nhwc(x, k, stride)
    # weight matrix with rows ordered (kh, kw, cin) to match im2col columns
    wm = jnp.transpose(w, (2, 3, 1, 0)).reshape(k * k * Cin, Cout)
    out = fused_matmul(patches, wm, b, gamma, beta, relu=True)
    B = x.shape[0]
    return out.reshape(B, OH, OW, Cout)                            # NHWC


# ----------------------------------------------------------------------------
# Pallas kernel 2: piecewise-cubic spline evaluation (NeuralSpline.apply)
#   One grid step = one (batch, channel) row x one lane-dense pixel tile,
#   evaluating ALL experts (image read from HBM exactly once).
#   Coefficients are threshold deltas: coef(seg j) = d0 + sum_{s<=j} delta_s,
#   so per segment we do 1 shared compare + 4 select-accumulates per expert,
#   then a single Horner cubic.
#   TODO(synk): MXU one-hot segment selection (per review) not implemented;
#   selection stays on the VPU via shared compares.
# ----------------------------------------------------------------------------
def _spline_apply_kernel(coef_ref, x_ref, o_ref, *, n, n_experts, clamp_out):
    step = 1.0 / (n - 1.0)
    x = x_ref[0]                                   # (TR, 128) pixel tile
    xi = jnp.clip(jnp.floor(x * (n - 1.0)), 0.0, float(n - 2))
    xf = x - xi * step
    co = coef_ref[...]                             # (1, 1, NE*4*(n-1)) deltas
    # shared segment masks (independent of expert / coefficient)
    masks = [xi >= float(s) for s in range(1, n - 1)]
    for e in range(n_experts):
        base = e * 4 * (n - 1)
        sel = []
        for k in range(4):
            cbase = base + k * (n - 1)
            v = jnp.full_like(x, co[0, 0, cbase])
            for s in range(1, n - 1):
                v = v + jnp.where(masks[s - 1], co[0, 0, cbase + s], 0.0)
            sel.append(v)
        a, b, c, d = sel
        y = ((a * xf + b) * xf + c) * xf + d       # Horner
        if clamp_out:
            y = jnp.clip(y, 0.0, 1.0)
        o_ref[e, 0] = y


def apply_splines(dcoef_rows, x_rows, *, n, n_experts, clamp_out):
    """dcoef_rows: (R, NE*4*(n-1)) threshold-delta coefficients (R = B*3 rows),
    x_rows: (R, NP) values in [0,1] -> (NE, R, NP) spline outputs."""
    R, NP = x_rows.shape
    LW = 128
    NR0 = -(-NP // LW)
    # tile-row cap from a per-step VMEM byte budget (v7x-safe, <= 64 MiB chips)
    budget = 6 * 1024 * 1024
    tr_cap = max(8, min(4096, (budget // ((1 + n_experts) * LW * 4)) // 8 * 8))
    if NR0 <= tr_cap:
        TR = NR0                    # full dim (allowed even if not %8)
        NR = NR0
    else:
        TR = tr_cap                 # multiple of 8
        NR = _round_up(NR0, TR)
    NPpad = NR * LW
    if NPpad != NP:
        x_rows = jnp.pad(x_rows, ((0, 0), (0, NPpad - NP)))
    x3 = x_rows.reshape(R, NR, LW)
    ncols = dcoef_rows.shape[1]
    co3 = dcoef_rows.reshape(R, 1, ncols).astype(jnp.float32)

    out = pl.pallas_call(
        functools.partial(_spline_apply_kernel, n=n, n_experts=n_experts,
                          clamp_out=clamp_out),
        out_shape=jax.ShapeDtypeStruct((n_experts, R, NR, LW), jnp.float32),
        grid=(R, NR // TR),
        in_specs=[
            # coefficient block is constant across the inner (tile) axis ->
            # DMA'd once per row and kept resident.
            pl.BlockSpec((1, 1, ncols), lambda r, t: (r, 0, 0)),
            pl.BlockSpec((1, TR, LW), lambda r, t: (r, t, 0)),
        ],
        out_specs=pl.BlockSpec((n_experts, 1, TR, LW),
                               lambda r, t: (0, r, t, 0)),
        compiler_params=pltpu.CompilerParams(
            dimension_semantics=("parallel", "parallel"),
            vmem_limit_bytes=32 * 1024 * 1024),
    )(co3, x3)
    return out.reshape(n_experts, R, NPpad)[:, :, :NP]


# ----------------------------------------------------------------------------
# parameters
# ----------------------------------------------------------------------------
def init_params(key, n, nc, nexperts, n_input_channels=3):
    ks = jax.random.split(key, 4 + 2 * nexperts)

    def conv(k, cout, cin, ksz):
        std = float(np.sqrt(2.0 / (cout * ksz * ksz)))      # kaiming fan_out
        w = std * jax.random.normal(k, (cout, cin, ksz, ksz), jnp.float32)
        b = jnp.zeros((cout,), jnp.float32)
        return w, b

    def linear(k, cout, cin):
        k1, k2 = jax.random.split(k)
        bound = 1.0 / float(np.sqrt(cin))
        w = bound * jax.random.normal(k1, (cout, cin), jnp.float32)
        b = bound * (2.0 * jax.random.uniform(k2, (cout,), jnp.float32) - 1.0)
        return w, b

    p = {}
    p['c1_w'], p['c1_b'] = conv(ks[0], nc, n_input_channels, 5)
    p['c2_w'], p['c2_b'] = conv(ks[1], 2 * nc, nc, 3)
    p['c3_w'], p['c3_b'] = conv(ks[2], 4 * nc, 2 * nc, 3)
    p['c4_w'], p['c4_b'] = conv(ks[3], 8 * nc, 4 * nc, 3)
    p['fc'] = []
    for e in range(nexperts):
        w1, b1 = linear(ks[4 + 2 * e], 8 * nc, 8 * nc)
        w2, b2 = linear(ks[5 + 2 * e], 3 * n, 8 * nc)
        p['fc'].append({'w1': w1, 'b1': b1, 'w2': w2, 'b2': b2})
    p['spline_matrix'] = precalc_spline_matrix(n)
    return p


# ----------------------------------------------------------------------------
# forward pass
# ----------------------------------------------------------------------------
def neural_spline_forward(params, batch, *, n, nexperts):
    B, C, H, W = batch.shape
    step = 1.0 / (n - 1.0)
    nc = params['c1_w'].shape[0]

    # F.interpolate(batch, (256, 256), mode='bilinear') -- half-pixel centers
    # (align_corners=False).  Plain-JAX preprocessing glue.
    if not (H == 256 and W == 256):
        small = jax.image.resize(batch, (B, C, 256, 256), method='bilinear')
    else:
        small = batch
    x = jnp.transpose(small, (0, 2, 3, 1))                    # NHWC once

    one = lambda c: jnp.ones((c,), jnp.float32)
    zero = lambda c: jnp.zeros((c,), jnp.float32)
    # eval-mode BatchNorm with running_mean=0, running_var=1, weight=1, bias=0
    bn_g = lambda c: jnp.full((c,), 1.0 / float(np.sqrt(1.0 + 1e-5)), jnp.float32)
    bn_b = lambda c: jnp.zeros((c,), jnp.float32)

    ys = conv_relu_bn_nhwc(x, params['c1_w'], params['c1_b'],
                           one(nc), zero(nc), 4)              # relu(c1)
    ys = conv_relu_bn_nhwc(ys, params['c2_w'], params['c2_b'],
                           bn_g(2 * nc), bn_b(2 * nc), 2)     # b2(relu(c2))
    ys = conv_relu_bn_nhwc(ys, params['c3_w'], params['c3_b'],
                           bn_g(4 * nc), bn_b(4 * nc), 2)     # b3(relu(c3))
    ys = conv_relu_bn_nhwc(ys, params['c4_w'], params['c4_b'],
                           bn_g(8 * nc), bn_b(8 * nc), 2)     # b4(relu(c4))

    # AvgPool2d(7, stride=1) on a 7x7 map -> global mean (tiny reduction, glue)
    feat = ys.mean(axis=(1, 2))                               # (B, 8nc)

    # expert heads fused into 2 Pallas matmuls (concat W1 / block-diag W2)
    c_in, c_out = 8 * nc, 3 * n
    w1cat = jnp.concatenate([params['fc'][e]['w1'].T for e in range(nexperts)], axis=1)
    b1cat = jnp.concatenate([params['fc'][e]['b1'] for e in range(nexperts)])
    h1 = fused_matmul(feat, w1cat, b1cat,
                      one(nexperts * c_in), zero(nexperts * c_in), relu=True)
    rows = []
    for e in range(nexperts):
        row = [params['fc'][e]['w2'].T if e2 == e
               else jnp.zeros((c_in, c_out), jnp.float32)
               for e2 in range(nexperts)]
        rows.append(jnp.concatenate(row, axis=1))
    w2bd = jnp.concatenate(rows, axis=0)                      # (NE*8nc, NE*3n)
    b2cat = jnp.concatenate([params['fc'][e]['b2'] for e in range(nexperts)])
    h2 = fused_matmul(h1, w2bd, b2cat,
                      one(nexperts * c_out), zero(nexperts * c_out), relu=False)
    ys_all = h2.reshape(B, nexperts, 3, n)                    # (B, NE, 3, n)

    # NeuralSpline.interpolate (vectorized): tiny n x n matmul kept in JAX glue.
    identity = jnp.arange(n, dtype=jnp.float32) / (n - 1.0)
    ys_id = ys_all + identity
    Ms = jnp.einsum('ij,benj->beni', params['spline_matrix'], ys_id)
    h = step
    a = (Ms[..., 1:] - Ms[..., :-1]) / (6.0 * h)
    bcf = Ms[..., :-1] / 2.0
    c = (ys_id[..., 1:] - ys_id[..., :-1]) / h \
        - (Ms[..., 1:] + 2.0 * Ms[..., :-1]) * (h / 6.0)
    d = ys_id[..., :-1]
    coeffs = jnp.stack([a, bcf, c, d], axis=-2)               # (B, NE, 3, 4, n-1)

    # threshold-delta form for the kernel: coef(seg j) = d0 + sum_{s<=j} delta_s
    dco = jnp.concatenate([coeffs[..., :1],
                           coeffs[..., 1:] - coeffs[..., :-1]], axis=-1)
    drows = jnp.transpose(dco, (0, 2, 1, 3, 4)).reshape(
        B * 3, nexperts * 4 * (n - 1))                        # row = (b, ch)

    # enhanceImage on the ORIGINAL-resolution image (eval -> clamp [0,1]);
    # spline curves sampled at 255 points, not clamped.
    HW = H * W
    img_rows = batch[:, :3].reshape(B * 3, HW)
    out_all = apply_splines(drows, img_rows, n=n, n_experts=nexperts,
                            clamp_out=True)
    out_all = out_all.reshape(nexperts, B, 3, H, W)

    xs = jnp.arange(255, dtype=jnp.float32) / 255.0           # torch.arange(0,1,1/255)
    xs_rows = jnp.broadcast_to(xs, (B * 3, 255))
    spl_all = apply_splines(drows, xs_rows, n=n, n_experts=nexperts,
                            clamp_out=False)
    spl_all = spl_all.reshape(nexperts, B, 3, 255)

    out = [out_all[e] for e in range(nexperts)]               # each (B, 3, H, W)
    splines = [spl_all[e] for e in range(nexperts)]           # each (B, 3, 255)
    return out, splines


# ----------------------------------------------------------------------------
if __name__ == "__main__":
    key = jax.random.PRNGKey(0)
    n, nc, nexperts = 8, 8, 2
    B, H, W = 2, 16, 16

    kp, kx = jax.random.split(key)
    params = init_params(kp, n, nc, nexperts, n_input_channels=3)
    x = jax.random.uniform(kx, (B, 3, H, W), dtype=jnp.float32)  # RGB in [0, 1]

    fwd = jax.jit(functools.partial(neural_spline_forward, n=n, nexperts=nexperts))
    out, splines = fwd(params, x)

    for o in out:
        jax.block_until_ready(o)
    for s in splines:
        jax.block_until_ready(s)

    assert out[0].shape == (B, 3, H, W) and splines[0].shape == (B, 3, 255)
    print("KERNEL_OK")
</pallas_src>

<mosaic_0001>
module attributes {stable_mosaic.version = 11 : i64} {
  func.func @_fused_mm_kernel(%arg0: i32, %arg1: memref<512x75xf32, #tpu.memory_space<vmem>>, %arg2: memref<75x8xf32, #tpu.memory_space<vmem>>, %arg3: memref<1x8xf32, #tpu.memory_space<vmem>>, %arg4: memref<1x8xf32, #tpu.memory_space<vmem>>, %arg5: memref<1x8xf32, #tpu.memory_space<vmem>>, %arg6: memref<512x8xf32, #tpu.memory_space<vmem>>) attributes {dimension_semantics = [#tpu.dimension_semantics<parallel>], iteration_bounds = array<i64: 16>, scalar_prefetch = 0 : i64, scratch_operands = 0 : i64, tpu.core_type = #tpu.core_type<tc>, window_params = [{transform_indices = @transform_0, window_bounds = array<i64: 512, 75>}, {pipeline_mode = #tpu.pipeline_mode<synchronous>, transform_indices = @transform_1, window_bounds = array<i64: 75, 8>}, {pipeline_mode = #tpu.pipeline_mode<synchronous>, transform_indices = @transform_2, window_bounds = array<i64: 1, 8>}, {pipeline_mode = #tpu.pipeline_mode<synchronous>, transform_indices = @transform_3, window_bounds = array<i64: 1, 8>}, {pipeline_mode = #tpu.pipeline_mode<synchronous>, transform_indices = @transform_4, window_bounds = array<i64: 1, 8>}, {transform_indices = @transform_5, window_bounds = array<i64: 512, 8>}]} {
    %c0 = arith.constant 0 : index
    %c0_0 = arith.constant 0 : index
    %0 = vector.load %arg1[%c0, %c0_0] : memref<512x75xf32, #tpu.memory_space<vmem>>, vector<512x75xf32>
    %c0_1 = arith.constant 0 : index
    %c0_2 = arith.constant 0 : index
    %1 = vector.load %arg2[%c0_1, %c0_2] : memref<75x8xf32, #tpu.memory_space<vmem>>, vector<75x8xf32>
    %cst = arith.constant dense<0.000000e+00> : vector<512x8xf32>
    %2 = tpu.matmul %0, %1, %cst {dimension_numbers = #tpu.dot_dimension_numbers<[1], [0], [0], [1], [0, 0, 1, 1], [], []>} : vector<512x75xf32>, vector<75x8xf32>, vector<512x8xf32> -> vector<512x8xf32>
    %c0_3 = arith.constant 0 : index
    %c0_4 = arith.constant 0 : index
    %3 = vector.load %arg3[%c0_3, %c0_4] : memref<1x8xf32, #tpu.memory_space<vmem>>, vector<1x8xf32>
    %4 = vector.broadcast %3 : vector<1x8xf32> to vector<512x8xf32>
    %5 = arith.addf %2, %4 : vector<512x8xf32>
    %cst_5 = arith.constant 0.000000e+00 : f32
    %6 = vector.broadcast %cst_5 : f32 to vector<512x8xf32>
    %7 = arith.maximumf %5, %6 : vector<512x8xf32>
    %c0_6 = arith.constant 0 : index
    %c0_7 = arith.constant 0 : index
    %8 = vector.load %arg4[%c0_6, %c0_7] : memref<1x8xf32, #tpu.memory_space<vmem>>, vector<1x8xf32>
    %9 = vector.broadcast %8 : vector<1x8xf32> to vector<512x8xf32>
    %10 = arith.mulf %7, %9 : vector<512x8xf32>
    %c0_8 = arith.constant 0 : index
    %c0_9 = arith.constant 0 : index
    %11 = vector.load %arg5[%c0_8, %c0_9] : memref<1x8xf32, #tpu.memory_space<vmem>>, vector<1x8xf32>
    %12 = vector.broadcast %11 : vector<1x8xf32> to vector<512x8xf32>
    %13 = arith.addf %10, %12 : vector<512x8xf32>
    %c0_10 = arith.constant 0 : index
    %c0_11 = arith.constant 0 : index
    %14 = vector.load %arg6[%c0_10, %c0_11] : memref<512x8xf32, #tpu.memory_space<vmem>>, vector<512x8xf32>
    tpu.vector_store %arg6[%c0_10, %c0_11], %13 {strides = array<i32>} : memref<512x8xf32, #tpu.memory_space<vmem>>, vector<512x8xf32>,
    return
  }
  func.func @transform_0(%arg0: i32) -> (i32, i32) {
    %c0_i32 = arith.constant 0 : i32
    %c0_i32_0 = arith.constant 0 : i32
    return %arg0, %c0_i32 : i32, i32
  }
  func.func @transform_1(%arg0: i32) -> (i32, i32) {
    %c0_i32 = arith.constant 0 : i32
    %c0_i32_0 = arith.constant 0 : i32
    %c0_i32_1 = arith.constant 0 : i32
    return %c0_i32, %c0_i32_0 : i32, i32
  }
  func.func @transform_2(%arg0: i32) -> (i32, i32) {
    %c0_i32 = arith.constant 0 : i32
    %c0_i32_0 = arith.constant 0 : i32
    %c0_i32_1 = arith.constant 0 : i32
    return %c0_i32, %c0_i32_0 : i32, i32
  }
  func.func @transform_3(%arg0: i32) -> (i32, i32) {
    %c0_i32 = arith.constant 0 : i32
    %c0_i32_0 = arith.constant 0 : i32
    %c0_i32_1 = arith.constant 0 : i32
    return %c0_i32, %c0_i32_0 : i32, i32
  }
  func.func @transform_4(%arg0: i32) -> (i32, i32) {
    %c0_i32 = arith.constant 0 : i32
    %c0_i32_0 = arith.constant 0 : i32
    %c0_i32_1 = arith.constant 0 : i32
    return %c0_i32, %c0_i32_0 : i32, i32
  }
  func.func @transform_5(%arg0: i32) -> (i32, i32) {
    %c0_i32 = arith.constant 0 : i32
    %c0_i32_0 = arith.constant 0 : i32
    return %arg0, %c0_i32 : i32, i32
  }
}

module attributes {stable_mosaic.version = 11 : i64} {
  func.func @_fused_mm_kernel(%arg0: i32, %arg1: memref<512x72xf32, #tpu.memory_space<vmem>>, %arg2: memref<72x16xf32, #tpu.memory_space<vmem>>, %arg3: memref<1x16xf32, #tpu.memory_space<vmem>>, %arg4: memref<1x16xf32, #tpu.memory_space<vmem>>, %arg5: memref<1x16xf32, #tpu.memory_space<vmem>>, %arg6: memref<512x16xf32, #tpu.memory_space<vmem>>) attributes {dimension_semantics = [#tpu.dimension_semantics<parallel>], iteration_bounds = array<i64: 4>, scalar_prefetch = 0 : i64, scratch_operands = 0 : i64, tpu.core_type = #tpu.core_type<tc>, window_params = [{transform_indices = @transform_0, window_bounds = array<i64: 512, 72>}, {pipeline_mode = #tpu.pipeline_mode<synchronous>, transform_indices = @transform_1, window_bounds = array<i64: 72, 16>}, {pipeline_mode = #tpu.pipeline_mode<synchronous>, transform_indices = @transform_2, window_bounds = array<i64: 1, 16>}, {pipeline_mode = #tpu.pipeline_mode<synchronous>, transform_indices = @transform_3, window_bounds = array<i64: 1, 16>}, {pipeline_mode = #tpu.pipeline_mode<synchronous>, transform_indices = @transform_4, window_bounds = array<i64: 1, 16>}, {transform_indices = @transform_5, window_bounds = array<i64: 512, 16>}]} {
    %c0 = arith.constant 0 : index
    %c0_0 = arith.constant 0 : index
    %0 = vector.load %arg1[%c0, %c0_0] : memref<512x72xf32, #tpu.memory_space<vmem>>, vector<512x72xf32>
    %c0_1 = arith.constant 0 : index
    %c0_2 = arith.constant 0 : index
    %1 = vector.load %arg2[%c0_1, %c0_2] : memref<72x16xf32, #tpu.memory_space<vmem>>, vector<72x16xf32>
    %cst = arith.constant dense<0.000000e+00> : vector<512x16xf32>
    %2 = tpu.matmul %0, %1, %cst {dimension_numbers = #tpu.dot_dimension_numbers<[1], [0], [0], [1], [0, 0, 1, 1], [], []>} : vector<512x72xf32>, vector<72x16xf32>, vector<512x16xf32> -> vector<512x16xf32>
    %c0_3 = arith.constant 0 : index
    %c0_4 = arith.constant 0 : index
    %3 = vector.load %arg3[%c0_3, %c0_4] : memref<1x16xf32, #tpu.memory_space<vmem>>, vector<1x16xf32>
    %4 = vector.broadcast %3 : vector<1x16xf32> to vector<512x16xf32>
    %5 = arith.addf %2, %4 : vector<512x16xf32>
    %cst_5 = arith.constant 0.000000e+00 : f32
    %6 = vector.broadcast %cst_5 : f32 to vector<512x16xf32>
    %7 = arith.maximumf %5, %6 : vector<512x16xf32>
    %c0_6 = arith.constant 0 : index
    %c0_7 = arith.constant 0 : index
    %8 = vector.load %arg4[%c0_6, %c0_7] : memref<1x16xf32, #tpu.memory_space<vmem>>, vector<1x16xf32>
    %9 = vector.broadcast %8 : vector<1x16xf32> to vector<512x16xf32>
    %10 = arith.mulf %7, %9 : vector<512x16xf32>
    %c0_8 = arith.constant 0 : index
    %c0_9 = arith.constant 0 : index
    %11 = vector.load %arg5[%c0_8, %c0_9] : memref<1x16xf32, #tpu.memory_space<vmem>>, vector<1x16xf32>
    %12 = vector.broadcast %11 : vector<1x16xf32> to vector<512x16xf32>
    %13 = arith.addf %10, %12 : vector<512x16xf32>
    %c0_10 = arith.constant 0 : index
    %c0_11 = arith.constant 0 : index
    %14 = vector.load %arg6[%c0_10, %c0_11] : memref<512x16xf32, #tpu.memory_space<vmem>>, vector<512x16xf32>
    tpu.vector_store %arg6[%c0_10, %c0_11], %13 {strides = array<i32>} : memref<512x16xf32, #tpu.memory_space<vmem>>, vector<512x16xf32>,
    return
  }
  func.func @transform_0(%arg0: i32) -> (i32, i32) {
    %c0_i32 = arith.constant 0 : i32
    %c0_i32_0 = arith.constant 0 : i32
    return %arg0, %c0_i32 : i32, i32
  }
  func.func @transform_1(%arg0: i32) -> (i32, i32) {
    %c0_i32 = arith.constant 0 : i32
    %c0_i32_0 = arith.constant 0 : i32
    %c0_i32_1 = arith.constant 0 : i32
    return %c0_i32, %c0_i32_0 : i32, i32
  }
  func.func @transform_2(%arg0: i32) -> (i32, i32) {
    %c0_i32 = arith.constant 0 : i32
    %c0_i32_0 = arith.constant 0 : i32
    %c0_i32_1 = arith.constant 0 : i32
    return %c0_i32, %c0_i32_0 : i32, i32
  }
  func.func @transform_3(%arg0: i32) -> (i32, i32) {
    %c0_i32 = arith.constant 0 : i32
    %c0_i32_0 = arith.constant 0 : i32
    %c0_i32_1 = arith.constant 0 : i32
    return %c0_i32, %c0_i32_0 : i32, i32
  }
  func.func @transform_4(%arg0: i32) -> (i32, i32) {
    %c0_i32 = arith.constant 0 : i32
    %c0_i32_0 = arith.constant 0 : i32
    %c0_i32_1 = arith.constant 0 : i32
    return %c0_i32, %c0_i32_0 : i32, i32
  }
  func.func @transform_5(%arg0: i32) -> (i32, i32) {
    %c0_i32 = arith.constant 0 : i32
    %c0_i32_0 = arith.constant 0 : i32
    return %arg0, %c0_i32 : i32, i32
  }
}

module attributes {stable_mosaic.version = 11 : i64} {
  func.func @_fused_mm_kernel(%arg0: i32, %arg1: memref<450x144xf32, #tpu.memory_space<vmem>>, %arg2: memref<144x32xf32, #tpu.memory_space<vmem>>, %arg3: memref<1x32xf32, #tpu.memory_space<vmem>>, %arg4: memref<1x32xf32, #tpu.memory_space<vmem>>, %arg5: memref<1x32xf32, #tpu.memory_space<vmem>>, %arg6: memref<450x32xf32, #tpu.memory_space<vmem>>) attributes {dimension_semantics = [#tpu.dimension_semantics<parallel>], iteration_bounds = array<i64: 1>, scalar_prefetch = 0 : i64, scratch_operands = 0 : i64, tpu.core_type = #tpu.core_type<tc>, window_params = [{transform_indices = @transform_0, window_bounds = array<i64: 450, 144>}, {pipeline_mode = #tpu.pipeline_mode<synchronous>, transform_indices = @transform_1, window_bounds = array<i64: 144, 32>}, {pipeline_mode = #tpu.pipeline_mode<synchronous>, transform_indices = @transform_2, window_bounds = array<i64: 1, 32>}, {pipeline_mode = #tpu.pipeline_mode<synchronous>, transform_indices = @transform_3, window_bounds = array<i64: 1, 32>}, {pipeline_mode = #tpu.pipeline_mode<synchronous>, transform_indices = @transform_4, window_bounds = array<i64: 1, 32>}, {transform_indices = @transform_5, window_bounds = array<i64: 450, 32>}]} {
    %c0 = arith.constant 0 : index
    %c0_0 = arith.constant 0 : index
    %0 = vector.load %arg1[%c0, %c0_0] : memref<450x144xf32, #tpu.memory_space<vmem>>, vector<450x144xf32>
    %c0_1 = arith.constant 0 : index
    %c0_2 = arith.constant 0 : index
    %1 = vector.load %arg2[%c0_1, %c0_2] : memref<144x32xf32, #tpu.memory_space<vmem>>, vector<144x32xf32>
    %cst = arith.constant dense<0.000000e+00> : vector<450x32xf32>
    %2 = tpu.matmul %0, %1, %cst {dimension_numbers = #tpu.dot_dimension_numbers<[1], [0], [0], [1], [0, 0, 1, 1], [], []>} : vector<450x144xf32>, vector<144x32xf32>, vector<450x32xf32> -> vector<450x32xf32>
    %c0_3 = arith.constant 0 : index
    %c0_4 = arith.constant 0 : index
    %3 = vector.load %arg3[%c0_3, %c0_4] : memref<1x32xf32, #tpu.memory_space<vmem>>, vector<1x32xf32>
    %4 = vector.broadcast %3 : vector<1x32xf32> to vector<450x32xf32>
    %5 = arith.addf %2, %4 : vector<450x32xf32>
    %cst_5 = arith.constant 0.000000e+00 : f32
    %6 = vector.broadcast %cst_5 : f32 to vector<450x32xf32>
    %7 = arith.maximumf %5, %6 : vector<450x32xf32>
    %c0_6 = arith.constant 0 : index
    %c0_7 = arith.constant 0 : index
    %8 = vector.load %arg4[%c0_6, %c0_7] : memref<1x32xf32, #tpu.memory_space<vmem>>, vector<1x32xf32>
    %9 = vector.broadcast %8 : vector<1x32xf32> to vector<450x32xf32>
    %10 = arith.mulf %7, %9 : vector<450x32xf32>
    %c0_8 = arith.constant 0 : index
    %c0_9 = arith.constant 0 : index
    %11 = vector.load %arg5[%c0_8, %c0_9] : memref<1x32xf32, #tpu.memory_space<vmem>>, vector<1x32xf32>
    %12 = vector.broadcast %11 : vector<1x32xf32> to vector<450x32xf32>
    %13 = arith.addf %10, %12 : vector<450x32xf32>
    %c0_10 = arith.constant 0 : index
    %c0_11 = arith.constant 0 : index
    %14 = vector.load %arg6[%c0_10, %c0_11] : memref<450x32xf32, #tpu.memory_space<vmem>>, vector<450x32xf32>
    tpu.vector_store %arg6[%c0_10, %c0_11], %13 {strides = array<i32>} : memref<450x32xf32, #tpu.memory_space<vmem>>, vector<450x32xf32>,
    return
  }
  func.func @transform_0(%arg0: i32) -> (i32, i32) {
    %c0_i32 = arith.constant 0 : i32
    %c0_i32_0 = arith.constant 0 : i32
    return %arg0, %c0_i32 : i32, i32
  }
  func.func @transform_1(%arg0: i32) -> (i32, i32) {
    %c0_i32 = arith.constant 0 : i32
    %c0_i32_0 = arith.constant 0 : i32
    %c0_i32_1 = arith.constant 0 : i32
    return %c0_i32, %c0_i32_0 : i32, i32
  }
  func.func @transform_2(%arg0: i32) -> (i32, i32) {
    %c0_i32 = arith.constant 0 : i32
    %c0_i32_0 = arith.constant 0 : i32
    %c0_i32_1 = arith.constant 0 : i32
    return %c0_i32, %c0_i32_0 : i32, i32
  }
  func.func @transform_3(%arg0: i32) -> (i32, i32) {
    %c0_i32 = arith.constant 0 : i32
    %c0_i32_0 = arith.constant 0 : i32
    %c0_i32_1 = arith.constant 0 : i32
    return %c0_i32, %c0_i32_0 : i32, i32
  }
  func.func @transform_4(%arg0: i32) -> (i32, i32) {
    %c0_i32 = arith.constant 0 : i32
    %c0_i32_0 = arith.constant 0 : i32
    %c0_i32_1 = arith.constant 0 : i32
    return %c0_i32, %c0_i32_0 : i32, i32
  }
  func.func @transform_5(%arg0: i32) -> (i32, i32) {
    %c0_i32 = arith.constant 0 : i32
    %c0_i32_0 = arith.constant 0 : i32
    return %arg0, %c0_i32 : i32, i32
  }
}

module attributes {stable_mosaic.version = 11 : i64} {
  func.func @_fused_mm_kernel(%arg0: i32, %arg1: memref<98x288xf32, #tpu.memory_space<vmem>>, %arg2: memref<288x64xf32, #tpu.memory_space<vmem>>, %arg3: memref<1x64xf32, #tpu.memory_space<vmem>>, %arg4: memref<1x64xf32, #tpu.memory_space<vmem>>, %arg5: memref<1x64xf32, #tpu.memory_space<vmem>>, %arg6: memref<98x64xf32, #tpu.memory_space<vmem>>) attributes {dimension_semantics = [#tpu.dimension_semantics<parallel>], iteration_bounds = array<i64: 1>, scalar_prefetch = 0 : i64, scratch_operands = 0 : i64, tpu.core_type = #tpu.core_type<tc>, window_params = [{transform_indices = @transform_0, window_bounds = array<i64: 98, 288>}, {pipeline_mode = #tpu.pipeline_mode<synchronous>, transform_indices = @transform_1, window_bounds = array<i64: 288, 64>}, {pipeline_mode = #tpu.pipeline_mode<synchronous>, transform_indices = @transform_2, window_bounds = array<i64: 1, 64>}, {pipeline_mode = #tpu.pipeline_mode<synchronous>, transform_indices = @transform_3, window_bounds = array<i64: 1, 64>}, {pipeline_mode = #tpu.pipeline_mode<synchronous>, transform_indices = @transform_4, window_bounds = array<i64: 1, 64>}, {transform_indices = @transform_5, window_bounds = array<i64: 98, 64>}]} {
    %c0 = arith.constant 0 : index
    %c0_0 = arith.constant 0 : index
    %0 = vector.load %arg1[%c0, %c0_0] : memref<98x288xf32, #tpu.memory_space<vmem>>, vector<98x288xf32>
    %c0_1 = arith.constant 0 : index
    %c0_2 = arith.constant 0 : index
    %1 = vector.load %arg2[%c0_1, %c0_2] : memref<288x64xf32, #tpu.memory_space<vmem>>, vector<288x64xf32>
    %cst = arith.constant dense<0.000000e+00> : vector<98x64xf32>
    %2 = tpu.matmul %0, %1, %cst {dimension_numbers = #tpu.dot_dimension_numbers<[1], [0], [0], [1], [0, 0, 1, 1], [], []>} : vector<98x288xf32>, vector<288x64xf32>, vector<98x64xf32> -> vector<98x64xf32>
    %c0_3 = arith.constant 0 : index
    %c0_4 = arith.constant 0 : index
    %3 = vector.load %arg3[%c0_3, %c0_4] : memref<1x64xf32, #tpu.memory_space<vmem>>, vector<1x64xf32>
    %4 = vector.broadcast %3 : vector<1x64xf32> to vector<98x64xf32>
    %5 = arith.addf %2, %4 : vector<98x64xf32>
    %cst_5 = arith.constant 0.000000e+00 : f32
    %6 = vector.broadcast %cst_5 : f32 to vector<98x64xf32>
    %7 = arith.maximumf %5, %6 : vector<98x64xf32>
    %c0_6 = arith.constant 0 : index
    %c0_7 = arith.constant 0 : index
    %8 = vector.load %arg4[%c0_6, %c0_7] : memref<1x64xf32, #tpu.memory_space<vmem>>, vector<1x64xf32>
    %9 = vector.broadcast %8 : vector<1x64xf32> to vector<98x64xf32>
    %10 = arith.mulf %7, %9 : vector<98x64xf32>
    %c0_8 = arith.constant 0 : index
    %c0_9 = arith.constant 0 : index
    %11 = vector.load %arg5[%c0_8, %c0_9] : memref<1x64xf32, #tpu.memory_space<vmem>>, vector<1x64xf32>
    %12 = vector.broadcast %11 : vector<1x64xf32> to vector<98x64xf32>
    %13 = arith.addf %10, %12 : vector<98x64xf32>
    %c0_10 = arith.constant 0 : index
    %c0_11 = arith.constant 0 : index
    %14 = vector.load %arg6[%c0_10, %c0_11] : memref<98x64xf32, #tpu.memory_space<vmem>>, vector<98x64xf32>
    tpu.vector_store %arg6[%c0_10, %c0_11], %13 {strides = array<i32>} : memref<98x64xf32, #tpu.memory_space<vmem>>, vector<98x64xf32>,
    return
  }
  func.func @transform_0(%arg0: i32) -> (i32, i32) {
    %c0_i32 = arith.constant 0 : i32
    %c0_i32_0 = arith.constant 0 : i32
    return %arg0, %c0_i32 : i32, i32
  }
  func.func @transform_1(%arg0: i32) -> (i32, i32) {
    %c0_i32 = arith.constant 0 : i32
    %c0_i32_0 = arith.constant 0 : i32
    %c0_i32_1 = arith.constant 0 : i32
    return %c0_i32, %c0_i32_0 : i32, i32
  }
  func.func @transform_2(%arg0: i32) -> (i32, i32) {
    %c0_i32 = arith.constant 0 : i32
    %c0_i32_0 = arith.constant 0 : i32
    %c0_i32_1 = arith.constant 0 : i32
    return %c0_i32, %c0_i32_0 : i32, i32
  }
  func.func @transform_3(%arg0: i32) -> (i32, i32) {
    %c0_i32 = arith.constant 0 : i32
    %c0_i32_0 = arith.constant 0 : i32
    %c0_i32_1 = arith.constant 0 : i32
    return %c0_i32, %c0_i32_0 : i32, i32
  }
  func.func @transform_4(%arg0: i32) -> (i32, i32) {
    %c0_i32 = arith.constant 0 : i32
    %c0_i32_0 = arith.constant 0 : i32
    %c0_i32_1 = arith.constant 0 : i32
    return %c0_i32, %c0_i32_0 : i32, i32
  }
  func.func @transform_5(%arg0: i32) -> (i32, i32) {
    %c0_i32 = arith.constant 0 : i32
    %c0_i32_0 = arith.constant 0 : i32
    return %arg0, %c0_i32 : i32, i32
  }
}

module attributes {stable_mosaic.version = 11 : i64} {
  func.func @_fused_mm_kernel(%arg0: i32, %arg1: memref<2x64xf32, #tpu.memory_space<vmem>>, %arg2: memref<64x128xf32, #tpu.memory_space<vmem>>, %arg3: memref<1x128xf32, #tpu.memory_space<vmem>>, %arg4: memref<1x128xf32, #tpu.memory_space<vmem>>, %arg5: memref<1x128xf32, #tpu.memory_space<vmem>>, %arg6: memref<2x128xf32, #tpu.memory_space<vmem>>) attributes {dimension_semantics = [#tpu.dimension_semantics<parallel>], iteration_bounds = array<i64: 1>, scalar_prefetch = 0 : i64, scratch_operands = 0 : i64, tpu.core_type = #tpu.core_type<tc>, window_params = [{transform_indices = @transform_0, window_bounds = array<i64: 2, 64>}, {pipeline_mode = #tpu.pipeline_mode<synchronous>, transform_indices = @transform_1, window_bounds = array<i64: 64, 128>}, {pipeline_mode = #tpu.pipeline_mode<synchronous>, transform_indices = @transform_2, window_bounds = array<i64: 1, 128>}, {pipeline_mode = #tpu.pipeline_mode<synchronous>, transform_indices = @transform_3, window_bounds = array<i64: 1, 128>}, {pipeline_mode = #tpu.pipeline_mode<synchronous>, transform_indices = @transform_4, window_bounds = array<i64: 1, 128>}, {transform_indices = @transform_5, window_bounds = array<i64: 2, 128>}]} {
    %c0 = arith.constant 0 : index
    %c0_0 = arith.constant 0 : index
    %0 = vector.load %arg1[%c0, %c0_0] : memref<2x64xf32, #tpu.memory_space<vmem>>, vector<2x64xf32>
    %c0_1 = arith.constant 0 : index
    %c0_2 = arith.constant 0 : index
    %1 = vector.load %arg2[%c0_1, %c0_2] : memref<64x128xf32, #tpu.memory_space<vmem>>, vector<64x128xf32>
    %cst = arith.constant dense<0.000000e+00> : vector<2x128xf32>
    %2 = tpu.matmul %0, %1, %cst {dimension_numbers = #tpu.dot_dimension_numbers<[1], [0], [0], [1], [0, 0, 1, 1], [], []>} : vector<2x64xf32>, vector<64x128xf32>, vector<2x128xf32> -> vector<2x128xf32>
    %c0_3 = arith.constant 0 : index
    %c0_4 = arith.constant 0 : index
    %3 = vector.load %arg3[%c0_3, %c0_4] : memref<1x128xf32, #tpu.memory_space<vmem>>, vector<1x128xf32>
    %4 = vector.broadcast %3 : vector<1x128xf32> to vector<2x128xf32>
    %5 = arith.addf %2, %4 : vector<2x128xf32>
    %cst_5 = arith.constant 0.000000e+00 : f32
    %6 = vector.broadcast %cst_5 : f32 to vector<2x128xf32>
    %7 = arith.maximumf %5, %6 : vector<2x128xf32>
    %c0_6 = arith.constant 0 : index
    %c0_7 = arith.constant 0 : index
    %8 = vector.load %arg4[%c0_6, %c0_7] : memref<1x128xf32, #tpu.memory_space<vmem>>, vector<1x128xf32>
    %9 = vector.broadcast %8 : vector<1x128xf32> to vector<2x128xf32>
    %10 = arith.mulf %7, %9 : vector<2x128xf32>
    %c0_8 = arith.constant 0 : index
    %c0_9 = arith.constant 0 : index
    %11 = vector.load %arg5[%c0_8, %c0_9] : memref<1x128xf32, #tpu.memory_space<vmem>>, vector<1x128xf32>
    %12 = vector.broadcast %11 : vector<1x128xf32> to vector<2x128xf32>
    %13 = arith.addf %10, %12 : vector<2x128xf32>
    %c0_10 = arith.constant 0 : index
    %c0_11 = arith.constant 0 : index
    %14 = vector.load %arg6[%c0_10, %c0_11] : memref<2x128xf32, #tpu.memory_space<vmem>>, vector<2x128xf32>
    tpu.vector_store %arg6[%c0_10, %c0_11], %13 {strides = array<i32>} : memref<2x128xf32, #tpu.memory_space<vmem>>, vector<2x128xf32>,
    return
  }
  func.func @transform_0(%arg0: i32) -> (i32, i32) {
    %c0_i32 = arith.constant 0 : i32
    %c0_i32_0 = arith.constant 0 : i32
    return %arg0, %c0_i32 : i32, i32
  }
  func.func @transform_1(%arg0: i32) -> (i32, i32) {
    %c0_i32 = arith.constant 0 : i32
    %c0_i32_0 = arith.constant 0 : i32
    %c0_i32_1 = arith.constant 0 : i32
    return %c0_i32, %c0_i32_0 : i32, i32
  }
  func.func @transform_2(%arg0: i32) -> (i32, i32) {
    %c0_i32 = arith.constant 0 : i32
    %c0_i32_0 = arith.constant 0 : i32
    %c0_i32_1 = arith.constant 0 : i32
    return %c0_i32, %c0_i32_0 : i32, i32
  }
  func.func @transform_3(%arg0: i32) -> (i32, i32) {
    %c0_i32 = arith.constant 0 : i32
    %c0_i32_0 = arith.constant 0 : i32
    %c0_i32_1 = arith.constant 0 : i32
    return %c0_i32, %c0_i32_0 : i32, i32
  }
  func.func @transform_4(%arg0: i32) -> (i32, i32) {
    %c0_i32 = arith.constant 0 : i32
    %c0_i32_0 = arith.constant 0 : i32
    %c0_i32_1 = arith.constant 0 : i32
    return %c0_i32, %c0_i32_0 : i32, i32
  }
  func.func @transform_5(%arg0: i32) -> (i32, i32) {
    %c0_i32 = arith.constant 0 : i32
    %c0_i32_0 = arith.constant 0 : i32
    return %arg0, %c0_i32 : i32, i32
  }
}

module attributes {stable_mosaic.version = 11 : i64} {
  func.func @_fused_mm_kernel(%arg0: i32, %arg1: memref<2x128xf32, #tpu.memory_space<vmem>>, %arg2: memref<128x48xf32, #tpu.memory_space<vmem>>, %arg3: memref<1x48xf32, #tpu.memory_space<vmem>>, %arg4: memref<1x48xf32, #tpu.memory_space<vmem>>, %arg5: memref<1x48xf32, #tpu.memory_space<vmem>>, %arg6: memref<2x48xf32, #tpu.memory_space<vmem>>) attributes {dimension_semantics = [#tpu.dimension_semantics<parallel>], iteration_bounds = array<i64: 1>, scalar_prefetch = 0 : i64, scratch_operands = 0 : i64, tpu.core_type = #tpu.core_type<tc>, window_params = [{transform_indices = @transform_0, window_bounds = array<i64: 2, 128>}, {pipeline_mode = #tpu.pipeline_mode<synchronous>, transform_indices = @transform_1, window_bounds = array<i64: 128, 48>}, {pipeline_mode = #tpu.pipeline_mode<synchronous>, transform_indices = @transform_2, window_bounds = array<i64: 1, 48>}, {pipeline_mode = #tpu.pipeline_mode<synchronous>, transform_indices = @transform_3, window_bounds = array<i64: 1, 48>}, {pipeline_mode = #tpu.pipeline_mode<synchronous>, transform_indices = @transform_4, window_bounds = array<i64: 1, 48>}, {transform_indices = @transform_5, window_bounds = array<i64: 2, 48>}]} {
    %c0 = arith.constant 0 : index
    %c0_0 = arith.constant 0 : index
    %0 = vector.load %arg1[%c0, %c0_0] : memref<2x128xf32, #tpu.memory_space<vmem>>, vector<2x128xf32>
    %c0_1 = arith.constant 0 : index
    %c0_2 = arith.constant 0 : index
    %1 = vector.load %arg2[%c0_1, %c0_2] : memref<128x48xf32, #tpu.memory_space<vmem>>, vector<128x48xf32>
    %cst = arith.constant dense<0.000000e+00> : vector<2x48xf32>
    %2 = tpu.matmul %0, %1, %cst {dimension_numbers = #tpu.dot_dimension_numbers<[1], [0], [0], [1], [0, 0, 1, 1], [], []>} : vector<2x128xf32>, vector<128x48xf32>, vector<2x48xf32> -> vector<2x48xf32>
    %c0_3 = arith.constant 0 : index
    %c0_4 = arith.constant 0 : index
    %3 = vector.load %arg3[%c0_3, %c0_4] : memref<1x48xf32, #tpu.memory_space<vmem>>, vector<1x48xf32>
    %4 = vector.broadcast %3 : vector<1x48xf32> to vector<2x48xf32>
    %5 = arith.addf %2, %4 : vector<2x48xf32>
    %c0_5 = arith.constant 0 : index
    %c0_6 = arith.constant 0 : index
    %6 = vector.load %arg4[%c0_5, %c0_6] : memref<1x48xf32, #tpu.memory_space<vmem>>, vector<1x48xf32>
    %7 = vector.broadcast %6 : vector<1x48xf32> to vector<2x48xf32>
    %8 = arith.mulf %5, %7 : vector<2x48xf32>
    %c0_7 = arith.constant 0 : index
    %c0_8 = arith.constant 0 : index
    %9 = vector.load %arg5[%c0_7, %c0_8] : memref<1x48xf32, #tpu.memory_space<vmem>>, vector<1x48xf32>
    %10 = vector.broadcast %9 : vector<1x48xf32> to vector<2x48xf32>
    %11 = arith.addf %8, %10 : vector<2x48xf32>
    %c0_9 = arith.constant 0 : index
    %c0_10 = arith.constant 0 : index
    %12 = vector.load %arg6[%c0_9, %c0_10] : memref<2x48xf32, #tpu.memory_space<vmem>>, vector<2x48xf32>
    tpu.vector_store %arg6[%c0_9, %c0_10], %11 {strides = array<i32>} : memref<2x48xf32, #tpu.memory_space<vmem>>, vector<2x48xf32>,
    return
  }
  func.func @transform_0(%arg0: i32) -> (i32, i32) {
    %c0_i32 = arith.constant 0 : i32
    %c0_i32_0 = arith.constant 0 : i32
    return %arg0, %c0_i32 : i32, i32
  }
  func.func @transform_1(%arg0: i32) -> (i32, i32) {
    %c0_i32 = arith.constant 0 : i32
    %c0_i32_0 = arith.constant 0 : i32
    %c0_i32_1 = arith.constant 0 : i32
    return %c0_i32, %c0_i32_0 : i32, i32
  }
  func.func @transform_2(%arg0: i32) -> (i32, i32) {
    %c0_i32 = arith.constant 0 : i32
    %c0_i32_0 = arith.constant 0 : i32
    %c0_i32_1 = arith.constant 0 : i32
    return %c0_i32, %c0_i32_0 : i32, i32
  }
  func.func @transform_3(%arg0: i32) -> (i32, i32) {
    %c0_i32 = arith.constant 0 : i32
    %c0_i32_0 = arith.constant 0 : i32
    %c0_i32_1 = arith.constant 0 : i32
    return %c0_i32, %c0_i32_0 : i32, i32
  }
  func.func @transform_4(%arg0: i32) -> (i32, i32) {
    %c0_i32 = arith.constant 0 : i32
    %c0_i32_0 = arith.constant 0 : i32
    %c0_i32_1 = arith.constant 0 : i32
    return %c0_i32, %c0_i32_0 : i32, i32
  }
  func.func @transform_5(%arg0: i32) -> (i32, i32) {
    %c0_i32 = arith.constant 0 : i32
    %c0_i32_0 = arith.constant 0 : i32
    return %arg0, %c0_i32 : i32, i32
  }
}

module attributes {stable_mosaic.version = 11 : i64} {
  func.func @_spline_apply_kernel(%arg0: i32, %arg1: i32, %arg2: memref<1x1x56xf32, #tpu.memory_space<vmem>>, %arg3: memref<1x2x128xf32, #tpu.memory_space<vmem>>, %arg4: memref<2x1x2x128xf32, #tpu.memory_space<vmem>>) attributes {dimension_semantics = [#tpu.dimension_semantics<parallel>, #tpu.dimension_semantics<parallel>], iteration_bounds = array<i64: 6, 1>, scalar_prefetch = 0 : i64, scratch_operands = 0 : i64, tpu.core_type = #tpu.core_type<tc>, window_params = [{transform_indices = @transform_0, window_bounds = array<i64: 1, 1, 56>}, {transform_indices = @transform_1, window_bounds = array<i64: 1, 2, 128>}, {transform_indices = @transform_2, window_bounds = array<i64: 2, 1, 2, 128>}]} {
    %c0 = arith.constant 0 : index
    %c0_0 = arith.constant 0 : index
    %c0_1 = arith.constant 0 : index
    %0 = vector.load %arg3[%c0, %c0_0, %c0_1] : memref<1x2x128xf32, #tpu.memory_space<vmem>>, vector<1x2x128xf32>
    %1 = vector.shape_cast %0 : vector<1x2x128xf32> to vector<2x128xf32>
    %cst = arith.constant 7.000000e+00 : f32
    %2 = vector.broadcast %cst : f32 to vector<2x128xf32>
    %3 = arith.mulf %1, %2 : vector<2x128xf32>
    %4 = math.floor %3 : vector<2x128xf32>
    %cst_2 = arith.constant 0.000000e+00 : f32
    %cst_3 = arith.constant 6.000000e+00 : f32
    %5 = vector.broadcast %cst_2 : f32 to vector<2x128xf32>
    %6 = arith.maximumf %5, %4 : vector<2x128xf32>
    %7 = vector.broadcast %cst_3 : f32 to vector<2x128xf32>
    %8 = arith.minimumf %7, %6 : vector<2x128xf32>
    %cst_4 = arith.constant 0.142857149 : f32
    %9 = vector.broadcast %cst_4 : f32 to vector<2x128xf32>
    %10 = arith.mulf %8, %9 : vector<2x128xf32>
    %11 = arith.subf %1, %10 : vector<2x128xf32>
    %c0_5 = arith.constant 0 : index
    %c0_6 = arith.constant 0 : index
    %c0_7 = arith.constant 0 : index
    %12 = vector.load %arg2[%c0_5, %c0_6, %c0_7] : memref<1x1x56xf32, #tpu.memory_space<vmem>>, vector<1x1x56xf32>
    %cst_8 = arith.constant 1.000000e+00 : f32
    %13 = vector.broadcast %cst_8 : f32 to vector<2x128xf32>
    %14 = arith.cmpf oge, %8, %13 : vector<2x128xf32>
    %cst_9 = arith.constant 2.000000e+00 : f32
    %15 = vector.broadcast %cst_9 : f32 to vector<2x128xf32>
    %16 = arith.cmpf oge, %8, %15 : vector<2x128xf32>
    %cst_10 = arith.constant 3.000000e+00 : f32
    %17 = vector.broadcast %cst_10 : f32 to vector<2x128xf32>
    %18 = arith.cmpf oge, %8, %17 : vector<2x128xf32>
    %cst_11 = arith.constant 4.000000e+00 : f32
    %19 = vector.broadcast %cst_11 : f32 to vector<2x128xf32>
    %20 = arith.cmpf oge, %8, %19 : vector<2x128xf32>
    %cst_12 = arith.constant 5.000000e+00 : f32
    %21 = vector.broadcast %cst_12 : f32 to vector<2x128xf32>
    %22 = arith.cmpf oge, %8, %21 : vector<2x128xf32>
    %cst_13 = arith.constant 6.000000e+00 : f32
    %23 = vector.broadcast %cst_13 : f32 to vector<2x128xf32>
    %24 = arith.cmpf oge, %8, %23 : vector<2x128xf32>
    %25 = vector.extract_strided_slice %12 {offsets = [0, 0, 0], sizes = [1, 1, 1], strides = [1, 1, 1]} : vector<1x1x56xf32> to vector<1x1x1xf32>
    %26 = vector.extract %25[0, 0, 0] : f32 from vector<1x1x1xf32>
    %27 = vector.broadcast %26 : f32 to vector<2x128xf32>
    %28 = vector.extract_strided_slice %12 {offsets = [0, 0, 1], sizes = [1, 1, 1], strides = [1, 1, 1]} : vector<1x1x56xf32> to vector<1x1x1xf32>
    %29 = vector.extract %28[0, 0, 0] : f32 from vector<1x1x1xf32>
    %cst_14 = arith.constant 0.000000e+00 : f32
    %30 = vector.broadcast %29 : f32 to vector<2x128xf32>
    %31 = vector.broadcast %cst_14 : f32 to vector<2x128xf32>
    %32 = arith.select %14, %30, %31 : vector<2x128xi1>, vector<2x128xf32>
    %33 = arith.addf %27, %32 : vector<2x128xf32>
    %34 = vector.extract_strided_slice %12 {offsets = [0, 0, 2], sizes = [1, 1, 1], strides = [1, 1, 1]} : vector<1x1x56xf32> to vector<1x1x1xf32>
    %35 = vector.extract %34[0, 0, 0] : f32 from vector<1x1x1xf32>
    %cst_15 = arith.constant 0.000000e+00 : f32
    %36 = vector.broadcast %35 : f32 to vector<2x128xf32>
    %37 = vector.broadcast %cst_15 : f32 to vector<2x128xf32>
    %38 = arith.select %16, %36, %37 : vector<2x128xi1>, vector<2x128xf32>
    %39 = arith.addf %33, %38 : vector<2x128xf32>
    %40 = vector.extract_strided_slice %12 {offsets = [0, 0, 3], sizes = [1, 1, 1], strides = [1, 1, 1]} : vector<1x1x56xf32> to vector<1x1x1xf32>
    %41 = vector.extract %40[0, 0, 0] : f32 from vector<1x1x1xf32>
    %cst_16 = arith.constant 0.000000e+00 : f32
    %42 = vector.broadcast %41 : f32 to vector<2x128xf32>
    %43 = vector.broadcast %cst_16 : f32 to vector<2x128xf32>
    %44 = arith.select %18, %42, %43 : vector<2x128xi1>, vector<2x128xf32>
    %45 = arith.addf %39, %44 : vector<2x128xf32>
    %46 = vector.extract_strided_slice %12 {offsets = [0, 0, 4], sizes = [1, 1, 1], strides = [1, 1, 1]} : vector<1x1x56xf32> to vector<1x1x1xf32>
    %47 = vector.extract %46[0, 0, 0] : f32 from vector<1x1x1xf32>
    %cst_17 = arith.constant 0.000000e+00 : f32
    %48 = vector.broadcast %47 : f32 to vector<2x128xf32>
    %49 = vector.broadcast %cst_17 : f32 to vector<2x128xf32>
    %50 = arith.select %20, %48, %49 : vector<2x128xi1>, vector<2x128xf32>
    %51 = arith.addf %45, %50 : vector<2x128xf32>
    %52 = vector.extract_strided_slice %12 {offsets = [0, 0, 5], sizes = [1, 1, 1], strides = [1, 1, 1]} : vector<1x1x56xf32> to vector<1x1x1xf32>
    %53 = vector.extract %52[0, 0, 0] : f32 from vector<1x1x1xf32>
    %cst_18 = arith.constant 0.000000e+00 : f32
    %54 = vector.broadcast %53 : f32 to vector<2x128xf32>
    %55 = vector.broadcast %cst_18 : f32 to vector<2x128xf32>
    %56 = arith.select %22, %54, %55 : vector<2x128xi1>, vector<2x128xf32>
    %57 = arith.addf %51, %56 : vector<2x128xf32>
    %58 = vector.extract_strided_slice %12 {offsets = [0, 0, 6], sizes = [1, 1, 1], strides = [1, 1, 1]} : vector<1x1x56xf32> to vector<1x1x1xf32>
    %59 = vector.extract %58[0, 0, 0] : f32 from vector<1x1x1xf32>
    %cst_19 = arith.constant 0.000000e+00 : f32
    %60 = vector.broadcast %59 : f32 to vector<2x128xf32>
    %61 = vector.broadcast %cst_19 : f32 to vector<2x128xf32>
    %62 = arith.select %24, %60, %61 : vector<2x128xi1>, vector<2x128xf32>
    %63 = arith.addf %57, %62 : vector<2x128xf32>
    %64 = vector.extract_strided_slice %12 {offsets = [0, 0, 7], sizes = [1, 1, 1], strides = [1, 1, 1]} : vector<1x1x56xf32> to vector<1x1x1xf32>
    %65 = vector.extract %64[0, 0, 0] : f32 from vector<1x1x1xf32>
    %66 = vector.broadcast %65 : f32 to vector<2x128xf32>
    %67 = vector.extract_strided_slice %12 {offsets = [0, 0, 8], sizes = [1, 1, 1], strides = [1, 1, 1]} : vector<1x1x56xf32> to vector<1x1x1xf32>
    %68 = vector.extract %67[0, 0, 0] : f32 from vector<1x1x1xf32>
    %cst_20 = arith.constant 0.000000e+00 : f32
    %69 = vector.broadcast %68 : f32 to vector<2x128xf32>
    %70 = vector.broadcast %cst_20 : f32 to vector<2x128xf32>
    %71 = arith.select %14, %69, %70 : vector<2x128xi1>, vector<2x128xf32>
    %72 = arith.addf %66, %71 : vector<2x128xf32>
    %73 = vector.extract_strided_slice %12 {offsets = [0, 0, 9], sizes = [1, 1, 1], strides = [1, 1, 1]} : vector<1x1x56xf32> to vector<1x1x1xf32>
    %74 = vector.extract %73[0, 0, 0] : f32 from vector<1x1x1xf32>
    %cst_21 = arith.constant 0.000000e+00 : f32
    %75 = vector.broadcast %74 : f32 to vector<2x128xf32>
    %76 = vector.broadcast %cst_21 : f32 to vector<2x128xf32>
    %77 = arith.select %16, %75, %76 : vector<2x128xi1>, vector<2x128xf32>
    %78 = arith.addf %72, %77 : vector<2x128xf32>
    %79 = vector.extract_strided_slice %12 {offsets = [0, 0, 10], sizes = [1, 1, 1], strides = [1, 1, 1]} : vector<1x1x56xf32> to vector<1x1x1xf32>
    %80 = vector.extract %79[0, 0, 0] : f32 from vector<1x1x1xf32>
    %cst_22 = arith.constant 0.000000e+00 : f32
    %81 = vector.broadcast %80 : f32 to vector<2x128xf32>
    %82 = vector.broadcast %cst_22 : f32 to vector<2x128xf32>
    %83 = arith.select %18, %81, %82 : vector<2x128xi1>, vector<2x128xf32>
    %84 = arith.addf %78, %83 : vector<2x128xf32>
    %85 = vector.extract_strided_slice %12 {offsets = [0, 0, 11], sizes = [1, 1, 1], strides = [1, 1, 1]} : vector<1x1x56xf32> to vector<1x1x1xf32>
    %86 = vector.extract %85[0, 0, 0] : f32 from vector<1x1x1xf32>
    %cst_23 = arith.constant 0.000000e+00 : f32
    %87 = vector.broadcast %86 : f32 to vector<2x128xf32>
    %88 = vector.broadcast %cst_23 : f32 to vector<2x128xf32>
    %89 = arith.select %20, %87, %88 : vector<2x128xi1>, vector<2x128xf32>
    %90 = arith.addf %84, %89 : vector<2x128xf32>
    %91 = vector.extract_strided_slice %12 {offsets = [0, 0, 12], sizes = [1, 1, 1], strides = [1, 1, 1]} : vector<1x1x56xf32> to vector<1x1x1xf32>
    %92 = vector.extract %91[0, 0, 0] : f32 from vector<1x1x1xf32>
    %cst_24 = arith.constant 0.000000e+00 : f32
    %93 = vector.broadcast %92 : f32 to vector<2x128xf32>
    %94 = vector.broadcast %cst_24 : f32 to vector<2x128xf32>
    %95 = arith.select %22, %93, %94 : vector<2x128xi1>, vector<2x128xf32>
    %96 = arith.addf %90, %95 : vector<2x128xf32>
    %97 = vector.extract_strided_slice %12 {offsets = [0, 0, 13], sizes = [1, 1, 1], strides = [1, 1, 1]} : vector<1x1x56xf32> to vector<1x1x1xf32>
    %98 = vector.extract %97[0, 0, 0] : f32 from vector<1x1x1xf32>
    %cst_25 = arith.constant 0.000000e+00 : f32
    %99 = vector.broadcast %98 : f32 to vector<2x128xf32>
    %100 = vector.broadcast %cst_25 : f32 to vector<2x128xf32>
    %101 = arith.select %24, %99, %100 : vector<2x128xi1>, vector<2x128xf32>
    %102 = arith.addf %96, %101 : vector<2x128xf32>
    %103 = vector.extract_strided_slice %12 {offsets = [0, 0, 14], sizes = [1, 1, 1], strides = [1, 1, 1]} : vector<1x1x56xf32> to vector<1x1x1xf32>
    %104 = vector.extract %103[0, 0, 0] : f32 from vector<1x1x1xf32>
    %105 = vector.broadcast %104 : f32 to vector<2x128xf32>
    %106 = vector.extract_strided_slice %12 {offsets = [0, 0, 15], sizes = [1, 1, 1], strides = [1, 1, 1]} : vector<1x1x56xf32> to vector<1x1x1xf32>
    %107 = vector.extract %106[0, 0, 0] : f32 from vector<1x1x1xf32>
    %cst_26 = arith.constant 0.000000e+00 : f32
    %108 = vector.broadcast %107 : f32 to vector<2x128xf32>
    %109 = vector.broadcast %cst_26 : f32 to vector<2x128xf32>
    %110 = arith.select %14, %108, %109 : vector<2x128xi1>, vector<2x128xf32>
    %111 = arith.addf %105, %110 : vector<2x128xf32>
    %112 = vector.extract_strided_slice %12 {offsets = [0, 0, 16], sizes = [1, 1, 1], strides = [1, 1, 1]} : vector<1x1x56xf32> to vector<1x1x1xf32>
    %113 = vector.extract %112[0, 0, 0] : f32 from vector<1x1x1xf32>
    %cst_27 = arith.constant 0.000000e+00 : f32
    %114 = vector.broadcast %113 : f32 to vector<2x128xf32>
    %115 = vector.broadcast %cst_27 : f32 to vector<2x128xf32>
    %116 = arith.select %16, %114, %115 : vector<2x128xi1>, vector<2x128xf32>
    %117 = arith.addf %111, %116 : vector<2x128xf32>
    %118 = vector.extract_strided_slice %12 {offsets = [0, 0, 17], sizes = [1, 1, 1], strides = [1, 1, 1]} : vector<1x1x56xf32> to vector<1x1x1xf32>
    %119 = vector.extract %118[0, 0, 0] : f32 from vector<1x1x1xf32>
    %cst_28 = arith.constant 0.000000e+00 : f32
    %120 = vector.broadcast %119 : f32 to vector<2x128xf32>
    %121 = vector.broadcast %cst_28 : f32 to vector<2x128xf32>
    %122 = arith.select %18, %120, %121 : vector<2x128xi1>, vector<2x128xf32>
    %123 = arith.addf %117, %122 : vector<2x128xf32>
    %124 = vector.extract_strided_slice %12 {offsets = [0, 0, 18], sizes = [1, 1, 1], strides = [1, 1, 1]} : vector<1x1x56xf32> to vector<1x1x1xf32>
    %125 = vector.extract %124[0, 0, 0] : f32 from vector<1x1x1xf32>
    %cst_29 = arith.constant 0.000000e+00 : f32
    %126 = vector.broadcast %125 : f32 to vector<2x128xf32>
    %127 = vector.broadcast %cst_29 : f32 to vector<2x128xf32>
    %128 = arith.select %20, %126, %127 : vector<2x128xi1>, vector<2x128xf32>
    %129 = arith.addf %123, %128 : vector<2x128xf32>
    %130 = vector.extract_strided_slice %12 {offsets = [0, 0, 19], sizes = [1, 1, 1], strides = [1, 1, 1]} : vector<1x1x56xf32> to vector<1x1x1xf32>
    %131 = vector.extract %130[0, 0, 0] : f32 from vector<1x1x1xf32>
    %cst_30 = arith.constant 0.000000e+00 : f32
    %132 = vector.broadcast %131 : f32 to vector<2x128xf32>
    %133 = vector.broadcast %cst_30 : f32 to vector<2x128xf32>
    %134 = arith.select %22, %132, %133 : vector<2x128xi1>, vector<2x128xf32>
    %135 = arith.addf %129, %134 : vector<2x128xf32>
    %136 = vector.extract_strided_slice %12 {offsets = [0, 0, 20], sizes = [1, 1, 1], strides = [1, 1, 1]} : vector<1x1x56xf32> to vector<1x1x1xf32>
    %137 = vector.extract %136[0, 0, 0] : f32 from vector<1x1x1xf32>
    %cst_31 = arith.constant 0.000000e+00 : f32
    %138 = vector.broadcast %137 : f32 to vector<2x128xf32>
    %139 = vector.broadcast %cst_31 : f32 to vector<2x128xf32>
    %140 = arith.select %24, %138, %139 : vector<2x128xi1>, vector<2x128xf32>
    %141 = arith.addf %135, %140 : vector<2x128xf32>
    %142 = vector.extract_strided_slice %12 {offsets = [0, 0, 21], sizes = [1, 1, 1], strides = [1, 1, 1]} : vector<1x1x56xf32> to vector<1x1x1xf32>
    %143 = vector.extract %142[0, 0, 0] : f32 from vector<1x1x1xf32>
    %144 = vector.broadcast %143 : f32 to vector<2x128xf32>
    %145 = vector.extract_strided_slice %12 {offsets = [0, 0, 22], sizes = [1, 1, 1], strides = [1, 1, 1]} : vector<1x1x56xf32> to vector<1x1x1xf32>
    %146 = vector.extract %145[0, 0, 0] : f32 from vector<1x1x1xf32>
    %cst_32 = arith.constant 0.000000e+00 : f32
    %147 = vector.broadcast %146 : f32 to vector<2x128xf32>
    %148 = vector.broadcast %cst_32 : f32 to vector<2x128xf32>
    %149 = arith.select %14, %147, %148 : vector<2x128xi1>, vector<2x128xf32>
    %150 = arith.addf %144, %149 : vector<2x128xf32>
    %151 = vector.extract_strided_slice %12 {offsets = [0, 0, 23], sizes = [1, 1, 1], strides = [1, 1, 1]} : vector<1x1x56xf32> to vector<1x1x1xf32>
    %152 = vector.extract %151[0, 0, 0] : f32 from vector<1x1x1xf32>
    %cst_33 = arith.constant 0.000000e+00 : f32
    %153 = vector.broadcast %152 : f32 to vector<2x128xf32>
    %154 = vector.broadcast %cst_33 : f32 to vector<2x128xf32>
    %155 = arith.select %16, %153, %154 : vector<2x128xi1>, vector<2x128xf32>
    %156 = arith.addf %150, %155 : vector<2x128xf32>
    %157 = vector.extract_strided_slice %12 {offsets = [0, 0, 24], sizes = [1, 1, 1], strides = [1, 1, 1]} : vector<1x1x56xf32> to vector<1x1x1xf32>
    %158 = vector.extract %157[0, 0, 0] : f32 from vector<1x1x1xf32>
    %cst_34 = arith.constant 0.000000e+00 : f32
    %159 = vector.broadcast %158 : f32 to vector<2x128xf32>
    %160 = vector.broadcast %cst_34 : f32 to vector<2x128xf32>
    %161 = arith.select %18, %159, %160 : vector<2x128xi1>, vector<2x128xf32>
    %162 = arith.addf %156, %161 : vector<2x128xf32>
    %163 = vector.extract_strided_slice %12 {offsets = [0, 0, 25], sizes = [1, 1, 1], strides = [1, 1, 1]} : vector<1x1x56xf32> to vector<1x1x1xf32>
    %164 = vector.extract %163[0, 0, 0] : f32 from vector<1x1x1xf32>
    %cst_35 = arith.constant 0.000000e+00 : f32
    %165 = vector.broadcast %164 : f32 to vector<2x128xf32>
    %166 = vector.broadcast %cst_35 : f32 to vector<2x128xf32>
    %167 = arith.select %20, %165, %166 : vector<2x128xi1>, vector<2x128xf32>
    %168 = arith.addf %162, %167 : vector<2x128xf32>
    %169 = vector.extract_strided_slice %12 {offsets = [0, 0, 26], sizes = [1, 1, 1], strides = [1, 1, 1]} : vector<1x1x56xf32> to vector<1x1x1xf32>
    %170 = vector.extract %169[0, 0, 0] : f32 from vector<1x1x1xf32>
    %cst_36 = arith.constant 0.000000e+00 : f32
    %171 = vector.broadcast %170 : f32 to vector<2x128xf32>
    %172 = vector.broadcast %cst_36 : f32 to vector<2x128xf32>
    %173 = arith.select %22, %171, %172 : vector<2x128xi1>, vector<2x128xf32>
    %174 = arith.addf %168, %173 : vector<2x128xf32>
    %175 = vector.extract_strided_slice %12 {offsets = [0, 0, 27], sizes = [1, 1, 1], strides = [1, 1, 1]} : vector<1x1x56xf32> to vector<1x1x1xf32>
    %176 = vector.extract %175[0, 0, 0] : f32 from vector<1x1x1xf32>
    %cst_37 = arith.constant 0.000000e+00 : f32
    %177 = vector.broadcast %176 : f32 to vector<2x128xf32>
    %178 = vector.broadcast %cst_37 : f32 to vector<2x128xf32>
    %179 = arith.select %24, %177, %178 : vector<2x128xi1>, vector<2x128xf32>
    %180 = arith.addf %174, %179 : vector<2x128xf32>
    %181 = arith.mulf %63, %11 : vector<2x128xf32>
    %182 = arith.addf %181, %102 : vector<2x128xf32>
    %183 = arith.mulf %182, %11 : vector<2x128xf32>
    %184 = arith.addf %183, %141 : vector<2x128xf32>
    %185 = arith.mulf %184, %11 : vector<2x128xf32>
    %186 = arith.addf %185, %180 : vector<2x128xf32>
    %cst_38 = arith.constant 0.000000e+00 : f32
    %cst_39 = arith.constant 1.000000e+00 : f32
    %187 = vector.broadcast %cst_38 : f32 to vector<2x128xf32>
    %188 = arith.maximumf %187, %186 : vector<2x128xf32>
    %189 = vector.broadcast %cst_39 : f32 to vector<2x128xf32>
    %190 = arith.minimumf %189, %188 : vector<2x128xf32>
    %c0_40 = arith.constant 0 : index
    %c0_41 = arith.constant 0 : index
    %c0_42 = arith.constant 0 : index
    %c0_43 = arith.constant 0 : index
    %191 = vector.load %arg4[%c0_40, %c0_41, %c0_42, %c0_43] : memref<2x1x2x128xf32, #tpu.memory_space<vmem>>, vector<1x1x2x128xf32>
    %192 = vector.shape_cast %191 : vector<1x1x2x128xf32> to vector<2x128xf32>
    %193 = vector.shape_cast %190 : vector<2x128xf32> to vector<1x1x2x128xf32>
    tpu.vector_store %arg4[%c0_40, %c0_41, %c0_42, %c0_43], %193 {strides = array<i32>} : memref<2x1x2x128xf32, #tpu.memory_space<vmem>>, vector<1x1x2x128xf32>,
    %194 = vector.extract_strided_slice %12 {offsets = [0, 0, 28], sizes = [1, 1, 1], strides = [1, 1, 1]} : vector<1x1x56xf32> to vector<1x1x1xf32>
    %195 = vector.extract %194[0, 0, 0] : f32 from vector<1x1x1xf32>
    %196 = vector.broadcast %195 : f32 to vector<2x128xf32>
    %197 = vector.extract_strided_slice %12 {offsets = [0, 0, 29], sizes = [1, 1, 1], strides = [1, 1, 1]} : vector<1x1x56xf32> to vector<1x1x1xf32>
    %198 = vector.extract %197[0, 0, 0] : f32 from vector<1x1x1xf32>
    %cst_44 = arith.constant 0.000000e+00 : f32
    %199 = vector.broadcast %198 : f32 to vector<2x128xf32>
    %200 = vector.broadcast %cst_44 : f32 to vector<2x128xf32>
    %201 = arith.select %14, %199, %200 : vector<2x128xi1>, vector<2x128xf32>
    %202 = arith.addf %196, %201 : vector<2x128xf32>
    %203 = vector.extract_strided_slice %12 {offsets = [0, 0, 30], sizes = [1, 1, 1], strides = [1, 1, 1]} : vector<1x1x56xf32> to vector<1x1x1xf32>
    %204 = vector.extract %203[0, 0, 0] : f32 from vector<1x1x1xf32>
    %cst_45 = arith.constant 0.000000e+00 : f32
    %205 = vector.broadcast %204 : f32 to vector<2x128xf32>
    %206 = vector.broadcast %cst_45 : f32 to vector<2x128xf32>
    %207 = arith.select %16, %205, %206 : vector<2x128xi1>, vector<2x128xf32>
    %208 = arith.addf %202, %207 : vector<2x128xf32>
    %209 = vector.extract_strided_slice %12 {offsets = [0, 0, 31], sizes = [1, 1, 1], strides = [1, 1, 1]} : vector<1x1x56xf32> to vector<1x1x1xf32>
    %210 = vector.extract %209[0, 0, 0] : f32 from vector<1x1x1xf32>
    %cst_46 = arith.constant 0.000000e+00 : f32
    %211 = vector.broadcast %210 : f32 to vector<2x128xf32>
    %212 = vector.broadcast %cst_46 : f32 to vector<2x128xf32>
    %213 = arith.select %18, %211, %212 : vector<2x128xi1>, vector<2x128xf32>
    %214 = arith.addf %208, %213 : vector<2x128xf32>
    %215 = vector.extract_strided_slice %12 {offsets = [0, 0, 32], sizes = [1, 1, 1], strides = [1, 1, 1]} : vector<1x1x56xf32> to vector<1x1x1xf32>
    %216 = vector.extract %215[0, 0, 0] : f32 from vector<1x1x1xf32>
    %cst_47 = arith.constant 0.000000e+00 : f32
    %217 = vector.broadcast %216 : f32 to vector<2x128xf32>
    %218 = vector.broadcast %cst_47 : f32 to vector<2x128xf32>
    %219 = arith.select %20, %217, %218 : vector<2x128xi1>, vector<2x128xf32>
    %220 = arith.addf %214, %219 : vector<2x128xf32>
    %221 = vector.extract_strided_slice %12 {offsets = [0, 0, 33], sizes = [1, 1, 1], strides = [1, 1, 1]} : vector<1x1x56xf32> to vector<1x1x1xf32>
    %222 = vector.extract %221[0, 0, 0] : f32 from vector<1x1x1xf32>
    %cst_48 = arith.constant 0.000000e+00 : f32
    %223 = vector.broadcast %222 : f32 to vector<2x128xf32>
    %224 = vector.broadcast %cst_48 : f32 to vector<2x128xf32>
    %225 = arith.select %22, %223, %224 : vector<2x128xi1>, vector<2x128xf32>
    %226 = arith.addf %220, %225 : vector<2x128xf32>
    %227 = vector.extract_strided_slice %12 {offsets = [0, 0, 34], sizes = [1, 1, 1], strides = [1, 1, 1]} : vector<1x1x56xf32> to vector<1x1x1xf32>
    %228 = vector.extract %227[0, 0, 0] : f32 from vector<1x1x1xf32>
    %cst_49 = arith.constant 0.000000e+00 : f32
    %229 = vector.broadcast %228 : f32 to vector<2x128xf32>
    %230 = vector.broadcast %cst_49 : f32 to vector<2x128xf32>
    %231 = arith.select %24, %229, %230 : vector<2x128xi1>, vector<2x128xf32>
    %232 = arith.addf %226, %231 : vector<2x128xf32>
    %233 = vector.extract_strided_slice %12 {offsets = [0, 0, 35], sizes = [1, 1, 1], strides = [1, 1, 1]} : vector<1x1x56xf32> to vector<1x1x1xf32>
    %234 = vector.extract %233[0, 0, 0] : f32 from vector<1x1x1xf32>
    %235 = vector.broadcast %234 : f32 to vector<2x128xf32>
    %236 = vector.extract_strided_slice %12 {offsets = [0, 0, 36], sizes = [1, 1, 1], strides = [1, 1, 1]} : vector<1x1x56xf32> to vector<1x1x1xf32>
    %237 = vector.extract %236[0, 0, 0] : f32 from vector<1x1x1xf32>
    %cst_50 = arith.constant 0.000000e+00 : f32
    %238 = vector.broadcast %237 : f32 to vector<2x128xf32>
    %239 = vector.broadcast %cst_50 : f32 to vector<2x128xf32>
    %240 = arith.select %14, %238, %239 : vector<2x128xi1>, vector<2x128xf32>
    %241 = arith.addf %235, %240 : vector<2x128xf32>
    %242 = vector.extract_strided_slice %12 {offsets = [0, 0, 37], sizes = [1, 1, 1], strides = [1, 1, 1]} : vector<1x1x56xf32> to vector<1x1x1xf32>
    %243 = vector.extract %242[0, 0, 0] : f32 from vector<1x1x1xf32>
    %cst_51 = arith.constant 0.000000e+00 : f32
    %244 = vector.broadcast %243 : f32 to vector<2x128xf32>
    %245 = vector.broadcast %cst_51 : f32 to vector<2x128xf32>
    %246 = arith.select %16, %244, %245 : vector<2x128xi1>, vector<2x128xf32>
    %247 = arith.addf %241, %246 : vector<2x128xf32>
    %248 = vector.extract_strided_slice %12 {offsets = [0, 0, 38], sizes = [1, 1, 1], strides = [1, 1, 1]} : vector<1x1x56xf32> to vector<1x1x1xf32>
    %249 = vector.extract %248[0, 0, 0] : f32 from vector<1x1x1xf32>
    %cst_52 = arith.constant 0.000000e+00 : f32
    %250 = vector.broadcast %249 : f32 to vector<2x128xf32>
    %251 = vector.broadcast %cst_52 : f32 to vector<2x128xf32>
    %252 = arith.select %18, %250, %251 : vector<2x128xi1>, vector<2x128xf32>
    %253 = arith.addf %247, %252 : vector<2x128xf32>
    %254 = vector.extract_strided_slice %12 {offsets = [0, 0, 39], sizes = [1, 1, 1], strides = [1, 1, 1]} : vector<1x1x56xf32> to vector<1x1x1xf32>
    %255 = vector.extract %254[0, 0, 0] : f32 from vector<1x1x1xf32>
    %cst_53 = arith.constant 0.000000e+00 : f32
    %256 = vector.broadcast %255 : f32 to vector<2x128xf32>
    %257 = vector.broadcast %cst_53 : f32 to vector<2x128xf32>
    %258 = arith.select %20, %256, %257 : vector<2x128xi1>, vector<2x128xf32>
    %259 = arith.addf %253, %258 : vector<2x128xf32>
    %260 = vector.extract_strided_slice %12 {offsets = [0, 0, 40], sizes = [1, 1, 1], strides = [1, 1, 1]} : vector<1x1x56xf32> to vector<1x1x1xf32>
    %261 = vector.extract %260[0, 0, 0] : f32 from vector<1x1x1xf32>
    %cst_54 = arith.constant 0.000000e+00 : f32
    %262 = vector.broadcast %261 : f32 to vector<2x128xf32>
    %263 = vector.broadcast %cst_54 : f32 to vector<2x128xf32>
    %264 = arith.select %22, %262, %263 : vector<2x128xi1>, vector<2x128xf32>
    %265 = arith.addf %259, %264 : vector<2x128xf32>
    %266 = vector.extract_strided_slice %12 {offsets = [0, 0, 41], sizes = [1, 1, 1], strides = [1, 1, 1]} : vector<1x1x56xf32> to vector<1x1x1xf32>
    %267 = vector.extract %266[0, 0, 0] : f32 from vector<1x1x1xf32>
    %cst_55 = arith.constant 0.000000e+00 : f32
    %268 = vector.broadcast %267 : f32 to vector<2x128xf32>
    %269 = vector.broadcast %cst_55 : f32 to vector<2x128xf32>
    %270 = arith.select %24, %268, %269 : vector<2x128xi1>, vector<2x128xf32>
    %271 = arith.addf %265, %270 : vector<2x128xf32>
    %272 = vector.extract_strided_slice %12 {offsets = [0, 0, 42], sizes = [1, 1, 1], strides = [1, 1, 1]} : vector<1x1x56xf32> to vector<1x1x1xf32>
    %273 = vector.extract %272[0, 0, 0] : f32 from vector<1x1x1xf32>
    %274 = vector.broadcast %273 : f32 to vector<2x128xf32>
    %275 = vector.extract_strided_slice %12 {offsets = [0, 0, 43], sizes = [1, 1, 1], strides = [1, 1, 1]} : vector<1x1x56xf32> to vector<1x1x1xf32>
    %276 = vector.extract %275[0, 0, 0] : f32 from vector<1x1x1xf32>
    %cst_56 = arith.constant 0.000000e+00 : f32
    %277 = vector.broadcast %276 : f32 to vector<2x128xf32>
    %278 = vector.broadcast %cst_56 : f32 to vector<2x128xf32>
    %279 = arith.select %14, %277, %278 : vector<2x128xi1>, vector<2x128xf32>
    %280 = arith.addf %274, %279 : vector<2x128xf32>
    %281 = vector.extract_strided_slice %12 {offsets = [0, 0, 44], sizes = [1, 1, 1], strides = [1, 1, 1]} : vector<1x1x56xf32> to vector<1x1x1xf32>
    %282 = vector.extract %281[0, 0, 0] : f32 from vector<1x1x1xf32>
    %cst_57 = arith.constant 0.000000e+00 : f32
    %283 = vector.broadcast %282 : f32 to vector<2x128xf32>
    %284 = vector.broadcast %cst_57 : f32 to vector<2x128xf32>
    %285 = arith.select %16, %283, %284 : vector<2x128xi1>, vector<2x128xf32>
    %286 = arith.addf %280, %285 : vector<2x128xf32>
    %287 = vector.extract_strided_slice %12 {offsets = [0, 0, 45], sizes = [1, 1, 1], strides = [1, 1, 1]} : vector<1x1x56xf32> to vector<1x1x1xf32>
    %288 = vector.extract %287[0, 0, 0] : f32 from vector<1x1x1xf32>
    %cst_58 = arith.constant 0.000000e+00 : f32
    %289 = vector.broadcast %288 : f32 to vector<2x128xf32>
    %290 = vector.broadcast %cst_58 : f32 to vector<2x128xf32>
    %291 = arith.select %18, %289, %290 : vector<2x128xi1>, vector<2x128xf32>
    %292 = arith.addf %286, %291 : vector<2x128xf32>
    %293 = vector.extract_strided_slice %12 {offsets = [0, 0, 46], sizes = [1, 1, 1], strides = [1, 1, 1]} : vector<1x1x56xf32> to vector<1x1x1xf32>
    %294 = vector.extract %293[0, 0, 0] : f32 from vector<1x1x1xf32>
    %cst_59 = arith.constant 0.000000e+00 : f32
    %295 = vector.broadcast %294 : f32 to vector<2x128xf32>
    %296 = vector.broadcast %cst_59 : f32 to vector<2x128xf32>
    %297 = arith.select %20, %295, %296 : vector<2x128xi1>, vector<2x128xf32>
    %298 = arith.addf %292, %297 : vector<2x128xf32>
    %299 = vector.extract_strided_slice %12 {offsets = [0, 0, 47], sizes = [1, 1, 1], strides = [1, 1, 1]} : vector<1x1x56xf32> to vector<1x1x1xf32>
    %300 = vector.extract %299[0, 0, 0] : f32 from vector<1x1x1xf32>
    %cst_60 = arith.constant 0.000000e+00 : f32
    %301 = vector.broadcast %300 : f32 to vector<2x128xf32>
    %302 = vector.broadcast %cst_60 : f32 to vector<2x128xf32>
    %303 = arith.select %22, %301, %302 : vector<2x128xi1>, vector<2x128xf32>
    %304 = arith.addf %298, %303 : vector<2x128xf32>
    %305 = vector.extract_strided_slice %12 {offsets = [0, 0, 48], sizes = [1, 1, 1], strides = [1, 1, 1]} : vector<1x1x56xf32> to vector<1x1x1xf32>
    %306 = vector.extract %305[0, 0, 0] : f32 from vector<1x1x1xf32>
    %cst_61 = arith.constant 0.000000e+00 : f32
    %307 = vector.broadcast %306 : f32 to vector<2x128xf32>
    %308 = vector.broadcast %cst_61 : f32 to vector<2x128xf32>
    %309 = arith.select %24, %307, %308 : vector<2x128xi1>, vector<2x128xf32>
    %310 = arith.addf %304, %309 : vector<2x128xf32>
    %311 = vector.extract_strided_slice %12 {offsets = [0, 0, 49], sizes = [1, 1, 1], strides = [1, 1, 1]} : vector<1x1x56xf32> to vector<1x1x1xf32>
    %312 = vector.extract %311[0, 0, 0] : f32 from vector<1x1x1xf32>
    %313 = vector.broadcast %312 : f32 to vector<2x128xf32>
    %314 = vector.extract_strided_slice %12 {offsets = [0, 0, 50], sizes = [1, 1, 1], strides = [1, 1, 1]} : vector<1x1x56xf32> to vector<1x1x1xf32>
    %315 = vector.extract %314[0, 0, 0] : f32 from vector<1x1x1xf32>
    %cst_62 = arith.constant 0.000000e+00 : f32
    %316 = vector.broadcast %315 : f32 to vector<2x128xf32>
    %317 = vector.broadcast %cst_62 : f32 to vector<2x128xf32>
    %318 = arith.select %14, %316, %317 : vector<2x128xi1>, vector<2x128xf32>
    %319 = arith.addf %313, %318 : vector<2x128xf32>
    %320 = vector.extract_strided_slice %12 {offsets = [0, 0, 51], sizes = [1, 1, 1], strides = [1, 1, 1]} : vector<1x1x56xf32> to vector<1x1x1xf32>
    %321 = vector.extract %320[0, 0, 0] : f32 from vector<1x1x1xf32>
    %cst_63 = arith.constant 0.000000e+00 : f32
    %322 = vector.broadcast %321 : f32 to vector<2x128xf32>
    %323 = vector.broadcast %cst_63 : f32 to vector<2x128xf32>
    %324 = arith.select %16, %322, %323 : vector<2x128xi1>, vector<2x128xf32>
    %325 = arith.addf %319, %324 : vector<2x128xf32>
    %326 = vector.extract_strided_slice %12 {offsets = [0, 0, 52], sizes = [1, 1, 1], strides = [1, 1, 1]} : vector<1x1x56xf32> to vector<1x1x1xf32>
    %327 = vector.extract %326[0, 0, 0] : f32 from vector<1x1x1xf32>
    %cst_64 = arith.constant 0.000000e+00 : f32
    %328 = vector.broadcast %327 : f32 to vector<2x128xf32>
    %329 = vector.broadcast %cst_64 : f32 to vector<2x128xf32>
    %330 = arith.select %18, %328, %329 : vector<2x128xi1>, vector<2x128xf32>
    %331 = arith.addf %325, %330 : vector<2x128xf32>
    %332 = vector.extract_strided_slice %12 {offsets = [0, 0, 53], sizes = [1, 1, 1], strides = [1, 1, 1]} : vector<1x1x56xf32> to vector<1x1x1xf32>
    %333 = vector.extract %332[0, 0, 0] : f32 from vector<1x1x1xf32>
    %cst_65 = arith.constant 0.000000e+00 : f32
    %334 = vector.broadcast %333 : f32 to vector<2x128xf32>
    %335 = vector.broadcast %cst_65 : f32 to vector<2x128xf32>
    %336 = arith.select %20, %334, %335 : vector<2x128xi1>, vector<2x128xf32>
    %337 = arith.addf %331, %336 : vector<2x128xf32>
    %338 = vector.extract_strided_slice %12 {offsets = [0, 0, 54], sizes = [1, 1, 1], strides = [1, 1, 1]} : vector<1x1x56xf32> to vector<1x1x1xf32>
    %339 = vector.extract %338[0, 0, 0] : f32 from vector<1x1x1xf32>
    %cst_66 = arith.constant 0.000000e+00 : f32
    %340 = vector.broadcast %339 : f32 to vector<2x128xf32>
    %341 = vector.broadcast %cst_66 : f32 to vector<2x128xf32>
    %342 = arith.select %22, %340, %341 : vector<2x128xi1>, vector<2x128xf32>
    %343 = arith.addf %337, %342 : vector<2x128xf32>
    %344 = vector.extract_strided_slice %12 {offsets = [0, 0, 55], sizes = [1, 1, 1], strides = [1, 1, 1]} : vector<1x1x56xf32> to vector<1x1x1xf32>
    %345 = vector.extract %344[0, 0, 0] : f32 from vector<1x1x1xf32>
    %cst_67 = arith.constant 0.000000e+00 : f32
    %346 = vector.broadcast %345 : f32 to vector<2x128xf32>
    %347 = vector.broadcast %cst_67 : f32 to vector<2x128xf32>
    %348 = arith.select %24, %346, %347 : vector<2x128xi1>, vector<2x128xf32>
    %349 = arith.addf %343, %348 : vector<2x128xf32>
    %350 = arith.mulf %232, %11 : vector<2x128xf32>
    %351 = arith.addf %350, %271 : vector<2x128xf32>
    %352 = arith.mulf %351, %11 : vector<2x128xf32>
    %353 = arith.addf %352, %310 : vector<2x128xf32>
    %354 = arith.mulf %353, %11 : vector<2x128xf32>
    %355 = arith.addf %354, %349 : vector<2x128xf32>
    %cst_68 = arith.constant 0.000000e+00 : f32
    %cst_69 = arith.constant 1.000000e+00 : f32
    %356 = vector.broadcast %cst_68 : f32 to vector<2x128xf32>
    %357 = arith.maximumf %356, %355 : vector<2x128xf32>
    %358 = vector.broadcast %cst_69 : f32 to vector<2x128xf32>
    %359 = arith.minimumf %358, %357 : vector<2x128xf32>
    %c1 = arith.constant 1 : index
    %c0_70 = arith.constant 0 : index
    %c0_71 = arith.constant 0 : index
    %c0_72 = arith.constant 0 : index
    %360 = vector.load %arg4[%c1, %c0_70, %c0_71, %c0_72] : memref<2x1x2x128xf32, #tpu.memory_space<vmem>>, vector<1x1x2x128xf32>
    %361 = vector.shape_cast %360 : vector<1x1x2x128xf32> to vector<2x128xf32>
    %362 = vector.shape_cast %359 : vector<2x128xf32> to vector<1x1x2x128xf32>
    tpu.vector_store %arg4[%c1, %c0_70, %c0_71, %c0_72], %362 {strides = array<i32>} : memref<2x1x2x128xf32, #tpu.memory_space<vmem>>, vector<1x1x2x128xf32>,
    return
  }
  func.func @transform_0(%arg0: i32, %arg1: i32) -> (i32, i32, i32) {
    %c0_i32 = arith.constant 0 : i32
    %c0_i32_0 = arith.constant 0 : i32
    %c0_i32_1 = arith.constant 0 : i32
    return %arg0, %c0_i32, %c0_i32_0 : i32, i32, i32
  }
  func.func @transform_1(%arg0: i32, %arg1: i32) -> (i32, i32, i32) {
    %c0_i32 = arith.constant 0 : i32
    %c0_i32_0 = arith.constant 0 : i32
    return %arg0, %arg1, %c0_i32 : i32, i32, i32
  }
  func.func @transform_2(%arg0: i32, %arg1: i32) -> (i32, i32, i32, i32) {
    %c0_i32 = arith.constant 0 : i32
    %c0_i32_0 = arith.constant 0 : i32
    %c0_i32_1 = arith.constant 0 : i32
    return %c0_i32, %arg0, %arg1, %c0_i32_0 : i32, i32, i32, i32
  }
}

module attributes {stable_mosaic.version = 11 : i64} {
  func.func @_spline_apply_kernel(%arg0: i32, %arg1: i32, %arg2: memref<1x1x56xf32, #tpu.memory_space<vmem>>, %arg3: memref<1x2x128xf32, #tpu.memory_space<vmem>>, %arg4: memref<2x1x2x128xf32, #tpu.memory_space<vmem>>) attributes {dimension_semantics = [#tpu.dimension_semantics<parallel>, #tpu.dimension_semantics<parallel>], iteration_bounds = array<i64: 6, 1>, scalar_prefetch = 0 : i64, scratch_operands = 0 : i64, tpu.core_type = #tpu.core_type<tc>, window_params = [{transform_indices = @transform_0, window_bounds = array<i64: 1, 1, 56>}, {transform_indices = @transform_1, window_bounds = array<i64: 1, 2, 128>}, {transform_indices = @transform_2, window_bounds = array<i64: 2, 1, 2, 128>}]} {
    %c0 = arith.constant 0 : index
    %c0_0 = arith.constant 0 : index
    %c0_1 = arith.constant 0 : index
    %0 = vector.load %arg3[%c0, %c0_0, %c0_1] : memref<1x2x128xf32, #tpu.memory_space<vmem>>, vector<1x2x128xf32>
    %1 = vector.shape_cast %0 : vector<1x2x128xf32> to vector<2x128xf32>
    %cst = arith.constant 7.000000e+00 : f32
    %2 = vector.broadcast %cst : f32 to vector<2x128xf32>
    %3 = arith.mulf %1, %2 : vector<2x128xf32>
    %4 = math.floor %3 : vector<2x128xf32>
    %cst_2 = arith.constant 0.000000e+00 : f32
    %cst_3 = arith.constant 6.000000e+00 : f32
    %5 = vector.broadcast %cst_2 : f32 to vector<2x128xf32>
    %6 = arith.maximumf %5, %4 : vector<2x128xf32>
    %7 = vector.broadcast %cst_3 : f32 to vector<2x128xf32>
    %8 = arith.minimumf %7, %6 : vector<2x128xf32>
    %cst_4 = arith.constant 0.142857149 : f32
    %9 = vector.broadcast %cst_4 : f32 to vector<2x128xf32>
    %10 = arith.mulf %8, %9 : vector<2x128xf32>
    %11 = arith.subf %1, %10 : vector<2x128xf32>
    %c0_5 = arith.constant 0 : index
    %c0_6 = arith.constant 0 : index
    %c0_7 = arith.constant 0 : index
    %12 = vector.load %arg2[%c0_5, %c0_6, %c0_7] : memref<1x1x56xf32, #tpu.memory_space<vmem>>, vector<1x1x56xf32>
    %cst_8 = arith.constant 1.000000e+00 : f32
    %13 = vector.broadcast %cst_8 : f32 to vector<2x128xf32>
    %14 = arith.cmpf oge, %8, %13 : vector<2x128xf32>
    %cst_9 = arith.constant 2.000000e+00 : f32
    %15 = vector.broadcast %cst_9 : f32 to vector<2x128xf32>
    %16 = arith.cmpf oge, %8, %15 : vector<2x128xf32>
    %cst_10 = arith.constant 3.000000e+00 : f32
    %17 = vector.broadcast %cst_10 : f32 to vector<2x128xf32>
    %18 = arith.cmpf oge, %8, %17 : vector<2x128xf32>
    %cst_11 = arith.constant 4.000000e+00 : f32
    %19 = vector.broadcast %cst_11 : f32 to vector<2x128xf32>
    %20 = arith.cmpf oge, %8, %19 : vector<2x128xf32>
    %cst_12 = arith.constant 5.000000e+00 : f32
    %21 = vector.broadcast %cst_12 : f32 to vector<2x128xf32>
    %22 = arith.cmpf oge, %8, %21 : vector<2x128xf32>
    %cst_13 = arith.constant 6.000000e+00 : f32
    %23 = vector.broadcast %cst_13 : f32 to vector<2x128xf32>
    %24 = arith.cmpf oge, %8, %23 : vector<2x128xf32>
    %25 = vector.extract_strided_slice %12 {offsets = [0, 0, 0], sizes = [1, 1, 1], strides = [1, 1, 1]} : vector<1x1x56xf32> to vector<1x1x1xf32>
    %26 = vector.extract %25[0, 0, 0] : f32 from vector<1x1x1xf32>
    %27 = vector.broadcast %26 : f32 to vector<2x128xf32>
    %28 = vector.extract_strided_slice %12 {offsets = [0, 0, 1], sizes = [1, 1, 1], strides = [1, 1, 1]} : vector<1x1x56xf32> to vector<1x1x1xf32>
    %29 = vector.extract %28[0, 0, 0] : f32 from vector<1x1x1xf32>
    %cst_14 = arith.constant 0.000000e+00 : f32
    %30 = vector.broadcast %29 : f32 to vector<2x128xf32>
    %31 = vector.broadcast %cst_14 : f32 to vector<2x128xf32>
    %32 = arith.select %14, %30, %31 : vector<2x128xi1>, vector<2x128xf32>
    %33 = arith.addf %27, %32 : vector<2x128xf32>
    %34 = vector.extract_strided_slice %12 {offsets = [0, 0, 2], sizes = [1, 1, 1], strides = [1, 1, 1]} : vector<1x1x56xf32> to vector<1x1x1xf32>
    %35 = vector.extract %34[0, 0, 0] : f32 from vector<1x1x1xf32>
    %cst_15 = arith.constant 0.000000e+00 : f32
    %36 = vector.broadcast %35 : f32 to vector<2x128xf32>
    %37 = vector.broadcast %cst_15 : f32 to vector<2x128xf32>
    %38 = arith.select %16, %36, %37 : vector<2x128xi1>, vector<2x128xf32>
    %39 = arith.addf %33, %38 : vector<2x128xf32>
    %40 = vector.extract_strided_slice %12 {offsets = [0, 0, 3], sizes = [1, 1, 1], strides = [1, 1, 1]} : vector<1x1x56xf32> to vector<1x1x1xf32>
    %41 = vector.extract %40[0, 0, 0] : f32 from vector<1x1x1xf32>
    %cst_16 = arith.constant 0.000000e+00 : f32
    %42 = vector.broadcast %41 : f32 to vector<2x128xf32>
    %43 = vector.broadcast %cst_16 : f32 to vector<2x128xf32>
    %44 = arith.select %18, %42, %43 : vector<2x128xi1>, vector<2x128xf32>
    %45 = arith.addf %39, %44 : vector<2x128xf32>
    %46 = vector.extract_strided_slice %12 {offsets = [0, 0, 4], sizes = [1, 1, 1], strides = [1, 1, 1]} : vector<1x1x56xf32> to vector<1x1x1xf32>
    %47 = vector.extract %46[0, 0, 0] : f32 from vector<1x1x1xf32>
    %cst_17 = arith.constant 0.000000e+00 : f32
    %48 = vector.broadcast %47 : f32 to vector<2x128xf32>
    %49 = vector.broadcast %cst_17 : f32 to vector<2x128xf32>
    %50 = arith.select %20, %48, %49 : vector<2x128xi1>, vector<2x128xf32>
    %51 = arith.addf %45, %50 : vector<2x128xf32>
    %52 = vector.extract_strided_slice %12 {offsets = [0, 0, 5], sizes = [1, 1, 1], strides = [1, 1, 1]} : vector<1x1x56xf32> to vector<1x1x1xf32>
    %53 = vector.extract %52[0, 0, 0] : f32 from vector<1x1x1xf32>
    %cst_18 = arith.constant 0.000000e+00 : f32
    %54 = vector.broadcast %53 : f32 to vector<2x128xf32>
    %55 = vector.broadcast %cst_18 : f32 to vector<2x128xf32>
    %56 = arith.select %22, %54, %55 : vector<2x128xi1>, vector<2x128xf32>
    %57 = arith.addf %51, %56 : vector<2x128xf32>
    %58 = vector.extract_strided_slice %12 {offsets = [0, 0, 6], sizes = [1, 1, 1], strides = [1, 1, 1]} : vector<1x1x56xf32> to vector<1x1x1xf32>
    %59 = vector.extract %58[0, 0, 0] : f32 from vector<1x1x1xf32>
    %cst_19 = arith.constant 0.000000e+00 : f32
    %60 = vector.broadcast %59 : f32 to vector<2x128xf32>
    %61 = vector.broadcast %cst_19 : f32 to vector<2x128xf32>
    %62 = arith.select %24, %60, %61 : vector<2x128xi1>, vector<2x128xf32>
    %63 = arith.addf %57, %62 : vector<2x128xf32>
    %64 = vector.extract_strided_slice %12 {offsets = [0, 0, 7], sizes = [1, 1, 1], strides = [1, 1, 1]} : vector<1x1x56xf32> to vector<1x1x1xf32>
    %65 = vector.extract %64[0, 0, 0] : f32 from vector<1x1x1xf32>
    %66 = vector.broadcast %65 : f32 to vector<2x128xf32>
    %67 = vector.extract_strided_slice %12 {offsets = [0, 0, 8], sizes = [1, 1, 1], strides = [1, 1, 1]} : vector<1x1x56xf32> to vector<1x1x1xf32>
    %68 = vector.extract %67[0, 0, 0] : f32 from vector<1x1x1xf32>
    %cst_20 = arith.constant 0.000000e+00 : f32
    %69 = vector.broadcast %68 : f32 to vector<2x128xf32>
    %70 = vector.broadcast %cst_20 : f32 to vector<2x128xf32>
    %71 = arith.select %14, %69, %70 : vector<2x128xi1>, vector<2x128xf32>
    %72 = arith.addf %66, %71 : vector<2x128xf32>
    %73 = vector.extract_strided_slice %12 {offsets = [0, 0, 9], sizes = [1, 1, 1], strides = [1, 1, 1]} : vector<1x1x56xf32> to vector<1x1x1xf32>
    %74 = vector.extract %73[0, 0, 0] : f32 from vector<1x1x1xf32>
    %cst_21 = arith.constant 0.000000e+00 : f32
    %75 = vector.broadcast %74 : f32 to vector<2x128xf32>
    %76 = vector.broadcast %cst_21 : f32 to vector<2x128xf32>
    %77 = arith.select %16, %75, %76 : vector<2x128xi1>, vector<2x128xf32>
    %78 = arith.addf %72, %77 : vector<2x128xf32>
    %79 = vector.extract_strided_slice %12 {offsets = [0, 0, 10], sizes = [1, 1, 1], strides = [1, 1, 1]} : vector<1x1x56xf32> to vector<1x1x1xf32>
    %80 = vector.extract %79[0, 0, 0] : f32 from vector<1x1x1xf32>
    %cst_22 = arith.constant 0.000000e+00 : f32
    %81 = vector.broadcast %80 : f32 to vector<2x128xf32>
    %82 = vector.broadcast %cst_22 : f32 to vector<2x128xf32>
    %83 = arith.select %18, %81, %82 : vector<2x128xi1>, vector<2x128xf32>
    %84 = arith.addf %78, %83 : vector<2x128xf32>
    %85 = vector.extract_strided_slice %12 {offsets = [0, 0, 11], sizes = [1, 1, 1], strides = [1, 1, 1]} : vector<1x1x56xf32> to vector<1x1x1xf32>
    %86 = vector.extract %85[0, 0, 0] : f32 from vector<1x1x1xf32>
    %cst_23 = arith.constant 0.000000e+00 : f32
    %87 = vector.broadcast %86 : f32 to vector<2x128xf32>
    %88 = vector.broadcast %cst_23 : f32 to vector<2x128xf32>
    %89 = arith.select %20, %87, %88 : vector<2x128xi1>, vector<2x128xf32>
    %90 = arith.addf %84, %89 : vector<2x128xf32>
    %91 = vector.extract_strided_slice %12 {offsets = [0, 0, 12], sizes = [1, 1, 1], strides = [1, 1, 1]} : vector<1x1x56xf32> to vector<1x1x1xf32>
    %92 = vector.extract %91[0, 0, 0] : f32 from vector<1x1x1xf32>
    %cst_24 = arith.constant 0.000000e+00 : f32
    %93 = vector.broadcast %92 : f32 to vector<2x128xf32>
    %94 = vector.broadcast %cst_24 : f32 to vector<2x128xf32>
    %95 = arith.select %22, %93, %94 : vector<2x128xi1>, vector<2x128xf32>
    %96 = arith.addf %90, %95 : vector<2x128xf32>
    %97 = vector.extract_strided_slice %12 {offsets = [0, 0, 13], sizes = [1, 1, 1], strides = [1, 1, 1]} : vector<1x1x56xf32> to vector<1x1x1xf32>
    %98 = vector.extract %97[0, 0, 0] : f32 from vector<1x1x1xf32>
    %cst_25 = arith.constant 0.000000e+00 : f32
    %99 = vector.broadcast %98 : f32 to vector<2x128xf32>
    %100 = vector.broadcast %cst_25 : f32 to vector<2x128xf32>
    %101 = arith.select %24, %99, %100 : vector<2x128xi1>, vector<2x128xf32>
    %102 = arith.addf %96, %101 : vector<2x128xf32>
    %103 = vector.extract_strided_slice %12 {offsets = [0, 0, 14], sizes = [1, 1, 1], strides = [1, 1, 1]} : vector<1x1x56xf32> to vector<1x1x1xf32>
    %104 = vector.extract %103[0, 0, 0] : f32 from vector<1x1x1xf32>
    %105 = vector.broadcast %104 : f32 to vector<2x128xf32>
    %106 = vector.extract_strided_slice %12 {offsets = [0, 0, 15], sizes = [1, 1, 1], strides = [1, 1, 1]} : vector<1x1x56xf32> to vector<1x1x1xf32>
    %107 = vector.extract %106[0, 0, 0] : f32 from vector<1x1x1xf32>
    %cst_26 = arith.constant 0.000000e+00 : f32
    %108 = vector.broadcast %107 : f32 to vector<2x128xf32>
    %109 = vector.broadcast %cst_26 : f32 to vector<2x128xf32>
    %110 = arith.select %14, %108, %109 : vector<2x128xi1>, vector<2x128xf32>
    %111 = arith.addf %105, %110 : vector<2x128xf32>
    %112 = vector.extract_strided_slice %12 {offsets = [0, 0, 16], sizes = [1, 1, 1], strides = [1, 1, 1]} : vector<1x1x56xf32> to vector<1x1x1xf32>
    %113 = vector.extract %112[0, 0, 0] : f32 from vector<1x1x1xf32>
    %cst_27 = arith.constant 0.000000e+00 : f32
    %114 = vector.broadcast %113 : f32 to vector<2x128xf32>
    %115 = vector.broadcast %cst_27 : f32 to vector<2x128xf32>
    %116 = arith.select %16, %114, %115 : vector<2x128xi1>, vector<2x128xf32>
    %117 = arith.addf %111, %116 : vector<2x128xf32>
    %118 = vector.extract_strided_slice %12 {offsets = [0, 0, 17], sizes = [1, 1, 1], strides = [1, 1, 1]} : vector<1x1x56xf32> to vector<1x1x1xf32>
    %119 = vector.extract %118[0, 0, 0] : f32 from vector<1x1x1xf32>
    %cst_28 = arith.constant 0.000000e+00 : f32
    %120 = vector.broadcast %119 : f32 to vector<2x128xf32>
    %121 = vector.broadcast %cst_28 : f32 to vector<2x128xf32>
    %122 = arith.select %18, %120, %121 : vector<2x128xi1>, vector<2x128xf32>
    %123 = arith.addf %117, %122 : vector<2x128xf32>
    %124 = vector.extract_strided_slice %12 {offsets = [0, 0, 18], sizes = [1, 1, 1], strides = [1, 1, 1]} : vector<1x1x56xf32> to vector<1x1x1xf32>
    %125 = vector.extract %124[0, 0, 0] : f32 from vector<1x1x1xf32>
    %cst_29 = arith.constant 0.000000e+00 : f32
    %126 = vector.broadcast %125 : f32 to vector<2x128xf32>
    %127 = vector.broadcast %cst_29 : f32 to vector<2x128xf32>
    %128 = arith.select %20, %126, %127 : vector<2x128xi1>, vector<2x128xf32>
    %129 = arith.addf %123, %128 : vector<2x128xf32>
    %130 = vector.extract_strided_slice %12 {offsets = [0, 0, 19], sizes = [1, 1, 1], strides = [1, 1, 1]} : vector<1x1x56xf32> to vector<1x1x1xf32>
    %131 = vector.extract %130[0, 0, 0] : f32 from vector<1x1x1xf32>
    %cst_30 = arith.constant 0.000000e+00 : f32
    %132 = vector.broadcast %131 : f32 to vector<2x128xf32>
    %133 = vector.broadcast %cst_30 : f32 to vector<2x128xf32>
    %134 = arith.select %22, %132, %133 : vector<2x128xi1>, vector<2x128xf32>
    %135 = arith.addf %129, %134 : vector<2x128xf32>
    %136 = vector.extract_strided_slice %12 {offsets = [0, 0, 20], sizes = [1, 1, 1], strides = [1, 1, 1]} : vector<1x1x56xf32> to vector<1x1x1xf32>
    %137 = vector.extract %136[0, 0, 0] : f32 from vector<1x1x1xf32>
    %cst_31 = arith.constant 0.000000e+00 : f32
    %138 = vector.broadcast %137 : f32 to vector<2x128xf32>
    %139 = vector.broadcast %cst_31 : f32 to vector<2x128xf32>
    %140 = arith.select %24, %138, %139 : vector<2x128xi1>, vector<2x128xf32>
    %141 = arith.addf %135, %140 : vector<2x128xf32>
    %142 = vector.extract_strided_slice %12 {offsets = [0, 0, 21], sizes = [1, 1, 1], strides = [1, 1, 1]} : vector<1x1x56xf32> to vector<1x1x1xf32>
    %143 = vector.extract %142[0, 0, 0] : f32 from vector<1x1x1xf32>
    %144 = vector.broadcast %143 : f32 to vector<2x128xf32>
    %145 = vector.extract_strided_slice %12 {offsets = [0, 0, 22], sizes = [1, 1, 1], strides = [1, 1, 1]} : vector<1x1x56xf32> to vector<1x1x1xf32>
    %146 = vector.extract %145[0, 0, 0] : f32 from vector<1x1x1xf32>
    %cst_32 = arith.constant 0.000000e+00 : f32
    %147 = vector.broadcast %146 : f32 to vector<2x128xf32>
    %148 = vector.broadcast %cst_32 : f32 to vector<2x128xf32>
    %149 = arith.select %14, %147, %148 : vector<2x128xi1>, vector<2x128xf32>
    %150 = arith.addf %144, %149 : vector<2x128xf32>
    %151 = vector.extract_strided_slice %12 {offsets = [0, 0, 23], sizes = [1, 1, 1], strides = [1, 1, 1]} : vector<1x1x56xf32> to vector<1x1x1xf32>
    %152 = vector.extract %151[0, 0, 0] : f32 from vector<1x1x1xf32>
    %cst_33 = arith.constant 0.000000e+00 : f32
    %153 = vector.broadcast %152 : f32 to vector<2x128xf32>
    %154 = vector.broadcast %cst_33 : f32 to vector<2x128xf32>
    %155 = arith.select %16, %153, %154 : vector<2x128xi1>, vector<2x128xf32>
    %156 = arith.addf %150, %155 : vector<2x128xf32>
    %157 = vector.extract_strided_slice %12 {offsets = [0, 0, 24], sizes = [1, 1, 1], strides = [1, 1, 1]} : vector<1x1x56xf32> to vector<1x1x1xf32>
    %158 = vector.extract %157[0, 0, 0] : f32 from vector<1x1x1xf32>
    %cst_34 = arith.constant 0.000000e+00 : f32
    %159 = vector.broadcast %158 : f32 to vector<2x128xf32>
    %160 = vector.broadcast %cst_34 : f32 to vector<2x128xf32>
    %161 = arith.select %18, %159, %160 : vector<2x128xi1>, vector<2x128xf32>
    %162 = arith.addf %156, %161 : vector<2x128xf32>
    %163 = vector.extract_strided_slice %12 {offsets = [0, 0, 25], sizes = [1, 1, 1], strides = [1, 1, 1]} : vector<1x1x56xf32> to vector<1x1x1xf32>
    %164 = vector.extract %163[0, 0, 0] : f32 from vector<1x1x1xf32>
    %cst_35 = arith.constant 0.000000e+00 : f32
    %165 = vector.broadcast %164 : f32 to vector<2x128xf32>
    %166 = vector.broadcast %cst_35 : f32 to vector<2x128xf32>
    %167 = arith.select %20, %165, %166 : vector<2x128xi1>, vector<2x128xf32>
    %168 = arith.addf %162, %167 : vector<2x128xf32>
    %169 = vector.extract_strided_slice %12 {offsets = [0, 0, 26], sizes = [1, 1, 1], strides = [1, 1, 1]} : vector<1x1x56xf32> to vector<1x1x1xf32>
    %170 = vector.extract %169[0, 0, 0] : f32 from vector<1x1x1xf32>
    %cst_36 = arith.constant 0.000000e+00 : f32
    %171 = vector.broadcast %170 : f32 to vector<2x128xf32>
    %172 = vector.broadcast %cst_36 : f32 to vector<2x128xf32>
    %173 = arith.select %22, %171, %172 : vector<2x128xi1>, vector<2x128xf32>
    %174 = arith.addf %168, %173 : vector<2x128xf32>
    %175 = vector.extract_strided_slice %12 {offsets = [0, 0, 27], sizes = [1, 1, 1], strides = [1, 1, 1]} : vector<1x1x56xf32> to vector<1x1x1xf32>
    %176 = vector.extract %175[0, 0, 0] : f32 from vector<1x1x1xf32>
    %cst_37 = arith.constant 0.000000e+00 : f32
    %177 = vector.broadcast %176 : f32 to vector<2x128xf32>
    %178 = vector.broadcast %cst_37 : f32 to vector<2x128xf32>
    %179 = arith.select %24, %177, %178 : vector<2x128xi1>, vector<2x128xf32>
    %180 = arith.addf %174, %179 : vector<2x128xf32>
    %181 = arith.mulf %63, %11 : vector<2x128xf32>
    %182 = arith.addf %181, %102 : vector<2x128xf32>
    %183 = arith.mulf %182, %11 : vector<2x128xf32>
    %184 = arith.addf %183, %141 : vector<2x128xf32>
    %185 = arith.mulf %184, %11 : vector<2x128xf32>
    %186 = arith.addf %185, %180 : vector<2x128xf32>
    %c0_38 = arith.constant 0 : index
    %c0_39 = arith.constant 0 : index
    %c0_40 = arith.constant 0 : index
    %c0_41 = arith.constant 0 : index
    %187 = vector.load %arg4[%c0_38, %c0_39, %c0_40, %c0_41] : memref<2x1x2x128xf32, #tpu.memory_space<vmem>>, vector<1x1x2x128xf32>
    %188 = vector.shape_cast %187 : vector<1x1x2x128xf32> to vector<2x128xf32>
    %189 = vector.shape_cast %186 : vector<2x128xf32> to vector<1x1x2x128xf32>
    tpu.vector_store %arg4[%c0_38, %c0_39, %c0_40, %c0_41], %189 {strides = array<i32>} : memref<2x1x2x128xf32, #tpu.memory_space<vmem>>, vector<1x1x2x128xf32>,
    %190 = vector.extract_strided_slice %12 {offsets = [0, 0, 28], sizes = [1, 1, 1], strides = [1, 1, 1]} : vector<1x1x56xf32> to vector<1x1x1xf32>
    %191 = vector.extract %190[0, 0, 0] : f32 from vector<1x1x1xf32>
    %192 = vector.broadcast %191 : f32 to vector<2x128xf32>
    %193 = vector.extract_strided_slice %12 {offsets = [0, 0, 29], sizes = [1, 1, 1], strides = [1, 1, 1]} : vector<1x1x56xf32> to vector<1x1x1xf32>
    %194 = vector.extract %193[0, 0, 0] : f32 from vector<1x1x1xf32>
    %cst_42 = arith.constant 0.000000e+00 : f32
    %195 = vector.broadcast %194 : f32 to vector<2x128xf32>
    %196 = vector.broadcast %cst_42 : f32 to vector<2x128xf32>
    %197 = arith.select %14, %195, %196 : vector<2x128xi1>, vector<2x128xf32>
    %198 = arith.addf %192, %197 : vector<2x128xf32>
    %199 = vector.extract_strided_slice %12 {offsets = [0, 0, 30], sizes = [1, 1, 1], strides = [1, 1, 1]} : vector<1x1x56xf32> to vector<1x1x1xf32>
    %200 = vector.extract %199[0, 0, 0] : f32 from vector<1x1x1xf32>
    %cst_43 = arith.constant 0.000000e+00 : f32
    %201 = vector.broadcast %200 : f32 to vector<2x128xf32>
    %202 = vector.broadcast %cst_43 : f32 to vector<2x128xf32>
    %203 = arith.select %16, %201, %202 : vector<2x128xi1>, vector<2x128xf32>
    %204 = arith.addf %198, %203 : vector<2x128xf32>
    %205 = vector.extract_strided_slice %12 {offsets = [0, 0, 31], sizes = [1, 1, 1], strides = [1, 1, 1]} : vector<1x1x56xf32> to vector<1x1x1xf32>
    %206 = vector.extract %205[0, 0, 0] : f32 from vector<1x1x1xf32>
    %cst_44 = arith.constant 0.000000e+00 : f32
    %207 = vector.broadcast %206 : f32 to vector<2x128xf32>
    %208 = vector.broadcast %cst_44 : f32 to vector<2x128xf32>
    %209 = arith.select %18, %207, %208 : vector<2x128xi1>, vector<2x128xf32>
    %210 = arith.addf %204, %209 : vector<2x128xf32>
    %211 = vector.extract_strided_slice %12 {offsets = [0, 0, 32], sizes = [1, 1, 1], strides = [1, 1, 1]} : vector<1x1x56xf32> to vector<1x1x1xf32>
    %212 = vector.extract %211[0, 0, 0] : f32 from vector<1x1x1xf32>
    %cst_45 = arith.constant 0.000000e+00 : f32
    %213 = vector.broadcast %212 : f32 to vector<2x128xf32>
    %214 = vector.broadcast %cst_45 : f32 to vector<2x128xf32>
    %215 = arith.select %20, %213, %214 : vector<2x128xi1>, vector<2x128xf32>
    %216 = arith.addf %210, %215 : vector<2x128xf32>
    %217 = vector.extract_strided_slice %12 {offsets = [0, 0, 33], sizes = [1, 1, 1], strides = [1, 1, 1]} : vector<1x1x56xf32> to vector<1x1x1xf32>
    %218 = vector.extract %217[0, 0, 0] : f32 from vector<1x1x1xf32>
    %cst_46 = arith.constant 0.000000e+00 : f32
    %219 = vector.broadcast %218 : f32 to vector<2x128xf32>
    %220 = vector.broadcast %cst_46 : f32 to vector<2x128xf32>
    %221 = arith.select %22, %219, %220 : vector<2x128xi1>, vector<2x128xf32>
    %222 = arith.addf %216, %221 : vector<2x128xf32>
    %223 = vector.extract_strided_slice %12 {offsets = [0, 0, 34], sizes = [1, 1, 1], strides = [1, 1, 1]} : vector<1x1x56xf32> to vector<1x1x1xf32>
    %224 = vector.extract %223[0, 0, 0] : f32 from vector<1x1x1xf32>
    %cst_47 = arith.constant 0.000000e+00 : f32
    %225 = vector.broadcast %224 : f32 to vector<2x128xf32>
    %226 = vector.broadcast %cst_47 : f32 to vector<2x128xf32>
    %227 = arith.select %24, %225, %226 : vector<2x128xi1>, vector<2x128xf32>
    %228 = arith.addf %222, %227 : vector<2x128xf32>
    %229 = vector.extract_strided_slice %12 {offsets = [0, 0, 35], sizes = [1, 1, 1], strides = [1, 1, 1]} : vector<1x1x56xf32> to vector<1x1x1xf32>
    %230 = vector.extract %229[0, 0, 0] : f32 from vector<1x1x1xf32>
    %231 = vector.broadcast %230 : f32 to vector<2x128xf32>
    %232 = vector.extract_strided_slice %12 {offsets = [0, 0, 36], sizes = [1, 1, 1], strides = [1, 1, 1]} : vector<1x1x56xf32> to vector<1x1x1xf32>
    %233 = vector.extract %232[0, 0, 0] : f32 from vector<1x1x1xf32>
    %cst_48 = arith.constant 0.000000e+00 : f32
    %234 = vector.broadcast %233 : f32 to vector<2x128xf32>
    %235 = vector.broadcast %cst_48 : f32 to vector<2x128xf32>
    %236 = arith.select %14, %234, %235 : vector<2x128xi1>, vector<2x128xf32>
    %237 = arith.addf %231, %236 : vector<2x128xf32>
    %238 = vector.extract_strided_slice %12 {offsets = [0, 0, 37], sizes = [1, 1, 1], strides = [1, 1, 1]} : vector<1x1x56xf32> to vector<1x1x1xf32>
    %239 = vector.extract %238[0, 0, 0] : f32 from vector<1x1x1xf32>
    %cst_49 = arith.constant 0.000000e+00 : f32
    %240 = vector.broadcast %239 : f32 to vector<2x128xf32>
    %241 = vector.broadcast %cst_49 : f32 to vector<2x128xf32>
    %242 = arith.select %16, %240, %241 : vector<2x128xi1>, vector<2x128xf32>
    %243 = arith.addf %237, %242 : vector<2x128xf32>
    %244 = vector.extract_strided_slice %12 {offsets = [0, 0, 38], sizes = [1, 1, 1], strides = [1, 1, 1]} : vector<1x1x56xf32> to vector<1x1x1xf32>
    %245 = vector.extract %244[0, 0, 0] : f32 from vector<1x1x1xf32>
    %cst_50 = arith.constant 0.000000e+00 : f32
    %246 = vector.broadcast %245 : f32 to vector<2x128xf32>
    %247 = vector.broadcast %cst_50 : f32 to vector<2x128xf32>
    %248 = arith.select %18, %246, %247 : vector<2x128xi1>, vector<2x128xf32>
    %249 = arith.addf %243, %248 : vector<2x128xf32>
    %250 = vector.extract_strided_slice %12 {offsets = [0, 0, 39], sizes = [1, 1, 1], strides = [1, 1, 1]} : vector<1x1x56xf32> to vector<1x1x1xf32>
    %251 = vector.extract %250[0, 0, 0] : f32 from vector<1x1x1xf32>
    %cst_51 = arith.constant 0.000000e+00 : f32
    %252 = vector.broadcast %251 : f32 to vector<2x128xf32>
    %253 = vector.broadcast %cst_51 : f32 to vector<2x128xf32>
    %254 = arith.select %20, %252, %253 : vector<2x128xi1>, vector<2x128xf32>
    %255 = arith.addf %249, %254 : vector<2x128xf32>
    %256 = vector.extract_strided_slice %12 {offsets = [0, 0, 40], sizes = [1, 1, 1], strides = [1, 1, 1]} : vector<1x1x56xf32> to vector<1x1x1xf32>
    %257 = vector.extract %256[0, 0, 0] : f32 from vector<1x1x1xf32>
    %cst_52 = arith.constant 0.000000e+00 : f32
    %258 = vector.broadcast %257 : f32 to vector<2x128xf32>
    %259 = vector.broadcast %cst_52 : f32 to vector<2x128xf32>
    %260 = arith.select %22, %258, %259 : vector<2x128xi1>, vector<2x128xf32>
    %261 = arith.addf %255, %260 : vector<2x128xf32>
    %262 = vector.extract_strided_slice %12 {offsets = [0, 0, 41], sizes = [1, 1, 1], strides = [1, 1, 1]} : vector<1x1x56xf32> to vector<1x1x1xf32>
    %263 = vector.extract %262[0, 0, 0] : f32 from vector<1x1x1xf32>
    %cst_53 = arith.constant 0.000000e+00 : f32
    %264 = vector.broadcast %263 : f32 to vector<2x128xf32>
    %265 = vector.broadcast %cst_53 : f32 to vector<2x128xf32>
    %266 = arith.select %24, %264, %265 : vector<2x128xi1>, vector<2x128xf32>
    %267 = arith.addf %261, %266 : vector<2x128xf32>
    %268 = vector.extract_strided_slice %12 {offsets = [0, 0, 42], sizes = [1, 1, 1], strides = [1, 1, 1]} : vector<1x1x56xf32> to vector<1x1x1xf32>
    %269 = vector.extract %268[0, 0, 0] : f32 from vector<1x1x1xf32>
    %270 = vector.broadcast %269 : f32 to vector<2x128xf32>
    %271 = vector.extract_strided_slice %12 {offsets = [0, 0, 43], sizes = [1, 1, 1], strides = [1, 1, 1]} : vector<1x1x56xf32> to vector<1x1x1xf32>
    %272 = vector.extract %271[0, 0, 0] : f32 from vector<1x1x1xf32>
    %cst_54 = arith.constant 0.000000e+00 : f32
    %273 = vector.broadcast %272 : f32 to vector<2x128xf32>
    %274 = vector.broadcast %cst_54 : f32 to vector<2x128xf32>
    %275 = arith.select %14, %273, %274 : vector<2x128xi1>, vector<2x128xf32>
    %276 = arith.addf %270, %275 : vector<2x128xf32>
    %277 = vector.extract_strided_slice %12 {offsets = [0, 0, 44], sizes = [1, 1, 1], strides = [1, 1, 1]} : vector<1x1x56xf32> to vector<1x1x1xf32>
    %278 = vector.extract %277[0, 0, 0] : f32 from vector<1x1x1xf32>
    %cst_55 = arith.constant 0.000000e+00 : f32
    %279 = vector.broadcast %278 : f32 to vector<2x128xf32>
    %280 = vector.broadcast %cst_55 : f32 to vector<2x128xf32>
    %281 = arith.select %16, %279, %280 : vector<2x128xi1>, vector<2x128xf32>
    %282 = arith.addf %276, %281 : vector<2x128xf32>
    %283 = vector.extract_strided_slice %12 {offsets = [0, 0, 45], sizes = [1, 1, 1], strides = [1, 1, 1]} : vector<1x1x56xf32> to vector<1x1x1xf32>
    %284 = vector.extract %283[0, 0, 0] : f32 from vector<1x1x1xf32>
    %cst_56 = arith.constant 0.000000e+00 : f32
    %285 = vector.broadcast %284 : f32 to vector<2x128xf32>
    %286 = vector.broadcast %cst_56 : f32 to vector<2x128xf32>
    %287 = arith.select %18, %285, %286 : vector<2x128xi1>, vector<2x128xf32>
    %288 = arith.addf %282, %287 : vector<2x128xf32>
    %289 = vector.extract_strided_slice %12 {offsets = [0, 0, 46], sizes = [1, 1, 1], strides = [1, 1, 1]} : vector<1x1x56xf32> to vector<1x1x1xf32>
    %290 = vector.extract %289[0, 0, 0] : f32 from vector<1x1x1xf32>
    %cst_57 = arith.constant 0.000000e+00 : f32
    %291 = vector.broadcast %290 : f32 to vector<2x128xf32>
    %292 = vector.broadcast %cst_57 : f32 to vector<2x128xf32>
    %293 = arith.select %20, %291, %292 : vector<2x128xi1>, vector<2x128xf32>
    %294 = arith.addf %288, %293 : vector<2x128xf32>
    %295 = vector.extract_strided_slice %12 {offsets = [0, 0, 47], sizes = [1, 1, 1], strides = [1, 1, 1]} : vector<1x1x56xf32> to vector<1x1x1xf32>
    %296 = vector.extract %295[0, 0, 0] : f32 from vector<1x1x1xf32>
    %cst_58 = arith.constant 0.000000e+00 : f32
    %297 = vector.broadcast %296 : f32 to vector<2x128xf32>
    %298 = vector.broadcast %cst_58 : f32 to vector<2x128xf32>
    %299 = arith.select %22, %297, %298 : vector<2x128xi1>, vector<2x128xf32>
    %300 = arith.addf %294, %299 : vector<2x128xf32>
    %301 = vector.extract_strided_slice %12 {offsets = [0, 0, 48], sizes = [1, 1, 1], strides = [1, 1, 1]} : vector<1x1x56xf32> to vector<1x1x1xf32>
    %302 = vector.extract %301[0, 0, 0] : f32 from vector<1x1x1xf32>
    %cst_59 = arith.constant 0.000000e+00 : f32
    %303 = vector.broadcast %302 : f32 to vector<2x128xf32>
    %304 = vector.broadcast %cst_59 : f32 to vector<2x128xf32>
    %305 = arith.select %24, %303, %304 : vector<2x128xi1>, vector<2x128xf32>
    %306 = arith.addf %300, %305 : vector<2x128xf32>
    %307 = vector.extract_strided_slice %12 {offsets = [0, 0, 49], sizes = [1, 1, 1], strides = [1, 1, 1]} : vector<1x1x56xf32> to vector<1x1x1xf32>
    %308 = vector.extract %307[0, 0, 0] : f32 from vector<1x1x1xf32>
    %309 = vector.broadcast %308 : f32 to vector<2x128xf32>
    %310 = vector.extract_strided_slice %12 {offsets = [0, 0, 50], sizes = [1, 1, 1], strides = [1, 1, 1]} : vector<1x1x56xf32> to vector<1x1x1xf32>
    %311 = vector.extract %310[0, 0, 0] : f32 from vector<1x1x1xf32>
    %cst_60 = arith.constant 0.000000e+00 : f32
    %312 = vector.broadcast %311 : f32 to vector<2x128xf32>
    %313 = vector.broadcast %cst_60 : f32 to vector<2x128xf32>
    %314 = arith.select %14, %312, %313 : vector<2x128xi1>, vector<2x128xf32>
    %315 = arith.addf %309, %314 : vector<2x128xf32>
    %316 = vector.extract_strided_slice %12 {offsets = [0, 0, 51], sizes = [1, 1, 1], strides = [1, 1, 1]} : vector<1x1x56xf32> to vector<1x1x1xf32>
    %317 = vector.extract %316[0, 0, 0] : f32 from vector<1x1x1xf32>
    %cst_61 = arith.constant 0.000000e+00 : f32
    %318 = vector.broadcast %317 : f32 to vector<2x128xf32>
    %319 = vector.broadcast %cst_61 : f32 to vector<2x128xf32>
    %320 = arith.select %16, %318, %319 : vector<2x128xi1>, vector<2x128xf32>
    %321 = arith.addf %315, %320 : vector<2x128xf32>
    %322 = vector.extract_strided_slice %12 {offsets = [0, 0, 52], sizes = [1, 1, 1], strides = [1, 1, 1]} : vector<1x1x56xf32> to vector<1x1x1xf32>
    %323 = vector.extract %322[0, 0, 0] : f32 from vector<1x1x1xf32>
    %cst_62 = arith.constant 0.000000e+00 : f32
    %324 = vector.broadcast %323 : f32 to vector<2x128xf32>
    %325 = vector.broadcast %cst_62 : f32 to vector<2x128xf32>
    %326 = arith.select %18, %324, %325 : vector<2x128xi1>, vector<2x128xf32>
    %327 = arith.addf %321, %326 : vector<2x128xf32>
    %328 = vector.extract_strided_slice %12 {offsets = [0, 0, 53], sizes = [1, 1, 1], strides = [1, 1, 1]} : vector<1x1x56xf32> to vector<1x1x1xf32>
    %329 = vector.extract %328[0, 0, 0] : f32 from vector<1x1x1xf32>
    %cst_63 = arith.constant 0.000000e+00 : f32
    %330 = vector.broadcast %329 : f32 to vector<2x128xf32>
    %331 = vector.broadcast %cst_63 : f32 to vector<2x128xf32>
    %332 = arith.select %20, %330, %331 : vector<2x128xi1>, vector<2x128xf32>
    %333 = arith.addf %327, %332 : vector<2x128xf32>
    %334 = vector.extract_strided_slice %12 {offsets = [0, 0, 54], sizes = [1, 1, 1], strides = [1, 1, 1]} : vector<1x1x56xf32> to vector<1x1x1xf32>
    %335 = vector.extract %334[0, 0, 0] : f32 from vector<1x1x1xf32>
    %cst_64 = arith.constant 0.000000e+00 : f32
    %336 = vector.broadcast %335 : f32 to vector<2x128xf32>
    %337 = vector.broadcast %cst_64 : f32 to vector<2x128xf32>
    %338 = arith.select %22, %336, %337 : vector<2x128xi1>, vector<2x128xf32>
    %339 = arith.addf %333, %338 : vector<2x128xf32>
    %340 = vector.extract_strided_slice %12 {offsets = [0, 0, 55], sizes = [1, 1, 1], strides = [1, 1, 1]} : vector<1x1x56xf32> to vector<1x1x1xf32>
    %341 = vector.extract %340[0, 0, 0] : f32 from vector<1x1x1xf32>
    %cst_65 = arith.constant 0.000000e+00 : f32
    %342 = vector.broadcast %341 : f32 to vector<2x128xf32>
    %343 = vector.broadcast %cst_65 : f32 to vector<2x128xf32>
    %344 = arith.select %24, %342, %343 : vector<2x128xi1>, vector<2x128xf32>
    %345 = arith.addf %339, %344 : vector<2x128xf32>
    %346 = arith.mulf %228, %11 : vector<2x128xf32>
    %347 = arith.addf %346, %267 : vector<2x128xf32>
    %348 = arith.mulf %347, %11 : vector<2x128xf32>
    %349 = arith.addf %348, %306 : vector<2x128xf32>
    %350 = arith.mulf %349, %11 : vector<2x128xf32>
    %351 = arith.addf %350, %345 : vector<2x128xf32>
    %c1 = arith.constant 1 : index
    %c0_66 = arith.constant 0 : index
    %c0_67 = arith.constant 0 : index
    %c0_68 = arith.constant 0 : index
    %352 = vector.load %arg4[%c1, %c0_66, %c0_67, %c0_68] : memref<2x1x2x128xf32, #tpu.memory_space<vmem>>, vector<1x1x2x128xf32>
    %353 = vector.shape_cast %352 : vector<1x1x2x128xf32> to vector<2x128xf32>
    %354 = vector.shape_cast %351 : vector<2x128xf32> to vector<1x1x2x128xf32>
    tpu.vector_store %arg4[%c1, %c0_66, %c0_67, %c0_68], %354 {strides = array<i32>} : memref<2x1x2x128xf32, #tpu.memory_space<vmem>>, vector<1x1x2x128xf32>,
    return
  }
  func.func @transform_0(%arg0: i32, %arg1: i32) -> (i32, i32, i32) {
    %c0_i32 = arith.constant 0 : i32
    %c0_i32_0 = arith.constant 0 : i32
    %c0_i32_1 = arith.constant 0 : i32
    return %arg0, %c0_i32, %c0_i32_0 : i32, i32, i32
  }
  func.func @transform_1(%arg0: i32, %arg1: i32) -> (i32, i32, i32) {
    %c0_i32 = arith.constant 0 : i32
    %c0_i32_0 = arith.constant 0 : i32
    return %arg0, %arg1, %c0_i32 : i32, i32, i32
  }
  func.func @transform_2(%arg0: i32, %arg1: i32) -> (i32, i32, i32, i32) {
    %c0_i32 = arith.constant 0 : i32
    %c0_i32_0 = arith.constant 0 : i32
    %c0_i32_1 = arith.constant 0 : i32
    return %c0_i32, %arg0, %arg1, %c0_i32_0 : i32, i32, i32, i32
  }
}

</mosaic_0001>

<llo_original>
// kernel: neural_spline_forward.8
$region0: #{neural_spline_forward.8}
  #allocation0 [shape = 'u32[]', space=smem, size = 0x4, offset = 0x4, fixed_abs, tag = 'smem constant byte address 0x4 - core index']
  #allocation1 [shape = 'u32[144,128]{1,0:T(1,128)}', space=vmem, size = 0x12000, scoped, tag = 'internal scratch']
  %s0 = inlined_call_operand.vmem [shape: f32[7938,75], index: 0, kind: input, shape index: {}]
  %s1 = inlined_call_operand.vmem [shape: f32[75,8], index: 1, kind: input, shape index: {}]
  %s2 = inlined_call_operand.vmem [shape: f32[1,8], index: 2, kind: input, shape index: {}]
  %s3 = inlined_call_operand.vmem [shape: f32[1,8], index: 3, kind: input, shape index: {}]
  %s4 = inlined_call_operand.vmem [shape: f32[1,8], index: 4, kind: input, shape index: {}]
  %s5 = inlined_call_operand.vmem [shape: f32[7938,8], index: 5, kind: output, shape index: {}]
  %s6 = sld [smem:[#allocation0]]
  $region101: #{neural_spline_forward.8} parent=0
    _
  %s8 = ssub.s32 1, %s6
  %s9 = scalar_select 0, %s8, %s6
  $region1: #{neural_spline_forward.8} parent=0
    #allocation2 [shape = 'u8[524288]{0}', space=vmem, size = 0x80000, scoped, tag = 'output window, operand 0']
    loop: start=0, step=1, limit=18
    $region2: #{neural_spline_forward.8} parent=1 // loop_pre_header
      _
    $region3: #{neural_spline_forward.8} parent=1 // loop_header
      %s11 = sphi 0, %s15
      %p12 = scmp.ge.s32.totalorder %s11, 18
      %s21 = sphi 0, %s23
      %s24 = sphi 0, %s21
      %s25 = sphi 0, %s24
      %s41 = sphi 0, %s25
      %s45 = sphi 0, %s45
      %s47 = sphi 0, %s45
      %s48 = sphi 0, %s47
      %s62 = sphi 0, %s48
      %s66 = sphi 0, %s66
      %s68 = sphi 0, %s66
      %s69 = sphi 0, %s68
      %s83 = sphi 0, %s69
      %s87 = sphi 0, %s87
      %s89 = sphi 0, %s87
      %s90 = sphi 0, %s89
      %s104 = sphi 0, %s90
      %s108 = sphi 0, %s108
      %s110 = sphi 0, %s108
      %s111 = sphi 0, %s110
      %s125 = sphi 0, %s111
      %s131 = sphi 0, %s133
      %s134 = sphi 0, %s131
      %s135 = sphi 0, %s134
      %s151 = sphi 0, %s135
    $region4: #{neural_spline_forward.8} parent=1 // loop_header_branch
      %14 = sbr.rel (%p12) target = $region8
    $region5: #{neural_spline_forward.8} parent=1 // loop_body
      %s16 = ssub.s32 %s11, 1
      %s17 = ssub.s32 %s11, 2
      %s18 = sadd.s32 %s11, 1
      %s19 = ssub.s32 %s11, %s18
      %p20 = scmp.eq.s32.totalorder %s19, 0
      %s22 = sadd.s32 %s21, 1
      %s23 = scalar_select %p20, %s21, %s22
      %p26 = pneg %p20
      %p27 = scmp.eq.s32.totalorder %s11, 15
      %p28 = por %p26, %p27
      %p29 = scmp.ne.s32.totalorder %s21, %s24
      %p30 = scmp.eq.s32.totalorder %s11, 0
      %p31 = por %p29, %p30
      %p32 = scmp.ne.s32.totalorder %s21, %s24
      %p33 = scmp.eq.s32.totalorder %s16, 15
      %p34 = por %p32, %p33
      %p35 = scmp.ne.s32.totalorder %s24, %s25
      %p36 = scmp.eq.s32.totalorder %s16, 0
      %p37 = por %p35, %p36
      %p38 = scmp.ne.s32.totalorder %s24, %s25
      %p39 = scmp.eq.s32.totalorder %s17, 15
      %p40 = por %p38, %p39
      %p42 = scmp.ne.s32.totalorder %s25, %s41
      %p43 = scmp.eq.s32.totalorder %s17, 0
      %p44 = por %p42, %p43
      %s46 = sadd.s32 %s45, 1
      %p49 = scmp.eq.s32.totalorder %s11, 15
      %p50 = scmp.ne.s32.totalorder %s45, %s47
      %p51 = scmp.eq.s32.totalorder %s11, 0
      %p52 = por %p50, %p51
      %p53 = scmp.ne.s32.totalorder %s45, %s47
      %p54 = scmp.eq.s32.totalorder %s16, 15
      %p55 = por %p53, %p54
      %p56 = scmp.ne.s32.totalorder %s47, %s48
      %p57 = scmp.eq.s32.totalorder %s16, 0
      %p58 = por %p56, %p57
      %p59 = scmp.ne.s32.totalorder %s47, %s48
      %p60 = scmp.eq.s32.totalorder %s17, 15
      %p61 = por %p59, %p60
      %p63 = scmp.ne.s32.totalorder %s48, %s62
      %p64 = scmp.eq.s32.totalorder %s17, 0
      %p65 = por %p63, %p64
      %s67 = sadd.s32 %s66, 1
      %p70 = scmp.eq.s32.totalorder %s11, 15
      %p71 = scmp.ne.s32.totalorder %s66, %s68
      %p72 = scmp.eq.s32.totalorder %s11, 0
      %p73 = por %p71, %p72
      %p74 = scmp.ne.s32.totalorder %s66, %s68
      %p75 = scmp.eq.s32.totalorder %s16, 15
      %p76 = por %p74, %p75
      %p77 = scmp.ne.s32.totalorder %s68, %s69
      %p78 = scmp.eq.s32.totalorder %s16, 0
      %p79 = por %p77, %p78
      %p80 = scmp.ne.s32.totalorder %s68, %s69
      %p81 = scmp.eq.s32.totalorder %s17, 15
      %p82 = por %p80, %p81
      %p84 = scmp.ne.s32.totalorder %s69, %s83
      %p85 = scmp.eq.s32.totalorder %s17, 0
      %p86 = por %p84, %p85
      %s88 = sadd.s32 %s87, 1
      %p91 = scmp.eq.s32.totalorder %s11, 15
      %p92 = scmp.ne.s32.totalorder %s87, %s89
      %p93 = scmp.eq.s32.totalorder %s11, 0
      %p94 = por %p92, %p93
      %p95 = scmp.ne.s32.totalorder %s87, %s89
      %p96 = scmp.eq.s32.totalorder %s16, 15
      %p97 = por %p95, %p96
      %p98 = scmp.ne.s32.totalorder %s89, %s90
      %p99 = scmp.eq.s32.totalorder %s16, 0
      %p100 = por %p98, %p99
      %p101 = scmp.ne.s32.totalorder %s89, %s90
      %p102 = scmp.eq.s32.totalorder %s17, 15
      %p103 = por %p101, %p102
      %p105 = scmp.ne.s32.totalorder %s90, %s104
      %p106 = scmp.eq.s32.totalorder %s17, 0
      %p107 = por %p105, %p106
      %s109 = sadd.s32 %s108, 1
      %p112 = scmp.eq.s32.totalorder %s11, 15
      %p113 = scmp.ne.s32.totalorder %s108, %s110
      %p114 = scmp.eq.s32.totalorder %s11, 0
      %p115 = por %p113, %p114
      %p116 = scmp.ne.s32.totalorder %s108, %s110
      %p117 = scmp.eq.s32.totalorder %s16, 15
      %p118 = por %p116, %p117
      %p119 = scmp.ne.s32.totalorder %s110, %s111
      %p120 = scmp.eq.s32.totalorder %s16, 0
      %p121 = por %p119, %p120
      %p122 = scmp.ne.s32.totalorder %s110, %s111
      %p123 = scmp.eq.s32.totalorder %s17, 15
      %p124 = por %p122, %p123
      %p126 = scmp.ne.s32.totalorder %s111, %s125
      %p127 = scmp.eq.s32.totalorder %s17, 0
      %p128 = por %p126, %p127
      %s129 = ssub.s32 %s11, %s18
      %p130 = scmp.eq.s32.totalorder %s129, 0
      %s132 = sadd.s32 %s131, 1
      %s133 = scalar_select %p130, %s131, %s132
      %p136 = pneg %p130
      %p137 = scmp.eq.s32.totalorder %s11, 15
      %p138 = por %p136, %p137
      %p139 = scmp.ne.s32.totalorder %s131, %s134
      %p140 = scmp.eq.s32.totalorder %s11, 0
      %p141 = por %p139, %p140
      %p142 = scmp.ne.s32.totalorder %s131, %s134
      %p143 = scmp.eq.s32.totalorder %s16, 15
      %p144 = por %p142, %p143
      %p145 = scmp.ne.s32.totalorder %s134, %s135
      %p146 = scmp.eq.s32.totalorder %s16, 0
      %p147 = por %p145, %p146
      %p148 = scmp.ne.s32.totalorder %s134, %s135
      %p149 = scmp.eq.s32.totalorder %s17, 15
      %p150 = por %p148, %p149
      %p152 = scmp.ne.s32.totalorder %s135, %s151
      %p153 = scmp.eq.s32.totalorder %s17, 0
      %p154 = por %p152, %p153
      %p155 = scmp.le.s32.totalorder 1, %s11
      %p156 = scmp.lt.s32.totalorder %s11, 17
      %p157 = pnand %p155, %p156
      %p158 = pneg %p157
      // Predicated region
      $region9: #{neural_spline_forward.8} parent=5 // pred_check
        _
      $region10: #{neural_spline_forward.8} parent=5 // pred_check_branch
        %160 = sbr.rel (%p157) target = $region12
      $region11: #{neural_spline_forward.8} parent=5 // pred_region
        %s161 = ssub.s32 %s11, 1
        // Predicated region
        $region13: #{neural_spline_forward.8} parent=11 // pred_check
          %p162 = pneg %p58
        $region14: #{neural_spline_forward.8} parent=11 // pred_check_branch
          %164 = sbr.rel (%p162) target = $region16
        $region15: #{neural_spline_forward.8} parent=11 // pred_region
          _
        $region16: #{neural_spline_forward.8} parent=11 // pred_fallthru
          _
        // Predicated region
        $region17: #{neural_spline_forward.8} parent=11 // pred_check
          %p165 = pneg %p79
        $region18: #{neural_spline_forward.8} parent=11 // pred_check_branch
          %167 = sbr.rel (%p165) target = $region20
        $region19: #{neural_spline_forward.8} parent=11 // pred_region
          _
        $region20: #{neural_spline_forward.8} parent=11 // pred_fallthru
          _
        // Predicated region
        $region21: #{neural_spline_forward.8} parent=11 // pred_check
          %p168 = pneg %p100
        $region22: #{neural_spline_forward.8} parent=11 // pred_check_branch
          %170 = sbr.rel (%p168) target = $region24
        $region23: #{neural_spline_forward.8} parent=11 // pred_region
          _
        $region24: #{neural_spline_forward.8} parent=11 // pred_fallthru
          _
        // Predicated region
        $region25: #{neural_spline_forward.8} parent=11 // pred_check
          %p171 = pneg %p121
        $region26: #{neural_spline_forward.8} parent=11 // pred_check_branch
          %173 = sbr.rel (%p171) target = $region28
        $region27: #{neural_spline_forward.8} parent=11 // pred_region
          _
        $region28: #{neural_spline_forward.8} parent=11 // pred_fallthru
          _
      $region12: #{neural_spline_forward.8} parent=5 // pred_fallthru
        _
      %p174 = scmp.lt.s32.totalorder %s11, 16
      // Predicated region
      $region29: #{neural_spline_forward.8} parent=5 // pred_check
        %p175 = pneg %p174
      $region30: #{neural_spline_forward.8} parent=5 // pred_check_branch
        %177 = sbr.rel (%p175) target = $region32
      $region31: #{neural_spline_forward.8} parent=5 // pred_region
        // Predicated region
        $region33: #{neural_spline_forward.8} parent=31 // pred_check
          %p178 = pneg %p31
        $region34: #{neural_spline_forward.8} parent=31 // pred_check_branch
          %180 = sbr.rel (%p178) target = $region36
        $region35: #{neural_spline_forward.8} parent=31 // pred_region
          %s181 = smul.u32 64, %s11
          %s182 = ssub.s32 993, %s181
          %p183 = scmp.lt.s32.totalorder %s182, 64
          %s184 = scalar_select %p183, %s182, 64
          %s185 = smul.u32 128, %s184
          %p186 = scmp.lt.s32.totalorder %s181, 992
          %s187 = scalar_select %p186, %s181, 992
          %s188 = smul.addr %s187, 8
          %s189 = scalar_lea.vmem %s0, %s188
          %s190 = smul.u32 64, %s11
          %s191 = ssub.s32 993, %s190
          %p192 = scmp.lt.s32.totalorder %s191, 64
          %s193 = scalar_select %p192, %s191, 64
          %s194 = smul.u32 128, %s193
        $region36: #{neural_spline_forward.8} parent=31 // pred_fallthru
          _
      $region32: #{neural_spline_forward.8} parent=5 // pred_fallthru
        _
      %p195 = scmp.le.s32.totalorder 1, %s11
      %p196 = scmp.lt.s32.totalorder %s11, 17
      %p197 = pnand %p195, %p196
      %p198 = pneg %p197
      // Predicated region
      $region37: #{neural_spline_forward.8} parent=5 // pred_check
        _
      $region38: #{neural_spline_forward.8} parent=5 // pred_check_branch
        %200 = sbr.rel (%p197) target = $region40
      $region39: #{neural_spline_forward.8} parent=5 // pred_region
        %s201 = ssub.s32 %s11, 1
        %s202 = smul.u32 64, %s16
        %s203 = ssub.s32 993, %s202
        %p204 = scmp.lt.s32.totalorder %s203, 64
        %s205 = scalar_select %p204, %s203, 64
        %s206 = smul.u32 128, %s205
        %p207 = scmp.lt.s32.totalorder %s202, 992
        %s208 = scalar_select %p207, %s202, 992
        %s209 = smul.addr %s208, 8
        %s210 = scalar_lea.vmem %s0, %s209
        %p211 = pneg %p37
        %p212 = pneg %p34
        %p213 = pneg %p58
        %p214 = pneg %p55
        %p215 = pneg %p79
        %p216 = pneg %p76
        %p217 = pneg %p100
        %p218 = pneg %p97
        %p219 = pneg %p121
        %p220 = pneg %p118
        %p221 = pneg %p147
        %p222 = pneg %p144
        %s223 = sand.u32 %s134, 1
        %s224 = sand.u32 %s134, 1
        %s225 = smul.addr %s224, 512
        %s226 = scalar_lea.vmem [#allocation2], %s225
        %s227 = smul.u32 64, %s16
        %s228 = ssub.s32 993, %s227
        %p229 = scmp.lt.s32.totalorder %s228, 64
        %s230 = scalar_select %p229, %s228, 64
        %s231 = smul.u32 128, %s230
        %p232 = scmp.lt.s32.totalorder %s227, 992
        %s233 = scalar_select %p232, %s227, 992
        %s234 = smul.addr %s233, 8
        %s235 = scalar_lea.vmem %s0, %s234
        %s236 = smul.u32 64, %s16
        %s237 = ssub.s32 993, %s236
        %p238 = scmp.lt.s32.totalorder %s237, 64
        %s239 = scalar_select %p238, %s237, 64
        %s240 = smul.u32 128, %s239
        %s241 = smul.u32 64, %s16
        %s242 = ssub.s32 993, %s241
        %p243 = scmp.lt.s32.totalorder %s242, 64
        %s244 = scalar_select %p243, %s242, 64
        %s245 = smul.u32 128, %s244
        %v246 = vld [vmem:[%s235] sm:$0xff]
        %v247 = vld [vmem:[%s235 + $0x8] sm:$0xff]
        %v248 = vld [vmem:[%s235 + $0x10] sm:$0xff]
        %v249 = vld [vmem:[%s235 + $0x18] sm:$0xff]
        %v250 = vld [vmem:[%s235 + $0x20] sm:$0xff]
        %v251 = vld [vmem:[%s235 + $0x28] sm:$0xff]
        %v252 = vld [vmem:[%s235 + $0x30] sm:$0xff]
        %v253 = vld [vmem:[%s235 + $0x38] sm:$0xff]
        %v254 = vld [vmem:[%s235 + $0x40] sm:$0xff]
        %v255 = vld [vmem:[%s235 + $0x48] sm:$0xff]
        %v256 = vld [vmem:[%s235 + $0x50] sm:$0xff]
        %v257 = vld [vmem:[%s235 + $0x58] sm:$0xff]
        %v258 = vld [vmem:[%s235 + $0x60] sm:$0xff]
        %v259 = vld [vmem:[%s235 + $0x68] sm:$0xff]
        %v260 = vld [vmem:[%s235 + $0x70] sm:$0xff]
        %v261 = vld [vmem:[%s235 + $0x78] sm:$0xff]
        %v262 = vld [vmem:[%s235 + $0x80] sm:$0xff]
        %v263 = vld [vmem:[%s235 + $0x88] sm:$0xff]
        %v264 = vld [vmem:[%s235 + $0x90] sm:$0xff]
        %v265 = vld [vmem:[%s235 + $0x98] sm:$0xff]
        %v266 = vld [vmem:[%s235 + $0xa0] sm:$0xff]
        %v267 = vld [vmem:[%s235 + $0xa8] sm:$0xff]
        %v268 = vld [vmem:[%s235 + $0xb0] sm:$0xff]
        %v269 = vld [vmem:[%s235 + $0xb8] sm:$0xff]
        %v270 = vld [vmem:[%s235 + $0xc0] sm:$0xff]
        %v271 = vld [vmem:[%s235 + $0xc8] sm:$0xff]
        %v272 = vld [vmem:[%s235 + $0xd0] sm:$0xff]
        %v273 = vld [vmem:[%s235 + $0xd8] sm:$0xff]
        %v274 = vld [vmem:[%s235 + $0xe0] sm:$0xff]
        %v275 = vld [vmem:[%s235 + $0xe8] sm:$0xff]
        %v276 = vld [vmem:[%s235 + $0xf0] sm:$0xff]
        %v277 = vld [vmem:[%s235 + $0xf8] sm:$0xff]
        %v278 = vld [vmem:[%s235 + $0x100] sm:$0xff]
        %v279 = vld [vmem:[%s235 + $0x108] sm:$0xff]
        %v280 = vld [vmem:[%s235 + $0x110] sm:$0xff]
        %v281 = vld [vmem:[%s235 + $0x118] sm:$0xff]
        %v282 = vld [vmem:[%s235 + $0x120] sm:$0xff]
        %v283 = vld [vmem:[%s235 + $0x128] sm:$0xff]
        %v284 = vld [vmem:[%s235 + $0x130] sm:$0xff]
        %v285 = vld [vmem:[%s235 + $0x138] sm:$0xff]
        %v286 = vld [vmem:[%s235 + $0x140] sm:$0xff]
        %v287 = vld [vmem:[%s235 + $0x148] sm:$0xff]
        %v288 = vld [vmem:[%s235 + $0x150] sm:$0xff]
        %v289 = vld [vmem:[%s235 + $0x158] sm:$0xff]
        %v290 = vld [vmem:[%s235 + $0x160] sm:$0xff]
        %v291 = vld [vmem:[%s235 + $0x168] sm:$0xff]
        %v292 = vld [vmem:[%s235 + $0x170] sm:$0xff]
        %v293 = vld [vmem:[%s235 + $0x178] sm:$0xff]
        %v294 = vld [vmem:[%s235 + $0x180] sm:$0xff]
        %v295 = vld [vmem:[%s235 + $0x188] sm:$0xff]
        %v296 = vld [vmem:[%s235 + $0x190] sm:$0xff]
        %v297 = vld [vmem:[%s235 + $0x198] sm:$0xff]
        %v298 = vld [vmem:[%s235 + $0x1a0] sm:$0xff]
        %v299 = vld [vmem:[%s235 + $0x1a8] sm:$0xff]
        %v300 = vld [vmem:[%s235 + $0x1b0] sm:$0xff]
        %v301 = vld [vmem:[%s235 + $0x1b8] sm:$0xff]
        %v302 = vld [vmem:[%s235 + $0x1c0] sm:$0xff]
        %v303 = vld [vmem:[%s235 + $0x1c8] sm:$0xff]
        %v304 = vld [vmem:[%s235 + $0x1d0] sm:$0xff]
        %v305 = vld [vmem:[%s235 + $0x1d8] sm:$0xff]
        %v306 = vld [vmem:[%s235 + $0x1e0] sm:$0xff]
        %v307 = vld [vmem:[%s235 + $0x1e8] sm:$0xff]
        %v308 = vld [vmem:[%s235 + $0x1f0] sm:$0xff]
        %v309 = vld [vmem:[%s235 + $0x1f8] sm:$0xff]
        %v310 = vld [vmem:[%s1] sm:$0xff]
        %v311 = vld [vmem:[%s1 + $0x8] sm:$0xff]
        %v312 = vld [vmem:[%s1 + $0x10] sm:$0xff]
        %v313 = vld [vmem:[%s1 + $0x18] sm:$0xff]
        %v314 = vld [vmem:[%s1 + $0x20] sm:$0xff]
        %v315 = vld [vmem:[%s1 + $0x28] sm:$0xff]
        %v316 = vld [vmem:[%s1 + $0x30] sm:$0xff]
        %v317 = vld [vmem:[%s1 + $0x38] sm:$0xff]
        %v318 = vld [vmem:[%s1 + $0x40] sm:$0xff]
        %v319 = vld [vmem:[%s1 + $0x48] sm:$0x7]
        %v320 = vld [vmem:[%s2] sm:$0x1]
        %v322 = vlaneseq
        %v323 = vshrl.u32 %v322, 7
        %v324 = vsub.s32 0, %v323
        %v325 = vrot.slane %v320, %v324
        %vm327 = vcmask 613376
        %v329 = vsel %vm327, %v246, 0
        %v332 = vsel %vm327, %v247, 0
        %v335 = vsel %vm327, %v248, 0
        %v338 = vsel %vm327, %v249, 0
        %v341 = vsel %vm327, %v250, 0
        %v344 = vsel %vm327, %v251, 0
        %v347 = vsel %vm327, %v252, 0
        %v350 = vsel %vm327, %v253, 0
        %v353 = vsel %vm327, %v254, 0
        %v356 = vsel %vm327, %v255, 0
        %v359 = vsel %vm327, %v256, 0
        %v362 = vsel %vm327, %v257, 0
        %v365 = vsel %vm327, %v258, 0
        %v368 = vsel %vm327, %v259, 0
        %v371 = vsel %vm327, %v260, 0
        %v374 = vsel %vm327, %v261, 0
        %v377 = vsel %vm327, %v262, 0
        %v380 = vsel %vm327, %v263, 0
        %v383 = vsel %vm327, %v264, 0
        %v386 = vsel %vm327, %v265, 0
        %v389 = vsel %vm327, %v266, 0
        %v392 = vsel %vm327, %v267, 0
        %v395 = vsel %vm327, %v268, 0
        %v398 = vsel %vm327, %v269, 0
        %v401 = vsel %vm327, %v270, 0
        %v404 = vsel %vm327, %v271, 0
        %v407 = vsel %vm327, %v272, 0
        %v410 = vsel %vm327, %v273, 0
        %v413 = vsel %vm327, %v274, 0
        %v416 = vsel %vm327, %v275, 0
        %v419 = vsel %vm327, %v276, 0
        %v422 = vsel %vm327, %v277, 0
        %v425 = vsel %vm327, %v278, 0
        %v428 = vsel %vm327, %v279, 0
        %v431 = vsel %vm327, %v280, 0
        %v434 = vsel %vm327, %v281, 0
        %v437 = vsel %vm327, %v282, 0
        %v440 = vsel %vm327, %v283, 0
        %v443 = vsel %vm327, %v284, 0
        %v446 = vsel %vm327, %v285, 0
        %v449 = vsel %vm327, %v286, 0
        %v452 = vsel %vm327, %v287, 0
        %v455 = vsel %vm327, %v288, 0
        %v458 = vsel %vm327, %v289, 0
        %v461 = vsel %vm327, %v290, 0
        %v464 = vsel %vm327, %v291, 0
        %v467 = vsel %vm327, %v292, 0
        %v470 = vsel %vm327, %v293, 0
        %v473 = vsel %vm327, %v294, 0
        %v476 = vsel %vm327, %v295, 0
        %v479 = vsel %vm327, %v296, 0
        %v482 = vsel %vm327, %v297, 0
        %v485 = vsel %vm327, %v298, 0
        %v488 = vsel %vm327, %v299, 0
        %v491 = vsel %vm327, %v300, 0
        %v494 = vsel %vm327, %v301, 0
        %v497 = vsel %vm327, %v302, 0
        %v500 = vsel %vm327, %v303, 0
        %v503 = vsel %vm327, %v304, 0
        %v506 = vsel %vm327, %v305, 0
        %v509 = vsel %vm327, %v306, 0
        %v512 = vsel %vm327, %v307, 0
        %v515 = vsel %vm327, %v308, 0
        %v518 = vsel %vm327, %v309, 0
        %vm520 = vcmask 1042432
        %v522 = vsel %vm520, %v319, 0
        %524 = vmatprep.subr.mxu0 0.0
        %525 = vmatpush1.msra.mxu0 %v310
        %526 = vmatprep.subr.mxu0 0.0
        %527 = vmatpush1.msra.mxu0 %v311
        %528 = vmatprep.subr.mxu0 0.0
        %529 = vmatpush1.msra.mxu0 %v312
        %530 = vmatprep.subr.mxu0 0.0
        %531 = vmatpush1.msra.mxu0 %v313
        %532 = vmatprep.subr.mxu0 0.0
        %533 = vmatpush1.msra.mxu0 %v314
        %534 = vmatprep.subr.mxu0 0.0
        %535 = vmatpush1.msra.mxu0 %v315
        %536 = vmatprep.subr.mxu0 0.0
        %537 = vmatpush1.msra.mxu0 %v316
        %538 = vmatprep.subr.mxu0 0.0
        %539 = vmatpush1.msra.mxu0 %v317
        %540 = vmatprep.subr.mxu0 0.0
        %541 = vmatpush1.msra.mxu0 %v318
        %542 = vmatprep.subr.mxu0 0.0
        %543 = vmatpush1.msra.mxu0 %v522
        %544 = vmatprep.subr.mxu0 0.0
        %545 = vmatpush1.msra.mxu0 0.0
        %546 = vmatprep.subr.mxu0 0.0
        %547 = vmatpush1.msra.mxu0 0.0
        %548 = vmatprep.subr.mxu0 0.0
        %549 = vmatpush1.msra.mxu0 0.0
        %550 = vmatprep.subr.mxu0 0.0
        %551 = vmatpush1.msra.mxu0 0.0
        %552 = vmatprep.subr.mxu0 0.0
        %553 = vmatpush1.msra.mxu0 0.0
        %554 = vmatprep.subr.mxu0 0.0
        %555 = vmatpush1.msra.mxu0 0.0
        %556 = vmatprep.subr.mxu0 0.0
        %557 = vmatpush1.msra.mxu0 0.0
        %558 = vmatprep.subr.mxu0 0.0
        %559 = vmatpush1.msra.mxu0 0.0
        %560 = vmatprep.subr.mxu0 0.0
        %561 = vmatpush1.msra.mxu0 0.0
        %562 = vmatprep.subr.mxu0 0.0
        %563 = vmatpush1.msra.mxu0 0.0
        %564 = vmatprep.subr.mxu0 0.0
        %565 = vmatpush1.msra.mxu0 0.0
        %566 = vmatprep.subr.mxu0 0.0
        %567 = vmatpush1.msra.mxu0 0.0
        %568 = vmatprep.subr.mxu0 0.0
        %569 = vmatpush1.msra.mxu0 0.0
        %570 = vmatprep.subr.mxu0 0.0
        %571 = vmatpush1.msra.mxu0 0.0
        %572 = vmatprep.subr.mxu0 0.0
        %573 = vmatpush1.msra.mxu0 0.0
        %574 = vmatprep.subr.mxu0 0.0
        %575 = vmatpush1.msra.mxu0 0.0
        %576 = vmatprep.subr.mxu0 0.0
        %577 = vmatpush1.msra.mxu0 0.0
        %578 = vmatprep.subr.mxu0 0.0
        %579 = vmatpush1.msra.mxu0 0.0
        %580 = vmatprep.subr.mxu0 0.0
        %581 = vmatpush1.msra.mxu0 0.0
        %582 = vmatprep.subr.mxu0 0.0
        %583 = vmatpush1.msra.mxu0 0.0
        %584 = vmatprep.subr.mxu0 0.0
        %585 = vmatpush1.msra.mxu0 0.0
        %586 = vmatprep.subr.mxu0 0.0
        %587 = vmatpush1.msra.mxu0 0.0
        %588 = vmatprep.mubr.f32.mxu0 0.0
        %589 = vmatmul.mubr.f32.gmra.mrb[0].mxu0 %v329
        %v590 = vpop.f32.mrb[0].mxu0
        %v591 = vadd.f32 %v325, %v590
        %v592 = vpop.f32.mrb[0].mxu0
        %593 = vmatprep.mubr.f32.mxu0 0.0
        %594 = vmatmul.mubr.f32.gmra.mrb[0].mxu0 %v332
        %v595 = vpop.f32.mrb[0].mxu0
        %v596 = vadd.f32 %v325, %v595
        %v597 = vpop.f32.mrb[0].mxu0
        %598 = vmatprep.mubr.f32.mxu0 0.0
        %599 = vmatmul.mubr.f32.gmra.mrb[0].mxu0 %v335
        %v600 = vpop.f32.mrb[0].mxu0
        %v601 = vadd.f32 %v325, %v600
        %v602 = vpop.f32.mrb[0].mxu0
        %603 = vmatprep.mubr.f32.mxu0 0.0
        %604 = vmatmul.mubr.f32.gmra.mrb[0].mxu0 %v338
        %v605 = vpop.f32.mrb[0].mxu0
        %v606 = vadd.f32 %v325, %v605
        %v607 = vpop.f32.mrb[0].mxu0
        %608 = vmatprep.mubr.f32.mxu0 0.0
        %609 = vmatmul.mubr.f32.gmra.mrb[0].mxu0 %v341
        %v610 = vpop.f32.mrb[0].mxu0
        %v611 = vadd.f32 %v325, %v610
        %v612 = vpop.f32.mrb[0].mxu0
        %613 = vmatprep.mubr.f32.mxu0 0.0
        %614 = vmatmul.mubr.f32.gmra.mrb[0].mxu0 %v344
        %v615 = vpop.f32.mrb[0].mxu0
        %v616 = vadd.f32 %v325, %v615
        %v617 = vpop.f32.mrb[0].mxu0
        %618 = vmatprep.mubr.f32.mxu0 0.0
        %619 = vmatmul.mubr.f32.gmra.mrb[0].mxu0 %v347
        %v620 = vpop.f32.mrb[0].mxu0
        %v621 = vadd.f32 %v325, %v620
        %v622 = vpop.f32.mrb[0].mxu0
        %623 = vmatprep.mubr.f32.mxu0 0.0
        %624 = vmatmul.mubr.f32.gmra.mrb[0].mxu0 %v350
        %v625 = vpop.f32.mrb[0].mxu0
        %v626 = vadd.f32 %v325, %v625
        %v627 = vpop.f32.mrb[0].mxu0
        %628 = vmatprep.mubr.f32.mxu0 0.0
        %629 = vmatmul.mubr.f32.gmra.mrb[0].mxu0 %v353
        %v630 = vpop.f32.mrb[0].mxu0
        %v631 = vadd.f32 %v325, %v630
        %v632 = vpop.f32.mrb[0].mxu0
        %633 = vmatprep.mubr.f32.mxu0 0.0
        %634 = vmatmul.mubr.f32.gmra.mrb[0].mxu0 %v356
        %v635 = vpop.f32.mrb[0].mxu0
        %v636 = vadd.f32 %v325, %v635
        %v637 = vpop.f32.mrb[0].mxu0
        %638 = vmatprep.mubr.f32.mxu0 0.0
        %639 = vmatmul.mubr.f32.gmra.mrb[0].mxu0 %v359
        %v640 = vpop.f32.mrb[0].mxu0
        %v641 = vadd.f32 %v325, %v640
        %v642 = vpop.f32.mrb[0].mxu0
        %643 = vmatprep.mubr.f32.mxu0 0.0
        %644 = vmatmul.mubr.f32.gmra.mrb[0].mxu0 %v362
        %v645 = vpop.f32.mrb[0].mxu0
        %v646 = vadd.f32 %v325, %v645
        %v647 = vpop.f32.mrb[0].mxu0
        %648 = vmatprep.mubr.f32.mxu0 0.0
        %649 = vmatmul.mubr.f32.gmra.mrb[0].mxu0 %v365
        %v650 = vpop.f32.mrb[0].mxu0
        %v651 = vadd.f32 %v325, %v650
        %v652 = vpop.f32.mrb[0].mxu0
        %653 = vmatprep.mubr.f32.mxu0 0.0
        %654 = vmatmul.mubr.f32.gmra.mrb[0].mxu0 %v368
        %v655 = vpop.f32.mrb[0].mxu0
        %v656 = vadd.f32 %v325, %v655
        %v657 = vpop.f32.mrb[0].mxu0
        %658 = vmatprep.mubr.f32.mxu0 0.0
        %659 = vmatmul.mubr.f32.gmra.mrb[0].mxu0 %v371
        %v660 = vpop.f32.mrb[0].mxu0
        %v661 = vadd.f32 %v325, %v660
        %v662 = vpop.f32.mrb[0].mxu0
        %663 = vmatprep.mubr.f32.mxu0 0.0
        %664 = vmatmul.mubr.f32.gmra.mrb[0].mxu0 %v374
        %v665 = vpop.f32.mrb[0].mxu0
        %v666 = vadd.f32 %v325, %v665
        %v667 = vpop.f32.mrb[0].mxu0
        %668 = vmatprep.mubr.f32.mxu0 0.0
        %669 = vmatmul.mubr.f32.gmra.mrb[0].mxu0 %v377
        %v670 = vpop.f32.mrb[0].mxu0
        %v671 = vadd.f32 %v325, %v670
        %v672 = vpop.f32.mrb[0].mxu0
        %673 = vmatprep.mubr.f32.mxu0 0.0
        %674 = vmatmul.mubr.f32.gmra.mrb[0].mxu0 %v380
        %v675 = vpop.f32.mrb[0].mxu0
        %v676 = vadd.f32 %v325, %v675
        %v677 = vpop.f32.mrb[0].mxu0
        %678 = vmatprep.mubr.f32.mxu0 0.0
        %679 = vmatmul.mubr.f32.gmra.mrb[0].mxu0 %v383
        %v680 = vpop.f32.mrb[0].mxu0
        %v681 = vadd.f32 %v325, %v680
        %v682 = vpop.f32.mrb[0].mxu0
        %683 = vmatprep.mubr.f32.mxu0 0.0
        %684 = vmatmul.mubr.f32.gmra.mrb[0].mxu0 %v386
        %v685 = vpop.f32.mrb[0].mxu0
        %v686 = vadd.f32 %v325, %v685
        %v687 = vpop.f32.mrb[0].mxu0
        %688 = vmatprep.mubr.f32.mxu0 0.0
        %689 = vmatmul.mubr.f32.gmra.mrb[0].mxu0 %v389
        %v690 = vpop.f32.mrb[0].mxu0
        %v691 = vadd.f32 %v325, %v690
        %v692 = vpop.f32.mrb[0].mxu0
        %693 = vmatprep.mubr.f32.mxu0 0.0
        %694 = vmatmul.mubr.f32.gmra.mrb[0].mxu0 %v392
        %v695 = vpop.f32.mrb[0].mxu0
        %v696 = vadd.f32 %v325, %v695
        %v697 = vpop.f32.mrb[0].mxu0
        %698 = vmatprep.mubr.f32.mxu0 0.0
        %699 = vmatmul.mubr.f32.gmra.mrb[0].mxu0 %v395
        %v700 = vpop.f32.mrb[0].mxu0
        %v701 = vadd.f32 %v325, %v700
        %v702 = vpop.f32.mrb[0].mxu0
        %703 = vmatprep.mubr.f32.mxu0 0.0
        %704 = vmatmul.mubr.f32.gmra.mrb[0].mxu0 %v398
        %v705 = vpop.f32.mrb[0].mxu0
        %v706 = vadd.f32 %v325, %v705
        %v707 = vpop.f32.mrb[0].mxu0
        %708 = vmatprep.mubr.f32.mxu0 0.0
        %709 = vmatmul.mubr.f32.gmra.mrb[0].mxu0 %v401
        %v710 = vpop.f32.mrb[0].mxu0
        %v711 = vadd.f32 %v325, %v710
        %v712 = vpop.f32.mrb[0].mxu0
        %713 = vmatprep.mubr.f32.mxu0 0.0
        %714 = vmatmul.mubr.f32.gmra.mrb[0].mxu0 %v404
        %v715 = vpop.f32.mrb[0].mxu0
        %v716 = vadd.f32 %v325, %v715
        %v717 = vpop.f32.mrb[0].mxu0
        %718 = vmatprep.mubr.f32.mxu0 0.0
        %719 = vmatmul.mubr.f32.gmra.mrb[0].mxu0 %v407
        %v720 = vpop.f32.mrb[0].mxu0
        %v721 = vadd.f32 %v325, %v720
        %v722 = vpop.f32.mrb[0].mxu0
        %723 = vmatprep.mubr.f32.mxu0 0.0
        %724 = vmatmul.mubr.f32.gmra.mrb[0].mxu0 %v410
        %v725 = vpop.f32.mrb[0].mxu0
        %v726 = vadd.f32 %v325, %v725
        %v727 = vpop.f32.mrb[0].mxu0
        %728 = vmatprep.mubr.f32.mxu0 0.0
        %729 = vmatmul.mubr.f32.gmra.mrb[0].mxu0 %v413
        %v730 = vpop.f32.mrb[0].mxu0
        %v731 = vadd.f32 %v325, %v730
        %v732 = vpop.f32.mrb[0].mxu0
        %733 = vmatprep.mubr.f32.mxu0 0.0
        %734 = vmatmul.mubr.f32.gmra.mrb[0].mxu0 %v416
        %v735 = vpop.f32.mrb[0].mxu0
        %v736 = vadd.f32 %v325, %v735
        %v737 = vpop.f32.mrb[0].mxu0
        %738 = vmatprep.mubr.f32.mxu0 0.0
        %739 = vmatmul.mubr.f32.gmra.mrb[0].mxu0 %v419
        %v740 = vpop.f32.mrb[0].mxu0
        %v741 = vadd.f32 %v325, %v740
        %v742 = vpop.f32.mrb[0].mxu0
        %743 = vmatprep.mubr.f32.mxu0 0.0
        %744 = vmatmul.mubr.f32.gmra.mrb[0].mxu0 %v422
        %v745 = vpop.f32.mrb[0].mxu0
        %v746 = vadd.f32 %v325, %v745
        %v747 = vpop.f32.mrb[0].mxu0
        %748 = vmatprep.mubr.f32.mxu0 0.0
        %749 = vmatmul.mubr.f32.gmra.mrb[0].mxu0 %v425
        %v750 = vpop.f32.mrb[0].mxu0
        %v751 = vadd.f32 %v325, %v750
        %v752 = vpop.f32.mrb[0].mxu0
        %753 = vmatprep.mubr.f32.mxu0 0.0
        %754 = vmatmul.mubr.f32.gmra.mrb[0].mxu0 %v428
        %v755 = vpop.f32.mrb[0].mxu0
        %v756 = vadd.f32 %v325, %v755
        %v757 = vpop.f32.mrb[0].mxu0
        %758 = vmatprep.mubr.f32.mxu0 0.0
        %759 = vmatmul.mubr.f32.gmra.mrb[0].mxu0 %v431
        %v760 = vpop.f32.mrb[0].mxu0
        %v761 = vadd.f32 %v325, %v760
        %v762 = vpop.f32.mrb[0].mxu0
        %763 = vmatprep.mubr.f32.mxu0 0.0
        %764 = vmatmul.mubr.f32.gmra.mrb[0].mxu0 %v434
        %v765 = vpop.f32.mrb[0].mxu0
        %v766 = vadd.f32 %v325, %v765
        %v767 = vpop.f32.mrb[0].mxu0
        %768 = vmatprep.mubr.f32.mxu0 0.0
        %769 = vmatmul.mubr.f32.gmra.mrb[0].mxu0 %v437
        %v770 = vpop.f32.mrb[0].mxu0
        %v771 = vadd.f32 %v325, %v770
        %v772 = vpop.f32.mrb[0].mxu0
        %773 = vmatprep.mubr.f32.mxu0 0.0
        %774 = vmatmul.mubr.f32.gmra.mrb[0].mxu0 %v440
        %v775 = vpop.f32.mrb[0].mxu0
        %v776 = vadd.f32 %v325, %v775
        %v777 = vpop.f32.mrb[0].mxu0
        %778 = vmatprep.mubr.f32.mxu0 0.0
        %779 = vmatmul.mubr.f32.gmra.mrb[0].mxu0 %v443
        %v780 = vpop.f32.mrb[0].mxu0
        %v781 = vadd.f32 %v325, %v780
        %v782 = vpop.f32.mrb[0].mxu0
        %783 = vmatprep.mubr.f32.mxu0 0.0
        %784 = vmatmul.mubr.f32.gmra.mrb[0].mxu0 %v446
        %v785 = vpop.f32.mrb[0].mxu0
        %v786 = vadd.f32 %v325, %v785
        %v787 = vpop.f32.mrb[0].mxu0
        %788 = vmatprep.mubr.f32.mxu0 0.0
        %789 = vmatmul.mubr.f32.gmra.mrb[0].mxu0 %v449
        %v790 = vpop.f32.mrb[0].mxu0
        %v791 = vadd.f32 %v325, %v790
        %v792 = vpop.f32.mrb[0].mxu0
        %793 = vmatprep.mubr.f32.mxu0 0.0
        %794 = vmatmul.mubr.f32.gmra.mrb[0].mxu0 %v452
        %v795 = vpop.f32.mrb[0].mxu0
        %v796 = vadd.f32 %v325, %v795
        %v797 = vpop.f32.mrb[0].mxu0
        %798 = vmatprep.mubr.f32.mxu0 0.0
        %799 = vmatmul.mubr.f32.gmra.mrb[0].mxu0 %v455
        %v800 = vpop.f32.mrb[0].mxu0
        %v801 = vadd.f32 %v325, %v800
        %v802 = vpop.f32.mrb[0].mxu0
        %803 = vmatprep.mubr.f32.mxu0 0.0
        %804 = vmatmul.mubr.f32.gmra.mrb[0].mxu0 %v458
        %v805 = vpop.f32.mrb[0].mxu0
        %v806 = vadd.f32 %v325, %v805
        %v807 = vpop.f32.mrb[0].mxu0
        %808 = vmatprep.mubr.f32.mxu0 0.0
        %809 = vmatmul.mubr.f32.gmra.mrb[0].mxu0 %v461
        %v810 = vpop.f32.mrb[0].mxu0
        %v811 = vadd.f32 %v325, %v810
        %v812 = vpop.f32.mrb[0].mxu0
        %813 = vmatprep.mubr.f32.mxu0 0.0
        %814 = vmatmul.mubr.f32.gmra.mrb[0].mxu0 %v464
        %v815 = vpop.f32.mrb[0].mxu0
        %v816 = vadd.f32 %v325, %v815
        %v817 = vpop.f32.mrb[0].mxu0
        %818 = vmatprep.mubr.f32.mxu0 0.0
        %819 = vmatmul.mubr.f32.gmra.mrb[0].mxu0 %v467
        %v820 = vpop.f32.mrb[0].mxu0
        %v821 = vadd.f32 %v325, %v820
        %v822 = vpop.f32.mrb[0].mxu0
        %823 = vmatprep.mubr.f32.mxu0 0.0
        %824 = vmatmul.mubr.f32.gmra.mrb[0].mxu0 %v470
        %v825 = vpop.f32.mrb[0].mxu0
        %v826 = vadd.f32 %v325, %v825
        %v827 = vpop.f32.mrb[0].mxu0
        %828 = vmatprep.mubr.f32.mxu0 0.0
        %829 = vmatmul.mubr.f32.gmra.mrb[0].mxu0 %v473
        %v830 = vpop.f32.mrb[0].mxu0
        %v831 = vadd.f32 %v325, %v830
        %v832 = vpop.f32.mrb[0].mxu0
        %833 = vmatprep.mubr.f32.mxu0 0.0
        %834 = vmatmul.mubr.f32.gmra.mrb[0].mxu0 %v476
        %v835 = vpop.f32.mrb[0].mxu0
        %v836 = vadd.f32 %v325, %v835
        %v837 = vpop.f32.mrb[0].mxu0
        %838 = vmatprep.mubr.f32.mxu0 0.0
        %839 = vmatmul.mubr.f32.gmra.mrb[0].mxu0 %v479
        %v840 = vpop.f32.mrb[0].mxu0
        %v841 = vadd.f32 %v325, %v840
        %v842 = vpop.f32.mrb[0].mxu0
        %843 = vmatprep.mubr.f32.mxu0 0.0
        %844 = vmatmul.mubr.f32.gmra.mrb[0].mxu0 %v482
        %v845 = vpop.f32.mrb[0].mxu0
        %v846 = vadd.f32 %v325, %v845
        %v847 = vpop.f32.mrb[0].mxu0
        %848 = vmatprep.mubr.f32.mxu0 0.0
        %849 = vmatmul.mubr.f32.gmra.mrb[0].mxu0 %v485
        %v850 = vpop.f32.mrb[0].mxu0
        %v851 = vadd.f32 %v325, %v850
        %v852 = vpop.f32.mrb[0].mxu0
        %853 = vmatprep.mubr.f32.mxu0 0.0
        %854 = vmatmul.mubr.f32.gmra.mrb[0].mxu0 %v488
        %v855 = vpop.f32.mrb[0].mxu0
        %v856 = vadd.f32 %v325, %v855
        %v857 = vpop.f32.mrb[0].mxu0
        %858 = vmatprep.mubr.f32.mxu0 0.0
        %859 = vmatmul.mubr.f32.gmra.mrb[0].mxu0 %v491
        %v860 = vpop.f32.mrb[0].mxu0
        %v861 = vadd.f32 %v325, %v860
        %v862 = vpop.f32.mrb[0].mxu0
        %863 = vmatprep.mubr.f32.mxu0 0.0
        %864 = vmatmul.mubr.f32.gmra.mrb[0].mxu0 %v494
        %v865 = vpop.f32.mrb[0].mxu0
        %v866 = vadd.f32 %v325, %v865
        %v867 = vpop.f32.mrb[0].mxu0
        %868 = vmatprep.mubr.f32.mxu0 0.0
        %869 = vmatmul.mubr.f32.gmra.mrb[0].mxu0 %v497
        %v870 = vpop.f32.mrb[0].mxu0
        %v871 = vadd.f32 %v325, %v870
        %v872 = vpop.f32.mrb[0].mxu0
        %873 = vmatprep.mubr.f32.mxu0 0.0
        %874 = vmatmul.mubr.f32.gmra.mrb[0].mxu0 %v500
        %v875 = vpop.f32.mrb[0].mxu0
        %v876 = vadd.f32 %v325, %v875
        %v877 = vpop.f32.mrb[0].mxu0
        %878 = vmatprep.mubr.f32.mxu0 0.0
        %879 = vmatmul.mubr.f32.gmra.mrb[0].mxu0 %v503
        %v880 = vpop.f32.mrb[0].mxu0
        %v881 = vadd.f32 %v325, %v880
        %v882 = vpop.f32.mrb[0].mxu0
        %883 = vmatprep.mubr.f32.mxu0 0.0
        %884 = vmatmul.mubr.f32.gmra.mrb[0].mxu0 %v506
        %v885 = vpop.f32.mrb[0].mxu0
        %v886 = vadd.f32 %v325, %v885
        %v887 = vpop.f32.mrb[0].mxu0
        %888 = vmatprep.mubr.f32.mxu0 0.0
        %889 = vmatmul.mubr.f32.gmra.mrb[0].mxu0 %v509
        %v890 = vpop.f32.mrb[0].mxu0
        %v891 = vadd.f32 %v325, %v890
        %v892 = vpop.f32.mrb[0].mxu0
        %893 = vmatprep.mubr.f32.mxu0 0.0
        %894 = vmatmul.mubr.f32.gmra.mrb[0].mxu0 %v512
        %v895 = vpop.f32.mrb[0].mxu0
        %v896 = vadd.f32 %v325, %v895
        %v897 = vpop.f32.mrb[0].mxu0
        %898 = vmatprep.mubr.f32.mxu0 0.0
        %899 = vmatmul.mubr.f32.gmra.mrb[0].mxu0 %v515
        %v900 = vpop.f32.mrb[0].mxu0
        %v901 = vadd.f32 %v325, %v900
        %v902 = vpop.f32.mrb[0].mxu0
        %903 = vmatprep.mubr.f32.mxu0 0.0
        %904 = vmatmul.mubr.f32.gmra.mrb[0].mxu0 %v518
        %v905 = vpop.f32.mrb[0].mxu0
        %v906 = vadd.f32 %v325, %v905
        %v907 = vpop.f32.mrb[0].mxu0
        %908 = vdwg.mxu0
        %v909 = vmax.f32 %v591, 0.0
        %v910 = vmax.f32 %v596, 0.0
        %v911 = vmax.f32 %v601, 0.0
        %v912 = vmax.f32 %v606, 0.0
        %v913 = vmax.f32 %v611, 0.0
        %v914 = vmax.f32 %v616, 0.0
        %v915 = vmax.f32 %v621, 0.0
        %v916 = vmax.f32 %v626, 0.0
        %v917 = vmax.f32 %v631, 0.0
        %v918 = vmax.f32 %v636, 0.0
        %v919 = vmax.f32 %v641, 0.0
        %v920 = vmax.f32 %v646, 0.0
        %v921 = vmax.f32 %v651, 0.0
        %v922 = vmax.f32 %v656, 0.0
        %v923 = vmax.f32 %v661, 0.0
        %v924 = vmax.f32 %v666, 0.0
        %v925 = vmax.f32 %v671, 0.0
        %v926 = vmax.f32 %v676, 0.0
        %v927 = vmax.f32 %v681, 0.0
        %v928 = vmax.f32 %v686, 0.0
        %v929 = vmax.f32 %v691, 0.0
        %v930 = vmax.f32 %v696, 0.0
        %v931 = vmax.f32 %v701, 0.0
        %v932 = vmax.f32 %v706, 0.0
        %v933 = vmax.f32 %v711, 0.0
        %v934 = vmax.f32 %v716, 0.0
        %v935 = vmax.f32 %v721, 0.0
        %v936 = vmax.f32 %v726, 0.0
        %v937 = vmax.f32 %v731, 0.0
        %v938 = vmax.f32 %v736, 0.0
        %v939 = vmax.f32 %v741, 0.0
        %v940 = vmax.f32 %v746, 0.0
        %v941 = vmax.f32 %v751, 0.0
        %v942 = vmax.f32 %v756, 0.0
        %v943 = vmax.f32 %v761, 0.0
        %v944 = vmax.f32 %v766, 0.0
        %v945 = vmax.f32 %v771, 0.0
        %v946 = vmax.f32 %v776, 0.0
        %v947 = vmax.f32 %v781, 0.0
        %v948 = vmax.f32 %v786, 0.0
        %v949 = vmax.f32 %v791, 0.0
        %v950 = vmax.f32 %v796, 0.0
        %v951 = vmax.f32 %v801, 0.0
        %v952 = vmax.f32 %v806, 0.0
        %v953 = vmax.f32 %v811, 0.0
        %v954 = vmax.f32 %v816, 0.0
        %v955 = vmax.f32 %v821, 0.0
        %v956 = vmax.f32 %v826, 0.0
        %v957 = vmax.f32 %v831, 0.0
        %v958 = vmax.f32 %v836, 0.0
        %v959 = vmax.f32 %v841, 0.0
        %v960 = vmax.f32 %v846, 0.0
        %v961 = vmax.f32 %v851, 0.0
        %v962 = vmax.f32 %v856, 0.0
        %v963 = vmax.f32 %v861, 0.0
        %v964 = vmax.f32 %v866, 0.0
        %v965 = vmax.f32 %v871, 0.0
        %v966 = vmax.f32 %v876, 0.0
        %v967 = vmax.f32 %v881, 0.0
        %v968 = vmax.f32 %v886, 0.0
        %v969 = vmax.f32 %v891, 0.0
        %v970 = vmax.f32 %v896, 0.0
        %v971 = vmax.f32 %v901, 0.0
        %v972 = vmax.f32 %v906, 0.0
        %v973 = vld [vmem:[%s3] sm:$0x1]
        %v975 = vlaneseq
        %v976 = vshrl.u32 %v975, 7
        %v977 = vsub.s32 0, %v976
        %v978 = vrot.slane %v973, %v977
        %v980 = vmul.f32 %v909, %v978
        %v981 = vmul.f32 %v910, %v978
        %v982 = vmul.f32 %v911, %v978
        %v983 = vmul.f32 %v912, %v978
        %v984 = vmul.f32 %v913, %v978
        %v985 = vmul.f32 %v914, %v978
        %v986 = vmul.f32 %v915, %v978
        %v987 = vmul.f32 %v916, %v978
        %v988 = vmul.f32 %v917, %v978
        %v989 = vmul.f32 %v918, %v978
        %v990 = vmul.f32 %v919, %v978
        %v991 = vmul.f32 %v920, %v978
        %v992 = vmul.f32 %v921, %v978
        %v993 = vmul.f32 %v922, %v978
        %v994 = vmul.f32 %v923, %v978
        %v995 = vmul.f32 %v924, %v978
        %v996 = vmul.f32 %v925, %v978
        %v997 = vmul.f32 %v926, %v978
        %v998 = vmul.f32 %v927, %v978
        %v999 = vmul.f32 %v928, %v978
        %v1000 = vmul.f32 %v929, %v978
        %v1001 = vmul.f32 %v930, %v978
        %v1002 = vmul.f32 %v931, %v978
        %v1003 = vmul.f32 %v932, %v978
        %v1004 = vmul.f32 %v933, %v978
        %v1005 = vmul.f32 %v934, %v978
        %v1006 = vmul.f32 %v935, %v978
        %v1007 = vmul.f32 %v936, %v978
        %v1008 = vmul.f32 %v937, %v978
        %v1009 = vmul.f32 %v938, %v978
        %v1010 = vmul.f32 %v939, %v978
        %v1011 = vmul.f32 %v940, %v978
        %v1012 = vmul.f32 %v941, %v978
        %v1013 = vmul.f32 %v942, %v978
        %v1014 = vmul.f32 %v943, %v978
        %v1015 = vmul.f32 %v944, %v978
        %v1016 = vmul.f32 %v945, %v978
        %v1017 = vmul.f32 %v946, %v978
        %v1018 = vmul.f32 %v947, %v978
        %v1019 = vmul.f32 %v948, %v978
        %v1020 = vmul.f32 %v949, %v978
        %v1021 = vmul.f32 %v950, %v978
        %v1022 = vmul.f32 %v951, %v978
        %v1023 = vmul.f32 %v952, %v978
        %v1024 = vmul.f32 %v953, %v978
        %v1025 = vmul.f32 %v954, %v978
        %v1026 = vmul.f32 %v955, %v978
        %v1027 = vmul.f32 %v956, %v978
        %v1028 = vmul.f32 %v957, %v978
        %v1029 = vmul.f32 %v958, %v978
        %v1030 = vmul.f32 %v959, %v978
        %v1031 = vmul.f32 %v960, %v978
        %v1032 = vmul.f32 %v961, %v978
        %v1033 = vmul.f32 %v962, %v978
        %v1034 = vmul.f32 %v963, %v978
        %v1035 = vmul.f32 %v964, %v978
        %v1036 = vmul.f32 %v965, %v978
        %v1037 = vmul.f32 %v966, %v978
        %v1038 = vmul.f32 %v967, %v978
        %v1039 = vmul.f32 %v968, %v978
        %v1040 = vmul.f32 %v969, %v978
        %v1041 = vmul.f32 %v970, %v978
        %v1042 = vmul.f32 %v971, %v978
        %v1043 = vmul.f32 %v972, %v978
        %v1044 = vld [vmem:[%s4] sm:$0x1]
        %v1046 = vlaneseq
        %v1047 = vshrl.u32 %v1046, 7
        %v1048 = vsub.s32 0, %v1047
        %v1049 = vrot.slane %v1044, %v1048
        %v1051 = vadd.f32 %v980, %v1049
        %v1052 = vadd.f32 %v981, %v1049
        %v1053 = vadd.f32 %v982, %v1049
        %v1054 = vadd.f32 %v983, %v1049
        %v1055 = vadd.f32 %v984, %v1049
        %v1056 = vadd.f32 %v985, %v1049
        %v1057 = vadd.f32 %v986, %v1049
        %v1058 = vadd.f32 %v987, %v1049
        %v1059 = vadd.f32 %v988, %v1049
        %v1060 = vadd.f32 %v989, %v1049
        %v1061 = vadd.f32 %v990, %v1049
        %v1062 = vadd.f32 %v991, %v1049
        %v1063 = vadd.f32 %v992, %v1049
        %v1064 = vadd.f32 %v993, %v1049
        %v1065 = vadd.f32 %v994, %v1049
        %v1066 = vadd.f32 %v995, %v1049
        %v1067 = vadd.f32 %v996, %v1049
        %v1068 = vadd.f32 %v997, %v1049
        %v1069 = vadd.f32 %v998, %v1049
        %v1070 = vadd.f32 %v999, %v1049
        %v1071 = vadd.f32 %v1000, %v1049
        %v1072 = vadd.f32 %v1001, %v1049
        %v1073 = vadd.f32 %v1002, %v1049
        %v1074 = vadd.f32 %v1003, %v1049
        %v1075 = vadd.f32 %v1004, %v1049
        %v1076 = vadd.f32 %v1005, %v1049
        %v1077 = vadd.f32 %v1006, %v1049
        %v1078 = vadd.f32 %v1007, %v1049
        %v1079 = vadd.f32 %v1008, %v1049
        %v1080 = vadd.f32 %v1009, %v1049
        %v1081 = vadd.f32 %v1010, %v1049
        %v1082 = vadd.f32 %v1011, %v1049
        %v1083 = vadd.f32 %v1012, %v1049
        %v1084 = vadd.f32 %v1013, %v1049
        %v1085 = vadd.f32 %v1014, %v1049
        %v1086 = vadd.f32 %v1015, %v1049
        %v1087 = vadd.f32 %v1016, %v1049
        %v1088 = vadd.f32 %v1017, %v1049
        %v1089 = vadd.f32 %v1018, %v1049
        %v1090 = vadd.f32 %v1019, %v1049
        %v1091 = vadd.f32 %v1020, %v1049
        %v1092 = vadd.f32 %v1021, %v1049
        %v1093 = vadd.f32 %v1022, %v1049
        %v1094 = vadd.f32 %v1023, %v1049
        %v1095 = vadd.f32 %v1024, %v1049
        %v1096 = vadd.f32 %v1025, %v1049
        %v1097 = vadd.f32 %v1026, %v1049
        %v1098 = vadd.f32 %v1027, %v1049
        %v1099 = vadd.f32 %v1028, %v1049
        %v1100 = vadd.f32 %v1029, %v1049
        %v1101 = vadd.f32 %v1030, %v1049
        %v1102 = vadd.f32 %v1031, %v1049
        %v1103 = vadd.f32 %v1032, %v1049
        %v1104 = vadd.f32 %v1033, %v1049
        %v1105 = vadd.f32 %v1034, %v1049
        %v1106 = vadd.f32 %v1035, %v1049
        %v1107 = vadd.f32 %v1036, %v1049
        %v1108 = vadd.f32 %v1037, %v1049
        %v1109 = vadd.f32 %v1038, %v1049
        %v1110 = vadd.f32 %v1039, %v1049
        %v1111 = vadd.f32 %v1040, %v1049
        %v1112 = vadd.f32 %v1041, %v1049
        %v1113 = vadd.f32 %v1042, %v1049
        %v1114 = vadd.f32 %v1043, %v1049
        %vm1115 = vcmask 64512
        %1116 = vst.msk [vmem:[%s226] sm:$0xff] %vm1115, %v1051
        %1117 = vst.msk [vmem:[%s226 + $0x8] sm:$0xff] %vm1115, %v1052
        %1118 = vst.msk [vmem:[%s226 + $0x10] sm:$0xff] %vm1115, %v1053
        %1119 = vst.msk [vmem:[%s226 + $0x18] sm:$0xff] %vm1115, %v1054
        %1120 = vst.msk [vmem:[%s226 + $0x20] sm:$0xff] %vm1115, %v1055
        %1121 = vst.msk [vmem:[%s226 + $0x28] sm:$0xff] %vm1115, %v1056
        %1122 = vst.msk [vmem:[%s226 + $0x30] sm:$0xff] %vm1115, %v1057
        %1123 = vst.msk [vmem:[%s226 + $0x38] sm:$0xff] %vm1115, %v1058
        %1124 = vst.msk [vmem:[%s226 + $0x40] sm:$0xff] %vm1115, %v1059
        %1125 = vst.msk [vmem:[%s226 + $0x48] sm:$0xff] %vm1115, %v1060
        %1126 = vst.msk [vmem:[%s226 + $0x50] sm:$0xff] %vm1115, %v1061
        %1127 = vst.msk [vmem:[%s226 + $0x58] sm:$0xff] %vm1115, %v1062
        %1128 = vst.msk [vmem:[%s226 + $0x60] sm:$0xff] %vm1115, %v1063
        %1129 = vst.msk [vmem:[%s226 + $0x68] sm:$0xff] %vm1115, %v1064
        %1130 = vst.msk [vmem:[%s226 + $0x70] sm:$0xff] %vm1115, %v1065
        %1131 = vst.msk [vmem:[%s226 + $0x78] sm:$0xff] %vm1115, %v1066
        %1132 = vst.msk [vmem:[%s226 + $0x80] sm:$0xff] %vm1115, %v1067
        %1133 = vst.msk [vmem:[%s226 + $0x88] sm:$0xff] %vm1115, %v1068
        %1134 = vst.msk [vmem:[%s226 + $0x90] sm:$0xff] %vm1115, %v1069
        %1135 = vst.msk [vmem:[%s226 + $0x98] sm:$0xff] %vm1115, %v1070
        %1136 = vst.msk [vmem:[%s226 + $0xa0] sm:$0xff] %vm1115, %v1071
        %1137 = vst.msk [vmem:[%s226 + $0xa8] sm:$0xff] %vm1115, %v1072
        %1138 = vst.msk [vmem:[%s226 + $0xb0] sm:$0xff] %vm1115, %v1073
        %1139 = vst.msk [vmem:[%s226 + $0xb8] sm:$0xff] %vm1115, %v1074
        %1140 = vst.msk [vmem:[%s226 + $0xc0] sm:$0xff] %vm1115, %v1075
        %1141 = vst.msk [vmem:[%s226 + $0xc8] sm:$0xff] %vm1115, %v1076
        %1142 = vst.msk [vmem:[%s226 + $0xd0] sm:$0xff] %vm1115, %v1077
        %1143 = vst.msk [vmem:[%s226 + $0xd8] sm:$0xff] %vm1115, %v1078
        %1144 = vst.msk [vmem:[%s226 + $0xe0] sm:$0xff] %vm1115, %v1079
        %1145 = vst.msk [vmem:[%s226 + $0xe8] sm:$0xff] %vm1115, %v1080
        %1146 = vst.msk [vmem:[%s226 + $0xf0] sm:$0xff] %vm1115, %v1081
        %1147 = vst.msk [vmem:[%s226 + $0xf8] sm:$0xff] %vm1115, %v1082
        %1148 = vst.msk [vmem:[%s226 + $0x100] sm:$0xff] %vm1115, %v1083
        %1149 = vst.msk [vmem:[%s226 + $0x108] sm:$0xff] %vm1115, %v1084
        %1150 = vst.msk [vmem:[%s226 + $0x110] sm:$0xff] %vm1115, %v1085
        %1151 = vst.msk [vmem:[%s226 + $0x118] sm:$0xff] %vm1115, %v1086
        %1152 = vst.msk [vmem:[%s226 + $0x120] sm:$0xff] %vm1115, %v1087
        %1153 = vst.msk [vmem:[%s226 + $0x128] sm:$0xff] %vm1115, %v1088
        %1154 = vst.msk [vmem:[%s226 + $0x130] sm:$0xff] %vm1115, %v1089
        %1155 = vst.msk [vmem:[%s226 + $0x138] sm:$0xff] %vm1115, %v1090
        %1156 = vst.msk [vmem:[%s226 + $0x140] sm:$0xff] %vm1115, %v1091
        %1157 = vst.msk [vmem:[%s226 + $0x148] sm:$0xff] %vm1115, %v1092
        %1158 = vst.msk [vmem:[%s226 + $0x150] sm:$0xff] %vm1115, %v1093
        %1159 = vst.msk [vmem:[%s226 + $0x158] sm:$0xff] %vm1115, %v1094
        %1160 = vst.msk [vmem:[%s226 + $0x160] sm:$0xff] %vm1115, %v1095
        %1161 = vst.msk [vmem:[%s226 + $0x168] sm:$0xff] %vm1115, %v1096
        %1162 = vst.msk [vmem:[%s226 + $0x170] sm:$0xff] %vm1115, %v1097
        %1163 = vst.msk [vmem:[%s226 + $0x178] sm:$0xff] %vm1115, %v1098
        %1164 = vst.msk [vmem:[%s226 + $0x180] sm:$0xff] %vm1115, %v1099
        %1165 = vst.msk [vmem:[%s226 + $0x188] sm:$0xff] %vm1115, %v1100
        %1166 = vst.msk [vmem:[%s226 + $0x190] sm:$0xff] %vm1115, %v1101
        %1167 = vst.msk [vmem:[%s226 + $0x198] sm:$0xff] %vm1115, %v1102
        %1168 = vst.msk [vmem:[%s226 + $0x1a0] sm:$0xff] %vm1115, %v1103
        %1169 = vst.msk [vmem:[%s226 + $0x1a8] sm:$0xff] %vm1115, %v1104
        %1170 = vst.msk [vmem:[%s226 + $0x1b0] sm:$0xff] %vm1115, %v1105
        %1171 = vst.msk [vmem:[%s226 + $0x1b8] sm:$0xff] %vm1115, %v1106
        %1172 = vst.msk [vmem:[%s226 + $0x1c0] sm:$0xff] %vm1115, %v1107
        %1173 = vst.msk [vmem:[%s226 + $0x1c8] sm:$0xff] %vm1115, %v1108
        %1174 = vst.msk [vmem:[%s226 + $0x1d0] sm:$0xff] %vm1115, %v1109
        %1175 = vst.msk [vmem:[%s226 + $0x1d8] sm:$0xff] %vm1115, %v1110
        %1176 = vst.msk [vmem:[%s226 + $0x1e0] sm:$0xff] %vm1115, %v1111
        %1177 = vst.msk [vmem:[%s226 + $0x1e8] sm:$0xff] %vm1115, %v1112
        %1178 = vst.msk [vmem:[%s226 + $0x1f0] sm:$0xff] %vm1115, %v1113
        %1179 = vst.msk [vmem:[%s226 + $0x1f8] sm:$0xff] %vm1115, %v1114
        %s1180 = sand.u32 %s134, 1
        %s1181 = sand.u32 %s134, 1
        %s1182 = smul.addr %s1181, 512
        %s1183 = scalar_lea.vmem [#allocation2], %s1182
        // Predicated region
        $region41: #{neural_spline_forward.8} parent=39 // pred_check
          %p1184 = pneg %p144
        $region42: #{neural_spline_forward.8} parent=39 // pred_check_branch
          %1186 = sbr.rel (%p1184) target = $region44
        $region43: #{neural_spline_forward.8} parent=39 // pred_region
          %s1187 = smul.u32 64, %s16
          %s1188 = ssub.s32 993, %s1187
          %p1189 = scmp.lt.s32.totalorder %s1188, 64
          %s1190 = scalar_select %p1189, %s1188, 64
          %s1191 = smul.u32 128, %s1190
          %p1192 = scmp.ne.s32.totalorder 0, %s1191
          %s1193 = smul.addr %s1187, 8
          %s1194 = scalar_lea.vmem %s5, %s1193
          // Predicated region
          $region45: #{neural_spline_forward.8} parent=43 // pred_check
            %p1195 = pneg %p1192
          $region46: #{neural_spline_forward.8} parent=43 // pred_check_branch
            %1197 = sbr.rel (%p1195) target = $region48
          $region47: #{neural_spline_forward.8} parent=43 // pred_region
            // Predicated region
            $region49: #{neural_spline_forward.8} parent=47 // pred_check
              _
            $region50: #{neural_spline_forward.8} parent=47 // pred_check_branch
              %1199 = sbr.rel (0) target = $region52
            $region51: #{neural_spline_forward.8} parent=47 // pred_region
              // Predicated region
              $region71: #{neural_spline_forward.8} parent=51 // pred_check
                _
              $region72: #{neural_spline_forward.8} parent=51 // pred_check_branch
                %1374 = sbr.rel (0) target = $region74
              $region73: #{neural_spline_forward.8} parent=51 // pred_region
                %s1375 = sshrl.u32 %s1190, 6
                // While loop
                $region75: #{neural_spline_forward.8} parent=73 // loop_pre_header
                  _
                $region76: #{neural_spline_forward.8} parent=73 // loop_header
                  %s1377 = sphi 0, %s1379
                  %p1378 = scmp.ge.s32.totalorder %s1377, %s1375
                  %s1382 = sphi 0, %s1515
                  %s1383 = sphi %s1183, %s1518
                  %s1384 = sphi %s1194, %s1519
                $region77: #{neural_spline_forward.8} parent=73 // loop_header_branch
                  %1381 = sbr.rel (%p1378) target = $region81
                $region78: #{neural_spline_forward.8} parent=73 // loop_body
                  %v1385 = vld [vmem:[%s1383] sm:$0xff]
                  %1386 = vst [vmem:[%s1384] sm:$0xff] %v1385
                  %v1387 = vld [vmem:[%s1383 + $0x8] sm:$0xff]
                  %1388 = vst [vmem:[%s1384 + $0x8] sm:$0xff] %v1387
                  %v1389 = vld [vmem:[%s1383 + $0x10] sm:$0xff]
                  %1390 = vst [vmem:[%s1384 + $0x10] sm:$0xff] %v1389
                  %v1391 = vld [vmem:[%s1383 + $0x18] sm:$0xff]
                  %1392 = vst [vmem:[%s1384 + $0x18] sm:$0xff] %v1391
                  %v1393 = vld [vmem:[%s1383 + $0x20] sm:$0xff]
                  %1394 = vst [vmem:[%s1384 + $0x20] sm:$0xff] %v1393
                  %v1395 = vld [vmem:[%s1383 + $0x28] sm:$0xff]
                  %1396 = vst [vmem:[%s1384 + $0x28] sm:$0xff] %v1395
                  %v1397 = vld [vmem:[%s1383 + $0x30] sm:$0xff]
                  %1398 = vst [vmem:[%s1384 + $0x30] sm:$0xff] %v1397
                  %v1399 = vld [vmem:[%s1383 + $0x38] sm:$0xff]
                  %1400 = vst [vmem:[%s1384 + $0x38] sm:$0xff] %v1399
                  %v1401 = vld [vmem:[%s1383 + $0x40] sm:$0xff]
                  %1402 = vst [vmem:[%s1384 + $0x40] sm:$0xff] %v1401
                  %v1403 = vld [vmem:[%s1383 + $0x48] sm:$0xff]
                  %1404 = vst [vmem:[%s1384 + $0x48] sm:$0xff] %v1403
                  %v1405 = vld [vmem:[%s1383 + $0x50] sm:$0xff]
                  %1406 = vst [vmem:[%s1384 + $0x50] sm:$0xff] %v1405
                  %v1407 = vld [vmem:[%s1383 + $0x58] sm:$0xff]
                  %1408 = vst [vmem:[%s1384 + $0x58] sm:$0xff] %v1407
                  %v1409 = vld [vmem:[%s1383 + $0x60] sm:$0xff]
                  %1410 = vst [vmem:[%s1384 + $0x60] sm:$0xff] %v1409
                  %v1411 = vld [vmem:[%s1383 + $0x68] sm:$0xff]
                  %1412 = vst [vmem:[%s1384 + $0x68] sm:$0xff] %v1411
                  %v1413 = vld [vmem:[%s1383 + $0x70] sm:$0xff]
                  %1414 = vst [vmem:[%s1384 + $0x70] sm:$0xff] %v1413
                  %v1415 = vld [vmem:[%s1383 + $0x78] sm:$0xff]
                  %1416 = vst [vmem:[%s1384 + $0x78] sm:$0xff] %v1415
                  %v1417 = vld [vmem:[%s1383 + $0x80] sm:$0xff]
                  %1418 = vst [vmem:[%s1384 + $0x80] sm:$0xff] %v1417
                  %v1419 = vld [vmem:[%s1383 + $0x88] sm:$0xff]
                  %1420 = vst [vmem:[%s1384 + $0x88] sm:$0xff] %v1419
                  %v1421 = vld [vmem:[%s1383 + $0x90] sm:$0xff]
                  %1422 = vst [vmem:[%s1384 + $0x90] sm:$0xff] %v1421
                  %v1423 = vld [vmem:[%s1383 + $0x98] sm:$0xff]
                  %1424 = vst [vmem:[%s1384 + $0x98] sm:$0xff] %v1423
                  %v1425 = vld [vmem:[%s1383 + $0xa0] sm:$0xff]
                  %1426 = vst [vmem:[%s1384 + $0xa0] sm:$0xff] %v1425
                  %v1427 = vld [vmem:[%s1383 + $0xa8] sm:$0xff]
                  %1428 = vst [vmem:[%s1384 + $0xa8] sm:$0xff] %v1427
                  %v1429 = vld [vmem:[%s1383 + $0xb0] sm:$0xff]
                  %1430 = vst [vmem:[%s1384 + $0xb0] sm:$0xff] %v1429
                  %v1431 = vld [vmem:[%s1383 + $0xb8] sm:$0xff]
                  %1432 = vst [vmem:[%s1384 + $0xb8] sm:$0xff] %v1431
                  %v1433 = vld [vmem:[%s1383 + $0xc0] sm:$0xff]
                  %1434 = vst [vmem:[%s1384 + $0xc0] sm:$0xff] %v1433
                  %v1435 = vld [vmem:[%s1383 + $0xc8] sm:$0xff]
                  %1436 = vst [vmem:[%s1384 + $0xc8] sm:$0xff] %v1435
                  %v1437 = vld [vmem:[%s1383 + $0xd0] sm:$0xff]
                  %1438 = vst [vmem:[%s1384 + $0xd0] sm:$0xff] %v1437
                  %v1439 = vld [vmem:[%s1383 + $0xd8] sm:$0xff]
                  %1440 = vst [vmem:[%s1384 + $0xd8] sm:$0xff] %v1439
                  %v1441 = vld [vmem:[%s1383 + $0xe0] sm:$0xff]
                  %1442 = vst [vmem:[%s1384 + $0xe0] sm:$0xff] %v1441
                  %v1443 = vld [vmem:[%s1383 + $0xe8] sm:$0xff]
                  %1444 = vst [vmem:[%s1384 + $0xe8] sm:$0xff] %v1443
                  %v1445 = vld [vmem:[%s1383 + $0xf0] sm:$0xff]
                  %1446 = vst [vmem:[%s1384 + $0xf0] sm:$0xff] %v1445
                  %v1447 = vld [vmem:[%s1383 + $0xf8] sm:$0xff]
                  %1448 = vst [vmem:[%s1384 + $0xf8] sm:$0xff] %v1447
                  %v1449 = vld [vmem:[%s1383 + $0x100] sm:$0xff]
                  %1450 = vst [vmem:[%s1384 + $0x100] sm:$0xff] %v1449
                  %v1451 = vld [vmem:[%s1383 + $0x108] sm:$0xff]
                  %1452 = vst [vmem:[%s1384 + $0x108] sm:$0xff] %v1451
                  %v1453 = vld [vmem:[%s1383 + $0x110] sm:$0xff]
                  %1454 = vst [vmem:[%s1384 + $0x110] sm:$0xff] %v1453
                  %v1455 = vld [vmem:[%s1383 + $0x118] sm:$0xff]
                  %1456 = vst [vmem:[%s1384 + $0x118] sm:$0xff] %v1455
                  %v1457 = vld [vmem:[%s1383 + $0x120] sm:$0xff]
                  %1458 = vst [vmem:[%s1384 + $0x120] sm:$0xff] %v1457
                  %v1459 = vld [vmem:[%s1383 + $0x128] sm:$0xff]
                  %1460 = vst [vmem:[%s1384 + $0x128] sm:$0xff] %v1459
                  %v1461 = vld [vmem:[%s1383 + $0x130] sm:$0xff]
                  %1462 = vst [vmem:[%s1384 + $0x130] sm:$0xff] %v1461
                  %v1463 = vld [vmem:[%s1383 + $0x138] sm:$0xff]
                  %1464 = vst [vmem:[%s1384 + $0x138] sm:$0xff] %v1463
                  %v1465 = vld [vmem:[%s1383 + $0x140] sm:$0xff]
                  %1466 = vst [vmem:[%s1384 + $0x140] sm:$0xff] %v1465
                  %v1467 = vld [vmem:[%s1383 + $0x148] sm:$0xff]
                  %1468 = vst [vmem:[%s1384 + $0x148] sm:$0xff] %v1467
                  %v1469 = vld [vmem:[%s1383 + $0x150] sm:$0xff]
                  %1470 = vst [vmem:[%s1384 + $0x150] sm:$0xff] %v1469
                  %v1471 = vld [vmem:[%s1383 + $0x158] sm:$0xff]
                  %1472 = vst [vmem:[%s1384 + $0x158] sm:$0xff] %v1471
                  %v1473 = vld [vmem:[%s1383 + $0x160] sm:$0xff]
                  %1474 = vst [vmem:[%s1384 + $0x160] sm:$0xff] %v1473
                  %v1475 = vld [vmem:[%s1383 + $0x168] sm:$0xff]
                  %1476 = vst [vmem:[%s1384 + $0x168] sm:$0xff] %v1475
                  %v1477 = vld [vmem:[%s1383 + $0x170] sm:$0xff]
                  %1478 = vst [vmem:[%s1384 + $0x170] sm:$0xff] %v1477
                  %v1479 = vld [vmem:[%s1383 + $0x178] sm:$0xff]
                  %1480 = vst [vmem:[%s1384 + $0x178] sm:$0xff] %v1479
                  %v1481 = vld [vmem:[%s1383 + $0x180] sm:$0xff]
                  %1482 = vst [vmem:[%s1384 + $0x180] sm:$0xff] %v1481
                  %v1483 = vld [vmem:[%s1383 + $0x188] sm:$0xff]
                  %1484 = vst [vmem:[%s1384 + $0x188] sm:$0xff] %v1483
                  %v1485 = vld [vmem:[%s1383 + $0x190] sm:$0xff]
                  %1486 = vst [vmem:[%s1384 + $0x190] sm:$0xff] %v1485
                  %v1487 = vld [vmem:[%s1383 + $0x198] sm:$0xff]
                  %1488 = vst [vmem:[%s1384 + $0x198] sm:$0xff] %v1487
                  %v1489 = vld [vmem:[%s1383 + $0x1a0] sm:$0xff]
                  %1490 = vst [vmem:[%s1384 + $0x1a0] sm:$0xff] %v1489
                  %v1491 = vld [vmem:[%s1383 + $0x1a8] sm:$0xff]
                  %1492 = vst [vmem:[%s1384 + $0x1a8] sm:$0xff] %v1491
                  %v1493 = vld [vmem:[%s1383 + $0x1b0] sm:$0xff]
                  %1494 = vst [vmem:[%s1384 + $0x1b0] sm:$0xff] %v1493
                  %v1495 = vld [vmem:[%s1383 + $0x1b8] sm:$0xff]
                  %1496 = vst [vmem:[%s1384 + $0x1b8] sm:$0xff] %v1495
                  %v1497 = vld [vmem:[%s1383 + $0x1c0] sm:$0xff]
                  %1498 = vst [vmem:[%s1384 + $0x1c0] sm:$0xff] %v1497
                  %v1499 = vld [vmem:[%s1383 + $0x1c8] sm:$0xff]
                  %1500 = vst [vmem:[%s1384 + $0x1c8] sm:$0xff] %v1499
                  %v1501 = vld [vmem:[%s1383 + $0x1d0] sm:$0xff]
                  %1502 = vst [vmem:[%s1384 + $0x1d0] sm:$0xff] %v1501
                  %v1503 = vld [vmem:[%s1383 + $0x1d8] sm:$0xff]
                  %1504 = vst [vmem:[%s1384 + $0x1d8] sm:$0xff] %v1503
                  %v1505 = vld [vmem:[%s1383 + $0x1e0] sm:$0xff]
                  %1506 = vst [vmem:[%s1384 + $0x1e0] sm:$0xff] %v1505
                  %v1507 = vld [vmem:[%s1383 + $0x1e8] sm:$0xff]
                  %1508 = vst [vmem:[%s1384 + $0x1e8] sm:$0xff] %v1507
                  %v1509 = vld [vmem:[%s1383 + $0x1f0] sm:$0xff]
                  %1510 = vst [vmem:[%s1384 + $0x1f0] sm:$0xff] %v1509
                  %v1511 = vld [vmem:[%s1383 + $0x1f8] sm:$0xff]
                  %1512 = vst [vmem:[%s1384 + $0x1f8] sm:$0xff] %v1511
                  %s1513 = sadd.s32 1, %s1382
                  %p1514 = scmp.ge.s32.totalorder %s1513, %s1375
                  %s1515 = scalar_select %p1514, 0, %s1513
                  %s1516 = smul.u32 %s1515, 512
                  %s1517 = smul.u32 %s1515, 512
                  %s1518 = scalar_lea.vmem %s1183, %s1516 [#allocation2]
                  %s1519 = scalar_lea.vmem %s1194, %s1517
                $region79: #{neural_spline_forward.8} parent=73 // loop_footer
                  %s1379 = sadd.s32 %s1377, 1
                $region80: #{neural_spline_forward.8} parent=73 // loop_footer_branch
                  %1376 = sbr.rel target = $region76
                $region81: #{neural_spline_forward.8} parent=73 // loop_exit
                  _
                %s1520 = sshrl.u32 %s1190, 6
                %s1521 = sand.u32 %s1190, 63
                %s1522 = smul.u32 %s1520, 64
                %s1523 = smul.u32 8, %s1522
                %s1524 = scalar_lea.vmem %s1183, %s1523 [#allocation2]
                %s1525 = smul.u32 8, %s1522
                %s1526 = scalar_lea.vmem %s1194, %s1525
                // While loop
                $region82: #{neural_spline_forward.8} parent=73 // loop_pre_header
                  _
                $region83: #{neural_spline_forward.8} parent=73 // loop_header
                  %s1528 = sphi 0, %s1530
                  %p1529 = scmp.ge.s32.totalorder %s1528, %s1521
                  %s1533 = sphi 0, %s1540
                  %s1534 = sphi %s1524, %s1543
                  %s1535 = sphi %s1526, %s1544
                $region84: #{neural_spline_forward.8} parent=73 // loop_header_branch
                  %1532 = sbr.rel (%p1529) target = $region88
                $region85: #{neural_spline_forward.8} parent=73 // loop_body
                  %v1536 = vld [vmem:[%s1534] sm:$0xff]
                  %1537 = vst [vmem:[%s1535] sm:$0xff] %v1536
                  %s1538 = sadd.s32 1, %s1533
                  %p1539 = scmp.ge.s32.totalorder %s1538, %s1521
                  %s1540 = scalar_select %p1539, 0, %s1538
                  %s1541 = smul.u32 %s1540, 8
                  %s1542 = smul.u32 %s1540, 8
                  %s1543 = scalar_lea.vmem %s1524, %s1541 [#allocation2]
                  %s1544 = scalar_lea.vmem %s1526, %s1542
                $region86: #{neural_spline_forward.8} parent=73 // loop_footer
                  %s1530 = sadd.s32 %s1528, 1
                $region87: #{neural_spline_forward.8} parent=73 // loop_footer_branch
                  %1527 = sbr.rel target = $region83
                $region88: #{neural_spline_forward.8} parent=73 // loop_exit
                  _
              $region74: #{neural_spline_forward.8} parent=51 // pred_fallthru
                _
              // Predicated region
              $region89: #{neural_spline_forward.8} parent=51 // pred_check
                _
              $region90: #{neural_spline_forward.8} parent=51 // pred_check_branch
                %1546 = sbr.rel target = $region92
              $region91: #{neural_spline_forward.8} parent=51 // pred_region
                _
              $region92: #{neural_spline_forward.8} parent=51 // pred_fallthru
                _
            $region52: #{neural_spline_forward.8} parent=47 // pred_fallthru
              _
            // Predicated region
            $region53: #{neural_spline_forward.8} parent=47 // pred_check
              _
            $region54: #{neural_spline_forward.8} parent=47 // pred_check_branch
              %1201 = sbr.rel target = $region56
            $region55: #{neural_spline_forward.8} parent=47 // pred_region
              %s1203 = sshrl.u32 %s1190, 6
              // While loop
              $region57: #{neural_spline_forward.8} parent=55 // loop_pre_header
                _
              $region58: #{neural_spline_forward.8} parent=55 // loop_header
                %s1205 = sphi 0, %s1207
                %p1206 = scmp.ge.s32.totalorder %s1205, %s1203
                %s1210 = sphi 0, %s1343
                %s1211 = sphi %s1183, %s1346
                %s1212 = sphi %s1194, %s1347
              $region59: #{neural_spline_forward.8} parent=55 // loop_header_branch
                %1209 = sbr.rel (%p1206) target = $region63
              $region60: #{neural_spline_forward.8} parent=55 // loop_body
                %v1213 = vld [vmem:[%s1211] sm:$0xff]
                %1214 = vst [vmem:[%s1212] sm:$0xff] %v1213
                %v1215 = vld [vmem:[%s1211 + $0x8] sm:$0xff]
                %1216 = vst [vmem:[%s1212 + $0x8] sm:$0xff] %v1215
                %v1217 = vld [vmem:[%s1211 + $0x10] sm:$0xff]
                %1218 = vst [vmem:[%s1212 + $0x10] sm:$0xff] %v1217
                %v1219 = vld [vmem:[%s1211 + $0x18] sm:$0xff]
                %1220 = vst [vmem:[%s1212 + $0x18] sm:$0xff] %v1219
                %v1221 = vld [vmem:[%s1211 + $0x20] sm:$0xff]
                %1222 = vst [vmem:[%s1212 + $0x20] sm:$0xff] %v1221
                %v1223 = vld [vmem:[%s1211 + $0x28] sm:$0xff]
                %1224 = vst [vmem:[%s1212 + $0x28] sm:$0xff] %v1223
                %v1225 = vld [vmem:[%s1211 + $0x30] sm:$0xff]
                %1226 = vst [vmem:[%s1212 + $0x30] sm:$0xff] %v1225
                %v1227 = vld [vmem:[%s1211 + $0x38] sm:$0xff]
                %1228 = vst [vmem:[%s1212 + $0x38] sm:$0xff] %v1227
                %v1229 = vld [vmem:[%s1211 + $0x40] sm:$0xff]
                %1230 = vst [vmem:[%s1212 + $0x40] sm:$0xff] %v1229
                %v1231 = vld [vmem:[%s1211 + $0x48] sm:$0xff]
                %1232 = vst [vmem:[%s1212 + $0x48] sm:$0xff] %v1231
                %v1233 = vld [vmem:[%s1211 + $0x50] sm:$0xff]
                %1234 = vst [vmem:[%s1212 + $0x50] sm:$0xff] %v1233
                %v1235 = vld [vmem:[%s1211 + $0x58] sm:$0xff]
                %1236 = vst [vmem:[%s1212 + $0x58] sm:$0xff] %v1235
                %v1237 = vld [vmem:[%s1211 + $0x60] sm:$0xff]
                %1238 = vst [vmem:[%s1212 + $0x60] sm:$0xff] %v1237
                %v1239 = vld [vmem:[%s1211 + $0x68] sm:$0xff]
                %1240 = vst [vmem:[%s1212 + $0x68] sm:$0xff] %v1239
                %v1241 = vld [vmem:[%s1211 + $0x70] sm:$0xff]
                %1242 = vst [vmem:[%s1212 + $0x70] sm:$0xff] %v1241
                %v1243 = vld [vmem:[%s1211 + $0x78] sm:$0xff]
                %1244 = vst [vmem:[%s1212 + $0x78] sm:$0xff] %v1243
                %v1245 = vld [vmem:[%s1211 + $0x80] sm:$0xff]
                %1246 = vst [vmem:[%s1212 + $0x80] sm:$0xff] %v1245
                %v1247 = vld [vmem:[%s1211 + $0x88] sm:$0xff]
                %1248 = vst [vmem:[%s1212 + $0x88] sm:$0xff] %v1247
                %v1249 = vld [vmem:[%s1211 + $0x90] sm:$0xff]
                %1250 = vst [vmem:[%s1212 + $0x90] sm:$0xff] %v1249
                %v1251 = vld [vmem:[%s1211 + $0x98] sm:$0xff]
                %1252 = vst [vmem:[%s1212 + $0x98] sm:$0xff] %v1251
                %v1253 = vld [vmem:[%s1211 + $0xa0] sm:$0xff]
                %1254 = vst [vmem:[%s1212 + $0xa0] sm:$0xff] %v1253
                %v1255 = vld [vmem:[%s1211 + $0xa8] sm:$0xff]
                %1256 = vst [vmem:[%s1212 + $0xa8] sm:$0xff] %v1255
                %v1257 = vld [vmem:[%s1211 + $0xb0] sm:$0xff]
                %1258 = vst [vmem:[%s1212 + $0xb0] sm:$0xff] %v1257
                %v1259 = vld [vmem:[%s1211 + $0xb8] sm:$0xff]
                %1260 = vst [vmem:[%s1212 + $0xb8] sm:$0xff] %v1259
                %v1261 = vld [vmem:[%s1211 + $0xc0] sm:$0xff]
                %1262 = vst [vmem:[%s1212 + $0xc0] sm:$0xff] %v1261
                %v1263 = vld [vmem:[%s1211 + $0xc8] sm:$0xff]
                %1264 = vst [vmem:[%s1212 + $0xc8] sm:$0xff] %v1263
                %v1265 = vld [vmem:[%s1211 + $0xd0] sm:$0xff]
                %1266 = vst [vmem:[%s1212 + $0xd0] sm:$0xff] %v1265
                %v1267 = vld [vmem:[%s1211 + $0xd8] sm:$0xff]
                %1268 = vst [vmem:[%s1212 + $0xd8] sm:$0xff] %v1267
                %v1269 = vld [vmem:[%s1211 + $0xe0] sm:$0xff]
                %1270 = vst [vmem:[%s1212 + $0xe0] sm:$0xff] %v1269
                %v1271 = vld [vmem:[%s1211 + $0xe8] sm:$0xff]
                %1272 = vst [vmem:[%s1212 + $0xe8] sm:$0xff] %v1271
                %v1273 = vld [vmem:[%s1211 + $0xf0] sm:$0xff]
                %1274 = vst [vmem:[%s1212 + $0xf0] sm:$0xff] %v1273
                %v1275 = vld [vmem:[%s1211 + $0xf8] sm:$0xff]
                %1276 = vst [vmem:[%s1212 + $0xf8] sm:$0xff] %v1275
                %v1277 = vld [vmem:[%s1211 + $0x100] sm:$0xff]
                %1278 = vst [vmem:[%s1212 + $0x100] sm:$0xff] %v1277
                %v1279 = vld [vmem:[%s1211 + $0x108] sm:$0xff]
                %1280 = vst [vmem:[%s1212 + $0x108] sm:$0xff] %v1279
                %v1281 = vld [vmem:[%s1211 + $0x110] sm:$0xff]
                %1282 = vst [vmem:[%s1212 + $0x110] sm:$0xff] %v1281
                %v1283 = vld [vmem:[%s1211 + $0x118] sm:$0xff]
                %1284 = vst [vmem:[%s1212 + $0x118] sm:$0xff] %v1283
                %v1285 = vld [vmem:[%s1211 + $0x120] sm:$0xff]
                %1286 = vst [vmem:[%s1212 + $0x120] sm:$0xff] %v1285
                %v1287 = vld [vmem:[%s1211 + $0x128] sm:$0xff]
                %1288 = vst [vmem:[%s1212 + $0x128] sm:$0xff] %v1287
                %v1289 = vld [vmem:[%s1211 + $0x130] sm:$0xff]
                %1290 = vst [vmem:[%s1212 + $0x130] sm:$0xff] %v1289
                %v1291 = vld [vmem:[%s1211 + $0x138] sm:$0xff]
                %1292 = vst [vmem:[%s1212 + $0x138] sm:$0xff] %v1291
                %v1293 = vld [vmem:[%s1211 + $0x140] sm:$0xff]
                %1294 = vst [vmem:[%s1212 + $0x140] sm:$0xff] %v1293
                %v1295 = vld [vmem:[%s1211 + $0x148] sm:$0xff]
                %1296 = vst [vmem:[%s1212 + $0x148] sm:$0xff] %v1295
                %v1297 = vld [vmem:[%s1211 + $0x150] sm:$0xff]
                %1298 = vst [vmem:[%s1212 + $0x150] sm:$0xff] %v1297
                %v1299 = vld [vmem:[%s1211 + $0x158] sm:$0xff]
                %1300 = vst [vmem:[%s1212 + $0x158] sm:$0xff] %v1299
                %v1301 = vld [vmem:[%s1211 + $0x160] sm:$0xff]
                %1302 = vst [vmem:[%s1212 + $0x160] sm:$0xff] %v1301
                %v1303 = vld [vmem:[%s1211 + $0x168] sm:$0xff]
                %1304 = vst [vmem:[%s1212 + $0x168] sm:$0xff] %v1303
                %v1305 = vld [vmem:[%s1211 + $0x170] sm:$0xff]
                %1306 = vst [vmem:[%s1212 + $0x170] sm:$0xff] %v1305
                %v1307 = vld [vmem:[%s1211 + $0x178] sm:$0xff]
                %1308 = vst [vmem:[%s1212 + $0x178] sm:$0xff] %v1307
                %v1309 = vld [vmem:[%s1211 + $0x180] sm:$0xff]
                %1310 = vst [vmem:[%s1212 + $0x180] sm:$0xff] %v1309
                %v1311 = vld [vmem:[%s1211 + $0x188] sm:$0xff]
                %1312 = vst [vmem:[%s1212 + $0x188] sm:$0xff] %v1311
                %v1313 = vld [vmem:[%s1211 + $0x190] sm:$0xff]
                %1314 = vst [vmem:[%s1212 + $0x190] sm:$0xff] %v1313
                %v1315 = vld [vmem:[%s1211 + $0x198] sm:$0xff]
                %1316 = vst [vmem:[%s1212 + $0x198] sm:$0xff] %v1315
                %v1317 = vld [vmem:[%s1211 + $0x1a0] sm:$0xff]
                %1318 = vst [vmem:[%s1212 + $0x1a0] sm:$0xff] %v1317
                %v1319 = vld [vmem:[%s1211 + $0x1a8] sm:$0xff]
                %1320 = vst [vmem:[%s1212 + $0x1a8] sm:$0xff] %v1319
                %v1321 = vld [vmem:[%s1211 + $0x1b0] sm:$0xff]
                %1322 = vst [vmem:[%s1212 + $0x1b0] sm:$0xff] %v1321
                %v1323 = vld [vmem:[%s1211 + $0x1b8] sm:$0xff]
                %1324 = vst [vmem:[%s1212 + $0x1b8] sm:$0xff] %v1323
                %v1325 = vld [vmem:[%s1211 + $0x1c0] sm:$0xff]
                %1326 = vst [vmem:[%s1212 + $0x1c0] sm:$0xff] %v1325
                %v1327 = vld [vmem:[%s1211 + $0x1c8] sm:$0xff]
                %1328 = vst [vmem:[%s1212 + $0x1c8] sm:$0xff] %v1327
                %v1329 = vld [vmem:[%s1211 + $0x1d0] sm:$0xff]
                %1330 = vst [vmem:[%s1212 + $0x1d0] sm:$0xff] %v1329
                %v1331 = vld [vmem:[%s1211 + $0x1d8] sm:$0xff]
                %1332 = vst [vmem:[%s1212 + $0x1d8] sm:$0xff] %v1331
                %v1333 = vld [vmem:[%s1211 + $0x1e0] sm:$0xff]
                %1334 = vst [vmem:[%s1212 + $0x1e0] sm:$0xff] %v1333
                %v1335 = vld [vmem:[%s1211 + $0x1e8] sm:$0xff]
                %1336 = vst [vmem:[%s1212 + $0x1e8] sm:$0xff] %v1335
                %v1337 = vld [vmem:[%s1211 + $0x1f0] sm:$0xff]
                %1338 = vst [vmem:[%s1212 + $0x1f0] sm:$0xff] %v1337
                %v1339 = vld [vmem:[%s1211 + $0x1f8] sm:$0xff]
                %1340 = vst [vmem:[%s1212 + $0x1f8] sm:$0xff] %v1339
                %s1341 = sadd.s32 1, %s1210
                %p1342 = scmp.ge.s32.totalorder %s1341, %s1203
                %s1343 = scalar_select %p1342, 0, %s1341
                %s1344 = smul.u32 %s1343, 512
                %s1345 = smul.u32 %s1343, 512
                %s1346 = scalar_lea.vmem %s1183, %s1344 [#allocation2]
                %s1347 = scalar_lea.vmem %s1194, %s1345
              $region61: #{neural_spline_forward.8} parent=55 // loop_footer
                %s1207 = sadd.s32 %s1205, 1
              $region62: #{neural_spline_forward.8} parent=55 // loop_footer_branch
                %1204 = sbr.rel target = $region58
              $region63: #{neural_spline_forward.8} parent=55 // loop_exit
                _
              %s1348 = sshrl.u32 %s1190, 6
              %s1349 = sand.u32 %s1190, 63
              %s1350 = smul.u32 %s1348, 64
              %s1351 = smul.u32 8, %s1350
              %s1352 = scalar_lea.vmem %s1183, %s1351 [#allocation2]
              %s1353 = smul.u32 8, %s1350
              %s1354 = scalar_lea.vmem %s1194, %s1353
              // While loop
              $region64: #{neural_spline_forward.8} parent=55 // loop_pre_header
                _
              $region65: #{neural_spline_forward.8} parent=55 // loop_header
                %s1356 = sphi 0, %s1358
                %p1357 = scmp.ge.s32.totalorder %s1356, %s1349
                %s1361 = sphi 0, %s1368
                %s1362 = sphi %s1352, %s1371
                %s1363 = sphi %s1354, %s1372
              $region66: #{neural_spline_forward.8} parent=55 // loop_header_branch
                %1360 = sbr.rel (%p1357) target = $region70
              $region67: #{neural_spline_forward.8} parent=55 // loop_body
                %v1364 = vld [vmem:[%s1362] sm:$0xff]
                %1365 = vst [vmem:[%s1363] sm:$0xff] %v1364
                %s1366 = sadd.s32 1, %s1361
                %p1367 = scmp.ge.s32.totalorder %s1366, %s1349
                %s1368 = scalar_select %p1367, 0, %s1366
                %s1369 = smul.u32 %s1368, 8
                %s1370 = smul.u32 %s1368, 8
                %s1371 = scalar_lea.vmem %s1352, %s1369 [#allocation2]
                %s1372 = scalar_lea.vmem %s1354, %s1370
              $region68: #{neural_spline_forward.8} parent=55 // loop_footer
                %s1358 = sadd.s32 %s1356, 1
              $region69: #{neural_spline_forward.8} parent=55 // loop_footer_branch
                %1355 = sbr.rel target = $region65
              $region70: #{neural_spline_forward.8} parent=55 // loop_exit
                _
            $region56: #{neural_spline_forward.8} parent=47 // pred_fallthru
              _
          $region48: #{neural_spline_forward.8} parent=43 // pred_fallthru
            _
          %1547 = vnop
        $region44: #{neural_spline_forward.8} parent=39 // pred_fallthru
          _
      $region40: #{neural_spline_forward.8} parent=5 // pred_fallthru
        _
      %p1548 = scmp.le.s32.totalorder 2, %s11
      // Predicated region
      $region93: #{neural_spline_forward.8} parent=5 // pred_check
        %p1549 = pneg %p1548
      $region94: #{neural_spline_forward.8} parent=5 // pred_check_branch
        %1551 = sbr.rel (%p1549) target = $region96
      $region95: #{neural_spline_forward.8} parent=5 // pred_region
        %s1552 = ssub.s32 %s11, 2
        // Predicated region
        $region97: #{neural_spline_forward.8} parent=95 // pred_check
          %p1553 = pneg %p150
        $region98: #{neural_spline_forward.8} parent=95 // pred_check_branch
          %1555 = sbr.rel (%p1553) target = $region100
        $region99: #{neural_spline_forward.8} parent=95 // pred_region
          %s1556 = sand.u32 %s135, 1
          %s1557 = sand.u32 %s135, 1
          %s1558 = smul.addr %s1557, 512
          %s1559 = scalar_lea.vmem [#allocation2], %s1558
        $region100: #{neural_spline_forward.8} parent=95 // pred_fallthru
          _
      $region96: #{neural_spline_forward.8} parent=5 // pred_fallthru
        _
    $region6: #{neural_spline_forward.8} parent=1 // loop_footer
      %s15 = sadd.s32 1, %s11
    $region7: #{neural_spline_forward.8} parent=1 // loop_footer_branch
      %10 = sbr.rel target = $region3
    $region8: #{neural_spline_forward.8} parent=1 // loop_exit
      _

// kernel: neural_spline_forward.9
$region0: #{neural_spline_forward.9}
  #allocation0 [shape = 'u32[]', space=smem, size = 0x4, offset = 0x4, fixed_abs, tag = 'smem constant byte address 0x4 - core index']
  #allocation1 [shape = 'u32[144,128]{1,0:T(1,128)}', space=vmem, size = 0x12000, scoped, tag = 'internal scratch']
  %s0 = inlined_call_operand.vmem [shape: f32[1922,72], index: 0, kind: input, shape index: {}]
  %s1 = inlined_call_operand.vmem [shape: f32[72,16], index: 1, kind: input, shape index: {}]
  %s2 = inlined_call_operand.vmem [shape: f32[1,16], index: 2, kind: input, shape index: {}]
  %s3 = inlined_call_operand.vmem [shape: f32[1,16], index: 3, kind: input, shape index: {}]
  %s4 = inlined_call_operand.vmem [shape: f32[1,16], index: 4, kind: input, shape index: {}]
  %s5 = inlined_call_operand.vmem [shape: f32[1922,16], index: 5, kind: output, shape index: {}]
  %s6 = sld [smem:[#allocation0]]
  $region101: #{neural_spline_forward.9} parent=0
    _
  %s8 = ssub.s32 1, %s6
  %s9 = scalar_select 0, %s8, %s6
  $region1: #{neural_spline_forward.9} parent=0
    #allocation2 [shape = 'u8[524288]{0}', space=vmem, size = 0x80000, scoped, tag = 'output window, operand 0']
    loop: start=0, step=1, limit=6
    $region2: #{neural_spline_forward.9} parent=1 // loop_pre_header
      _
    $region3: #{neural_spline_forward.9} parent=1 // loop_header
      %s11 = sphi 0, %s15
      %p12 = scmp.ge.s32.totalorder %s11, 6
      %s21 = sphi 0, %s23
      %s24 = sphi 0, %s21
      %s25 = sphi 0, %s24
      %s41 = sphi 0, %s25
      %s45 = sphi 0, %s45
      %s47 = sphi 0, %s45
      %s48 = sphi 0, %s47
      %s62 = sphi 0, %s48
      %s66 = sphi 0, %s66
      %s68 = sphi 0, %s66
      %s69 = sphi 0, %s68
      %s83 = sphi 0, %s69
      %s87 = sphi 0, %s87
      %s89 = sphi 0, %s87
      %s90 = sphi 0, %s89
      %s104 = sphi 0, %s90
      %s108 = sphi 0, %s108
      %s110 = sphi 0, %s108
      %s111 = sphi 0, %s110
      %s125 = sphi 0, %s111
      %s131 = sphi 0, %s133
      %s134 = sphi 0, %s131
      %s135 = sphi 0, %s134
      %s151 = sphi 0, %s135
    $region4: #{neural_spline_forward.9} parent=1 // loop_header_branch
      %14 = sbr.rel (%p12) target = $region8
    $region5: #{neural_spline_forward.9} parent=1 // loop_body
      %s16 = ssub.s32 %s11, 1
      %s17 = ssub.s32 %s11, 2
      %s18 = sadd.s32 %s11, 1
      %s19 = ssub.s32 %s11, %s18
      %p20 = scmp.eq.s32.totalorder %s19, 0
      %s22 = sadd.s32 %s21, 1
      %s23 = scalar_select %p20, %s21, %s22
      %p26 = pneg %p20
      %p27 = scmp.eq.s32.totalorder %s11, 3
      %p28 = por %p26, %p27
      %p29 = scmp.ne.s32.totalorder %s21, %s24
      %p30 = scmp.eq.s32.totalorder %s11, 0
      %p31 = por %p29, %p30
      %p32 = scmp.ne.s32.totalorder %s21, %s24
      %p33 = scmp.eq.s32.totalorder %s16, 3
      %p34 = por %p32, %p33
      %p35 = scmp.ne.s32.totalorder %s24, %s25
      %p36 = scmp.eq.s32.totalorder %s16, 0
      %p37 = por %p35, %p36
      %p38 = scmp.ne.s32.totalorder %s24, %s25
      %p39 = scmp.eq.s32.totalorder %s17, 3
      %p40 = por %p38, %p39
      %p42 = scmp.ne.s32.totalorder %s25, %s41
      %p43 = scmp.eq.s32.totalorder %s17, 0
      %p44 = por %p42, %p43
      %s46 = sadd.s32 %s45, 1
      %p49 = scmp.eq.s32.totalorder %s11, 3
      %p50 = scmp.ne.s32.totalorder %s45, %s47
      %p51 = scmp.eq.s32.totalorder %s11, 0
      %p52 = por %p50, %p51
      %p53 = scmp.ne.s32.totalorder %s45, %s47
      %p54 = scmp.eq.s32.totalorder %s16, 3
      %p55 = por %p53, %p54
      %p56 = scmp.ne.s32.totalorder %s47, %s48
      %p57 = scmp.eq.s32.totalorder %s16, 0
      %p58 = por %p56, %p57
      %p59 = scmp.ne.s32.totalorder %s47, %s48
      %p60 = scmp.eq.s32.totalorder %s17, 3
      %p61 = por %p59, %p60
      %p63 = scmp.ne.s32.totalorder %s48, %s62
      %p64 = scmp.eq.s32.totalorder %s17, 0
      %p65 = por %p63, %p64
      %s67 = sadd.s32 %s66, 1
      %p70 = scmp.eq.s32.totalorder %s11, 3
      %p71 = scmp.ne.s32.totalorder %s66, %s68
      %p72 = scmp.eq.s32.totalorder %s11, 0
      %p73 = por %p71, %p72
      %p74 = scmp.ne.s32.totalorder %s66, %s68
      %p75 = scmp.eq.s32.totalorder %s16, 3
      %p76 = por %p74, %p75
      %p77 = scmp.ne.s32.totalorder %s68, %s69
      %p78 = scmp.eq.s32.totalorder %s16, 0
      %p79 = por %p77, %p78
      %p80 = scmp.ne.s32.totalorder %s68, %s69
      %p81 = scmp.eq.s32.totalorder %s17, 3
      %p82 = por %p80, %p81
      %p84 = scmp.ne.s32.totalorder %s69, %s83
      %p85 = scmp.eq.s32.totalorder %s17, 0
      %p86 = por %p84, %p85
      %s88 = sadd.s32 %s87, 1
      %p91 = scmp.eq.s32.totalorder %s11, 3
      %p92 = scmp.ne.s32.totalorder %s87, %s89
      %p93 = scmp.eq.s32.totalorder %s11, 0
      %p94 = por %p92, %p93
      %p95 = scmp.ne.s32.totalorder %s87, %s89
      %p96 = scmp.eq.s32.totalorder %s16, 3
      %p97 = por %p95, %p96
      %p98 = scmp.ne.s32.totalorder %s89, %s90
      %p99 = scmp.eq.s32.totalorder %s16, 0
      %p100 = por %p98, %p99
      %p101 = scmp.ne.s32.totalorder %s89, %s90
      %p102 = scmp.eq.s32.totalorder %s17, 3
      %p103 = por %p101, %p102
      %p105 = scmp.ne.s32.totalorder %s90, %s104
      %p106 = scmp.eq.s32.totalorder %s17, 0
      %p107 = por %p105, %p106
      %s109 = sadd.s32 %s108, 1
      %p112 = scmp.eq.s32.totalorder %s11, 3
      %p113 = scmp.ne.s32.totalorder %s108, %s110
      %p114 = scmp.eq.s32.totalorder %s11, 0
      %p115 = por %p113, %p114
      %p116 = scmp.ne.s32.totalorder %s108, %s110
      %p117 = scmp.eq.s32.totalorder %s16, 3
      %p118 = por %p116, %p117
      %p119 = scmp.ne.s32.totalorder %s110, %s111
      %p120 = scmp.eq.s32.totalorder %s16, 0
      %p121 = por %p119, %p120
      %p122 = scmp.ne.s32.totalorder %s110, %s111
      %p123 = scmp.eq.s32.totalorder %s17, 3
      %p124 = por %p122, %p123
      %p126 = scmp.ne.s32.totalorder %s111, %s125
      %p127 = scmp.eq.s32.totalorder %s17, 0
      %p128 = por %p126, %p127
      %s129 = ssub.s32 %s11, %s18
      %p130 = scmp.eq.s32.totalorder %s129, 0
      %s132 = sadd.s32 %s131, 1
      %s133 = scalar_select %p130, %s131, %s132
      %p136 = pneg %p130
      %p137 = scmp.eq.s32.totalorder %s11, 3
      %p138 = por %p136, %p137
      %p139 = scmp.ne.s32.totalorder %s131, %s134
      %p140 = scmp.eq.s32.totalorder %s11, 0
      %p141 = por %p139, %p140
      %p142 = scmp.ne.s32.totalorder %s131, %s134
      %p143 = scmp.eq.s32.totalorder %s16, 3
      %p144 = por %p142, %p143
      %p145 = scmp.ne.s32.totalorder %s134, %s135
      %p146 = scmp.eq.s32.totalorder %s16, 0
      %p147 = por %p145, %p146
      %p148 = scmp.ne.s32.totalorder %s134, %s135
      %p149 = scmp.eq.s32.totalorder %s17, 3
      %p150 = por %p148, %p149
      %p152 = scmp.ne.s32.totalorder %s135, %s151
      %p153 = scmp.eq.s32.totalorder %s17, 0
      %p154 = por %p152, %p153
      %p155 = scmp.le.s32.totalorder 1, %s11
      %p156 = scmp.lt.s32.totalorder %s11, 5
      %p157 = pnand %p155, %p156
      %p158 = pneg %p157
      // Predicated region
      $region9: #{neural_spline_forward.9} parent=5 // pred_check
        _
      $region10: #{neural_spline_forward.9} parent=5 // pred_check_branch
        %160 = sbr.rel (%p157) target = $region12
      $region11: #{neural_spline_forward.9} parent=5 // pred_region
        %s161 = ssub.s32 %s11, 1
        // Predicated region
        $region13: #{neural_spline_forward.9} parent=11 // pred_check
          %p162 = pneg %p58
        $region14: #{neural_spline_forward.9} parent=11 // pred_check_branch
          %164 = sbr.rel (%p162) target = $region16
        $region15: #{neural_spline_forward.9} parent=11 // pred_region
          _
        $region16: #{neural_spline_forward.9} parent=11 // pred_fallthru
          _
        // Predicated region
        $region17: #{neural_spline_forward.9} parent=11 // pred_check
          %p165 = pneg %p79
        $region18: #{neural_spline_forward.9} parent=11 // pred_check_branch
          %167 = sbr.rel (%p165) target = $region20
        $region19: #{neural_spline_forward.9} parent=11 // pred_region
          _
        $region20: #{neural_spline_forward.9} parent=11 // pred_fallthru
          _
        // Predicated region
        $region21: #{neural_spline_forward.9} parent=11 // pred_check
          %p168 = pneg %p100
        $region22: #{neural_spline_forward.9} parent=11 // pred_check_branch
          %170 = sbr.rel (%p168) target = $region24
        $region23: #{neural_spline_forward.9} parent=11 // pred_region
          _
        $region24: #{neural_spline_forward.9} parent=11 // pred_fallthru
          _
        // Predicated region
        $region25: #{neural_spline_forward.9} parent=11 // pred_check
          %p171 = pneg %p121
        $region26: #{neural_spline_forward.9} parent=11 // pred_check_branch
          %173 = sbr.rel (%p171) target = $region28
        $region27: #{neural_spline_forward.9} parent=11 // pred_region
          _
        $region28: #{neural_spline_forward.9} parent=11 // pred_fallthru
          _
      $region12: #{neural_spline_forward.9} parent=5 // pred_fallthru
        _
      %p174 = scmp.lt.s32.totalorder %s11, 4
      // Predicated region
      $region29: #{neural_spline_forward.9} parent=5 // pred_check
        %p175 = pneg %p174
      $region30: #{neural_spline_forward.9} parent=5 // pred_check_branch
        %177 = sbr.rel (%p175) target = $region32
      $region31: #{neural_spline_forward.9} parent=5 // pred_region
        // Predicated region
        $region33: #{neural_spline_forward.9} parent=31 // pred_check
          %p178 = pneg %p31
        $region34: #{neural_spline_forward.9} parent=31 // pred_check_branch
          %180 = sbr.rel (%p178) target = $region36
        $region35: #{neural_spline_forward.9} parent=31 // pred_region
          %s181 = smul.u32 64, %s11
          %s182 = ssub.s32 241, %s181
          %p183 = scmp.lt.s32.totalorder %s182, 64
          %s184 = scalar_select %p183, %s182, 64
          %s185 = smul.u32 128, %s184
          %p186 = scmp.lt.s32.totalorder %s181, 240
          %s187 = scalar_select %p186, %s181, 240
          %s188 = smul.addr %s187, 8
          %s189 = scalar_lea.vmem %s0, %s188
          %s190 = smul.u32 64, %s11
          %s191 = ssub.s32 241, %s190
          %p192 = scmp.lt.s32.totalorder %s191, 64
          %s193 = scalar_select %p192, %s191, 64
          %s194 = smul.u32 128, %s193
        $region36: #{neural_spline_forward.9} parent=31 // pred_fallthru
          _
      $region32: #{neural_spline_forward.9} parent=5 // pred_fallthru
        _
      %p195 = scmp.le.s32.totalorder 1, %s11
      %p196 = scmp.lt.s32.totalorder %s11, 5
      %p197 = pnand %p195, %p196
      %p198 = pneg %p197
      // Predicated region
      $region37: #{neural_spline_forward.9} parent=5 // pred_check
        _
      $region38: #{neural_spline_forward.9} parent=5 // pred_check_branch
        %200 = sbr.rel (%p197) target = $region40
      $region39: #{neural_spline_forward.9} parent=5 // pred_region
        %s201 = ssub.s32 %s11, 1
        %s202 = smul.u32 64, %s16
        %s203 = ssub.s32 241, %s202
        %p204 = scmp.lt.s32.totalorder %s203, 64
        %s205 = scalar_select %p204, %s203, 64
        %s206 = smul.u32 128, %s205
        %p207 = scmp.lt.s32.totalorder %s202, 240
        %s208 = scalar_select %p207, %s202, 240
        %s209 = smul.addr %s208, 8
        %s210 = scalar_lea.vmem %s0, %s209
        %p211 = pneg %p37
        %p212 = pneg %p34
        %p213 = pneg %p58
        %p214 = pneg %p55
        %p215 = pneg %p79
        %p216 = pneg %p76
        %p217 = pneg %p100
        %p218 = pneg %p97
        %p219 = pneg %p121
        %p220 = pneg %p118
        %p221 = pneg %p147
        %p222 = pneg %p144
        %s223 = sand.u32 %s134, 1
        %s224 = sand.u32 %s134, 1
        %s225 = smul.addr %s224, 512
        %s226 = scalar_lea.vmem [#allocation2], %s225
        %s227 = smul.u32 64, %s16
        %s228 = ssub.s32 241, %s227
        %p229 = scmp.lt.s32.totalorder %s228, 64
        %s230 = scalar_select %p229, %s228, 64
        %s231 = smul.u32 128, %s230
        %p232 = scmp.lt.s32.totalorder %s227, 240
        %s233 = scalar_select %p232, %s227, 240
        %s234 = smul.addr %s233, 8
        %s235 = scalar_lea.vmem %s0, %s234
        %s236 = smul.u32 64, %s16
        %s237 = ssub.s32 241, %s236
        %p238 = scmp.lt.s32.totalorder %s237, 64
        %s239 = scalar_select %p238, %s237, 64
        %s240 = smul.u32 128, %s239
        %s241 = smul.u32 64, %s16
        %s242 = ssub.s32 241, %s241
        %p243 = scmp.lt.s32.totalorder %s242, 64
        %s244 = scalar_select %p243, %s242, 64
        %s245 = smul.u32 128, %s244
        %v246 = vld [vmem:[%s235] sm:$0xff]
        %v247 = vld [vmem:[%s235 + $0x8] sm:$0xff]
        %v248 = vld [vmem:[%s235 + $0x10] sm:$0xff]
        %v249 = vld [vmem:[%s235 + $0x18] sm:$0xff]
        %v250 = vld [vmem:[%s235 + $0x20] sm:$0xff]
        %v251 = vld [vmem:[%s235 + $0x28] sm:$0xff]
        %v252 = vld [vmem:[%s235 + $0x30] sm:$0xff]
        %v253 = vld [vmem:[%s235 + $0x38] sm:$0xff]
        %v254 = vld [vmem:[%s235 + $0x40] sm:$0xff]
        %v255 = vld [vmem:[%s235 + $0x48] sm:$0xff]
        %v256 = vld [vmem:[%s235 + $0x50] sm:$0xff]
        %v257 = vld [vmem:[%s235 + $0x58] sm:$0xff]
        %v258 = vld [vmem:[%s235 + $0x60] sm:$0xff]
        %v259 = vld [vmem:[%s235 + $0x68] sm:$0xff]
        %v260 = vld [vmem:[%s235 + $0x70] sm:$0xff]
        %v261 = vld [vmem:[%s235 + $0x78] sm:$0xff]
        %v262 = vld [vmem:[%s235 + $0x80] sm:$0xff]
        %v263 = vld [vmem:[%s235 + $0x88] sm:$0xff]
        %v264 = vld [vmem:[%s235 + $0x90] sm:$0xff]
        %v265 = vld [vmem:[%s235 + $0x98] sm:$0xff]
        %v266 = vld [vmem:[%s235 + $0xa0] sm:$0xff]
        %v267 = vld [vmem:[%s235 + $0xa8] sm:$0xff]
        %v268 = vld [vmem:[%s235 + $0xb0] sm:$0xff]
        %v269 = vld [vmem:[%s235 + $0xb8] sm:$0xff]
        %v270 = vld [vmem:[%s235 + $0xc0] sm:$0xff]
        %v271 = vld [vmem:[%s235 + $0xc8] sm:$0xff]
        %v272 = vld [vmem:[%s235 + $0xd0] sm:$0xff]
        %v273 = vld [vmem:[%s235 + $0xd8] sm:$0xff]
        %v274 = vld [vmem:[%s235 + $0xe0] sm:$0xff]
        %v275 = vld [vmem:[%s235 + $0xe8] sm:$0xff]
        %v276 = vld [vmem:[%s235 + $0xf0] sm:$0xff]
        %v277 = vld [vmem:[%s235 + $0xf8] sm:$0xff]
        %v278 = vld [vmem:[%s235 + $0x100] sm:$0xff]
        %v279 = vld [vmem:[%s235 + $0x108] sm:$0xff]
        %v280 = vld [vmem:[%s235 + $0x110] sm:$0xff]
        %v281 = vld [vmem:[%s235 + $0x118] sm:$0xff]
        %v282 = vld [vmem:[%s235 + $0x120] sm:$0xff]
        %v283 = vld [vmem:[%s235 + $0x128] sm:$0xff]
        %v284 = vld [vmem:[%s235 + $0x130] sm:$0xff]
        %v285 = vld [vmem:[%s235 + $0x138] sm:$0xff]
        %v286 = vld [vmem:[%s235 + $0x140] sm:$0xff]
        %v287 = vld [vmem:[%s235 + $0x148] sm:$0xff]
        %v288 = vld [vmem:[%s235 + $0x150] sm:$0xff]
        %v289 = vld [vmem:[%s235 + $0x158] sm:$0xff]
        %v290 = vld [vmem:[%s235 + $0x160] sm:$0xff]
        %v291 = vld [vmem:[%s235 + $0x168] sm:$0xff]
        %v292 = vld [vmem:[%s235 + $0x170] sm:$0xff]
        %v293 = vld [vmem:[%s235 + $0x178] sm:$0xff]
        %v294 = vld [vmem:[%s235 + $0x180] sm:$0xff]
        %v295 = vld [vmem:[%s235 + $0x188] sm:$0xff]
        %v296 = vld [vmem:[%s235 + $0x190] sm:$0xff]
        %v297 = vld [vmem:[%s235 + $0x198] sm:$0xff]
        %v298 = vld [vmem:[%s235 + $0x1a0] sm:$0xff]
        %v299 = vld [vmem:[%s235 + $0x1a8] sm:$0xff]
        %v300 = vld [vmem:[%s235 + $0x1b0] sm:$0xff]
        %v301 = vld [vmem:[%s235 + $0x1b8] sm:$0xff]
        %v302 = vld [vmem:[%s235 + $0x1c0] sm:$0xff]
        %v303 = vld [vmem:[%s235 + $0x1c8] sm:$0xff]
        %v304 = vld [vmem:[%s235 + $0x1d0] sm:$0xff]
        %v305 = vld [vmem:[%s235 + $0x1d8] sm:$0xff]
        %v306 = vld [vmem:[%s235 + $0x1e0] sm:$0xff]
        %v307 = vld [vmem:[%s235 + $0x1e8] sm:$0xff]
        %v308 = vld [vmem:[%s235 + $0x1f0] sm:$0xff]
        %v309 = vld [vmem:[%s235 + $0x1f8] sm:$0xff]
        %v310 = vld [vmem:[%s1] sm:$0xff]
        %v311 = vld [vmem:[%s1 + $0x8] sm:$0xff]
        %v312 = vld [vmem:[%s1 + $0x10] sm:$0xff]
        %v313 = vld [vmem:[%s1 + $0x18] sm:$0xff]
        %v314 = vld [vmem:[%s1 + $0x20] sm:$0xff]
        %v315 = vld [vmem:[%s1 + $0x28] sm:$0xff]
        %v316 = vld [vmem:[%s1 + $0x30] sm:$0xff]
        %v317 = vld [vmem:[%s1 + $0x38] sm:$0xff]
        %v318 = vld [vmem:[%s1 + $0x40] sm:$0xff]
        %v319 = vld [vmem:[%s2] sm:$0x1]
        %v321 = vlaneseq
        %v322 = vshrl.u32 %v321, 7
        %v323 = vsub.s32 0, %v322
        %v324 = vrot.slane %v319, %v323
        %vm326 = vcmask 588800
        %v328 = vsel %vm326, %v246, 0
        %v331 = vsel %vm326, %v247, 0
        %v334 = vsel %vm326, %v248, 0
        %v337 = vsel %vm326, %v249, 0
        %v340 = vsel %vm326, %v250, 0
        %v343 = vsel %vm326, %v251, 0
        %v346 = vsel %vm326, %v252, 0
        %v349 = vsel %vm326, %v253, 0
        %v352 = vsel %vm326, %v254, 0
        %v355 = vsel %vm326, %v255, 0
        %v358 = vsel %vm326, %v256, 0
        %v361 = vsel %vm326, %v257, 0
        %v364 = vsel %vm326, %v258, 0
        %v367 = vsel %vm326, %v259, 0
        %v370 = vsel %vm326, %v260, 0
        %v373 = vsel %vm326, %v261, 0
        %v376 = vsel %vm326, %v262, 0
        %v379 = vsel %vm326, %v263, 0
        %v382 = vsel %vm326, %v264, 0
        %v385 = vsel %vm326, %v265, 0
        %v388 = vsel %vm326, %v266, 0
        %v391 = vsel %vm326, %v267, 0
        %v394 = vsel %vm326, %v268, 0
        %v397 = vsel %vm326, %v269, 0
        %v400 = vsel %vm326, %v270, 0
        %v403 = vsel %vm326, %v271, 0
        %v406 = vsel %vm326, %v272, 0
        %v409 = vsel %vm326, %v273, 0
        %v412 = vsel %vm326, %v274, 0
        %v415 = vsel %vm326, %v275, 0
        %v418 = vsel %vm326, %v276, 0
        %v421 = vsel %vm326, %v277, 0
        %v424 = vsel %vm326, %v278, 0
        %v427 = vsel %vm326, %v279, 0
        %v430 = vsel %vm326, %v280, 0
        %v433 = vsel %vm326, %v281, 0
        %v436 = vsel %vm326, %v282, 0
        %v439 = vsel %vm326, %v283, 0
        %v442 = vsel %vm326, %v284, 0
        %v445 = vsel %vm326, %v285, 0
        %v448 = vsel %vm326, %v286, 0
        %v451 = vsel %vm326, %v287, 0
        %v454 = vsel %vm326, %v288, 0
        %v457 = vsel %vm326, %v289, 0
        %v460 = vsel %vm326, %v290, 0
        %v463 = vsel %vm326, %v291, 0
        %v466 = vsel %vm326, %v292, 0
        %v469 = vsel %vm326, %v293, 0
        %v472 = vsel %vm326, %v294, 0
        %v475 = vsel %vm326, %v295, 0
        %v478 = vsel %vm326, %v296, 0
        %v481 = vsel %vm326, %v297, 0
        %v484 = vsel %vm326, %v298, 0
        %v487 = vsel %vm326, %v299, 0
        %v490 = vsel %vm326, %v300, 0
        %v493 = vsel %vm326, %v301, 0
        %v496 = vsel %vm326, %v302, 0
        %v499 = vsel %vm326, %v303, 0
        %v502 = vsel %vm326, %v304, 0
        %v505 = vsel %vm326, %v305, 0
        %v508 = vsel %vm326, %v306, 0
        %v511 = vsel %vm326, %v307, 0
        %v514 = vsel %vm326, %v308, 0
        %v517 = vsel %vm326, %v309, 0
        %519 = vmatprep.subr.mxu0 0.0
        %520 = vmatpush1.msra.mxu0 %v310
        %521 = vmatprep.subr.mxu0 0.0
        %522 = vmatpush1.msra.mxu0 %v311
        %523 = vmatprep.subr.mxu0 0.0
        %524 = vmatpush1.msra.mxu0 %v312
        %525 = vmatprep.subr.mxu0 0.0
        %526 = vmatpush1.msra.mxu0 %v313
        %527 = vmatprep.subr.mxu0 0.0
        %528 = vmatpush1.msra.mxu0 %v314
        %529 = vmatprep.subr.mxu0 0.0
        %530 = vmatpush1.msra.mxu0 %v315
        %531 = vmatprep.subr.mxu0 0.0
        %532 = vmatpush1.msra.mxu0 %v316
        %533 = vmatprep.subr.mxu0 0.0
        %534 = vmatpush1.msra.mxu0 %v317
        %535 = vmatprep.subr.mxu0 0.0
        %536 = vmatpush1.msra.mxu0 %v318
        %537 = vmatprep.subr.mxu0 0.0
        %538 = vmatpush1.msra.mxu0 0.0
        %539 = vmatprep.subr.mxu0 0.0
        %540 = vmatpush1.msra.mxu0 0.0
        %541 = vmatprep.subr.mxu0 0.0
        %542 = vmatpush1.msra.mxu0 0.0
        %543 = vmatprep.subr.mxu0 0.0
        %544 = vmatpush1.msra.mxu0 0.0
        %545 = vmatprep.subr.mxu0 0.0
        %546 = vmatpush1.msra.mxu0 0.0
        %547 = vmatprep.subr.mxu0 0.0
        %548 = vmatpush1.msra.mxu0 0.0
        %549 = vmatprep.subr.mxu0 0.0
        %550 = vmatpush1.msra.mxu0 0.0
        %551 = vmatprep.subr.mxu0 0.0
        %552 = vmatpush1.msra.mxu0 0.0
        %553 = vmatprep.subr.mxu0 0.0
        %554 = vmatpush1.msra.mxu0 0.0
        %555 = vmatprep.subr.mxu0 0.0
        %556 = vmatpush1.msra.mxu0 0.0
        %557 = vmatprep.subr.mxu0 0.0
        %558 = vmatpush1.msra.mxu0 0.0
        %559 = vmatprep.subr.mxu0 0.0
        %560 = vmatpush1.msra.mxu0 0.0
        %561 = vmatprep.subr.mxu0 0.0
        %562 = vmatpush1.msra.mxu0 0.0
        %563 = vmatprep.subr.mxu0 0.0
        %564 = vmatpush1.msra.mxu0 0.0
        %565 = vmatprep.subr.mxu0 0.0
        %566 = vmatpush1.msra.mxu0 0.0
        %567 = vmatprep.subr.mxu0 0.0
        %568 = vmatpush1.msra.mxu0 0.0
        %569 = vmatprep.subr.mxu0 0.0
        %570 = vmatpush1.msra.mxu0 0.0
        %571 = vmatprep.subr.mxu0 0.0
        %572 = vmatpush1.msra.mxu0 0.0
        %573 = vmatprep.subr.mxu0 0.0
        %574 = vmatpush1.msra.mxu0 0.0
        %575 = vmatprep.subr.mxu0 0.0
        %576 = vmatpush1.msra.mxu0 0.0
        %577 = vmatprep.subr.mxu0 0.0
        %578 = vmatpush1.msra.mxu0 0.0
        %579 = vmatprep.subr.mxu0 0.0
        %580 = vmatpush1.msra.mxu0 0.0
        %581 = vmatprep.subr.mxu0 0.0
        %582 = vmatpush1.msra.mxu0 0.0
        %583 = vmatprep.mubr.f32.mxu0 0.0
        %584 = vmatmul.mubr.f32.gmra.mrb[0].mxu0 %v328
        %v585 = vpop.f32.mrb[0].mxu0
        %v586 = vadd.f32 %v324, %v585
        %v587 = vpop.f32.mrb[0].mxu0
        %588 = vmatprep.mubr.f32.mxu0 0.0
        %589 = vmatmul.mubr.f32.gmra.mrb[0].mxu0 %v331
        %v590 = vpop.f32.mrb[0].mxu0
        %v591 = vadd.f32 %v324, %v590
        %v592 = vpop.f32.mrb[0].mxu0
        %593 = vmatprep.mubr.f32.mxu0 0.0
        %594 = vmatmul.mubr.f32.gmra.mrb[0].mxu0 %v334
        %v595 = vpop.f32.mrb[0].mxu0
        %v596 = vadd.f32 %v324, %v595
        %v597 = vpop.f32.mrb[0].mxu0
        %598 = vmatprep.mubr.f32.mxu0 0.0
        %599 = vmatmul.mubr.f32.gmra.mrb[0].mxu0 %v337
        %v600 = vpop.f32.mrb[0].mxu0
        %v601 = vadd.f32 %v324, %v600
        %v602 = vpop.f32.mrb[0].mxu0
        %603 = vmatprep.mubr.f32.mxu0 0.0
        %604 = vmatmul.mubr.f32.gmra.mrb[0].mxu0 %v340
        %v605 = vpop.f32.mrb[0].mxu0
        %v606 = vadd.f32 %v324, %v605
        %v607 = vpop.f32.mrb[0].mxu0
        %608 = vmatprep.mubr.f32.mxu0 0.0
        %609 = vmatmul.mubr.f32.gmra.mrb[0].mxu0 %v343
        %v610 = vpop.f32.mrb[0].mxu0
        %v611 = vadd.f32 %v324, %v610
        %v612 = vpop.f32.mrb[0].mxu0
        %613 = vmatprep.mubr.f32.mxu0 0.0
        %614 = vmatmul.mubr.f32.gmra.mrb[0].mxu0 %v346
        %v615 = vpop.f32.mrb[0].mxu0
        %v616 = vadd.f32 %v324, %v615
        %v617 = vpop.f32.mrb[0].mxu0
        %618 = vmatprep.mubr.f32.mxu0 0.0
        %619 = vmatmul.mubr.f32.gmra.mrb[0].mxu0 %v349
        %v620 = vpop.f32.mrb[0].mxu0
        %v621 = vadd.f32 %v324, %v620
        %v622 = vpop.f32.mrb[0].mxu0
        %623 = vmatprep.mubr.f32.mxu0 0.0
        %624 = vmatmul.mubr.f32.gmra.mrb[0].mxu0 %v352
        %v625 = vpop.f32.mrb[0].mxu0
        %v626 = vadd.f32 %v324, %v625
        %v627 = vpop.f32.mrb[0].mxu0
        %628 = vmatprep.mubr.f32.mxu0 0.0
        %629 = vmatmul.mubr.f32.gmra.mrb[0].mxu0 %v355
        %v630 = vpop.f32.mrb[0].mxu0
        %v631 = vadd.f32 %v324, %v630
        %v632 = vpop.f32.mrb[0].mxu0
        %633 = vmatprep.mubr.f32.mxu0 0.0
        %634 = vmatmul.mubr.f32.gmra.mrb[0].mxu0 %v358
        %v635 = vpop.f32.mrb[0].mxu0
        %v636 = vadd.f32 %v324, %v635
        %v637 = vpop.f32.mrb[0].mxu0
        %638 = vmatprep.mubr.f32.mxu0 0.0
        %639 = vmatmul.mubr.f32.gmra.mrb[0].mxu0 %v361
        %v640 = vpop.f32.mrb[0].mxu0
        %v641 = vadd.f32 %v324, %v640
        %v642 = vpop.f32.mrb[0].mxu0
        %643 = vmatprep.mubr.f32.mxu0 0.0
        %644 = vmatmul.mubr.f32.gmra.mrb[0].mxu0 %v364
        %v645 = vpop.f32.mrb[0].mxu0
        %v646 = vadd.f32 %v324, %v645
        %v647 = vpop.f32.mrb[0].mxu0
        %648 = vmatprep.mubr.f32.mxu0 0.0
        %649 = vmatmul.mubr.f32.gmra.mrb[0].mxu0 %v367
        %v650 = vpop.f32.mrb[0].mxu0
        %v651 = vadd.f32 %v324, %v650
        %v652 = vpop.f32.mrb[0].mxu0
        %653 = vmatprep.mubr.f32.mxu0 0.0
        %654 = vmatmul.mubr.f32.gmra.mrb[0].mxu0 %v370
        %v655 = vpop.f32.mrb[0].mxu0
        %v656 = vadd.f32 %v324, %v655
        %v657 = vpop.f32.mrb[0].mxu0
        %658 = vmatprep.mubr.f32.mxu0 0.0
        %659 = vmatmul.mubr.f32.gmra.mrb[0].mxu0 %v373
        %v660 = vpop.f32.mrb[0].mxu0
        %v661 = vadd.f32 %v324, %v660
        %v662 = vpop.f32.mrb[0].mxu0
        %663 = vmatprep.mubr.f32.mxu0 0.0
        %664 = vmatmul.mubr.f32.gmra.mrb[0].mxu0 %v376
        %v665 = vpop.f32.mrb[0].mxu0
        %v666 = vadd.f32 %v324, %v665
        %v667 = vpop.f32.mrb[0].mxu0
        %668 = vmatprep.mubr.f32.mxu0 0.0
        %669 = vmatmul.mubr.f32.gmra.mrb[0].mxu0 %v379
        %v670 = vpop.f32.mrb[0].mxu0
        %v671 = vadd.f32 %v324, %v670
        %v672 = vpop.f32.mrb[0].mxu0
        %673 = vmatprep.mubr.f32.mxu0 0.0
        %674 = vmatmul.mubr.f32.gmra.mrb[0].mxu0 %v382
        %v675 = vpop.f32.mrb[0].mxu0
        %v676 = vadd.f32 %v324, %v675
        %v677 = vpop.f32.mrb[0].mxu0
        %678 = vmatprep.mubr.f32.mxu0 0.0
        %679 = vmatmul.mubr.f32.gmra.mrb[0].mxu0 %v385
        %v680 = vpop.f32.mrb[0].mxu0
        %v681 = vadd.f32 %v324, %v680
        %v682 = vpop.f32.mrb[0].mxu0
        %683 = vmatprep.mubr.f32.mxu0 0.0
        %684 = vmatmul.mubr.f32.gmra.mrb[0].mxu0 %v388
        %v685 = vpop.f32.mrb[0].mxu0
        %v686 = vadd.f32 %v324, %v685
        %v687 = vpop.f32.mrb[0].mxu0
        %688 = vmatprep.mubr.f32.mxu0 0.0
        %689 = vmatmul.mubr.f32.gmra.mrb[0].mxu0 %v391
        %v690 = vpop.f32.mrb[0].mxu0
        %v691 = vadd.f32 %v324, %v690
        %v692 = vpop.f32.mrb[0].mxu0
        %693 = vmatprep.mubr.f32.mxu0 0.0
        %694 = vmatmul.mubr.f32.gmra.mrb[0].mxu0 %v394
        %v695 = vpop.f32.mrb[0].mxu0
        %v696 = vadd.f32 %v324, %v695
        %v697 = vpop.f32.mrb[0].mxu0
        %698 = vmatprep.mubr.f32.mxu0 0.0
        %699 = vmatmul.mubr.f32.gmra.mrb[0].mxu0 %v397
        %v700 = vpop.f32.mrb[0].mxu0
        %v701 = vadd.f32 %v324, %v700
        %v702 = vpop.f32.mrb[0].mxu0
        %703 = vmatprep.mubr.f32.mxu0 0.0
        %704 = vmatmul.mubr.f32.gmra.mrb[0].mxu0 %v400
        %v705 = vpop.f32.mrb[0].mxu0
        %v706 = vadd.f32 %v324, %v705
        %v707 = vpop.f32.mrb[0].mxu0
        %708 = vmatprep.mubr.f32.mxu0 0.0
        %709 = vmatmul.mubr.f32.gmra.mrb[0].mxu0 %v403
        %v710 = vpop.f32.mrb[0].mxu0
        %v711 = vadd.f32 %v324, %v710
        %v712 = vpop.f32.mrb[0].mxu0
        %713 = vmatprep.mubr.f32.mxu0 0.0
        %714 = vmatmul.mubr.f32.gmra.mrb[0].mxu0 %v406
        %v715 = vpop.f32.mrb[0].mxu0
        %v716 = vadd.f32 %v324, %v715
        %v717 = vpop.f32.mrb[0].mxu0
        %718 = vmatprep.mubr.f32.mxu0 0.0
        %719 = vmatmul.mubr.f32.gmra.mrb[0].mxu0 %v409
        %v720 = vpop.f32.mrb[0].mxu0
        %v721 = vadd.f32 %v324, %v720
        %v722 = vpop.f32.mrb[0].mxu0
        %723 = vmatprep.mubr.f32.mxu0 0.0
        %724 = vmatmul.mubr.f32.gmra.mrb[0].mxu0 %v412
        %v725 = vpop.f32.mrb[0].mxu0
        %v726 = vadd.f32 %v324, %v725
        %v727 = vpop.f32.mrb[0].mxu0
        %728 = vmatprep.mubr.f32.mxu0 0.0
        %729 = vmatmul.mubr.f32.gmra.mrb[0].mxu0 %v415
        %v730 = vpop.f32.mrb[0].mxu0
        %v731 = vadd.f32 %v324, %v730
        %v732 = vpop.f32.mrb[0].mxu0
        %733 = vmatprep.mubr.f32.mxu0 0.0
        %734 = vmatmul.mubr.f32.gmra.mrb[0].mxu0 %v418
        %v735 = vpop.f32.mrb[0].mxu0
        %v736 = vadd.f32 %v324, %v735
        %v737 = vpop.f32.mrb[0].mxu0
        %738 = vmatprep.mubr.f32.mxu0 0.0
        %739 = vmatmul.mubr.f32.gmra.mrb[0].mxu0 %v421
        %v740 = vpop.f32.mrb[0].mxu0
        %v741 = vadd.f32 %v324, %v740
        %v742 = vpop.f32.mrb[0].mxu0
        %743 = vmatprep.mubr.f32.mxu0 0.0
        %744 = vmatmul.mubr.f32.gmra.mrb[0].mxu0 %v424
        %v745 = vpop.f32.mrb[0].mxu0
        %v746 = vadd.f32 %v324, %v745
        %v747 = vpop.f32.mrb[0].mxu0
        %748 = vmatprep.mubr.f32.mxu0 0.0
        %749 = vmatmul.mubr.f32.gmra.mrb[0].mxu0 %v427
        %v750 = vpop.f32.mrb[0].mxu0
        %v751 = vadd.f32 %v324, %v750
        %v752 = vpop.f32.mrb[0].mxu0
        %753 = vmatprep.mubr.f32.mxu0 0.0
        %754 = vmatmul.mubr.f32.gmra.mrb[0].mxu0 %v430
        %v755 = vpop.f32.mrb[0].mxu0
        %v756 = vadd.f32 %v324, %v755
        %v757 = vpop.f32.mrb[0].mxu0
        %758 = vmatprep.mubr.f32.mxu0 0.0
        %759 = vmatmul.mubr.f32.gmra.mrb[0].mxu0 %v433
        %v760 = vpop.f32.mrb[0].mxu0
        %v761 = vadd.f32 %v324, %v760
        %v762 = vpop.f32.mrb[0].mxu0
        %763 = vmatprep.mubr.f32.mxu0 0.0
        %764 = vmatmul.mubr.f32.gmra.mrb[0].mxu0 %v436
        %v765 = vpop.f32.mrb[0].mxu0
        %v766 = vadd.f32 %v324, %v765
        %v767 = vpop.f32.mrb[0].mxu0
        %768 = vmatprep.mubr.f32.mxu0 0.0
        %769 = vmatmul.mubr.f32.gmra.mrb[0].mxu0 %v439
        %v770 = vpop.f32.mrb[0].mxu0
        %v771 = vadd.f32 %v324, %v770
        %v772 = vpop.f32.mrb[0].mxu0
        %773 = vmatprep.mubr.f32.mxu0 0.0
        %774 = vmatmul.mubr.f32.gmra.mrb[0].mxu0 %v442
        %v775 = vpop.f32.mrb[0].mxu0
        %v776 = vadd.f32 %v324, %v775
        %v777 = vpop.f32.mrb[0].mxu0
        %778 = vmatprep.mubr.f32.mxu0 0.0
        %779 = vmatmul.mubr.f32.gmra.mrb[0].mxu0 %v445
        %v780 = vpop.f32.mrb[0].mxu0
        %v781 = vadd.f32 %v324, %v780
        %v782 = vpop.f32.mrb[0].mxu0
        %783 = vmatprep.mubr.f32.mxu0 0.0
        %784 = vmatmul.mubr.f32.gmra.mrb[0].mxu0 %v448
        %v785 = vpop.f32.mrb[0].mxu0
        %v786 = vadd.f32 %v324, %v785
        %v787 = vpop.f32.mrb[0].mxu0
        %788 = vmatprep.mubr.f32.mxu0 0.0
        %789 = vmatmul.mubr.f32.gmra.mrb[0].mxu0 %v451
        %v790 = vpop.f32.mrb[0].mxu0
        %v791 = vadd.f32 %v324, %v790
        %v792 = vpop.f32.mrb[0].mxu0
        %793 = vmatprep.mubr.f32.mxu0 0.0
        %794 = vmatmul.mubr.f32.gmra.mrb[0].mxu0 %v454
        %v795 = vpop.f32.mrb[0].mxu0
        %v796 = vadd.f32 %v324, %v795
        %v797 = vpop.f32.mrb[0].mxu0
        %798 = vmatprep.mubr.f32.mxu0 0.0
        %799 = vmatmul.mubr.f32.gmra.mrb[0].mxu0 %v457
        %v800 = vpop.f32.mrb[0].mxu0
        %v801 = vadd.f32 %v324, %v800
        %v802 = vpop.f32.mrb[0].mxu0
        %803 = vmatprep.mubr.f32.mxu0 0.0
        %804 = vmatmul.mubr.f32.gmra.mrb[0].mxu0 %v460
        %v805 = vpop.f32.mrb[0].mxu0
        %v806 = vadd.f32 %v324, %v805
        %v807 = vpop.f32.mrb[0].mxu0
        %808 = vmatprep.mubr.f32.mxu0 0.0
        %809 = vmatmul.mubr.f32.gmra.mrb[0].mxu0 %v463
        %v810 = vpop.f32.mrb[0].mxu0
        %v811 = vadd.f32 %v324, %v810
        %v812 = vpop.f32.mrb[0].mxu0
        %813 = vmatprep.mubr.f32.mxu0 0.0
        %814 = vmatmul.mubr.f32.gmra.mrb[0].mxu0 %v466
        %v815 = vpop.f32.mrb[0].mxu0
        %v816 = vadd.f32 %v324, %v815
        %v817 = vpop.f32.mrb[0].mxu0
        %818 = vmatprep.mubr.f32.mxu0 0.0
        %819 = vmatmul.mubr.f32.gmra.mrb[0].mxu0 %v469
        %v820 = vpop.f32.mrb[0].mxu0
        %v821 = vadd.f32 %v324, %v820
        %v822 = vpop.f32.mrb[0].mxu0
        %823 = vmatprep.mubr.f32.mxu0 0.0
        %824 = vmatmul.mubr.f32.gmra.mrb[0].mxu0 %v472
        %v825 = vpop.f32.mrb[0].mxu0
        %v826 = vadd.f32 %v324, %v825
        %v827 = vpop.f32.mrb[0].mxu0
        %828 = vmatprep.mubr.f32.mxu0 0.0
        %829 = vmatmul.mubr.f32.gmra.mrb[0].mxu0 %v475
        %v830 = vpop.f32.mrb[0].mxu0
        %v831 = vadd.f32 %v324, %v830
        %v832 = vpop.f32.mrb[0].mxu0
        %833 = vmatprep.mubr.f32.mxu0 0.0
        %834 = vmatmul.mubr.f32.gmra.mrb[0].mxu0 %v478
        %v835 = vpop.f32.mrb[0].mxu0
        %v836 = vadd.f32 %v324, %v835
        %v837 = vpop.f32.mrb[0].mxu0
        %838 = vmatprep.mubr.f32.mxu0 0.0
        %839 = vmatmul.mubr.f32.gmra.mrb[0].mxu0 %v481
        %v840 = vpop.f32.mrb[0].mxu0
        %v841 = vadd.f32 %v324, %v840
        %v842 = vpop.f32.mrb[0].mxu0
        %843 = vmatprep.mubr.f32.mxu0 0.0
        %844 = vmatmul.mubr.f32.gmra.mrb[0].mxu0 %v484
        %v845 = vpop.f32.mrb[0].mxu0
        %v846 = vadd.f32 %v324, %v845
        %v847 = vpop.f32.mrb[0].mxu0
        %848 = vmatprep.mubr.f32.mxu0 0.0
        %849 = vmatmul.mubr.f32.gmra.mrb[0].mxu0 %v487
        %v850 = vpop.f32.mrb[0].mxu0
        %v851 = vadd.f32 %v324, %v850
        %v852 = vpop.f32.mrb[0].mxu0
        %853 = vmatprep.mubr.f32.mxu0 0.0
        %854 = vmatmul.mubr.f32.gmra.mrb[0].mxu0 %v490
        %v855 = vpop.f32.mrb[0].mxu0
        %v856 = vadd.f32 %v324, %v855
        %v857 = vpop.f32.mrb[0].mxu0
        %858 = vmatprep.mubr.f32.mxu0 0.0
        %859 = vmatmul.mubr.f32.gmra.mrb[0].mxu0 %v493
        %v860 = vpop.f32.mrb[0].mxu0
        %v861 = vadd.f32 %v324, %v860
        %v862 = vpop.f32.mrb[0].mxu0
        %863 = vmatprep.mubr.f32.mxu0 0.0
        %864 = vmatmul.mubr.f32.gmra.mrb[0].mxu0 %v496
        %v865 = vpop.f32.mrb[0].mxu0
        %v866 = vadd.f32 %v324, %v865
        %v867 = vpop.f32.mrb[0].mxu0
        %868 = vmatprep.mubr.f32.mxu0 0.0
        %869 = vmatmul.mubr.f32.gmra.mrb[0].mxu0 %v499
        %v870 = vpop.f32.mrb[0].mxu0
        %v871 = vadd.f32 %v324, %v870
        %v872 = vpop.f32.mrb[0].mxu0
        %873 = vmatprep.mubr.f32.mxu0 0.0
        %874 = vmatmul.mubr.f32.gmra.mrb[0].mxu0 %v502
        %v875 = vpop.f32.mrb[0].mxu0
        %v876 = vadd.f32 %v324, %v875
        %v877 = vpop.f32.mrb[0].mxu0
        %878 = vmatprep.mubr.f32.mxu0 0.0
        %879 = vmatmul.mubr.f32.gmra.mrb[0].mxu0 %v505
        %v880 = vpop.f32.mrb[0].mxu0
        %v881 = vadd.f32 %v324, %v880
        %v882 = vpop.f32.mrb[0].mxu0
        %883 = vmatprep.mubr.f32.mxu0 0.0
        %884 = vmatmul.mubr.f32.gmra.mrb[0].mxu0 %v508
        %v885 = vpop.f32.mrb[0].mxu0
        %v886 = vadd.f32 %v324, %v885
        %v887 = vpop.f32.mrb[0].mxu0
        %888 = vmatprep.mubr.f32.mxu0 0.0
        %889 = vmatmul.mubr.f32.gmra.mrb[0].mxu0 %v511
        %v890 = vpop.f32.mrb[0].mxu0
        %v891 = vadd.f32 %v324, %v890
        %v892 = vpop.f32.mrb[0].mxu0
        %893 = vmatprep.mubr.f32.mxu0 0.0
        %894 = vmatmul.mubr.f32.gmra.mrb[0].mxu0 %v514
        %v895 = vpop.f32.mrb[0].mxu0
        %v896 = vadd.f32 %v324, %v895
        %v897 = vpop.f32.mrb[0].mxu0
        %898 = vmatprep.mubr.f32.mxu0 0.0
        %899 = vmatmul.mubr.f32.gmra.mrb[0].mxu0 %v517
        %v900 = vpop.f32.mrb[0].mxu0
        %v901 = vadd.f32 %v324, %v900
        %v902 = vpop.f32.mrb[0].mxu0
        %903 = vdwg.mxu0
        %v904 = vmax.f32 %v586, 0.0
        %v905 = vmax.f32 %v591, 0.0
        %v906 = vmax.f32 %v596, 0.0
        %v907 = vmax.f32 %v601, 0.0
        %v908 = vmax.f32 %v606, 0.0
        %v909 = vmax.f32 %v611, 0.0
        %v910 = vmax.f32 %v616, 0.0
        %v911 = vmax.f32 %v621, 0.0
        %v912 = vmax.f32 %v626, 0.0
        %v913 = vmax.f32 %v631, 0.0
        %v914 = vmax.f32 %v636, 0.0
        %v915 = vmax.f32 %v641, 0.0
        %v916 = vmax.f32 %v646, 0.0
        %v917 = vmax.f32 %v651, 0.0
        %v918 = vmax.f32 %v656, 0.0
        %v919 = vmax.f32 %v661, 0.0
        %v920 = vmax.f32 %v666, 0.0
        %v921 = vmax.f32 %v671, 0.0
        %v922 = vmax.f32 %v676, 0.0
        %v923 = vmax.f32 %v681, 0.0
        %v924 = vmax.f32 %v686, 0.0
        %v925 = vmax.f32 %v691, 0.0
        %v926 = vmax.f32 %v696, 0.0
        %v927 = vmax.f32 %v701, 0.0
        %v928 = vmax.f32 %v706, 0.0
        %v929 = vmax.f32 %v711, 0.0
        %v930 = vmax.f32 %v716, 0.0
        %v931 = vmax.f32 %v721, 0.0
        %v932 = vmax.f32 %v726, 0.0
        %v933 = vmax.f32 %v731, 0.0
        %v934 = vmax.f32 %v736, 0.0
        %v935 = vmax.f32 %v741, 0.0
        %v936 = vmax.f32 %v746, 0.0
        %v937 = vmax.f32 %v751, 0.0
        %v938 = vmax.f32 %v756, 0.0
        %v939 = vmax.f32 %v761, 0.0
        %v940 = vmax.f32 %v766, 0.0
        %v941 = vmax.f32 %v771, 0.0
        %v942 = vmax.f32 %v776, 0.0
        %v943 = vmax.f32 %v781, 0.0
        %v944 = vmax.f32 %v786, 0.0
        %v945 = vmax.f32 %v791, 0.0
        %v946 = vmax.f32 %v796, 0.0
        %v947 = vmax.f32 %v801, 0.0
        %v948 = vmax.f32 %v806, 0.0
        %v949 = vmax.f32 %v811, 0.0
        %v950 = vmax.f32 %v816, 0.0
        %v951 = vmax.f32 %v821, 0.0
        %v952 = vmax.f32 %v826, 0.0
        %v953 = vmax.f32 %v831, 0.0
        %v954 = vmax.f32 %v836, 0.0
        %v955 = vmax.f32 %v841, 0.0
        %v956 = vmax.f32 %v846, 0.0
        %v957 = vmax.f32 %v851, 0.0
        %v958 = vmax.f32 %v856, 0.0
        %v959 = vmax.f32 %v861, 0.0
        %v960 = vmax.f32 %v866, 0.0
        %v961 = vmax.f32 %v871, 0.0
        %v962 = vmax.f32 %v876, 0.0
        %v963 = vmax.f32 %v881, 0.0
        %v964 = vmax.f32 %v886, 0.0
        %v965 = vmax.f32 %v891, 0.0
        %v966 = vmax.f32 %v896, 0.0
        %v967 = vmax.f32 %v901, 0.0
        %v968 = vld [vmem:[%s3] sm:$0x1]
        %v970 = vlaneseq
        %v971 = vshrl.u32 %v970, 7
        %v972 = vsub.s32 0, %v971
        %v973 = vrot.slane %v968, %v972
        %v975 = vmul.f32 %v904, %v973
        %v976 = vmul.f32 %v905, %v973
        %v977 = vmul.f32 %v906, %v973
        %v978 = vmul.f32 %v907, %v973
        %v979 = vmul.f32 %v908, %v973
        %v980 = vmul.f32 %v909, %v973
        %v981 = vmul.f32 %v910, %v973
        %v982 = vmul.f32 %v911, %v973
        %v983 = vmul.f32 %v912, %v973
        %v984 = vmul.f32 %v913, %v973
        %v985 = vmul.f32 %v914, %v973
        %v986 = vmul.f32 %v915, %v973
        %v987 = vmul.f32 %v916, %v973
        %v988 = vmul.f32 %v917, %v973
        %v989 = vmul.f32 %v918, %v973
        %v990 = vmul.f32 %v919, %v973
        %v991 = vmul.f32 %v920, %v973
        %v992 = vmul.f32 %v921, %v973
        %v993 = vmul.f32 %v922, %v973
        %v994 = vmul.f32 %v923, %v973
        %v995 = vmul.f32 %v924, %v973
        %v996 = vmul.f32 %v925, %v973
        %v997 = vmul.f32 %v926, %v973
        %v998 = vmul.f32 %v927, %v973
        %v999 = vmul.f32 %v928, %v973
        %v1000 = vmul.f32 %v929, %v973
        %v1001 = vmul.f32 %v930, %v973
        %v1002 = vmul.f32 %v931, %v973
        %v1003 = vmul.f32 %v932, %v973
        %v1004 = vmul.f32 %v933, %v973
        %v1005 = vmul.f32 %v934, %v973
        %v1006 = vmul.f32 %v935, %v973
        %v1007 = vmul.f32 %v936, %v973
        %v1008 = vmul.f32 %v937, %v973
        %v1009 = vmul.f32 %v938, %v973
        %v1010 = vmul.f32 %v939, %v973
        %v1011 = vmul.f32 %v940, %v973
        %v1012 = vmul.f32 %v941, %v973
        %v1013 = vmul.f32 %v942, %v973
        %v1014 = vmul.f32 %v943, %v973
        %v1015 = vmul.f32 %v944, %v973
        %v1016 = vmul.f32 %v945, %v973
        %v1017 = vmul.f32 %v946, %v973
        %v1018 = vmul.f32 %v947, %v973
        %v1019 = vmul.f32 %v948, %v973
        %v1020 = vmul.f32 %v949, %v973
        %v1021 = vmul.f32 %v950, %v973
        %v1022 = vmul.f32 %v951, %v973
        %v1023 = vmul.f32 %v952, %v973
        %v1024 = vmul.f32 %v953, %v973
        %v1025 = vmul.f32 %v954, %v973
        %v1026 = vmul.f32 %v955, %v973
        %v1027 = vmul.f32 %v956, %v973
        %v1028 = vmul.f32 %v957, %v973
        %v1029 = vmul.f32 %v958, %v973
        %v1030 = vmul.f32 %v959, %v973
        %v1031 = vmul.f32 %v960, %v973
        %v1032 = vmul.f32 %v961, %v973
        %v1033 = vmul.f32 %v962, %v973
        %v1034 = vmul.f32 %v963, %v973
        %v1035 = vmul.f32 %v964, %v973
        %v1036 = vmul.f32 %v965, %v973
        %v1037 = vmul.f32 %v966, %v973
        %v1038 = vmul.f32 %v967, %v973
        %v1039 = vld [vmem:[%s4] sm:$0x1]
        %v1041 = vlaneseq
        %v1042 = vshrl.u32 %v1041, 7
        %v1043 = vsub.s32 0, %v1042
        %v1044 = vrot.slane %v1039, %v1043
        %v1046 = vadd.f32 %v975, %v1044
        %v1047 = vadd.f32 %v976, %v1044
        %v1048 = vadd.f32 %v977, %v1044
        %v1049 = vadd.f32 %v978, %v1044
        %v1050 = vadd.f32 %v979, %v1044
        %v1051 = vadd.f32 %v980, %v1044
        %v1052 = vadd.f32 %v981, %v1044
        %v1053 = vadd.f32 %v982, %v1044
        %v1054 = vadd.f32 %v983, %v1044
        %v1055 = vadd.f32 %v984, %v1044
        %v1056 = vadd.f32 %v985, %v1044
        %v1057 = vadd.f32 %v986, %v1044
        %v1058 = vadd.f32 %v987, %v1044
        %v1059 = vadd.f32 %v988, %v1044
        %v1060 = vadd.f32 %v989, %v1044
        %v1061 = vadd.f32 %v990, %v1044
        %v1062 = vadd.f32 %v991, %v1044
        %v1063 = vadd.f32 %v992, %v1044
        %v1064 = vadd.f32 %v993, %v1044
        %v1065 = vadd.f32 %v994, %v1044
        %v1066 = vadd.f32 %v995, %v1044
        %v1067 = vadd.f32 %v996, %v1044
        %v1068 = vadd.f32 %v997, %v1044
        %v1069 = vadd.f32 %v998, %v1044
        %v1070 = vadd.f32 %v999, %v1044
        %v1071 = vadd.f32 %v1000, %v1044
        %v1072 = vadd.f32 %v1001, %v1044
        %v1073 = vadd.f32 %v1002, %v1044
        %v1074 = vadd.f32 %v1003, %v1044
        %v1075 = vadd.f32 %v1004, %v1044
        %v1076 = vadd.f32 %v1005, %v1044
        %v1077 = vadd.f32 %v1006, %v1044
        %v1078 = vadd.f32 %v1007, %v1044
        %v1079 = vadd.f32 %v1008, %v1044
        %v1080 = vadd.f32 %v1009, %v1044
        %v1081 = vadd.f32 %v1010, %v1044
        %v1082 = vadd.f32 %v1011, %v1044
        %v1083 = vadd.f32 %v1012, %v1044
        %v1084 = vadd.f32 %v1013, %v1044
        %v1085 = vadd.f32 %v1014, %v1044
        %v1086 = vadd.f32 %v1015, %v1044
        %v1087 = vadd.f32 %v1016, %v1044
        %v1088 = vadd.f32 %v1017, %v1044
        %v1089 = vadd.f32 %v1018, %v1044
        %v1090 = vadd.f32 %v1019, %v1044
        %v1091 = vadd.f32 %v1020, %v1044
        %v1092 = vadd.f32 %v1021, %v1044
        %v1093 = vadd.f32 %v1022, %v1044
        %v1094 = vadd.f32 %v1023, %v1044
        %v1095 = vadd.f32 %v1024, %v1044
        %v1096 = vadd.f32 %v1025, %v1044
        %v1097 = vadd.f32 %v1026, %v1044
        %v1098 = vadd.f32 %v1027, %v1044
        %v1099 = vadd.f32 %v1028, %v1044
        %v1100 = vadd.f32 %v1029, %v1044
        %v1101 = vadd.f32 %v1030, %v1044
        %v1102 = vadd.f32 %v1031, %v1044
        %v1103 = vadd.f32 %v1032, %v1044
        %v1104 = vadd.f32 %v1033, %v1044
        %v1105 = vadd.f32 %v1034, %v1044
        %v1106 = vadd.f32 %v1035, %v1044
        %v1107 = vadd.f32 %v1036, %v1044
        %v1108 = vadd.f32 %v1037, %v1044
        %v1109 = vadd.f32 %v1038, %v1044
        %vm1110 = vcmask 130048
        %1111 = vst.msk [vmem:[%s226] sm:$0xff] %vm1110, %v1046
        %1112 = vst.msk [vmem:[%s226 + $0x8] sm:$0xff] %vm1110, %v1047
        %1113 = vst.msk [vmem:[%s226 + $0x10] sm:$0xff] %vm1110, %v1048
        %1114 = vst.msk [vmem:[%s226 + $0x18] sm:$0xff] %vm1110, %v1049
        %1115 = vst.msk [vmem:[%s226 + $0x20] sm:$0xff] %vm1110, %v1050
        %1116 = vst.msk [vmem:[%s226 + $0x28] sm:$0xff] %vm1110, %v1051
        %1117 = vst.msk [vmem:[%s226 + $0x30] sm:$0xff] %vm1110, %v1052
        %1118 = vst.msk [vmem:[%s226 + $0x38] sm:$0xff] %vm1110, %v1053
        %1119 = vst.msk [vmem:[%s226 + $0x40] sm:$0xff] %vm1110, %v1054
        %1120 = vst.msk [vmem:[%s226 + $0x48] sm:$0xff] %vm1110, %v1055
        %1121 = vst.msk [vmem:[%s226 + $0x50] sm:$0xff] %vm1110, %v1056
        %1122 = vst.msk [vmem:[%s226 + $0x58] sm:$0xff] %vm1110, %v1057
        %1123 = vst.msk [vmem:[%s226 + $0x60] sm:$0xff] %vm1110, %v1058
        %1124 = vst.msk [vmem:[%s226 + $0x68] sm:$0xff] %vm1110, %v1059
        %1125 = vst.msk [vmem:[%s226 + $0x70] sm:$0xff] %vm1110, %v1060
        %1126 = vst.msk [vmem:[%s226 + $0x78] sm:$0xff] %vm1110, %v1061
        %1127 = vst.msk [vmem:[%s226 + $0x80] sm:$0xff] %vm1110, %v1062
        %1128 = vst.msk [vmem:[%s226 + $0x88] sm:$0xff] %vm1110, %v1063
        %1129 = vst.msk [vmem:[%s226 + $0x90] sm:$0xff] %vm1110, %v1064
        %1130 = vst.msk [vmem:[%s226 + $0x98] sm:$0xff] %vm1110, %v1065
        %1131 = vst.msk [vmem:[%s226 + $0xa0] sm:$0xff] %vm1110, %v1066
        %1132 = vst.msk [vmem:[%s226 + $0xa8] sm:$0xff] %vm1110, %v1067
        %1133 = vst.msk [vmem:[%s226 + $0xb0] sm:$0xff] %vm1110, %v1068
        %1134 = vst.msk [vmem:[%s226 + $0xb8] sm:$0xff] %vm1110, %v1069
        %1135 = vst.msk [vmem:[%s226 + $0xc0] sm:$0xff] %vm1110, %v1070
        %1136 = vst.msk [vmem:[%s226 + $0xc8] sm:$0xff] %vm1110, %v1071
        %1137 = vst.msk [vmem:[%s226 + $0xd0] sm:$0xff] %vm1110, %v1072
        %1138 = vst.msk [vmem:[%s226 + $0xd8] sm:$0xff] %vm1110, %v1073
        %1139 = vst.msk [vmem:[%s226 + $0xe0] sm:$0xff] %vm1110, %v1074
        %1140 = vst.msk [vmem:[%s226 + $0xe8] sm:$0xff] %vm1110, %v1075
        %1141 = vst.msk [vmem:[%s226 + $0xf0] sm:$0xff] %vm1110, %v1076
        %1142 = vst.msk [vmem:[%s226 + $0xf8] sm:$0xff] %vm1110, %v1077
        %1143 = vst.msk [vmem:[%s226 + $0x100] sm:$0xff] %vm1110, %v1078
        %1144 = vst.msk [vmem:[%s226 + $0x108] sm:$0xff] %vm1110, %v1079
        %1145 = vst.msk [vmem:[%s226 + $0x110] sm:$0xff] %vm1110, %v1080
        %1146 = vst.msk [vmem:[%s226 + $0x118] sm:$0xff] %vm1110, %v1081
        %1147 = vst.msk [vmem:[%s226 + $0x120] sm:$0xff] %vm1110, %v1082
        %1148 = vst.msk [vmem:[%s226 + $0x128] sm:$0xff] %vm1110, %v1083
        %1149 = vst.msk [vmem:[%s226 + $0x130] sm:$0xff] %vm1110, %v1084
        %1150 = vst.msk [vmem:[%s226 + $0x138] sm:$0xff] %vm1110, %v1085
        %1151 = vst.msk [vmem:[%s226 + $0x140] sm:$0xff] %vm1110, %v1086
        %1152 = vst.msk [vmem:[%s226 + $0x148] sm:$0xff] %vm1110, %v1087
        %1153 = vst.msk [vmem:[%s226 + $0x150] sm:$0xff] %vm1110, %v1088
        %1154 = vst.msk [vmem:[%s226 + $0x158] sm:$0xff] %vm1110, %v1089
        %1155 = vst.msk [vmem:[%s226 + $0x160] sm:$0xff] %vm1110, %v1090
        %1156 = vst.msk [vmem:[%s226 + $0x168] sm:$0xff] %vm1110, %v1091
        %1157 = vst.msk [vmem:[%s226 + $0x170] sm:$0xff] %vm1110, %v1092
        %1158 = vst.msk [vmem:[%s226 + $0x178] sm:$0xff] %vm1110, %v1093
        %1159 = vst.msk [vmem:[%s226 + $0x180] sm:$0xff] %vm1110, %v1094
        %1160 = vst.msk [vmem:[%s226 + $0x188] sm:$0xff] %vm1110, %v1095
        %1161 = vst.msk [vmem:[%s226 + $0x190] sm:$0xff] %vm1110, %v1096
        %1162 = vst.msk [vmem:[%s226 + $0x198] sm:$0xff] %vm1110, %v1097
        %1163 = vst.msk [vmem:[%s226 + $0x1a0] sm:$0xff] %vm1110, %v1098
        %1164 = vst.msk [vmem:[%s226 + $0x1a8] sm:$0xff] %vm1110, %v1099
        %1165 = vst.msk [vmem:[%s226 + $0x1b0] sm:$0xff] %vm1110, %v1100
        %1166 = vst.msk [vmem:[%s226 + $0x1b8] sm:$0xff] %vm1110, %v1101
        %1167 = vst.msk [vmem:[%s226 + $0x1c0] sm:$0xff] %vm1110, %v1102
        %1168 = vst.msk [vmem:[%s226 + $0x1c8] sm:$0xff] %vm1110, %v1103
        %1169 = vst.msk [vmem:[%s226 + $0x1d0] sm:$0xff] %vm1110, %v1104
        %1170 = vst.msk [vmem:[%s226 + $0x1d8] sm:$0xff] %vm1110, %v1105
        %1171 = vst.msk [vmem:[%s226 + $0x1e0] sm:$0xff] %vm1110, %v1106
        %1172 = vst.msk [vmem:[%s226 + $0x1e8] sm:$0xff] %vm1110, %v1107
        %1173 = vst.msk [vmem:[%s226 + $0x1f0] sm:$0xff] %vm1110, %v1108
        %1174 = vst.msk [vmem:[%s226 + $0x1f8] sm:$0xff] %vm1110, %v1109
        %s1175 = sand.u32 %s134, 1
        %s1176 = sand.u32 %s134, 1
        %s1177 = smul.addr %s1176, 512
        %s1178 = scalar_lea.vmem [#allocation2], %s1177
        // Predicated region
        $region41: #{neural_spline_forward.9} parent=39 // pred_check
          %p1179 = pneg %p144
        $region42: #{neural_spline_forward.9} parent=39 // pred_check_branch
          %1181 = sbr.rel (%p1179) target = $region44
        $region43: #{neural_spline_forward.9} parent=39 // pred_region
          %s1182 = smul.u32 64, %s16
          %s1183 = ssub.s32 241, %s1182
          %p1184 = scmp.lt.s32.totalorder %s1183, 64
          %s1185 = scalar_select %p1184, %s1183, 64
          %s1186 = smul.u32 128, %s1185
          %p1187 = scmp.ne.s32.totalorder 0, %s1186
          %s1188 = smul.addr %s1182, 8
          %s1189 = scalar_lea.vmem %s5, %s1188
          // Predicated region
          $region45: #{neural_spline_forward.9} parent=43 // pred_check
            %p1190 = pneg %p1187
          $region46: #{neural_spline_forward.9} parent=43 // pred_check_branch
            %1192 = sbr.rel (%p1190) target = $region48
          $region47: #{neural_spline_forward.9} parent=43 // pred_region
            // Predicated region
            $region49: #{neural_spline_forward.9} parent=47 // pred_check
              _
            $region50: #{neural_spline_forward.9} parent=47 // pred_check_branch
              %1194 = sbr.rel (0) target = $region52
            $region51: #{neural_spline_forward.9} parent=47 // pred_region
              // Predicated region
              $region71: #{neural_spline_forward.9} parent=51 // pred_check
                _
              $region72: #{neural_spline_forward.9} parent=51 // pred_check_branch
                %1369 = sbr.rel (0) target = $region74
              $region73: #{neural_spline_forward.9} parent=51 // pred_region
                %s1370 = sshrl.u32 %s1185, 6
                // While loop
                $region75: #{neural_spline_forward.9} parent=73 // loop_pre_header
                  _
                $region76: #{neural_spline_forward.9} parent=73 // loop_header
                  %s1372 = sphi 0, %s1374
                  %p1373 = scmp.ge.s32.totalorder %s1372, %s1370
                  %s1377 = sphi 0, %s1510
                  %s1378 = sphi %s1178, %s1513
                  %s1379 = sphi %s1189, %s1514
                $region77: #{neural_spline_forward.9} parent=73 // loop_header_branch
                  %1376 = sbr.rel (%p1373) target = $region81
                $region78: #{neural_spline_forward.9} parent=73 // loop_body
                  %v1380 = vld [vmem:[%s1378] sm:$0xff]
                  %1381 = vst [vmem:[%s1379] sm:$0xff] %v1380
                  %v1382 = vld [vmem:[%s1378 + $0x8] sm:$0xff]
                  %1383 = vst [vmem:[%s1379 + $0x8] sm:$0xff] %v1382
                  %v1384 = vld [vmem:[%s1378 + $0x10] sm:$0xff]
                  %1385 = vst [vmem:[%s1379 + $0x10] sm:$0xff] %v1384
                  %v1386 = vld [vmem:[%s1378 + $0x18] sm:$0xff]
                  %1387 = vst [vmem:[%s1379 + $0x18] sm:$0xff] %v1386
                  %v1388 = vld [vmem:[%s1378 + $0x20] sm:$0xff]
                  %1389 = vst [vmem:[%s1379 + $0x20] sm:$0xff] %v1388
                  %v1390 = vld [vmem:[%s1378 + $0x28] sm:$0xff]
                  %1391 = vst [vmem:[%s1379 + $0x28] sm:$0xff] %v1390
                  %v1392 = vld [vmem:[%s1378 + $0x30] sm:$0xff]
                  %1393 = vst [vmem:[%s1379 + $0x30] sm:$0xff] %v1392
                  %v1394 = vld [vmem:[%s1378 + $0x38] sm:$0xff]
                  %1395 = vst [vmem:[%s1379 + $0x38] sm:$0xff] %v1394
                  %v1396 = vld [vmem:[%s1378 + $0x40] sm:$0xff]
                  %1397 = vst [vmem:[%s1379 + $0x40] sm:$0xff] %v1396
                  %v1398 = vld [vmem:[%s1378 + $0x48] sm:$0xff]
                  %1399 = vst [vmem:[%s1379 + $0x48] sm:$0xff] %v1398
                  %v1400 = vld [vmem:[%s1378 + $0x50] sm:$0xff]
                  %1401 = vst [vmem:[%s1379 + $0x50] sm:$0xff] %v1400
                  %v1402 = vld [vmem:[%s1378 + $0x58] sm:$0xff]
                  %1403 = vst [vmem:[%s1379 + $0x58] sm:$0xff] %v1402
                  %v1404 = vld [vmem:[%s1378 + $0x60] sm:$0xff]
                  %1405 = vst [vmem:[%s1379 + $0x60] sm:$0xff] %v1404
                  %v1406 = vld [vmem:[%s1378 + $0x68] sm:$0xff]
                  %1407 = vst [vmem:[%s1379 + $0x68] sm:$0xff] %v1406
                  %v1408 = vld [vmem:[%s1378 + $0x70] sm:$0xff]
                  %1409 = vst [vmem:[%s1379 + $0x70] sm:$0xff] %v1408
                  %v1410 = vld [vmem:[%s1378 + $0x78] sm:$0xff]
                  %1411 = vst [vmem:[%s1379 + $0x78] sm:$0xff] %v1410
                  %v1412 = vld [vmem:[%s1378 + $0x80] sm:$0xff]
                  %1413 = vst [vmem:[%s1379 + $0x80] sm:$0xff] %v1412
                  %v1414 = vld [vmem:[%s1378 + $0x88] sm:$0xff]
                  %1415 = vst [vmem:[%s1379 + $0x88] sm:$0xff] %v1414
                  %v1416 = vld [vmem:[%s1378 + $0x90] sm:$0xff]
                  %1417 = vst [vmem:[%s1379 + $0x90] sm:$0xff] %v1416
                  %v1418 = vld [vmem:[%s1378 + $0x98] sm:$0xff]
                  %1419 = vst [vmem:[%s1379 + $0x98] sm:$0xff] %v1418
                  %v1420 = vld [vmem:[%s1378 + $0xa0] sm:$0xff]
                  %1421 = vst [vmem:[%s1379 + $0xa0] sm:$0xff] %v1420
                  %v1422 = vld [vmem:[%s1378 + $0xa8] sm:$0xff]
                  %1423 = vst [vmem:[%s1379 + $0xa8] sm:$0xff] %v1422
                  %v1424 = vld [vmem:[%s1378 + $0xb0] sm:$0xff]
                  %1425 = vst [vmem:[%s1379 + $0xb0] sm:$0xff] %v1424
                  %v1426 = vld [vmem:[%s1378 + $0xb8] sm:$0xff]
                  %1427 = vst [vmem:[%s1379 + $0xb8] sm:$0xff] %v1426
                  %v1428 = vld [vmem:[%s1378 + $0xc0] sm:$0xff]
                  %1429 = vst [vmem:[%s1379 + $0xc0] sm:$0xff] %v1428
                  %v1430 = vld [vmem:[%s1378 + $0xc8] sm:$0xff]
                  %1431 = vst [vmem:[%s1379 + $0xc8] sm:$0xff] %v1430
                  %v1432 = vld [vmem:[%s1378 + $0xd0] sm:$0xff]
                  %1433 = vst [vmem:[%s1379 + $0xd0] sm:$0xff] %v1432
                  %v1434 = vld [vmem:[%s1378 + $0xd8] sm:$0xff]
                  %1435 = vst [vmem:[%s1379 + $0xd8] sm:$0xff] %v1434
                  %v1436 = vld [vmem:[%s1378 + $0xe0] sm:$0xff]
                  %1437 = vst [vmem:[%s1379 + $0xe0] sm:$0xff] %v1436
                  %v1438 = vld [vmem:[%s1378 + $0xe8] sm:$0xff]
                  %1439 = vst [vmem:[%s1379 + $0xe8] sm:$0xff] %v1438
                  %v1440 = vld [vmem:[%s1378 + $0xf0] sm:$0xff]
                  %1441 = vst [vmem:[%s1379 + $0xf0] sm:$0xff] %v1440
                  %v1442 = vld [vmem:[%s1378 + $0xf8] sm:$0xff]
                  %1443 = vst [vmem:[%s1379 + $0xf8] sm:$0xff] %v1442
                  %v1444 = vld [vmem:[%s1378 + $0x100] sm:$0xff]
                  %1445 = vst [vmem:[%s1379 + $0x100] sm:$0xff] %v1444
                  %v1446 = vld [vmem:[%s1378 + $0x108] sm:$0xff]
                  %1447 = vst [vmem:[%s1379 + $0x108] sm:$0xff] %v1446
                  %v1448 = vld [vmem:[%s1378 + $0x110] sm:$0xff]
                  %1449 = vst [vmem:[%s1379 + $0x110] sm:$0xff] %v1448
                  %v1450 = vld [vmem:[%s1378 + $0x118] sm:$0xff]
                  %1451 = vst [vmem:[%s1379 + $0x118] sm:$0xff] %v1450
                  %v1452 = vld [vmem:[%s1378 + $0x120] sm:$0xff]
                  %1453 = vst [vmem:[%s1379 + $0x120] sm:$0xff] %v1452
                  %v1454 = vld [vmem:[%s1378 + $0x128] sm:$0xff]
                  %1455 = vst [vmem:[%s1379 + $0x128] sm:$0xff] %v1454
                  %v1456 = vld [vmem:[%s1378 + $0x130] sm:$0xff]
                  %1457 = vst [vmem:[%s1379 + $0x130] sm:$0xff] %v1456
                  %v1458 = vld [vmem:[%s1378 + $0x138] sm:$0xff]
                  %1459 = vst [vmem:[%s1379 + $0x138] sm:$0xff] %v1458
                  %v1460 = vld [vmem:[%s1378 + $0x140] sm:$0xff]
                  %1461 = vst [vmem:[%s1379 + $0x140] sm:$0xff] %v1460
                  %v1462 = vld [vmem:[%s1378 + $0x148] sm:$0xff]
                  %1463 = vst [vmem:[%s1379 + $0x148] sm:$0xff] %v1462
                  %v1464 = vld [vmem:[%s1378 + $0x150] sm:$0xff]
                  %1465 = vst [vmem:[%s1379 + $0x150] sm:$0xff] %v1464
                  %v1466 = vld [vmem:[%s1378 + $0x158] sm:$0xff]
                  %1467 = vst [vmem:[%s1379 + $0x158] sm:$0xff] %v1466
                  %v1468 = vld [vmem:[%s1378 + $0x160] sm:$0xff]
                  %1469 = vst [vmem:[%s1379 + $0x160] sm:$0xff] %v1468
                  %v1470 = vld [vmem:[%s1378 + $0x168] sm:$0xff]
                  %1471 = vst [vmem:[%s1379 + $0x168] sm:$0xff] %v1470
                  %v1472 = vld [vmem:[%s1378 + $0x170] sm:$0xff]
                  %1473 = vst [vmem:[%s1379 + $0x170] sm:$0xff] %v1472
                  %v1474 = vld [vmem:[%s1378 + $0x178] sm:$0xff]
                  %1475 = vst [vmem:[%s1379 + $0x178] sm:$0xff] %v1474
                  %v1476 = vld [vmem:[%s1378 + $0x180] sm:$0xff]
                  %1477 = vst [vmem:[%s1379 + $0x180] sm:$0xff] %v1476
                  %v1478 = vld [vmem:[%s1378 + $0x188] sm:$0xff]
                  %1479 = vst [vmem:[%s1379 + $0x188] sm:$0xff] %v1478
                  %v1480 = vld [vmem:[%s1378 + $0x190] sm:$0xff]
                  %1481 = vst [vmem:[%s1379 + $0x190] sm:$0xff] %v1480
                  %v1482 = vld [vmem:[%s1378 + $0x198] sm:$0xff]
                  %1483 = vst [vmem:[%s1379 + $0x198] sm:$0xff] %v1482
                  %v1484 = vld [vmem:[%s1378 + $0x1a0] sm:$0xff]
                  %1485 = vst [vmem:[%s1379 + $0x1a0] sm:$0xff] %v1484
                  %v1486 = vld [vmem:[%s1378 + $0x1a8] sm:$0xff]
                  %1487 = vst [vmem:[%s1379 + $0x1a8] sm:$0xff] %v1486
                  %v1488 = vld [vmem:[%s1378 + $0x1b0] sm:$0xff]
                  %1489 = vst [vmem:[%s1379 + $0x1b0] sm:$0xff] %v1488
                  %v1490 = vld [vmem:[%s1378 + $0x1b8] sm:$0xff]
                  %1491 = vst [vmem:[%s1379 + $0x1b8] sm:$0xff] %v1490
                  %v1492 = vld [vmem:[%s1378 + $0x1c0] sm:$0xff]
                  %1493 = vst [vmem:[%s1379 + $0x1c0] sm:$0xff] %v1492
                  %v1494 = vld [vmem:[%s1378 + $0x1c8] sm:$0xff]
                  %1495 = vst [vmem:[%s1379 + $0x1c8] sm:$0xff] %v1494
                  %v1496 = vld [vmem:[%s1378 + $0x1d0] sm:$0xff]
                  %1497 = vst [vmem:[%s1379 + $0x1d0] sm:$0xff] %v1496
                  %v1498 = vld [vmem:[%s1378 + $0x1d8] sm:$0xff]
                  %1499 = vst [vmem:[%s1379 + $0x1d8] sm:$0xff] %v1498
                  %v1500 = vld [vmem:[%s1378 + $0x1e0] sm:$0xff]
                  %1501 = vst [vmem:[%s1379 + $0x1e0] sm:$0xff] %v1500
                  %v1502 = vld [vmem:[%s1378 + $0x1e8] sm:$0xff]
                  %1503 = vst [vmem:[%s1379 + $0x1e8] sm:$0xff] %v1502
                  %v1504 = vld [vmem:[%s1378 + $0x1f0] sm:$0xff]
                  %1505 = vst [vmem:[%s1379 + $0x1f0] sm:$0xff] %v1504
                  %v1506 = vld [vmem:[%s1378 + $0x1f8] sm:$0xff]
                  %1507 = vst [vmem:[%s1379 + $0x1f8] sm:$0xff] %v1506
                  %s1508 = sadd.s32 1, %s1377
                  %p1509 = scmp.ge.s32.totalorder %s1508, %s1370
                  %s1510 = scalar_select %p1509, 0, %s1508
                  %s1511 = smul.u32 %s1510, 512
                  %s1512 = smul.u32 %s1510, 512
                  %s1513 = scalar_lea.vmem %s1178, %s1511 [#allocation2]
                  %s1514 = scalar_lea.vmem %s1189, %s1512
                $region79: #{neural_spline_forward.9} parent=73 // loop_footer
                  %s1374 = sadd.s32 %s1372, 1
                $region80: #{neural_spline_forward.9} parent=73 // loop_footer_branch
                  %1371 = sbr.rel target = $region76
                $region81: #{neural_spline_forward.9} parent=73 // loop_exit
                  _
                %s1515 = sshrl.u32 %s1185, 6
                %s1516 = sand.u32 %s1185, 63
                %s1517 = smul.u32 %s1515, 64
                %s1518 = smul.u32 8, %s1517
                %s1519 = scalar_lea.vmem %s1178, %s1518 [#allocation2]
                %s1520 = smul.u32 8, %s1517
                %s1521 = scalar_lea.vmem %s1189, %s1520
                // While loop
                $region82: #{neural_spline_forward.9} parent=73 // loop_pre_header
                  _
                $region83: #{neural_spline_forward.9} parent=73 // loop_header
                  %s1523 = sphi 0, %s1525
                  %p1524 = scmp.ge.s32.totalorder %s1523, %s1516
                  %s1528 = sphi 0, %s1535
                  %s1529 = sphi %s1519, %s1538
                  %s1530 = sphi %s1521, %s1539
                $region84: #{neural_spline_forward.9} parent=73 // loop_header_branch
                  %1527 = sbr.rel (%p1524) target = $region88
                $region85: #{neural_spline_forward.9} parent=73 // loop_body
                  %v1531 = vld [vmem:[%s1529] sm:$0xff]
                  %1532 = vst [vmem:[%s1530] sm:$0xff] %v1531
                  %s1533 = sadd.s32 1, %s1528
                  %p1534 = scmp.ge.s32.totalorder %s1533, %s1516
                  %s1535 = scalar_select %p1534, 0, %s1533
                  %s1536 = smul.u32 %s1535, 8
                  %s1537 = smul.u32 %s1535, 8
                  %s1538 = scalar_lea.vmem %s1519, %s1536 [#allocation2]
                  %s1539 = scalar_lea.vmem %s1521, %s1537
                $region86: #{neural_spline_forward.9} parent=73 // loop_footer
                  %s1525 = sadd.s32 %s1523, 1
                $region87: #{neural_spline_forward.9} parent=73 // loop_footer_branch
                  %1522 = sbr.rel target = $region83
                $region88: #{neural_spline_forward.9} parent=73 // loop_exit
                  _
              $region74: #{neural_spline_forward.9} parent=51 // pred_fallthru
                _
              // Predicated region
              $region89: #{neural_spline_forward.9} parent=51 // pred_check
                _
              $region90: #{neural_spline_forward.9} parent=51 // pred_check_branch
                %1541 = sbr.rel target = $region92
              $region91: #{neural_spline_forward.9} parent=51 // pred_region
                _
              $region92: #{neural_spline_forward.9} parent=51 // pred_fallthru
                _
            $region52: #{neural_spline_forward.9} parent=47 // pred_fallthru
              _
            // Predicated region
            $region53: #{neural_spline_forward.9} parent=47 // pred_check
              _
            $region54: #{neural_spline_forward.9} parent=47 // pred_check_branch
              %1196 = sbr.rel target = $region56
            $region55: #{neural_spline_forward.9} parent=47 // pred_region
              %s1198 = sshrl.u32 %s1185, 6
              // While loop
              $region57: #{neural_spline_forward.9} parent=55 // loop_pre_header
                _
              $region58: #{neural_spline_forward.9} parent=55 // loop_header
                %s1200 = sphi 0, %s1202
                %p1201 = scmp.ge.s32.totalorder %s1200, %s1198
                %s1205 = sphi 0, %s1338
                %s1206 = sphi %s1178, %s1341
                %s1207 = sphi %s1189, %s1342
              $region59: #{neural_spline_forward.9} parent=55 // loop_header_branch
                %1204 = sbr.rel (%p1201) target = $region63
              $region60: #{neural_spline_forward.9} parent=55 // loop_body
                %v1208 = vld [vmem:[%s1206] sm:$0xff]
                %1209 = vst [vmem:[%s1207] sm:$0xff] %v1208
                %v1210 = vld [vmem:[%s1206 + $0x8] sm:$0xff]
                %1211 = vst [vmem:[%s1207 + $0x8] sm:$0xff] %v1210
                %v1212 = vld [vmem:[%s1206 + $0x10] sm:$0xff]
                %1213 = vst [vmem:[%s1207 + $0x10] sm:$0xff] %v1212
                %v1214 = vld [vmem:[%s1206 + $0x18] sm:$0xff]
                %1215 = vst [vmem:[%s1207 + $0x18] sm:$0xff] %v1214
                %v1216 = vld [vmem:[%s1206 + $0x20] sm:$0xff]
                %1217 = vst [vmem:[%s1207 + $0x20] sm:$0xff] %v1216
                %v1218 = vld [vmem:[%s1206 + $0x28] sm:$0xff]
                %1219 = vst [vmem:[%s1207 + $0x28] sm:$0xff] %v1218
                %v1220 = vld [vmem:[%s1206 + $0x30] sm:$0xff]
                %1221 = vst [vmem:[%s1207 + $0x30] sm:$0xff] %v1220
                %v1222 = vld [vmem:[%s1206 + $0x38] sm:$0xff]
                %1223 = vst [vmem:[%s1207 + $0x38] sm:$0xff] %v1222
                %v1224 = vld [vmem:[%s1206 + $0x40] sm:$0xff]
                %1225 = vst [vmem:[%s1207 + $0x40] sm:$0xff] %v1224
                %v1226 = vld [vmem:[%s1206 + $0x48] sm:$0xff]
                %1227 = vst [vmem:[%s1207 + $0x48] sm:$0xff] %v1226
                %v1228 = vld [vmem:[%s1206 + $0x50] sm:$0xff]
                %1229 = vst [vmem:[%s1207 + $0x50] sm:$0xff] %v1228
                %v1230 = vld [vmem:[%s1206 + $0x58] sm:$0xff]
                %1231 = vst [vmem:[%s1207 + $0x58] sm:$0xff] %v1230
                %v1232 = vld [vmem:[%s1206 + $0x60] sm:$0xff]
                %1233 = vst [vmem:[%s1207 + $0x60] sm:$0xff] %v1232
                %v1234 = vld [vmem:[%s1206 + $0x68] sm:$0xff]
                %1235 = vst [vmem:[%s1207 + $0x68] sm:$0xff] %v1234
                %v1236 = vld [vmem:[%s1206 + $0x70] sm:$0xff]
                %1237 = vst [vmem:[%s1207 + $0x70] sm:$0xff] %v1236
                %v1238 = vld [vmem:[%s1206 + $0x78] sm:$0xff]
                %1239 = vst [vmem:[%s1207 + $0x78] sm:$0xff] %v1238
                %v1240 = vld [vmem:[%s1206 + $0x80] sm:$0xff]
                %1241 = vst [vmem:[%s1207 + $0x80] sm:$0xff] %v1240
                %v1242 = vld [vmem:[%s1206 + $0x88] sm:$0xff]
                %1243 = vst [vmem:[%s1207 + $0x88] sm:$0xff] %v1242
                %v1244 = vld [vmem:[%s1206 + $0x90] sm:$0xff]
                %1245 = vst [vmem:[%s1207 + $0x90] sm:$0xff] %v1244
                %v1246 = vld [vmem:[%s1206 + $0x98] sm:$0xff]
                %1247 = vst [vmem:[%s1207 + $0x98] sm:$0xff] %v1246
                %v1248 = vld [vmem:[%s1206 + $0xa0] sm:$0xff]
                %1249 = vst [vmem:[%s1207 + $0xa0] sm:$0xff] %v1248
                %v1250 = vld [vmem:[%s1206 + $0xa8] sm:$0xff]
                %1251 = vst [vmem:[%s1207 + $0xa8] sm:$0xff] %v1250
                %v1252 = vld [vmem:[%s1206 + $0xb0] sm:$0xff]
                %1253 = vst [vmem:[%s1207 + $0xb0] sm:$0xff] %v1252
                %v1254 = vld [vmem:[%s1206 + $0xb8] sm:$0xff]
                %1255 = vst [vmem:[%s1207 + $0xb8] sm:$0xff] %v1254
                %v1256 = vld [vmem:[%s1206 + $0xc0] sm:$0xff]
                %1257 = vst [vmem:[%s1207 + $0xc0] sm:$0xff] %v1256
                %v1258 = vld [vmem:[%s1206 + $0xc8] sm:$0xff]
                %1259 = vst [vmem:[%s1207 + $0xc8] sm:$0xff] %v1258
                %v1260 = vld [vmem:[%s1206 + $0xd0] sm:$0xff]
                %1261 = vst [vmem:[%s1207 + $0xd0] sm:$0xff] %v1260
                %v1262 = vld [vmem:[%s1206 + $0xd8] sm:$0xff]
                %1263 = vst [vmem:[%s1207 + $0xd8] sm:$0xff] %v1262
                %v1264 = vld [vmem:[%s1206 + $0xe0] sm:$0xff]
                %1265 = vst [vmem:[%s1207 + $0xe0] sm:$0xff] %v1264
                %v1266 = vld [vmem:[%s1206 + $0xe8] sm:$0xff]
                %1267 = vst [vmem:[%s1207 + $0xe8] sm:$0xff] %v1266
                %v1268 = vld [vmem:[%s1206 + $0xf0] sm:$0xff]
                %1269 = vst [vmem:[%s1207 + $0xf0] sm:$0xff] %v1268
                %v1270 = vld [vmem:[%s1206 + $0xf8] sm:$0xff]
                %1271 = vst [vmem:[%s1207 + $0xf8] sm:$0xff] %v1270
                %v1272 = vld [vmem:[%s1206 + $0x100] sm:$0xff]
                %1273 = vst [vmem:[%s1207 + $0x100] sm:$0xff] %v1272
                %v1274 = vld [vmem:[%s1206 + $0x108] sm:$0xff]
                %1275 = vst [vmem:[%s1207 + $0x108] sm:$0xff] %v1274
                %v1276 = vld [vmem:[%s1206 + $0x110] sm:$0xff]
                %1277 = vst [vmem:[%s1207 + $0x110] sm:$0xff] %v1276
                %v1278 = vld [vmem:[%s1206 + $0x118] sm:$0xff]
                %1279 = vst [vmem:[%s1207 + $0x118] sm:$0xff] %v1278
                %v1280 = vld [vmem:[%s1206 + $0x120] sm:$0xff]
                %1281 = vst [vmem:[%s1207 + $0x120] sm:$0xff] %v1280
                %v1282 = vld [vmem:[%s1206 + $0x128] sm:$0xff]
                %1283 = vst [vmem:[%s1207 + $0x128] sm:$0xff] %v1282
                %v1284 = vld [vmem:[%s1206 + $0x130] sm:$0xff]
                %1285 = vst [vmem:[%s1207 + $0x130] sm:$0xff] %v1284
                %v1286 = vld [vmem:[%s1206 + $0x138] sm:$0xff]
                %1287 = vst [vmem:[%s1207 + $0x138] sm:$0xff] %v1286
                %v1288 = vld [vmem:[%s1206 + $0x140] sm:$0xff]
                %1289 = vst [vmem:[%s1207 + $0x140] sm:$0xff] %v1288
                %v1290 = vld [vmem:[%s1206 + $0x148] sm:$0xff]
                %1291 = vst [vmem:[%s1207 + $0x148] sm:$0xff] %v1290
                %v1292 = vld [vmem:[%s1206 + $0x150] sm:$0xff]
                %1293 = vst [vmem:[%s1207 + $0x150] sm:$0xff] %v1292
                %v1294 = vld [vmem:[%s1206 + $0x158] sm:$0xff]
                %1295 = vst [vmem:[%s1207 + $0x158] sm:$0xff] %v1294
                %v1296 = vld [vmem:[%s1206 + $0x160] sm:$0xff]
                %1297 = vst [vmem:[%s1207 + $0x160] sm:$0xff] %v1296
                %v1298 = vld [vmem:[%s1206 + $0x168] sm:$0xff]
                %1299 = vst [vmem:[%s1207 + $0x168] sm:$0xff] %v1298
                %v1300 = vld [vmem:[%s1206 + $0x170] sm:$0xff]
                %1301 = vst [vmem:[%s1207 + $0x170] sm:$0xff] %v1300
                %v1302 = vld [vmem:[%s1206 + $0x178] sm:$0xff]
                %1303 = vst [vmem:[%s1207 + $0x178] sm:$0xff] %v1302
                %v1304 = vld [vmem:[%s1206 + $0x180] sm:$0xff]
                %1305 = vst [vmem:[%s1207 + $0x180] sm:$0xff] %v1304
                %v1306 = vld [vmem:[%s1206 + $0x188] sm:$0xff]
                %1307 = vst [vmem:[%s1207 + $0x188] sm:$0xff] %v1306
                %v1308 = vld [vmem:[%s1206 + $0x190] sm:$0xff]
                %1309 = vst [vmem:[%s1207 + $0x190] sm:$0xff] %v1308
                %v1310 = vld [vmem:[%s1206 + $0x198] sm:$0xff]
                %1311 = vst [vmem:[%s1207 + $0x198] sm:$0xff] %v1310
                %v1312 = vld [vmem:[%s1206 + $0x1a0] sm:$0xff]
                %1313 = vst [vmem:[%s1207 + $0x1a0] sm:$0xff] %v1312
                %v1314 = vld [vmem:[%s1206 + $0x1a8] sm:$0xff]
                %1315 = vst [vmem:[%s1207 + $0x1a8] sm:$0xff] %v1314
                %v1316 = vld [vmem:[%s1206 + $0x1b0] sm:$0xff]
                %1317 = vst [vmem:[%s1207 + $0x1b0] sm:$0xff] %v1316
                %v1318 = vld [vmem:[%s1206 + $0x1b8] sm:$0xff]
                %1319 = vst [vmem:[%s1207 + $0x1b8] sm:$0xff] %v1318
                %v1320 = vld [vmem:[%s1206 + $0x1c0] sm:$0xff]
                %1321 = vst [vmem:[%s1207 + $0x1c0] sm:$0xff] %v1320
                %v1322 = vld [vmem:[%s1206 + $0x1c8] sm:$0xff]
                %1323 = vst [vmem:[%s1207 + $0x1c8] sm:$0xff] %v1322
                %v1324 = vld [vmem:[%s1206 + $0x1d0] sm:$0xff]
                %1325 = vst [vmem:[%s1207 + $0x1d0] sm:$0xff] %v1324
                %v1326 = vld [vmem:[%s1206 + $0x1d8] sm:$0xff]
                %1327 = vst [vmem:[%s1207 + $0x1d8] sm:$0xff] %v1326
                %v1328 = vld [vmem:[%s1206 + $0x1e0] sm:$0xff]
                %1329 = vst [vmem:[%s1207 + $0x1e0] sm:$0xff] %v1328
                %v1330 = vld [vmem:[%s1206 + $0x1e8] sm:$0xff]
                %1331 = vst [vmem:[%s1207 + $0x1e8] sm:$0xff] %v1330
                %v1332 = vld [vmem:[%s1206 + $0x1f0] sm:$0xff]
                %1333 = vst [vmem:[%s1207 + $0x1f0] sm:$0xff] %v1332
                %v1334 = vld [vmem:[%s1206 + $0x1f8] sm:$0xff]
                %1335 = vst [vmem:[%s1207 + $0x1f8] sm:$0xff] %v1334
                %s1336 = sadd.s32 1, %s1205
                %p1337 = scmp.ge.s32.totalorder %s1336, %s1198
                %s1338 = scalar_select %p1337, 0, %s1336
                %s1339 = smul.u32 %s1338, 512
                %s1340 = smul.u32 %s1338, 512
                %s1341 = scalar_lea.vmem %s1178, %s1339 [#allocation2]
                %s1342 = scalar_lea.vmem %s1189, %s1340
              $region61: #{neural_spline_forward.9} parent=55 // loop_footer
                %s1202 = sadd.s32 %s1200, 1
              $region62: #{neural_spline_forward.9} parent=55 // loop_footer_branch
                %1199 = sbr.rel target = $region58
              $region63: #{neural_spline_forward.9} parent=55 // loop_exit
                _
              %s1343 = sshrl.u32 %s1185, 6
              %s1344 = sand.u32 %s1185, 63
              %s1345 = smul.u32 %s1343, 64
              %s1346 = smul.u32 8, %s1345
              %s1347 = scalar_lea.vmem %s1178, %s1346 [#allocation2]
              %s1348 = smul.u32 8, %s1345
              %s1349 = scalar_lea.vmem %s1189, %s1348
              // While loop
              $region64: #{neural_spline_forward.9} parent=55 // loop_pre_header
                _
              $region65: #{neural_spline_forward.9} parent=55 // loop_header
                %s1351 = sphi 0, %s1353
                %p1352 = scmp.ge.s32.totalorder %s1351, %s1344
                %s1356 = sphi 0, %s1363
                %s1357 = sphi %s1347, %s1366
                %s1358 = sphi %s1349, %s1367
              $region66: #{neural_spline_forward.9} parent=55 // loop_header_branch
                %1355 = sbr.rel (%p1352) target = $region70
              $region67: #{neural_spline_forward.9} parent=55 // loop_body
                %v1359 = vld [vmem:[%s1357] sm:$0xff]
                %1360 = vst [vmem:[%s1358] sm:$0xff] %v1359
                %s1361 = sadd.s32 1, %s1356
                %p1362 = scmp.ge.s32.totalorder %s1361, %s1344
                %s1363 = scalar_select %p1362, 0, %s1361
                %s1364 = smul.u32 %s1363, 8
                %s1365 = smul.u32 %s1363, 8
                %s1366 = scalar_lea.vmem %s1347, %s1364 [#allocation2]
                %s1367 = scalar_lea.vmem %s1349, %s1365
              $region68: #{neural_spline_forward.9} parent=55 // loop_footer
                %s1353 = sadd.s32 %s1351, 1
              $region69: #{neural_spline_forward.9} parent=55 // loop_footer_branch
                %1350 = sbr.rel target = $region65
              $region70: #{neural_spline_forward.9} parent=55 // loop_exit
                _
            $region56: #{neural_spline_forward.9} parent=47 // pred_fallthru
              _
          $region48: #{neural_spline_forward.9} parent=43 // pred_fallthru
            _
          %1542 = vnop
        $region44: #{neural_spline_forward.9} parent=39 // pred_fallthru
          _
      $region40: #{neural_spline_forward.9} parent=5 // pred_fallthru
        _
      %p1543 = scmp.le.s32.totalorder 2, %s11
      // Predicated region
      $region93: #{neural_spline_forward.9} parent=5 // pred_check
        %p1544 = pneg %p1543
      $region94: #{neural_spline_forward.9} parent=5 // pred_check_branch
        %1546 = sbr.rel (%p1544) target = $region96
      $region95: #{neural_spline_forward.9} parent=5 // pred_region
        %s1547 = ssub.s32 %s11, 2
        // Predicated region
        $region97: #{neural_spline_forward.9} parent=95 // pred_check
          %p1548 = pneg %p150
        $region98: #{neural_spline_forward.9} parent=95 // pred_check_branch
          %1550 = sbr.rel (%p1548) target = $region100
        $region99: #{neural_spline_forward.9} parent=95 // pred_region
          %s1551 = sand.u32 %s135, 1
          %s1552 = sand.u32 %s135, 1
          %s1553 = smul.addr %s1552, 512
          %s1554 = scalar_lea.vmem [#allocation2], %s1553
        $region100: #{neural_spline_forward.9} parent=95 // pred_fallthru
          _
      $region96: #{neural_spline_forward.9} parent=5 // pred_fallthru
        _
    $region6: #{neural_spline_forward.9} parent=1 // loop_footer
      %s15 = sadd.s32 1, %s11
    $region7: #{neural_spline_forward.9} parent=1 // loop_footer_branch
      %10 = sbr.rel target = $region3
    $region8: #{neural_spline_forward.9} parent=1 // loop_exit
      _

// kernel: neural_spline_forward.10
$region0: #{neural_spline_forward.10}
  #allocation0 [shape = 'u32[]', space=smem, size = 0x4, offset = 0x4, fixed_abs, tag = 'smem constant byte address 0x4 - core index']
  #allocation1 [shape = 'u32[144,128]{1,0:T(1,128)}', space=vmem, size = 0x12000, scoped, tag = 'internal scratch']
  %s0 = inlined_call_operand.vmem [shape: f32[450,144], index: 0, kind: input, shape index: {}]
  %s1 = inlined_call_operand.vmem [shape: f32[144,32], index: 1, kind: input, shape index: {}]
  %s2 = inlined_call_operand.vmem [shape: f32[1,32], index: 2, kind: input, shape index: {}]
  %s3 = inlined_call_operand.vmem [shape: f32[1,32], index: 3, kind: input, shape index: {}]
  %s4 = inlined_call_operand.vmem [shape: f32[1,32], index: 4, kind: input, shape index: {}]
  %s5 = inlined_call_operand.vmem [shape: f32[450,32], index: 5, kind: output, shape index: {}]
  %s6 = sld [smem:[#allocation0]]
  $region30: #{neural_spline_forward.10} parent=0
    _
  %s8 = ssub.s32 1, %s6
  %s9 = scalar_select 0, %s8, %s6
  // Predicated region
  $region2: #{neural_spline_forward.10} parent=0 // pred_check
    _
  $region3: #{neural_spline_forward.10} parent=0 // pred_check_branch
    %11 = sbr.rel (0) target = $region5
  $region4: #{neural_spline_forward.10} parent=0 // pred_region
    _
  $region5: #{neural_spline_forward.10} parent=0 // pred_fallthru
    _
  // Predicated region
  $region6: #{neural_spline_forward.10} parent=0 // pred_check
    _
  $region7: #{neural_spline_forward.10} parent=0 // pred_check_branch
    %13 = sbr.rel (0) target = $region9
  $region8: #{neural_spline_forward.10} parent=0 // pred_region
    _
  $region9: #{neural_spline_forward.10} parent=0 // pred_fallthru
    _
  // Predicated region
  $region10: #{neural_spline_forward.10} parent=0 // pred_check
    _
  $region11: #{neural_spline_forward.10} parent=0 // pred_check_branch
    %15 = sbr.rel (0) target = $region13
  $region12: #{neural_spline_forward.10} parent=0 // pred_region
    _
  $region13: #{neural_spline_forward.10} parent=0 // pred_fallthru
    _
  // Predicated region
  $region14: #{neural_spline_forward.10} parent=0 // pred_check
    _
  $region15: #{neural_spline_forward.10} parent=0 // pred_check_branch
    %17 = sbr.rel (0) target = $region17
  $region16: #{neural_spline_forward.10} parent=0 // pred_region
    _
  $region17: #{neural_spline_forward.10} parent=0 // pred_fallthru
    _
  // Predicated region
  $region18: #{neural_spline_forward.10} parent=0 // pred_check
    _
  $region19: #{neural_spline_forward.10} parent=0 // pred_check_branch
    %19 = sbr.rel (0) target = $region21
  $region20: #{neural_spline_forward.10} parent=0 // pred_region
    _
  $region21: #{neural_spline_forward.10} parent=0 // pred_fallthru
    _
  %v20 = vld [vmem:[%s0] sm:$0xff]
  %v21 = vld [vmem:[%s0 + $0x8] sm:$0xff]
  %v22 = vld [vmem:[%s0 + $0x10] sm:$0xff]
  %v23 = vld [vmem:[%s0 + $0x18] sm:$0xff]
  %v24 = vld [vmem:[%s0 + $0x20] sm:$0xff]
  %v25 = vld [vmem:[%s0 + $0x28] sm:$0xff]
  %v26 = vld [vmem:[%s0 + $0x30] sm:$0xff]
  %v27 = vld [vmem:[%s0 + $0x38] sm:$0xff]
  %v28 = vld [vmem:[%s0 + $0x40] sm:$0xff]
  %v29 = vld [vmem:[%s0 + $0x48] sm:$0xff]
  %v30 = vld [vmem:[%s0 + $0x50] sm:$0xff]
  %v31 = vld [vmem:[%s0 + $0x58] sm:$0xff]
  %v32 = vld [vmem:[%s0 + $0x60] sm:$0xff]
  %v33 = vld [vmem:[%s0 + $0x68] sm:$0xff]
  %v34 = vld [vmem:[%s0 + $0x70] sm:$0xff]
  %v35 = vld [vmem:[%s0 + $0x78] sm:$0xff]
  %v36 = vld [vmem:[%s0 + $0x80] sm:$0xff]
  %v37 = vld [vmem:[%s0 + $0x88] sm:$0xff]
  %v38 = vld [vmem:[%s0 + $0x90] sm:$0xff]
  %v39 = vld [vmem:[%s0 + $0x98] sm:$0xff]
  %v40 = vld [vmem:[%s0 + $0xa0] sm:$0xff]
  %v41 = vld [vmem:[%s0 + $0xa8] sm:$0xff]
  %v42 = vld [vmem:[%s0 + $0xb0] sm:$0xff]
  %v43 = vld [vmem:[%s0 + $0xb8] sm:$0xff]
  %v44 = vld [vmem:[%s0 + $0xc0] sm:$0xff]
  %v45 = vld [vmem:[%s0 + $0xc8] sm:$0xff]
  %v46 = vld [vmem:[%s0 + $0xd0] sm:$0xff]
  %v47 = vld [vmem:[%s0 + $0xd8] sm:$0xff]
  %v48 = vld [vmem:[%s0 + $0xe0] sm:$0xff]
  %v49 = vld [vmem:[%s0 + $0xe8] sm:$0xff]
  %v50 = vld [vmem:[%s0 + $0xf0] sm:$0xff]
  %v51 = vld [vmem:[%s0 + $0xf8] sm:$0xff]
  %v52 = vld [vmem:[%s0 + $0x100] sm:$0xff]
  %v53 = vld [vmem:[%s0 + $0x108] sm:$0xff]
  %v54 = vld [vmem:[%s0 + $0x110] sm:$0xff]
  %v55 = vld [vmem:[%s0 + $0x118] sm:$0xff]
  %v56 = vld [vmem:[%s0 + $0x120] sm:$0xff]
  %v57 = vld [vmem:[%s0 + $0x128] sm:$0xff]
  %v58 = vld [vmem:[%s0 + $0x130] sm:$0xff]
  %v59 = vld [vmem:[%s0 + $0x138] sm:$0xff]
  %v60 = vld [vmem:[%s0 + $0x140] sm:$0xff]
  %v61 = vld [vmem:[%s0 + $0x148] sm:$0xff]
  %v62 = vld [vmem:[%s0 + $0x150] sm:$0xff]
  %v63 = vld [vmem:[%s0 + $0x158] sm:$0xff]
  %v64 = vld [vmem:[%s0 + $0x160] sm:$0xff]
  %v65 = vld [vmem:[%s0 + $0x168] sm:$0xff]
  %v66 = vld [vmem:[%s0 + $0x170] sm:$0xff]
  %v67 = vld [vmem:[%s0 + $0x178] sm:$0xff]
  %v68 = vld [vmem:[%s0 + $0x180] sm:$0xff]
  %v69 = vld [vmem:[%s0 + $0x188] sm:$0xff]
  %v70 = vld [vmem:[%s0 + $0x190] sm:$0xff]
  %v71 = vld [vmem:[%s0 + $0x198] sm:$0xff]
  %v72 = vld [vmem:[%s0 + $0x1a0] sm:$0xff]
  %v73 = vld [vmem:[%s0 + $0x1a8] sm:$0xff]
  %v74 = vld [vmem:[%s0 + $0x1b0] sm:$0xff]
  %v75 = vld [vmem:[%s0 + $0x1b8] sm:$0xff]
  %v76 = vld [vmem:[%s0 + $0x1c0] sm:$0xff]
  %v77 = vld [vmem:[%s0 + $0x1c8] sm:$0xff]
  %v78 = vld [vmem:[%s0 + $0x1d0] sm:$0xff]
  %v79 = vld [vmem:[%s0 + $0x1d8] sm:$0xff]
  %v80 = vld [vmem:[%s0 + $0x1e0] sm:$0xff]
  %v81 = vld [vmem:[%s0 + $0x1e8] sm:$0xff]
  %v82 = vld [vmem:[%s0 + $0x1f0] sm:$0xff]
  %v83 = vld [vmem:[%s0 + $0x1f8] sm:$0xff]
  %v84 = vld [vmem:[%s0 + $0x200] sm:$0xff]
  %v85 = vld [vmem:[%s0 + $0x208] sm:$0xff]
  %v86 = vld [vmem:[%s0 + $0x210] sm:$0xff]
  %v87 = vld [vmem:[%s0 + $0x218] sm:$0xff]
  %v88 = vld [vmem:[%s0 + $0x220] sm:$0xff]
  %v89 = vld [vmem:[%s0 + $0x228] sm:$0xff]
  %v90 = vld [vmem:[%s0 + $0x230] sm:$0xff]
  %v91 = vld [vmem:[%s0 + $0x238] sm:$0xff]
  %v92 = vld [vmem:[%s0 + $0x240] sm:$0xff]
  %v93 = vld [vmem:[%s0 + $0x248] sm:$0xff]
  %v94 = vld [vmem:[%s0 + $0x250] sm:$0xff]
  %v95 = vld [vmem:[%s0 + $0x258] sm:$0xff]
  %v96 = vld [vmem:[%s0 + $0x260] sm:$0xff]
  %v97 = vld [vmem:[%s0 + $0x268] sm:$0xff]
  %v98 = vld [vmem:[%s0 + $0x270] sm:$0xff]
  %v99 = vld [vmem:[%s0 + $0x278] sm:$0xff]
  %v100 = vld [vmem:[%s0 + $0x280] sm:$0xff]
  %v101 = vld [vmem:[%s0 + $0x288] sm:$0xff]
  %v102 = vld [vmem:[%s0 + $0x290] sm:$0xff]
  %v103 = vld [vmem:[%s0 + $0x298] sm:$0xff]
  %v104 = vld [vmem:[%s0 + $0x2a0] sm:$0xff]
  %v105 = vld [vmem:[%s0 + $0x2a8] sm:$0xff]
  %v106 = vld [vmem:[%s0 + $0x2b0] sm:$0xff]
  %v107 = vld [vmem:[%s0 + $0x2b8] sm:$0xff]
  %v108 = vld [vmem:[%s0 + $0x2c0] sm:$0xff]
  %v109 = vld [vmem:[%s0 + $0x2c8] sm:$0xff]
  %v110 = vld [vmem:[%s0 + $0x2d0] sm:$0xff]
  %v111 = vld [vmem:[%s0 + $0x2d8] sm:$0xff]
  %v112 = vld [vmem:[%s0 + $0x2e0] sm:$0xff]
  %v113 = vld [vmem:[%s0 + $0x2e8] sm:$0xff]
  %v114 = vld [vmem:[%s0 + $0x2f0] sm:$0xff]
  %v115 = vld [vmem:[%s0 + $0x2f8] sm:$0xff]
  %v116 = vld [vmem:[%s0 + $0x300] sm:$0xff]
  %v117 = vld [vmem:[%s0 + $0x308] sm:$0xff]
  %v118 = vld [vmem:[%s0 + $0x310] sm:$0xff]
  %v119 = vld [vmem:[%s0 + $0x318] sm:$0xff]
  %v120 = vld [vmem:[%s0 + $0x320] sm:$0xff]
  %v121 = vld [vmem:[%s0 + $0x328] sm:$0xff]
  %v122 = vld [vmem:[%s0 + $0x330] sm:$0xff]
  %v123 = vld [vmem:[%s0 + $0x338] sm:$0xff]
  %v124 = vld [vmem:[%s0 + $0x340] sm:$0xff]
  %v125 = vld [vmem:[%s0 + $0x348] sm:$0xff]
  %v126 = vld [vmem:[%s0 + $0x350] sm:$0xff]
  %v127 = vld [vmem:[%s0 + $0x358] sm:$0xff]
  %v128 = vld [vmem:[%s0 + $0x360] sm:$0xff]
  %v129 = vld [vmem:[%s0 + $0x368] sm:$0xff]
  %v130 = vld [vmem:[%s0 + $0x370] sm:$0xff]
  %v131 = vld [vmem:[%s0 + $0x378] sm:$0xff]
  %v132 = vld [vmem:[%s0 + $0x380] sm:$0x3]
  %v133 = vld [vmem:[%s0 + $0x388] sm:$0x3]
  %v134 = vld [vmem:[%s1] sm:$0xff]
  %v135 = vld [vmem:[%s1 + $0x8] sm:$0xff]
  %v136 = vld [vmem:[%s1 + $0x10] sm:$0xff]
  %v137 = vld [vmem:[%s1 + $0x18] sm:$0xff]
  %v138 = vld [vmem:[%s1 + $0x20] sm:$0xff]
  %v139 = vld [vmem:[%s1 + $0x28] sm:$0xff]
  %v140 = vld [vmem:[%s1 + $0x30] sm:$0xff]
  %v141 = vld [vmem:[%s1 + $0x38] sm:$0xff]
  %v142 = vld [vmem:[%s1 + $0x40] sm:$0xff]
  %v143 = vld [vmem:[%s1 + $0x48] sm:$0xff]
  %v144 = vld [vmem:[%s1 + $0x50] sm:$0xff]
  %v145 = vld [vmem:[%s1 + $0x58] sm:$0xff]
  %v146 = vld [vmem:[%s1 + $0x60] sm:$0xff]
  %v147 = vld [vmem:[%s1 + $0x68] sm:$0xff]
  %v148 = vld [vmem:[%s1 + $0x70] sm:$0xff]
  %v149 = vld [vmem:[%s1 + $0x78] sm:$0xff]
  %v150 = vld [vmem:[%s1 + $0x80] sm:$0xff]
  %v151 = vld [vmem:[%s1 + $0x88] sm:$0xff]
  %v152 = vld [vmem:[%s2] sm:$0x1]
  %v154 = vlaneseq
  %v155 = vshrl.u32 %v154, 7
  %v156 = vsub.s32 0, %v155
  %v157 = vrot.slane %v152, %v156
  %vm159 = vcmask 130048
  %v161 = vsel %vm159, %v21, 0
  %v164 = vsel %vm159, %v23, 0
  %v167 = vsel %vm159, %v25, 0
  %v170 = vsel %vm159, %v27, 0
  %v173 = vsel %vm159, %v29, 0
  %v176 = vsel %vm159, %v31, 0
  %v179 = vsel %vm159, %v33, 0
  %v182 = vsel %vm159, %v35, 0
  %v185 = vsel %vm159, %v37, 0
  %v188 = vsel %vm159, %v39, 0
  %v191 = vsel %vm159, %v41, 0
  %v194 = vsel %vm159, %v43, 0
  %v197 = vsel %vm159, %v45, 0
  %v200 = vsel %vm159, %v47, 0
  %v203 = vsel %vm159, %v49, 0
  %v206 = vsel %vm159, %v51, 0
  %v209 = vsel %vm159, %v53, 0
  %v212 = vsel %vm159, %v55, 0
  %v215 = vsel %vm159, %v57, 0
  %v218 = vsel %vm159, %v59, 0
  %v221 = vsel %vm159, %v61, 0
  %v224 = vsel %vm159, %v63, 0
  %v227 = vsel %vm159, %v65, 0
  %v230 = vsel %vm159, %v67, 0
  %v233 = vsel %vm159, %v69, 0
  %v236 = vsel %vm159, %v71, 0
  %v239 = vsel %vm159, %v73, 0
  %v242 = vsel %vm159, %v75, 0
  %v245 = vsel %vm159, %v77, 0
  %v248 = vsel %vm159, %v79, 0
  %v251 = vsel %vm159, %v81, 0
  %v254 = vsel %vm159, %v83, 0
  %v257 = vsel %vm159, %v85, 0
  %v260 = vsel %vm159, %v87, 0
  %v263 = vsel %vm159, %v89, 0
  %v266 = vsel %vm159, %v91, 0
  %v269 = vsel %vm159, %v93, 0
  %v272 = vsel %vm159, %v95, 0
  %v275 = vsel %vm159, %v97, 0
  %v278 = vsel %vm159, %v99, 0
  %v281 = vsel %vm159, %v101, 0
  %v284 = vsel %vm159, %v103, 0
  %v287 = vsel %vm159, %v105, 0
  %v290 = vsel %vm159, %v107, 0
  %v293 = vsel %vm159, %v109, 0
  %v296 = vsel %vm159, %v111, 0
  %v299 = vsel %vm159, %v113, 0
  %v302 = vsel %vm159, %v115, 0
  %v305 = vsel %vm159, %v117, 0
  %v308 = vsel %vm159, %v119, 0
  %v311 = vsel %vm159, %v121, 0
  %v314 = vsel %vm159, %v123, 0
  %v317 = vsel %vm159, %v125, 0
  %v320 = vsel %vm159, %v127, 0
  %v323 = vsel %vm159, %v129, 0
  %v326 = vsel %vm159, %v131, 0
  %v329 = vsel %vm159, %v133, 0
  %331 = vmatprep.subr.mxu0 0.0
  %332 = vmatpush1.msra.mxu0 %v134
  %333 = vmatprep.subr.mxu0 0.0
  %334 = vmatpush1.msra.mxu0 %v135
  %335 = vmatprep.subr.mxu0 0.0
  %336 = vmatpush1.msra.mxu0 %v136
  %337 = vmatprep.subr.mxu0 0.0
  %338 = vmatpush1.msra.mxu0 %v137
  %339 = vmatprep.subr.mxu0 0.0
  %340 = vmatpush1.msra.mxu0 %v138
  %341 = vmatprep.subr.mxu0 0.0
  %342 = vmatpush1.msra.mxu0 %v139
  %343 = vmatprep.subr.mxu0 0.0
  %344 = vmatpush1.msra.mxu0 %v140
  %345 = vmatprep.subr.mxu0 0.0
  %346 = vmatpush1.msra.mxu0 %v141
  %347 = vmatprep.subr.mxu0 0.0
  %348 = vmatpush1.msra.mxu0 %v142
  %349 = vmatprep.subr.mxu0 0.0
  %350 = vmatpush1.msra.mxu0 %v143
  %351 = vmatprep.subr.mxu0 0.0
  %352 = vmatpush1.msra.mxu0 %v144
  %353 = vmatprep.subr.mxu0 0.0
  %354 = vmatpush1.msra.mxu0 %v145
  %355 = vmatprep.subr.mxu0 0.0
  %356 = vmatpush1.msra.mxu0 %v146
  %357 = vmatprep.subr.mxu0 0.0
  %358 = vmatpush1.msra.mxu0 %v147
  %359 = vmatprep.subr.mxu0 0.0
  %360 = vmatpush1.msra.mxu0 %v148
  %361 = vmatprep.subr.mxu0 0.0
  %362 = vmatpush1.msra.mxu0 %v149
  %363 = vmatprep.subr.mxu0 0.0
  %364 = vmatpush1.msra.mxu0 %v150
  %365 = vmatprep.subr.mxu0 0.0
  %366 = vmatpush1.msra.mxu0 %v151
  %367 = vmatprep.subr.mxu0 0.0
  %368 = vmatpush1.msra.mxu0 0.0
  %369 = vmatprep.subr.mxu0 0.0
  %370 = vmatpush1.msra.mxu0 0.0
  %371 = vmatprep.subr.mxu0 0.0
  %372 = vmatpush1.msra.mxu0 0.0
  %373 = vmatprep.subr.mxu0 0.0
  %374 = vmatpush1.msra.mxu0 0.0
  %375 = vmatprep.subr.mxu0 0.0
  %376 = vmatpush1.msra.mxu0 0.0
  %377 = vmatprep.subr.mxu0 0.0
  %378 = vmatpush1.msra.mxu0 0.0
  %379 = vmatprep.subr.mxu0 0.0
  %380 = vmatpush1.msra.mxu0 0.0
  %381 = vmatprep.subr.mxu0 0.0
  %382 = vmatpush1.msra.mxu0 0.0
  %383 = vmatprep.subr.mxu0 0.0
  %384 = vmatpush1.msra.mxu0 0.0
  %385 = vmatprep.subr.mxu0 0.0
  %386 = vmatpush1.msra.mxu0 0.0
  %387 = vmatprep.subr.mxu0 0.0
  %388 = vmatpush1.msra.mxu0 0.0
  %389 = vmatprep.subr.mxu0 0.0
  %390 = vmatpush1.msra.mxu0 0.0
  %391 = vmatprep.subr.mxu0 0.0
  %392 = vmatpush1.msra.mxu0 0.0
  %393 = vmatprep.subr.mxu0 0.0
  %394 = vmatpush1.msra.mxu0 0.0
  %395 = vmatprep.mubr.f32.mxu0 %v161
  %396 = vmatmul.mubr.f32.gmra.mrb[0].mxu0 %v20
  %v397 = vpop.f32.mrb[0].mxu0
  %v398 = vadd.f32 %v157, %v397
  %v399 = vpop.f32.mrb[0].mxu0
  %400 = vmatprep.mubr.f32.mxu0 %v164
  %401 = vmatmul.mubr.f32.gmra.mrb[0].mxu0 %v22
  %v402 = vpop.f32.mrb[0].mxu0
  %v403 = vadd.f32 %v157, %v402
  %v404 = vpop.f32.mrb[0].mxu0
  %405 = vmatprep.mubr.f32.mxu0 %v167
  %406 = vmatmul.mubr.f32.gmra.mrb[0].mxu0 %v24
  %v407 = vpop.f32.mrb[0].mxu0
  %v408 = vadd.f32 %v157, %v407
  %v409 = vpop.f32.mrb[0].mxu0
  %410 = vmatprep.mubr.f32.mxu0 %v170
  %411 = vmatmul.mubr.f32.gmra.mrb[0].mxu0 %v26
  %v412 = vpop.f32.mrb[0].mxu0
  %v413 = vadd.f32 %v157, %v412
  %v414 = vpop.f32.mrb[0].mxu0
  %415 = vmatprep.mubr.f32.mxu0 %v173
  %416 = vmatmul.mubr.f32.gmra.mrb[0].mxu0 %v28
  %v417 = vpop.f32.mrb[0].mxu0
  %v418 = vadd.f32 %v157, %v417
  %v419 = vpop.f32.mrb[0].mxu0
  %420 = vmatprep.mubr.f32.mxu0 %v176
  %421 = vmatmul.mubr.f32.gmra.mrb[0].mxu0 %v30
  %v422 = vpop.f32.mrb[0].mxu0
  %v423 = vadd.f32 %v157, %v422
  %v424 = vpop.f32.mrb[0].mxu0
  %425 = vmatprep.mubr.f32.mxu0 %v179
  %426 = vmatmul.mubr.f32.gmra.mrb[0].mxu0 %v32
  %v427 = vpop.f32.mrb[0].mxu0
  %v428 = vadd.f32 %v157, %v427
  %v429 = vpop.f32.mrb[0].mxu0
  %430 = vmatprep.mubr.f32.mxu0 %v182
  %431 = vmatmul.mubr.f32.gmra.mrb[0].mxu0 %v34
  %v432 = vpop.f32.mrb[0].mxu0
  %v433 = vadd.f32 %v157, %v432
  %v434 = vpop.f32.mrb[0].mxu0
  %435 = vmatprep.mubr.f32.mxu0 %v185
  %436 = vmatmul.mubr.f32.gmra.mrb[0].mxu0 %v36
  %v437 = vpop.f32.mrb[0].mxu0
  %v438 = vadd.f32 %v157, %v437
  %v439 = vpop.f32.mrb[0].mxu0
  %440 = vmatprep.mubr.f32.mxu0 %v188
  %441 = vmatmul.mubr.f32.gmra.mrb[0].mxu0 %v38
  %v442 = vpop.f32.mrb[0].mxu0
  %v443 = vadd.f32 %v157, %v442
  %v444 = vpop.f32.mrb[0].mxu0
  %445 = vmatprep.mubr.f32.mxu0 %v191
  %446 = vmatmul.mubr.f32.gmra.mrb[0].mxu0 %v40
  %v447 = vpop.f32.mrb[0].mxu0
  %v448 = vadd.f32 %v157, %v447
  %v449 = vpop.f32.mrb[0].mxu0
  %450 = vmatprep.mubr.f32.mxu0 %v194
  %451 = vmatmul.mubr.f32.gmra.mrb[0].mxu0 %v42
  %v452 = vpop.f32.mrb[0].mxu0
  %v453 = vadd.f32 %v157, %v452
  %v454 = vpop.f32.mrb[0].mxu0
  %455 = vmatprep.mubr.f32.mxu0 %v197
  %456 = vmatmul.mubr.f32.gmra.mrb[0].mxu0 %v44
  %v457 = vpop.f32.mrb[0].mxu0
  %v458 = vadd.f32 %v157, %v457
  %v459 = vpop.f32.mrb[0].mxu0
  %460 = vmatprep.mubr.f32.mxu0 %v200
  %461 = vmatmul.mubr.f32.gmra.mrb[0].mxu0 %v46
  %v462 = vpop.f32.mrb[0].mxu0
  %v463 = vadd.f32 %v157, %v462
  %v464 = vpop.f32.mrb[0].mxu0
  %465 = vmatprep.mubr.f32.mxu0 %v203
  %466 = vmatmul.mubr.f32.gmra.mrb[0].mxu0 %v48
  %v467 = vpop.f32.mrb[0].mxu0
  %v468 = vadd.f32 %v157, %v467
  %v469 = vpop.f32.mrb[0].mxu0
  %470 = vmatprep.mubr.f32.mxu0 %v206
  %471 = vmatmul.mubr.f32.gmra.mrb[0].mxu0 %v50
  %v472 = vpop.f32.mrb[0].mxu0
  %v473 = vadd.f32 %v157, %v472
  %v474 = vpop.f32.mrb[0].mxu0
  %475 = vmatprep.mubr.f32.mxu0 %v209
  %476 = vmatmul.mubr.f32.gmra.mrb[0].mxu0 %v52
  %v477 = vpop.f32.mrb[0].mxu0
  %v478 = vadd.f32 %v157, %v477
  %v479 = vpop.f32.mrb[0].mxu0
  %480 = vmatprep.mubr.f32.mxu0 %v212
  %481 = vmatmul.mubr.f32.gmra.mrb[0].mxu0 %v54
  %v482 = vpop.f32.mrb[0].mxu0
  %v483 = vadd.f32 %v157, %v482
  %v484 = vpop.f32.mrb[0].mxu0
  %485 = vmatprep.mubr.f32.mxu0 %v215
  %486 = vmatmul.mubr.f32.gmra.mrb[0].mxu0 %v56
  %v487 = vpop.f32.mrb[0].mxu0
  %v488 = vadd.f32 %v157, %v487
  %v489 = vpop.f32.mrb[0].mxu0
  %490 = vmatprep.mubr.f32.mxu0 %v218
  %491 = vmatmul.mubr.f32.gmra.mrb[0].mxu0 %v58
  %v492 = vpop.f32.mrb[0].mxu0
  %v493 = vadd.f32 %v157, %v492
  %v494 = vpop.f32.mrb[0].mxu0
  %495 = vmatprep.mubr.f32.mxu0 %v221
  %496 = vmatmul.mubr.f32.gmra.mrb[0].mxu0 %v60
  %v497 = vpop.f32.mrb[0].mxu0
  %v498 = vadd.f32 %v157, %v497
  %v499 = vpop.f32.mrb[0].mxu0
  %500 = vmatprep.mubr.f32.mxu0 %v224
  %501 = vmatmul.mubr.f32.gmra.mrb[0].mxu0 %v62
  %v502 = vpop.f32.mrb[0].mxu0
  %v503 = vadd.f32 %v157, %v502
  %v504 = vpop.f32.mrb[0].mxu0
  %505 = vmatprep.mubr.f32.mxu0 %v227
  %506 = vmatmul.mubr.f32.gmra.mrb[0].mxu0 %v64
  %v507 = vpop.f32.mrb[0].mxu0
  %v508 = vadd.f32 %v157, %v507
  %v509 = vpop.f32.mrb[0].mxu0
  %510 = vmatprep.mubr.f32.mxu0 %v230
  %511 = vmatmul.mubr.f32.gmra.mrb[0].mxu0 %v66
  %v512 = vpop.f32.mrb[0].mxu0
  %v513 = vadd.f32 %v157, %v512
  %v514 = vpop.f32.mrb[0].mxu0
  %515 = vmatprep.mubr.f32.mxu0 %v233
  %516 = vmatmul.mubr.f32.gmra.mrb[0].mxu0 %v68
  %v517 = vpop.f32.mrb[0].mxu0
  %v518 = vadd.f32 %v157, %v517
  %v519 = vpop.f32.mrb[0].mxu0
  %520 = vmatprep.mubr.f32.mxu0 %v236
  %521 = vmatmul.mubr.f32.gmra.mrb[0].mxu0 %v70
  %v522 = vpop.f32.mrb[0].mxu0
  %v523 = vadd.f32 %v157, %v522
  %v524 = vpop.f32.mrb[0].mxu0
  %525 = vmatprep.mubr.f32.mxu0 %v239
  %526 = vmatmul.mubr.f32.gmra.mrb[0].mxu0 %v72
  %v527 = vpop.f32.mrb[0].mxu0
  %v528 = vadd.f32 %v157, %v527
  %v529 = vpop.f32.mrb[0].mxu0
  %530 = vmatprep.mubr.f32.mxu0 %v242
  %531 = vmatmul.mubr.f32.gmra.mrb[0].mxu0 %v74
  %v532 = vpop.f32.mrb[0].mxu0
  %v533 = vadd.f32 %v157, %v532
  %v534 = vpop.f32.mrb[0].mxu0
  %535 = vmatprep.mubr.f32.mxu0 %v245
  %536 = vmatmul.mubr.f32.gmra.mrb[0].mxu0 %v76
  %v537 = vpop.f32.mrb[0].mxu0
  %v538 = vadd.f32 %v157, %v537
  %v539 = vpop.f32.mrb[0].mxu0
  %540 = vmatprep.mubr.f32.mxu0 %v248
  %541 = vmatmul.mubr.f32.gmra.mrb[0].mxu0 %v78
  %v542 = vpop.f32.mrb[0].mxu0
  %v543 = vadd.f32 %v157, %v542
  %v544 = vpop.f32.mrb[0].mxu0
  %545 = vmatprep.mubr.f32.mxu0 %v251
  %546 = vmatmul.mubr.f32.gmra.mrb[0].mxu0 %v80
  %v547 = vpop.f32.mrb[0].mxu0
  %v548 = vadd.f32 %v157, %v547
  %v549 = vpop.f32.mrb[0].mxu0
  %550 = vmatprep.mubr.f32.mxu0 %v254
  %551 = vmatmul.mubr.f32.gmra.mrb[0].mxu0 %v82
  %v552 = vpop.f32.mrb[0].mxu0
  %v553 = vadd.f32 %v157, %v552
  %v554 = vpop.f32.mrb[0].mxu0
  %555 = vmatprep.mubr.f32.mxu0 %v257
  %556 = vmatmul.mubr.f32.gmra.mrb[0].mxu0 %v84
  %v557 = vpop.f32.mrb[0].mxu0
  %v558 = vadd.f32 %v157, %v557
  %v559 = vpop.f32.mrb[0].mxu0
  %560 = vmatprep.mubr.f32.mxu0 %v260
  %561 = vmatmul.mubr.f32.gmra.mrb[0].mxu0 %v86
  %v562 = vpop.f32.mrb[0].mxu0
  %v563 = vadd.f32 %v157, %v562
  %v564 = vpop.f32.mrb[0].mxu0
  %565 = vmatprep.mubr.f32.mxu0 %v263
  %566 = vmatmul.mubr.f32.gmra.mrb[0].mxu0 %v88
  %v567 = vpop.f32.mrb[0].mxu0
  %v568 = vadd.f32 %v157, %v567
  %v569 = vpop.f32.mrb[0].mxu0
  %570 = vmatprep.mubr.f32.mxu0 %v266
  %571 = vmatmul.mubr.f32.gmra.mrb[0].mxu0 %v90
  %v572 = vpop.f32.mrb[0].mxu0
  %v573 = vadd.f32 %v157, %v572
  %v574 = vpop.f32.mrb[0].mxu0
  %575 = vmatprep.mubr.f32.mxu0 %v269
  %576 = vmatmul.mubr.f32.gmra.mrb[0].mxu0 %v92
  %v577 = vpop.f32.mrb[0].mxu0
  %v578 = vadd.f32 %v157, %v577
  %v579 = vpop.f32.mrb[0].mxu0
  %580 = vmatprep.mubr.f32.mxu0 %v272
  %581 = vmatmul.mubr.f32.gmra.mrb[0].mxu0 %v94
  %v582 = vpop.f32.mrb[0].mxu0
  %v583 = vadd.f32 %v157, %v582
  %v584 = vpop.f32.mrb[0].mxu0
  %585 = vmatprep.mubr.f32.mxu0 %v275
  %586 = vmatmul.mubr.f32.gmra.mrb[0].mxu0 %v96
  %v587 = vpop.f32.mrb[0].mxu0
  %v588 = vadd.f32 %v157, %v587
  %v589 = vpop.f32.mrb[0].mxu0
  %590 = vmatprep.mubr.f32.mxu0 %v278
  %591 = vmatmul.mubr.f32.gmra.mrb[0].mxu0 %v98
  %v592 = vpop.f32.mrb[0].mxu0
  %v593 = vadd.f32 %v157, %v592
  %v594 = vpop.f32.mrb[0].mxu0
  %595 = vmatprep.mubr.f32.mxu0 %v281
  %596 = vmatmul.mubr.f32.gmra.mrb[0].mxu0 %v100
  %v597 = vpop.f32.mrb[0].mxu0
  %v598 = vadd.f32 %v157, %v597
  %v599 = vpop.f32.mrb[0].mxu0
  %600 = vmatprep.mubr.f32.mxu0 %v284
  %601 = vmatmul.mubr.f32.gmra.mrb[0].mxu0 %v102
  %v602 = vpop.f32.mrb[0].mxu0
  %v603 = vadd.f32 %v157, %v602
  %v604 = vpop.f32.mrb[0].mxu0
  %605 = vmatprep.mubr.f32.mxu0 %v287
  %606 = vmatmul.mubr.f32.gmra.mrb[0].mxu0 %v104
  %v607 = vpop.f32.mrb[0].mxu0
  %v608 = vadd.f32 %v157, %v607
  %v609 = vpop.f32.mrb[0].mxu0
  %610 = vmatprep.mubr.f32.mxu0 %v290
  %611 = vmatmul.mubr.f32.gmra.mrb[0].mxu0 %v106
  %v612 = vpop.f32.mrb[0].mxu0
  %v613 = vadd.f32 %v157, %v612
  %v614 = vpop.f32.mrb[0].mxu0
  %615 = vmatprep.mubr.f32.mxu0 %v293
  %616 = vmatmul.mubr.f32.gmra.mrb[0].mxu0 %v108
  %v617 = vpop.f32.mrb[0].mxu0
  %v618 = vadd.f32 %v157, %v617
  %v619 = vpop.f32.mrb[0].mxu0
  %620 = vmatprep.mubr.f32.mxu0 %v296
  %621 = vmatmul.mubr.f32.gmra.mrb[0].mxu0 %v110
  %v622 = vpop.f32.mrb[0].mxu0
  %v623 = vadd.f32 %v157, %v622
  %v624 = vpop.f32.mrb[0].mxu0
  %625 = vmatprep.mubr.f32.mxu0 %v299
  %626 = vmatmul.mubr.f32.gmra.mrb[0].mxu0 %v112
  %v627 = vpop.f32.mrb[0].mxu0
  %v628 = vadd.f32 %v157, %v627
  %v629 = vpop.f32.mrb[0].mxu0
  %630 = vmatprep.mubr.f32.mxu0 %v302
  %631 = vmatmul.mubr.f32.gmra.mrb[0].mxu0 %v114
  %v632 = vpop.f32.mrb[0].mxu0
  %v633 = vadd.f32 %v157, %v632
  %v634 = vpop.f32.mrb[0].mxu0
  %635 = vmatprep.mubr.f32.mxu0 %v305
  %636 = vmatmul.mubr.f32.gmra.mrb[0].mxu0 %v116
  %v637 = vpop.f32.mrb[0].mxu0
  %v638 = vadd.f32 %v157, %v637
  %v639 = vpop.f32.mrb[0].mxu0
  %640 = vmatprep.mubr.f32.mxu0 %v308
  %641 = vmatmul.mubr.f32.gmra.mrb[0].mxu0 %v118
  %v642 = vpop.f32.mrb[0].mxu0
  %v643 = vadd.f32 %v157, %v642
  %v644 = vpop.f32.mrb[0].mxu0
  %645 = vmatprep.mubr.f32.mxu0 %v311
  %646 = vmatmul.mubr.f32.gmra.mrb[0].mxu0 %v120
  %v647 = vpop.f32.mrb[0].mxu0
  %v648 = vadd.f32 %v157, %v647
  %v649 = vpop.f32.mrb[0].mxu0
  %650 = vmatprep.mubr.f32.mxu0 %v314
  %651 = vmatmul.mubr.f32.gmra.mrb[0].mxu0 %v122
  %v652 = vpop.f32.mrb[0].mxu0
  %v653 = vadd.f32 %v157, %v652
  %v654 = vpop.f32.mrb[0].mxu0
  %655 = vmatprep.mubr.f32.mxu0 %v317
  %656 = vmatmul.mubr.f32.gmra.mrb[0].mxu0 %v124
  %v657 = vpop.f32.mrb[0].mxu0
  %v658 = vadd.f32 %v157, %v657
  %v659 = vpop.f32.mrb[0].mxu0
  %660 = vmatprep.mubr.f32.mxu0 %v320
  %661 = vmatmul.mubr.f32.gmra.mrb[0].mxu0 %v126
  %v662 = vpop.f32.mrb[0].mxu0
  %v663 = vadd.f32 %v157, %v662
  %v664 = vpop.f32.mrb[0].mxu0
  %665 = vmatprep.mubr.f32.mxu0 %v323
  %666 = vmatmul.mubr.f32.gmra.mrb[0].mxu0 %v128
  %v667 = vpop.f32.mrb[0].mxu0
  %v668 = vadd.f32 %v157, %v667
  %v669 = vpop.f32.mrb[0].mxu0
  %670 = vmatprep.mubr.f32.mxu0 %v326
  %671 = vmatmul.mubr.f32.gmra.mrb[0].mxu0 %v130
  %v672 = vpop.f32.mrb[0].mxu0
  %v673 = vadd.f32 %v157, %v672
  %v674 = vpop.f32.mrb[0].mxu0
  %675 = vmatprep.mubr.f32.mxu0 %v329
  %676 = vmatmul.mubr.f32.gmra.mrb[0].mxu0 %v132
  %v677 = vpop.f32.mrb[0].mxu0
  %v678 = vadd.f32 %v157, %v677
  %v679 = vpop.f32.mrb[0].mxu0
  %680 = vdwg.mxu0
  %v681 = vmax.f32 %v398, 0.0
  %v682 = vmax.f32 %v403, 0.0
  %v683 = vmax.f32 %v408, 0.0
  %v684 = vmax.f32 %v413, 0.0
  %v685 = vmax.f32 %v418, 0.0
  %v686 = vmax.f32 %v423, 0.0
  %v687 = vmax.f32 %v428, 0.0
  %v688 = vmax.f32 %v433, 0.0
  %v689 = vmax.f32 %v438, 0.0
  %v690 = vmax.f32 %v443, 0.0
  %v691 = vmax.f32 %v448, 0.0
  %v692 = vmax.f32 %v453, 0.0
  %v693 = vmax.f32 %v458, 0.0
  %v694 = vmax.f32 %v463, 0.0
  %v695 = vmax.f32 %v468, 0.0
  %v696 = vmax.f32 %v473, 0.0
  %v697 = vmax.f32 %v478, 0.0
  %v698 = vmax.f32 %v483, 0.0
  %v699 = vmax.f32 %v488, 0.0
  %v700 = vmax.f32 %v493, 0.0
  %v701 = vmax.f32 %v498, 0.0
  %v702 = vmax.f32 %v503, 0.0
  %v703 = vmax.f32 %v508, 0.0
  %v704 = vmax.f32 %v513, 0.0
  %v705 = vmax.f32 %v518, 0.0
  %v706 = vmax.f32 %v523, 0.0
  %v707 = vmax.f32 %v528, 0.0
  %v708 = vmax.f32 %v533, 0.0
  %v709 = vmax.f32 %v538, 0.0
  %v710 = vmax.f32 %v543, 0.0
  %v711 = vmax.f32 %v548, 0.0
  %v712 = vmax.f32 %v553, 0.0
  %v713 = vmax.f32 %v558, 0.0
  %v714 = vmax.f32 %v563, 0.0
  %v715 = vmax.f32 %v568, 0.0
  %v716 = vmax.f32 %v573, 0.0
  %v717 = vmax.f32 %v578, 0.0
  %v718 = vmax.f32 %v583, 0.0
  %v719 = vmax.f32 %v588, 0.0
  %v720 = vmax.f32 %v593, 0.0
  %v721 = vmax.f32 %v598, 0.0
  %v722 = vmax.f32 %v603, 0.0
  %v723 = vmax.f32 %v608, 0.0
  %v724 = vmax.f32 %v613, 0.0
  %v725 = vmax.f32 %v618, 0.0
  %v726 = vmax.f32 %v623, 0.0
  %v727 = vmax.f32 %v628, 0.0
  %v728 = vmax.f32 %v633, 0.0
  %v729 = vmax.f32 %v638, 0.0
  %v730 = vmax.f32 %v643, 0.0
  %v731 = vmax.f32 %v648, 0.0
  %v732 = vmax.f32 %v653, 0.0
  %v733 = vmax.f32 %v658, 0.0
  %v734 = vmax.f32 %v663, 0.0
  %v735 = vmax.f32 %v668, 0.0
  %v736 = vmax.f32 %v673, 0.0
  %v737 = vmax.f32 %v678, 0.0
  %v738 = vld [vmem:[%s3] sm:$0x1]
  %v740 = vlaneseq
  %v741 = vshrl.u32 %v740, 7
  %v742 = vsub.s32 0, %v741
  %v743 = vrot.slane %v738, %v742
  %v745 = vmul.f32 %v681, %v743
  %v746 = vmul.f32 %v682, %v743
  %v747 = vmul.f32 %v683, %v743
  %v748 = vmul.f32 %v684, %v743
  %v749 = vmul.f32 %v685, %v743
  %v750 = vmul.f32 %v686, %v743
  %v751 = vmul.f32 %v687, %v743
  %v752 = vmul.f32 %v688, %v743
  %v753 = vmul.f32 %v689, %v743
  %v754 = vmul.f32 %v690, %v743
  %v755 = vmul.f32 %v691, %v743
  %v756 = vmul.f32 %v692, %v743
  %v757 = vmul.f32 %v693, %v743
  %v758 = vmul.f32 %v694, %v743
  %v759 = vmul.f32 %v695, %v743
  %v760 = vmul.f32 %v696, %v743
  %v761 = vmul.f32 %v697, %v743
  %v762 = vmul.f32 %v698, %v743
  %v763 = vmul.f32 %v699, %v743
  %v764 = vmul.f32 %v700, %v743
  %v765 = vmul.f32 %v701, %v743
  %v766 = vmul.f32 %v702, %v743
  %v767 = vmul.f32 %v703, %v743
  %v768 = vmul.f32 %v704, %v743
  %v769 = vmul.f32 %v705, %v743
  %v770 = vmul.f32 %v706, %v743
  %v771 = vmul.f32 %v707, %v743
  %v772 = vmul.f32 %v708, %v743
  %v773 = vmul.f32 %v709, %v743
  %v774 = vmul.f32 %v710, %v743
  %v775 = vmul.f32 %v711, %v743
  %v776 = vmul.f32 %v712, %v743
  %v777 = vmul.f32 %v713, %v743
  %v778 = vmul.f32 %v714, %v743
  %v779 = vmul.f32 %v715, %v743
  %v780 = vmul.f32 %v716, %v743
  %v781 = vmul.f32 %v717, %v743
  %v782 = vmul.f32 %v718, %v743
  %v783 = vmul.f32 %v719, %v743
  %v784 = vmul.f32 %v720, %v743
  %v785 = vmul.f32 %v721, %v743
  %v786 = vmul.f32 %v722, %v743
  %v787 = vmul.f32 %v723, %v743
  %v788 = vmul.f32 %v724, %v743
  %v789 = vmul.f32 %v725, %v743
  %v790 = vmul.f32 %v726, %v743
  %v791 = vmul.f32 %v727, %v743
  %v792 = vmul.f32 %v728, %v743
  %v793 = vmul.f32 %v729, %v743
  %v794 = vmul.f32 %v730, %v743
  %v795 = vmul.f32 %v731, %v743
  %v796 = vmul.f32 %v732, %v743
  %v797 = vmul.f32 %v733, %v743
  %v798 = vmul.f32 %v734, %v743
  %v799 = vmul.f32 %v735, %v743
  %v800 = vmul.f32 %v736, %v743
  %v801 = vmul.f32 %v737, %v743
  %v802 = vld [vmem:[%s4] sm:$0x1]
  %v804 = vlaneseq
  %v805 = vshrl.u32 %v804, 7
  %v806 = vsub.s32 0, %v805
  %v807 = vrot.slane %v802, %v806
  %v809 = vadd.f32 %v745, %v807
  %v810 = vadd.f32 %v746, %v807
  %v811 = vadd.f32 %v747, %v807
  %v812 = vadd.f32 %v748, %v807
  %v813 = vadd.f32 %v749, %v807
  %v814 = vadd.f32 %v750, %v807
  %v815 = vadd.f32 %v751, %v807
  %v816 = vadd.f32 %v752, %v807
  %v817 = vadd.f32 %v753, %v807
  %v818 = vadd.f32 %v754, %v807
  %v819 = vadd.f32 %v755, %v807
  %v820 = vadd.f32 %v756, %v807
  %v821 = vadd.f32 %v757, %v807
  %v822 = vadd.f32 %v758, %v807
  %v823 = vadd.f32 %v759, %v807
  %v824 = vadd.f32 %v760, %v807
  %v825 = vadd.f32 %v761, %v807
  %v826 = vadd.f32 %v762, %v807
  %v827 = vadd.f32 %v763, %v807
  %v828 = vadd.f32 %v764, %v807
  %v829 = vadd.f32 %v765, %v807
  %v830 = vadd.f32 %v766, %v807
  %v831 = vadd.f32 %v767, %v807
  %v832 = vadd.f32 %v768, %v807
  %v833 = vadd.f32 %v769, %v807
  %v834 = vadd.f32 %v770, %v807
  %v835 = vadd.f32 %v771, %v807
  %v836 = vadd.f32 %v772, %v807
  %v837 = vadd.f32 %v773, %v807
  %v838 = vadd.f32 %v774, %v807
  %v839 = vadd.f32 %v775, %v807
  %v840 = vadd.f32 %v776, %v807
  %v841 = vadd.f32 %v777, %v807
  %v842 = vadd.f32 %v778, %v807
  %v843 = vadd.f32 %v779, %v807
  %v844 = vadd.f32 %v780, %v807
  %v845 = vadd.f32 %v781, %v807
  %v846 = vadd.f32 %v782, %v807
  %v847 = vadd.f32 %v783, %v807
  %v848 = vadd.f32 %v784, %v807
  %v849 = vadd.f32 %v785, %v807
  %v850 = vadd.f32 %v786, %v807
  %v851 = vadd.f32 %v787, %v807
  %v852 = vadd.f32 %v788, %v807
  %v853 = vadd.f32 %v789, %v807
  %v854 = vadd.f32 %v790, %v807
  %v855 = vadd.f32 %v791, %v807
  %v856 = vadd.f32 %v792, %v807
  %v857 = vadd.f32 %v793, %v807
  %v858 = vadd.f32 %v794, %v807
  %v859 = vadd.f32 %v795, %v807
  %v860 = vadd.f32 %v796, %v807
  %v861 = vadd.f32 %v797, %v807
  %v862 = vadd.f32 %v798, %v807
  %v863 = vadd.f32 %v799, %v807
  %v864 = vadd.f32 %v800, %v807
  %v865 = vadd.f32 %v801, %v807
  %vm866 = vcmask 261120
  %867 = vst.msk [vmem:[%s5] sm:$0xff] %vm866, %v809
  %868 = vst.msk [vmem:[%s5 + $0x8] sm:$0xff] %vm866, %v810
  %869 = vst.msk [vmem:[%s5 + $0x10] sm:$0xff] %vm866, %v811
  %870 = vst.msk [vmem:[%s5 + $0x18] sm:$0xff] %vm866, %v812
  %871 = vst.msk [vmem:[%s5 + $0x20] sm:$0xff] %vm866, %v813
  %872 = vst.msk [vmem:[%s5 + $0x28] sm:$0xff] %vm866, %v814
  %873 = vst.msk [vmem:[%s5 + $0x30] sm:$0xff] %vm866, %v815
  %874 = vst.msk [vmem:[%s5 + $0x38] sm:$0xff] %vm866, %v816
  %875 = vst.msk [vmem:[%s5 + $0x40] sm:$0xff] %vm866, %v817
  %876 = vst.msk [vmem:[%s5 + $0x48] sm:$0xff] %vm866, %v818
  %877 = vst.msk [vmem:[%s5 + $0x50] sm:$0xff] %vm866, %v819
  %878 = vst.msk [vmem:[%s5 + $0x58] sm:$0xff] %vm866, %v820
  %879 = vst.msk [vmem:[%s5 + $0x60] sm:$0xff] %vm866, %v821
  %880 = vst.msk [vmem:[%s5 + $0x68] sm:$0xff] %vm866, %v822
  %881 = vst.msk [vmem:[%s5 + $0x70] sm:$0xff] %vm866, %v823
  %882 = vst.msk [vmem:[%s5 + $0x78] sm:$0xff] %vm866, %v824
  %883 = vst.msk [vmem:[%s5 + $0x80] sm:$0xff] %vm866, %v825
  %884 = vst.msk [vmem:[%s5 + $0x88] sm:$0xff] %vm866, %v826
  %885 = vst.msk [vmem:[%s5 + $0x90] sm:$0xff] %vm866, %v827
  %886 = vst.msk [vmem:[%s5 + $0x98] sm:$0xff] %vm866, %v828
  %887 = vst.msk [vmem:[%s5 + $0xa0] sm:$0xff] %vm866, %v829
  %888 = vst.msk [vmem:[%s5 + $0xa8] sm:$0xff] %vm866, %v830
  %889 = vst.msk [vmem:[%s5 + $0xb0] sm:$0xff] %vm866, %v831
  %890 = vst.msk [vmem:[%s5 + $0xb8] sm:$0xff] %vm866, %v832
  %891 = vst.msk [vmem:[%s5 + $0xc0] sm:$0xff] %vm866, %v833
  %892 = vst.msk [vmem:[%s5 + $0xc8] sm:$0xff] %vm866, %v834
  %893 = vst.msk [vmem:[%s5 + $0xd0] sm:$0xff] %vm866, %v835
  %894 = vst.msk [vmem:[%s5 + $0xd8] sm:$0xff] %vm866, %v836
  %895 = vst.msk [vmem:[%s5 + $0xe0] sm:$0xff] %vm866, %v837
  %896 = vst.msk [vmem:[%s5 + $0xe8] sm:$0xff] %vm866, %v838
  %897 = vst.msk [vmem:[%s5 + $0xf0] sm:$0xff] %vm866, %v839
  %898 = vst.msk [vmem:[%s5 + $0xf8] sm:$0xff] %vm866, %v840
  %899 = vst.msk [vmem:[%s5 + $0x100] sm:$0xff] %vm866, %v841
  %900 = vst.msk [vmem:[%s5 + $0x108] sm:$0xff] %vm866, %v842
  %901 = vst.msk [vmem:[%s5 + $0x110] sm:$0xff] %vm866, %v843
  %902 = vst.msk [vmem:[%s5 + $0x118] sm:$0xff] %vm866, %v844
  %903 = vst.msk [vmem:[%s5 + $0x120] sm:$0xff] %vm866, %v845
  %904 = vst.msk [vmem:[%s5 + $0x128] sm:$0xff] %vm866, %v846
  %905 = vst.msk [vmem:[%s5 + $0x130] sm:$0xff] %vm866, %v847
  %906 = vst.msk [vmem:[%s5 + $0x138] sm:$0xff] %vm866, %v848
  %907 = vst.msk [vmem:[%s5 + $0x140] sm:$0xff] %vm866, %v849
  %908 = vst.msk [vmem:[%s5 + $0x148] sm:$0xff] %vm866, %v850
  %909 = vst.msk [vmem:[%s5 + $0x150] sm:$0xff] %vm866, %v851
  %910 = vst.msk [vmem:[%s5 + $0x158] sm:$0xff] %vm866, %v852
  %911 = vst.msk [vmem:[%s5 + $0x160] sm:$0xff] %vm866, %v853
  %912 = vst.msk [vmem:[%s5 + $0x168] sm:$0xff] %vm866, %v854
  %913 = vst.msk [vmem:[%s5 + $0x170] sm:$0xff] %vm866, %v855
  %914 = vst.msk [vmem:[%s5 + $0x178] sm:$0xff] %vm866, %v856
  %915 = vst.msk [vmem:[%s5 + $0x180] sm:$0xff] %vm866, %v857
  %916 = vst.msk [vmem:[%s5 + $0x188] sm:$0xff] %vm866, %v858
  %917 = vst.msk [vmem:[%s5 + $0x190] sm:$0xff] %vm866, %v859
  %918 = vst.msk [vmem:[%s5 + $0x198] sm:$0xff] %vm866, %v860
  %919 = vst.msk [vmem:[%s5 + $0x1a0] sm:$0xff] %vm866, %v861
  %920 = vst.msk [vmem:[%s5 + $0x1a8] sm:$0xff] %vm866, %v862
  %921 = vst.msk [vmem:[%s5 + $0x1b0] sm:$0xff] %vm866, %v863
  %922 = vst.msk [vmem:[%s5 + $0x1b8] sm:$0xff] %vm866, %v864
  %vm923 = vcmask 254976
  %924 = vst.msk [vmem:[%s5 + $0x1c0] sm:$0x3] %vm923, %v865
  // Predicated region
  $region22: #{neural_spline_forward.10} parent=0 // pred_check
    _
  $region23: #{neural_spline_forward.10} parent=0 // pred_check_branch
    %926 = sbr.rel (0) target = $region25
  $region24: #{neural_spline_forward.10} parent=0 // pred_region
    _
  $region25: #{neural_spline_forward.10} parent=0 // pred_fallthru
    _
  // Predicated region
  $region26: #{neural_spline_forward.10} parent=0 // pred_check
    _
  $region27: #{neural_spline_forward.10} parent=0 // pred_check_branch
    %928 = sbr.rel (0) target = $region29
  $region28: #{neural_spline_forward.10} parent=0 // pred_region
    _
  $region29: #{neural_spline_forward.10} parent=0 // pred_fallthru
    _

// kernel: neural_spline_forward.11
$region0: #{neural_spline_forward.11}
  #allocation0 [shape = 'u32[]', space=smem, size = 0x4, offset = 0x4, fixed_abs, tag = 'smem constant byte address 0x4 - core index']
  #allocation1 [shape = 'u32[144,128]{1,0:T(1,128)}', space=vmem, size = 0x12000, scoped, tag = 'internal scratch']
  %s0 = inlined_call_operand.vmem [shape: f32[98,288], index: 0, kind: input, shape index: {}]
  %s1 = inlined_call_operand.vmem [shape: f32[288,64], index: 1, kind: input, shape index: {}]
  %s2 = inlined_call_operand.vmem [shape: f32[1,64], index: 2, kind: input, shape index: {}]
  %s3 = inlined_call_operand.vmem [shape: f32[1,64], index: 3, kind: input, shape index: {}]
  %s4 = inlined_call_operand.vmem [shape: f32[1,64], index: 4, kind: input, shape index: {}]
  %s5 = inlined_call_operand.vmem [shape: f32[98,64], index: 5, kind: output, shape index: {}]
  %s6 = sld [smem:[#allocation0]]
  $region30: #{neural_spline_forward.11} parent=0
    _
  %s8 = ssub.s32 1, %s6
  %s9 = scalar_select 0, %s8, %s6
  // Predicated region
  $region2: #{neural_spline_forward.11} parent=0 // pred_check
    _
  $region3: #{neural_spline_forward.11} parent=0 // pred_check_branch
    %11 = sbr.rel (0) target = $region5
  $region4: #{neural_spline_forward.11} parent=0 // pred_region
    _
  $region5: #{neural_spline_forward.11} parent=0 // pred_fallthru
    _
  // Predicated region
  $region6: #{neural_spline_forward.11} parent=0 // pred_check
    _
  $region7: #{neural_spline_forward.11} parent=0 // pred_check_branch
    %13 = sbr.rel (0) target = $region9
  $region8: #{neural_spline_forward.11} parent=0 // pred_region
    _
  $region9: #{neural_spline_forward.11} parent=0 // pred_fallthru
    _
  // Predicated region
  $region10: #{neural_spline_forward.11} parent=0 // pred_check
    _
  $region11: #{neural_spline_forward.11} parent=0 // pred_check_branch
    %15 = sbr.rel (0) target = $region13
  $region12: #{neural_spline_forward.11} parent=0 // pred_region
    _
  $region13: #{neural_spline_forward.11} parent=0 // pred_fallthru
    _
  // Predicated region
  $region14: #{neural_spline_forward.11} parent=0 // pred_check
    _
  $region15: #{neural_spline_forward.11} parent=0 // pred_check_branch
    %17 = sbr.rel (0) target = $region17
  $region16: #{neural_spline_forward.11} parent=0 // pred_region
    _
  $region17: #{neural_spline_forward.11} parent=0 // pred_fallthru
    _
  // Predicated region
  $region18: #{neural_spline_forward.11} parent=0 // pred_check
    _
  $region19: #{neural_spline_forward.11} parent=0 // pred_check_branch
    %19 = sbr.rel (0) target = $region21
  $region20: #{neural_spline_forward.11} parent=0 // pred_region
    _
  $region21: #{neural_spline_forward.11} parent=0 // pred_fallthru
    _
  %v20 = vld [vmem:[%s0] sm:$0xff]
  %v21 = vld [vmem:[%s0 + $0x8] sm:$0xff]
  %v22 = vld [vmem:[%s0 + $0x10] sm:$0xff]
  %v23 = vld [vmem:[%s0 + $0x18] sm:$0xff]
  %v24 = vld [vmem:[%s0 + $0x20] sm:$0xff]
  %v25 = vld [vmem:[%s0 + $0x28] sm:$0xff]
  %v26 = vld [vmem:[%s0 + $0x30] sm:$0xff]
  %v27 = vld [vmem:[%s0 + $0x38] sm:$0xff]
  %v28 = vld [vmem:[%s0 + $0x40] sm:$0xff]
  %v29 = vld [vmem:[%s0 + $0x48] sm:$0xff]
  %v30 = vld [vmem:[%s0 + $0x50] sm:$0xff]
  %v31 = vld [vmem:[%s0 + $0x58] sm:$0xff]
  %v32 = vld [vmem:[%s0 + $0x60] sm:$0xff]
  %v33 = vld [vmem:[%s0 + $0x68] sm:$0xff]
  %v34 = vld [vmem:[%s0 + $0x70] sm:$0xff]
  %v35 = vld [vmem:[%s0 + $0x78] sm:$0xff]
  %v36 = vld [vmem:[%s0 + $0x80] sm:$0xff]
  %v37 = vld [vmem:[%s0 + $0x88] sm:$0xff]
  %v38 = vld [vmem:[%s0 + $0x90] sm:$0xff]
  %v39 = vld [vmem:[%s0 + $0x98] sm:$0xff]
  %v40 = vld [vmem:[%s0 + $0xa0] sm:$0xff]
  %v41 = vld [vmem:[%s0 + $0xa8] sm:$0xff]
  %v42 = vld [vmem:[%s0 + $0xb0] sm:$0xff]
  %v43 = vld [vmem:[%s0 + $0xb8] sm:$0xff]
  %v44 = vld [vmem:[%s0 + $0xc0] sm:$0xff]
  %v45 = vld [vmem:[%s0 + $0xc8] sm:$0xff]
  %v46 = vld [vmem:[%s0 + $0xd0] sm:$0xff]
  %v47 = vld [vmem:[%s0 + $0xd8] sm:$0xff]
  %v48 = vld [vmem:[%s0 + $0xe0] sm:$0xff]
  %v49 = vld [vmem:[%s0 + $0xe8] sm:$0xff]
  %v50 = vld [vmem:[%s0 + $0xf0] sm:$0xff]
  %v51 = vld [vmem:[%s0 + $0xf8] sm:$0xff]
  %v52 = vld [vmem:[%s0 + $0x100] sm:$0xff]
  %v53 = vld [vmem:[%s0 + $0x108] sm:$0xff]
  %v54 = vld [vmem:[%s0 + $0x110] sm:$0xff]
  %v55 = vld [vmem:[%s0 + $0x118] sm:$0xff]
  %v56 = vld [vmem:[%s0 + $0x120] sm:$0x3]
  %v57 = vld [vmem:[%s0 + $0x128] sm:$0x3]
  %v58 = vld [vmem:[%s0 + $0x130] sm:$0x3]
  %v59 = vld [vmem:[%s1] sm:$0xff]
  %v60 = vld [vmem:[%s1 + $0x8] sm:$0xff]
  %v61 = vld [vmem:[%s1 + $0x10] sm:$0xff]
  %v62 = vld [vmem:[%s1 + $0x18] sm:$0xff]
  %v63 = vld [vmem:[%s1 + $0x20] sm:$0xff]
  %v64 = vld [vmem:[%s1 + $0x28] sm:$0xff]
  %v65 = vld [vmem:[%s1 + $0x30] sm:$0xff]
  %v66 = vld [vmem:[%s1 + $0x38] sm:$0xff]
  %v67 = vld [vmem:[%s1 + $0x40] sm:$0xff]
  %v68 = vld [vmem:[%s1 + $0x48] sm:$0xff]
  %v69 = vld [vmem:[%s1 + $0x50] sm:$0xff]
  %v70 = vld [vmem:[%s1 + $0x58] sm:$0xff]
  %v71 = vld [vmem:[%s1 + $0x60] sm:$0xff]
  %v72 = vld [vmem:[%s1 + $0x68] sm:$0xff]
  %v73 = vld [vmem:[%s1 + $0x70] sm:$0xff]
  %v74 = vld [vmem:[%s1 + $0x78] sm:$0xff]
  %v75 = vld [vmem:[%s1 + $0x80] sm:$0xff]
  %v76 = vld [vmem:[%s1 + $0x88] sm:$0xff]
  %v77 = vld [vmem:[%s1 + $0x90] sm:$0xff]
  %v78 = vld [vmem:[%s1 + $0x98] sm:$0xff]
  %v79 = vld [vmem:[%s1 + $0xa0] sm:$0xff]
  %v80 = vld [vmem:[%s1 + $0xa8] sm:$0xff]
  %v81 = vld [vmem:[%s1 + $0xb0] sm:$0xff]
  %v82 = vld [vmem:[%s1 + $0xb8] sm:$0xff]
  %v83 = vld [vmem:[%s1 + $0xc0] sm:$0xff]
  %v84 = vld [vmem:[%s1 + $0xc8] sm:$0xff]
  %v85 = vld [vmem:[%s1 + $0xd0] sm:$0xff]
  %v86 = vld [vmem:[%s1 + $0xd8] sm:$0xff]
  %v87 = vld [vmem:[%s1 + $0xe0] sm:$0xff]
  %v88 = vld [vmem:[%s1 + $0xe8] sm:$0xff]
  %v89 = vld [vmem:[%s1 + $0xf0] sm:$0xff]
  %v90 = vld [vmem:[%s1 + $0xf8] sm:$0xff]
  %v91 = vld [vmem:[%s1 + $0x100] sm:$0xff]
  %v92 = vld [vmem:[%s1 + $0x108] sm:$0xff]
  %v93 = vld [vmem:[%s1 + $0x110] sm:$0xff]
  %v94 = vld [vmem:[%s1 + $0x118] sm:$0xff]
  %v95 = vld [vmem:[%s2] sm:$0x1]
  %v97 = vlaneseq
  %v98 = vshrl.u32 %v97, 7
  %v99 = vsub.s32 0, %v98
  %v100 = vrot.slane %v95, %v99
  %vm102 = vcmask 261120
  %v104 = vsel %vm102, %v22, 0
  %v107 = vsel %vm102, %v25, 0
  %v110 = vsel %vm102, %v28, 0
  %v113 = vsel %vm102, %v31, 0
  %v116 = vsel %vm102, %v34, 0
  %v119 = vsel %vm102, %v37, 0
  %v122 = vsel %vm102, %v40, 0
  %v125 = vsel %vm102, %v43, 0
  %v128 = vsel %vm102, %v46, 0
  %v131 = vsel %vm102, %v49, 0
  %v134 = vsel %vm102, %v52, 0
  %v137 = vsel %vm102, %v55, 0
  %v140 = vsel %vm102, %v58, 0
  %142 = vmatprep.subr.mxu0 0.0
  %143 = vmatpush1.msra.mxu0 %v59
  %144 = vmatprep.subr.mxu0 0.0
  %145 = vmatpush1.msra.mxu0 %v60
  %146 = vmatprep.subr.mxu0 0.0
  %147 = vmatpush1.msra.mxu0 %v61
  %148 = vmatprep.subr.mxu0 0.0
  %149 = vmatpush1.msra.mxu0 %v62
  %150 = vmatprep.subr.mxu0 0.0
  %151 = vmatpush1.msra.mxu0 %v63
  %152 = vmatprep.subr.mxu0 0.0
  %153 = vmatpush1.msra.mxu0 %v64
  %154 = vmatprep.subr.mxu0 0.0
  %155 = vmatpush1.msra.mxu0 %v65
  %156 = vmatprep.subr.mxu0 0.0
  %157 = vmatpush1.msra.mxu0 %v66
  %158 = vmatprep.subr.mxu0 0.0
  %159 = vmatpush1.msra.mxu0 %v67
  %160 = vmatprep.subr.mxu0 0.0
  %161 = vmatpush1.msra.mxu0 %v68
  %162 = vmatprep.subr.mxu0 0.0
  %163 = vmatpush1.msra.mxu0 %v69
  %164 = vmatprep.subr.mxu0 0.0
  %165 = vmatpush1.msra.mxu0 %v70
  %166 = vmatprep.subr.mxu0 0.0
  %167 = vmatpush1.msra.mxu0 %v71
  %168 = vmatprep.subr.mxu0 0.0
  %169 = vmatpush1.msra.mxu0 %v72
  %170 = vmatprep.subr.mxu0 0.0
  %171 = vmatpush1.msra.mxu0 %v73
  %172 = vmatprep.subr.mxu0 0.0
  %173 = vmatpush1.msra.mxu0 %v74
  %174 = vmatprep.subr.mxu0 0.0
  %175 = vmatpush1.msra.mxu0 %v75
  %176 = vmatprep.subr.mxu0 0.0
  %177 = vmatpush1.msra.mxu0 %v76
  %178 = vmatprep.subr.mxu0 0.0
  %179 = vmatpush1.msra.mxu0 %v77
  %180 = vmatprep.subr.mxu0 0.0
  %181 = vmatpush1.msra.mxu0 %v78
  %182 = vmatprep.subr.mxu0 0.0
  %183 = vmatpush1.msra.mxu0 %v79
  %184 = vmatprep.subr.mxu0 0.0
  %185 = vmatpush1.msra.mxu0 %v80
  %186 = vmatprep.subr.mxu0 0.0
  %187 = vmatpush1.msra.mxu0 %v81
  %188 = vmatprep.subr.mxu0 0.0
  %189 = vmatpush1.msra.mxu0 %v82
  %190 = vmatprep.subr.mxu0 0.0
  %191 = vmatpush1.msra.mxu0 %v83
  %192 = vmatprep.subr.mxu0 0.0
  %193 = vmatpush1.msra.mxu0 %v84
  %194 = vmatprep.subr.mxu0 0.0
  %195 = vmatpush1.msra.mxu0 %v85
  %196 = vmatprep.subr.mxu0 0.0
  %197 = vmatpush1.msra.mxu0 %v86
  %198 = vmatprep.subr.mxu0 0.0
  %199 = vmatpush1.msra.mxu0 %v87
  %200 = vmatprep.subr.mxu0 0.0
  %201 = vmatpush1.msra.mxu0 %v88
  %202 = vmatprep.subr.mxu0 0.0
  %203 = vmatpush1.msra.mxu0 %v89
  %204 = vmatprep.subr.mxu0 0.0
  %205 = vmatpush1.msra.mxu0 %v90
  %206 = vmatprep.mubr.f32.mxu0 %v21
  %207 = vmatmul.mubr.f32.gmra.mrb[0].mxu0 %v20
  %v208 = vpop.f32.mrb[0].mxu0
  %v209 = vadd.f32 %v100, %v208
  %v210 = vpop.f32.mrb[0].mxu0
  %211 = vmatprep.mubr.f32.mxu0 %v24
  %212 = vmatmul.mubr.f32.gmra.mrb[0].mxu0 %v23
  %v213 = vpop.f32.mrb[0].mxu0
  %v214 = vadd.f32 %v100, %v213
  %v215 = vpop.f32.mrb[0].mxu0
  %216 = vmatprep.mubr.f32.mxu0 %v27
  %217 = vmatmul.mubr.f32.gmra.mrb[0].mxu0 %v26
  %v218 = vpop.f32.mrb[0].mxu0
  %v219 = vadd.f32 %v100, %v218
  %v220 = vpop.f32.mrb[0].mxu0
  %221 = vmatprep.mubr.f32.mxu0 %v30
  %222 = vmatmul.mubr.f32.gmra.mrb[0].mxu0 %v29
  %v223 = vpop.f32.mrb[0].mxu0
  %v224 = vadd.f32 %v100, %v223
  %v225 = vpop.f32.mrb[0].mxu0
  %226 = vmatprep.mubr.f32.mxu0 %v33
  %227 = vmatmul.mubr.f32.gmra.mrb[0].mxu0 %v32
  %v228 = vpop.f32.mrb[0].mxu0
  %v229 = vadd.f32 %v100, %v228
  %v230 = vpop.f32.mrb[0].mxu0
  %231 = vmatprep.mubr.f32.mxu0 %v36
  %232 = vmatmul.mubr.f32.gmra.mrb[0].mxu0 %v35
  %v233 = vpop.f32.mrb[0].mxu0
  %v234 = vadd.f32 %v100, %v233
  %v235 = vpop.f32.mrb[0].mxu0
  %236 = vmatprep.mubr.f32.mxu0 %v39
  %237 = vmatmul.mubr.f32.gmra.mrb[0].mxu0 %v38
  %v238 = vpop.f32.mrb[0].mxu0
  %v239 = vadd.f32 %v100, %v238
  %v240 = vpop.f32.mrb[0].mxu0
  %241 = vmatprep.mubr.f32.mxu0 %v42
  %242 = vmatmul.mubr.f32.gmra.mrb[0].mxu0 %v41
  %v243 = vpop.f32.mrb[0].mxu0
  %v244 = vadd.f32 %v100, %v243
  %v245 = vpop.f32.mrb[0].mxu0
  %246 = vmatprep.mubr.f32.mxu0 %v45
  %247 = vmatmul.mubr.f32.gmra.mrb[0].mxu0 %v44
  %v248 = vpop.f32.mrb[0].mxu0
  %v249 = vadd.f32 %v100, %v248
  %v250 = vpop.f32.mrb[0].mxu0
  %251 = vmatprep.mubr.f32.mxu0 %v48
  %252 = vmatmul.mubr.f32.gmra.mrb[0].mxu0 %v47
  %v253 = vpop.f32.mrb[0].mxu0
  %v254 = vadd.f32 %v100, %v253
  %v255 = vpop.f32.mrb[0].mxu0
  %256 = vmatprep.mubr.f32.mxu0 %v51
  %257 = vmatmul.mubr.f32.gmra.mrb[0].mxu0 %v50
  %v258 = vpop.f32.mrb[0].mxu0
  %v259 = vadd.f32 %v100, %v258
  %v260 = vpop.f32.mrb[0].mxu0
  %261 = vmatprep.mubr.f32.mxu0 %v54
  %262 = vmatmul.mubr.f32.gmra.mrb[0].mxu0 %v53
  %v263 = vpop.f32.mrb[0].mxu0
  %v264 = vadd.f32 %v100, %v263
  %v265 = vpop.f32.mrb[0].mxu0
  %266 = vmatprep.mubr.f32.mxu0 %v57
  %267 = vmatmul.mubr.f32.gmra.mrb[0].mxu0 %v56
  %v268 = vpop.f32.mrb[0].mxu0
  %v269 = vadd.f32 %v100, %v268
  %v270 = vpop.f32.mrb[0].mxu0
  %271 = vdwg.mxu0
  %272 = vmatprep.subr.mxu0 0.0
  %273 = vmatpush1.msra.mxu0 %v91
  %274 = vmatprep.subr.mxu0 0.0
  %275 = vmatpush1.msra.mxu0 %v92
  %276 = vmatprep.subr.mxu0 0.0
  %277 = vmatpush1.msra.mxu0 %v93
  %278 = vmatprep.subr.mxu0 0.0
  %279 = vmatpush1.msra.mxu0 %v94
  %280 = vmatprep.subr.mxu0 0.0
  %281 = vmatpush1.msra.mxu0 0.0
  %282 = vmatprep.subr.mxu0 0.0
  %283 = vmatpush1.msra.mxu0 0.0
  %284 = vmatprep.subr.mxu0 0.0
  %285 = vmatpush1.msra.mxu0 0.0
  %286 = vmatprep.subr.mxu0 0.0
  %287 = vmatpush1.msra.mxu0 0.0
  %288 = vmatprep.subr.mxu0 0.0
  %289 = vmatpush1.msra.mxu0 0.0
  %290 = vmatprep.subr.mxu0 0.0
  %291 = vmatpush1.msra.mxu0 0.0
  %292 = vmatprep.subr.mxu0 0.0
  %293 = vmatpush1.msra.mxu0 0.0
  %294 = vmatprep.subr.mxu0 0.0
  %295 = vmatpush1.msra.mxu0 0.0
  %296 = vmatprep.subr.mxu0 0.0
  %297 = vmatpush1.msra.mxu0 0.0
  %298 = vmatprep.subr.mxu0 0.0
  %299 = vmatpush1.msra.mxu0 0.0
  %300 = vmatprep.subr.mxu0 0.0
  %301 = vmatpush1.msra.mxu0 0.0
  %302 = vmatprep.subr.mxu0 0.0
  %303 = vmatpush1.msra.mxu0 0.0
  %304 = vmatprep.subr.mxu0 0.0
  %305 = vmatpush1.msra.mxu0 0.0
  %306 = vmatprep.subr.mxu0 0.0
  %307 = vmatpush1.msra.mxu0 0.0
  %308 = vmatprep.subr.mxu0 0.0
  %309 = vmatpush1.msra.mxu0 0.0
  %310 = vmatprep.subr.mxu0 0.0
  %311 = vmatpush1.msra.mxu0 0.0
  %312 = vmatprep.subr.mxu0 0.0
  %313 = vmatpush1.msra.mxu0 0.0
  %314 = vmatprep.subr.mxu0 0.0
  %315 = vmatpush1.msra.mxu0 0.0
  %316 = vmatprep.subr.mxu0 0.0
  %317 = vmatpush1.msra.mxu0 0.0
  %318 = vmatprep.subr.mxu0 0.0
  %319 = vmatpush1.msra.mxu0 0.0
  %320 = vmatprep.subr.mxu0 0.0
  %321 = vmatpush1.msra.mxu0 0.0
  %322 = vmatprep.subr.mxu0 0.0
  %323 = vmatpush1.msra.mxu0 0.0
  %324 = vmatprep.subr.mxu0 0.0
  %325 = vmatpush1.msra.mxu0 0.0
  %326 = vmatprep.subr.mxu0 0.0
  %327 = vmatpush1.msra.mxu0 0.0
  %328 = vmatprep.subr.mxu0 0.0
  %329 = vmatpush1.msra.mxu0 0.0
  %330 = vmatprep.subr.mxu0 0.0
  %331 = vmatpush1.msra.mxu0 0.0
  %332 = vmatprep.subr.mxu0 0.0
  %333 = vmatpush1.msra.mxu0 0.0
  %334 = vmatprep.subr.mxu0 0.0
  %335 = vmatpush1.msra.mxu0 0.0
  %336 = vmatprep.mubr.f32.mxu0 0.0
  %337 = vmatmul.mubr.f32.gmra.mrb[0].mxu0 %v104
  %v338 = vpop.f32.mrb[0].mxu0
  %v339 = vadd.f32 %v209, %v338
  %v340 = vpop.f32.mrb[0].mxu0
  %341 = vmatprep.mubr.f32.mxu0 0.0
  %342 = vmatmul.mubr.f32.gmra.mrb[0].mxu0 %v107
  %v343 = vpop.f32.mrb[0].mxu0
  %v344 = vadd.f32 %v214, %v343
  %v345 = vpop.f32.mrb[0].mxu0
  %346 = vmatprep.mubr.f32.mxu0 0.0
  %347 = vmatmul.mubr.f32.gmra.mrb[0].mxu0 %v110
  %v348 = vpop.f32.mrb[0].mxu0
  %v349 = vadd.f32 %v219, %v348
  %v350 = vpop.f32.mrb[0].mxu0
  %351 = vmatprep.mubr.f32.mxu0 0.0
  %352 = vmatmul.mubr.f32.gmra.mrb[0].mxu0 %v113
  %v353 = vpop.f32.mrb[0].mxu0
  %v354 = vadd.f32 %v224, %v353
  %v355 = vpop.f32.mrb[0].mxu0
  %356 = vmatprep.mubr.f32.mxu0 0.0
  %357 = vmatmul.mubr.f32.gmra.mrb[0].mxu0 %v116
  %v358 = vpop.f32.mrb[0].mxu0
  %v359 = vadd.f32 %v229, %v358
  %v360 = vpop.f32.mrb[0].mxu0
  %361 = vmatprep.mubr.f32.mxu0 0.0
  %362 = vmatmul.mubr.f32.gmra.mrb[0].mxu0 %v119
  %v363 = vpop.f32.mrb[0].mxu0
  %v364 = vadd.f32 %v234, %v363
  %v365 = vpop.f32.mrb[0].mxu0
  %366 = vmatprep.mubr.f32.mxu0 0.0
  %367 = vmatmul.mubr.f32.gmra.mrb[0].mxu0 %v122
  %v368 = vpop.f32.mrb[0].mxu0
  %v369 = vadd.f32 %v239, %v368
  %v370 = vpop.f32.mrb[0].mxu0
  %371 = vmatprep.mubr.f32.mxu0 0.0
  %372 = vmatmul.mubr.f32.gmra.mrb[0].mxu0 %v125
  %v373 = vpop.f32.mrb[0].mxu0
  %v374 = vadd.f32 %v244, %v373
  %v375 = vpop.f32.mrb[0].mxu0
  %376 = vmatprep.mubr.f32.mxu0 0.0
  %377 = vmatmul.mubr.f32.gmra.mrb[0].mxu0 %v128
  %v378 = vpop.f32.mrb[0].mxu0
  %v379 = vadd.f32 %v249, %v378
  %v380 = vpop.f32.mrb[0].mxu0
  %381 = vmatprep.mubr.f32.mxu0 0.0
  %382 = vmatmul.mubr.f32.gmra.mrb[0].mxu0 %v131
  %v383 = vpop.f32.mrb[0].mxu0
  %v384 = vadd.f32 %v254, %v383
  %v385 = vpop.f32.mrb[0].mxu0
  %386 = vmatprep.mubr.f32.mxu0 0.0
  %387 = vmatmul.mubr.f32.gmra.mrb[0].mxu0 %v134
  %v388 = vpop.f32.mrb[0].mxu0
  %v389 = vadd.f32 %v259, %v388
  %v390 = vpop.f32.mrb[0].mxu0
  %391 = vmatprep.mubr.f32.mxu0 0.0
  %392 = vmatmul.mubr.f32.gmra.mrb[0].mxu0 %v137
  %v393 = vpop.f32.mrb[0].mxu0
  %v394 = vadd.f32 %v264, %v393
  %v395 = vpop.f32.mrb[0].mxu0
  %396 = vmatprep.mubr.f32.mxu0 0.0
  %397 = vmatmul.mubr.f32.gmra.mrb[0].mxu0 %v140
  %v398 = vpop.f32.mrb[0].mxu0
  %v399 = vadd.f32 %v269, %v398
  %v400 = vpop.f32.mrb[0].mxu0
  %401 = vdwg.mxu0
  %v402 = vmax.f32 %v339, 0.0
  %v403 = vmax.f32 %v344, 0.0
  %v404 = vmax.f32 %v349, 0.0
  %v405 = vmax.f32 %v354, 0.0
  %v406 = vmax.f32 %v359, 0.0
  %v407 = vmax.f32 %v364, 0.0
  %v408 = vmax.f32 %v369, 0.0
  %v409 = vmax.f32 %v374, 0.0
  %v410 = vmax.f32 %v379, 0.0
  %v411 = vmax.f32 %v384, 0.0
  %v412 = vmax.f32 %v389, 0.0
  %v413 = vmax.f32 %v394, 0.0
  %v414 = vmax.f32 %v399, 0.0
  %v415 = vld [vmem:[%s3] sm:$0x1]
  %v417 = vlaneseq
  %v418 = vshrl.u32 %v417, 7
  %v419 = vsub.s32 0, %v418
  %v420 = vrot.slane %v415, %v419
  %v422 = vmul.f32 %v402, %v420
  %v423 = vmul.f32 %v403, %v420
  %v424 = vmul.f32 %v404, %v420
  %v425 = vmul.f32 %v405, %v420
  %v426 = vmul.f32 %v406, %v420
  %v427 = vmul.f32 %v407, %v420
  %v428 = vmul.f32 %v408, %v420
  %v429 = vmul.f32 %v409, %v420
  %v430 = vmul.f32 %v410, %v420
  %v431 = vmul.f32 %v411, %v420
  %v432 = vmul.f32 %v412, %v420
  %v433 = vmul.f32 %v413, %v420
  %v434 = vmul.f32 %v414, %v420
  %v435 = vld [vmem:[%s4] sm:$0x1]
  %v437 = vlaneseq
  %v438 = vshrl.u32 %v437, 7
  %v439 = vsub.s32 0, %v438
  %v440 = vrot.slane %v435, %v439
  %v442 = vadd.f32 %v422, %v440
  %v443 = vadd.f32 %v423, %v440
  %v444 = vadd.f32 %v424, %v440
  %v445 = vadd.f32 %v425, %v440
  %v446 = vadd.f32 %v426, %v440
  %v447 = vadd.f32 %v427, %v440
  %v448 = vadd.f32 %v428, %v440
  %v449 = vadd.f32 %v429, %v440
  %v450 = vadd.f32 %v430, %v440
  %v451 = vadd.f32 %v431, %v440
  %v452 = vadd.f32 %v432, %v440
  %v453 = vadd.f32 %v433, %v440
  %v454 = vadd.f32 %v434, %v440
  %vm455 = vcmask 523264
  %456 = vst.msk [vmem:[%s5] sm:$0xff] %vm455, %v442
  %457 = vst.msk [vmem:[%s5 + $0x8] sm:$0xff] %vm455, %v443
  %458 = vst.msk [vmem:[%s5 + $0x10] sm:$0xff] %vm455, %v444
  %459 = vst.msk [vmem:[%s5 + $0x18] sm:$0xff] %vm455, %v445
  %460 = vst.msk [vmem:[%s5 + $0x20] sm:$0xff] %vm455, %v446
  %461 = vst.msk [vmem:[%s5 + $0x28] sm:$0xff] %vm455, %v447
  %462 = vst.msk [vmem:[%s5 + $0x30] sm:$0xff] %vm455, %v448
  %463 = vst.msk [vmem:[%s5 + $0x38] sm:$0xff] %vm455, %v449
  %464 = vst.msk [vmem:[%s5 + $0x40] sm:$0xff] %vm455, %v450
  %465 = vst.msk [vmem:[%s5 + $0x48] sm:$0xff] %vm455, %v451
  %466 = vst.msk [vmem:[%s5 + $0x50] sm:$0xff] %vm455, %v452
  %467 = vst.msk [vmem:[%s5 + $0x58] sm:$0xff] %vm455, %v453
  %vm468 = vcmask 517120
  %469 = vst.msk [vmem:[%s5 + $0x60] sm:$0x3] %vm468, %v454
  // Predicated region
  $region22: #{neural_spline_forward.11} parent=0 // pred_check
    _
  $region23: #{neural_spline_forward.11} parent=0 // pred_check_branch
    %471 = sbr.rel (0) target = $region25
  $region24: #{neural_spline_forward.11} parent=0 // pred_region
    _
  $region25: #{neural_spline_forward.11} parent=0 // pred_fallthru
    _
  // Predicated region
  $region26: #{neural_spline_forward.11} parent=0 // pred_check
    _
  $region27: #{neural_spline_forward.11} parent=0 // pred_check_branch
    %473 = sbr.rel (0) target = $region29
  $region28: #{neural_spline_forward.11} parent=0 // pred_region
    _
  $region29: #{neural_spline_forward.11} parent=0 // pred_fallthru
    _

// kernel: neural_spline_forward.12
$region0: #{neural_spline_forward.12}
  #allocation0 [shape = 'u32[]', space=smem, size = 0x4, offset = 0x4, fixed_abs, tag = 'smem constant byte address 0x4 - core index']
  #allocation1 [shape = 'u32[144,128]{1,0:T(1,128)}', space=vmem, size = 0x12000, scoped, tag = 'internal scratch']
  %s0 = inlined_call_operand.vmem [shape: f32[2,64], index: 0, kind: input, shape index: {}]
  %s1 = inlined_call_operand.vmem [shape: f32[64,128], index: 1, kind: input, shape index: {}]
  %s2 = inlined_call_operand.vmem [shape: f32[1,128], index: 2, kind: input, shape index: {}]
  %s3 = inlined_call_operand.vmem [shape: f32[1,128], index: 3, kind: input, shape index: {}]
  %s4 = inlined_call_operand.vmem [shape: f32[1,128], index: 4, kind: input, shape index: {}]
  %s5 = inlined_call_operand.vmem [shape: f32[2,128], index: 5, kind: output, shape index: {}]
  %s6 = sld [smem:[#allocation0]]
  $region30: #{neural_spline_forward.12} parent=0
    _
  %s8 = ssub.s32 1, %s6
  %s9 = scalar_select 0, %s8, %s6
  // Predicated region
  $region2: #{neural_spline_forward.12} parent=0 // pred_check
    _
  $region3: #{neural_spline_forward.12} parent=0 // pred_check_branch
    %11 = sbr.rel (0) target = $region5
  $region4: #{neural_spline_forward.12} parent=0 // pred_region
    _
  $region5: #{neural_spline_forward.12} parent=0 // pred_fallthru
    _
  // Predicated region
  $region6: #{neural_spline_forward.12} parent=0 // pred_check
    _
  $region7: #{neural_spline_forward.12} parent=0 // pred_check_branch
    %13 = sbr.rel (0) target = $region9
  $region8: #{neural_spline_forward.12} parent=0 // pred_region
    _
  $region9: #{neural_spline_forward.12} parent=0 // pred_fallthru
    _
  // Predicated region
  $region10: #{neural_spline_forward.12} parent=0 // pred_check
    _
  $region11: #{neural_spline_forward.12} parent=0 // pred_check_branch
    %15 = sbr.rel (0) target = $region13
  $region12: #{neural_spline_forward.12} parent=0 // pred_region
    _
  $region13: #{neural_spline_forward.12} parent=0 // pred_fallthru
    _
  // Predicated region
  $region14: #{neural_spline_forward.12} parent=0 // pred_check
    _
  $region15: #{neural_spline_forward.12} parent=0 // pred_check_branch
    %17 = sbr.rel (0) target = $region17
  $region16: #{neural_spline_forward.12} parent=0 // pred_region
    _
  $region17: #{neural_spline_forward.12} parent=0 // pred_fallthru
    _
  // Predicated region
  $region18: #{neural_spline_forward.12} parent=0 // pred_check
    _
  $region19: #{neural_spline_forward.12} parent=0 // pred_check_branch
    %19 = sbr.rel (0) target = $region21
  $region20: #{neural_spline_forward.12} parent=0 // pred_region
    _
  $region21: #{neural_spline_forward.12} parent=0 // pred_fallthru
    _
  %v20 = vld [vmem:[%s0] sm:$0x3]
  %v21 = vld [vmem:[%s1] sm:$0xff]
  %v22 = vld [vmem:[%s1 + $0x8] sm:$0xff]
  %v23 = vld [vmem:[%s1 + $0x10] sm:$0xff]
  %v24 = vld [vmem:[%s1 + $0x18] sm:$0xff]
  %v25 = vld [vmem:[%s1 + $0x20] sm:$0xff]
  %v26 = vld [vmem:[%s1 + $0x28] sm:$0xff]
  %v27 = vld [vmem:[%s1 + $0x30] sm:$0xff]
  %v28 = vld [vmem:[%s1 + $0x38] sm:$0xff]
  %v29 = vld [vmem:[%s2] sm:$0x1]
  %v31 = vlaneseq
  %v32 = vshrl.u32 %v31, 7
  %v33 = vsub.s32 0, %v32
  %v34 = vrot.slane %v29, %v33
  %vm36 = vcmask 523264
  %v38 = vsel %vm36, %v20, 0
  %40 = vmatprep.subr.mxu0 0.0
  %41 = vmatpush1.msra.mxu0 %v21
  %42 = vmatprep.subr.mxu0 0.0
  %43 = vmatpush1.msra.mxu0 %v22
  %44 = vmatprep.subr.mxu0 0.0
  %45 = vmatpush1.msra.mxu0 %v23
  %46 = vmatprep.subr.mxu0 0.0
  %47 = vmatpush1.msra.mxu0 %v24
  %48 = vmatprep.subr.mxu0 0.0
  %49 = vmatpush1.msra.mxu0 %v25
  %50 = vmatprep.subr.mxu0 0.0
  %51 = vmatpush1.msra.mxu0 %v26
  %52 = vmatprep.subr.mxu0 0.0
  %53 = vmatpush1.msra.mxu0 %v27
  %54 = vmatprep.subr.mxu0 0.0
  %55 = vmatpush1.msra.mxu0 %v28
  %56 = vmatprep.subr.mxu0 0.0
  %57 = vmatpush1.msra.mxu0 0.0
  %58 = vmatprep.subr.mxu0 0.0
  %59 = vmatpush1.msra.mxu0 0.0
  %60 = vmatprep.subr.mxu0 0.0
  %61 = vmatpush1.msra.mxu0 0.0
  %62 = vmatprep.subr.mxu0 0.0
  %63 = vmatpush1.msra.mxu0 0.0
  %64 = vmatprep.subr.mxu0 0.0
  %65 = vmatpush1.msra.mxu0 0.0
  %66 = vmatprep.subr.mxu0 0.0
  %67 = vmatpush1.msra.mxu0 0.0
  %68 = vmatprep.subr.mxu0 0.0
  %69 = vmatpush1.msra.mxu0 0.0
  %70 = vmatprep.subr.mxu0 0.0
  %71 = vmatpush1.msra.mxu0 0.0
  %72 = vmatprep.subr.mxu0 0.0
  %73 = vmatpush1.msra.mxu0 0.0
  %74 = vmatprep.subr.mxu0 0.0
  %75 = vmatpush1.msra.mxu0 0.0
  %76 = vmatprep.subr.mxu0 0.0
  %77 = vmatpush1.msra.mxu0 0.0
  %78 = vmatprep.subr.mxu0 0.0
  %79 = vmatpush1.msra.mxu0 0.0
  %80 = vmatprep.subr.mxu0 0.0
  %81 = vmatpush1.msra.mxu0 0.0
  %82 = vmatprep.subr.mxu0 0.0
  %83 = vmatpush1.msra.mxu0 0.0
  %84 = vmatprep.subr.mxu0 0.0
  %85 = vmatpush1.msra.mxu0 0.0
  %86 = vmatprep.subr.mxu0 0.0
  %87 = vmatpush1.msra.mxu0 0.0
  %88 = vmatprep.subr.mxu0 0.0
  %89 = vmatpush1.msra.mxu0 0.0
  %90 = vmatprep.subr.mxu0 0.0
  %91 = vmatpush1.msra.mxu0 0.0
  %92 = vmatprep.subr.mxu0 0.0
  %93 = vmatpush1.msra.mxu0 0.0
  %94 = vmatprep.subr.mxu0 0.0
  %95 = vmatpush1.msra.mxu0 0.0
  %96 = vmatprep.subr.mxu0 0.0
  %97 = vmatpush1.msra.mxu0 0.0
  %98 = vmatprep.subr.mxu0 0.0
  %99 = vmatpush1.msra.mxu0 0.0
  %100 = vmatprep.subr.mxu0 0.0
  %101 = vmatpush1.msra.mxu0 0.0
  %102 = vmatprep.subr.mxu0 0.0
  %103 = vmatpush1.msra.mxu0 0.0
  %104 = vmatprep.mubr.f32.mxu0 0.0
  %105 = vmatmul.mubr.f32.gmra.mrb[0].mxu0 %v38
  %v106 = vpop.f32.mrb[0].mxu0
  %v107 = vadd.f32 %v34, %v106
  %v108 = vpop.f32.mrb[0].mxu0
  %109 = vdwg.mxu0
  %v110 = vmax.f32 %v107, 0.0
  %v111 = vld [vmem:[%s3] sm:$0x1]
  %v113 = vlaneseq
  %v114 = vshrl.u32 %v113, 7
  %v115 = vsub.s32 0, %v114
  %v116 = vrot.slane %v111, %v115
  %v118 = vmul.f32 %v110, %v116
  %v119 = vld [vmem:[%s4] sm:$0x1]
  %v121 = vlaneseq
  %v122 = vshrl.u32 %v121, 7
  %v123 = vsub.s32 0, %v122
  %v124 = vrot.slane %v119, %v123
  %v126 = vadd.f32 %v118, %v124
  %127 = vst [vmem:[%s5] sm:$0x3] %v126
  // Predicated region
  $region22: #{neural_spline_forward.12} parent=0 // pred_check
    _
  $region23: #{neural_spline_forward.12} parent=0 // pred_check_branch
    %129 = sbr.rel (0) target = $region25
  $region24: #{neural_spline_forward.12} parent=0 // pred_region
    _
  $region25: #{neural_spline_forward.12} parent=0 // pred_fallthru
    _
  // Predicated region
  $region26: #{neural_spline_forward.12} parent=0 // pred_check
    _
  $region27: #{neural_spline_forward.12} parent=0 // pred_check_branch
    %131 = sbr.rel (0) target = $region29
  $region28: #{neural_spline_forward.12} parent=0 // pred_region
    _
  $region29: #{neural_spline_forward.12} parent=0 // pred_fallthru
    _

// kernel: neural_spline_forward.13
$region0: #{neural_spline_forward.13}
  #allocation0 [shape = 'u32[]', space=smem, size = 0x4, offset = 0x4, fixed_abs, tag = 'smem constant byte address 0x4 - core index']
  #allocation1 [shape = 'u32[144,128]{1,0:T(1,128)}', space=vmem, size = 0x12000, scoped, tag = 'internal scratch']
  %s0 = inlined_call_operand.vmem [shape: f32[2,128], index: 0, kind: input, shape index: {}]
  %s1 = inlined_call_operand.vmem [shape: f32[128,48], index: 1, kind: input, shape index: {}]
  %s2 = inlined_call_operand.vmem [shape: f32[1,48], index: 2, kind: input, shape index: {}]
  %s3 = inlined_call_operand.vmem [shape: f32[1,48], index: 3, kind: input, shape index: {}]
  %s4 = inlined_call_operand.vmem [shape: f32[1,48], index: 4, kind: input, shape index: {}]
  %s5 = inlined_call_operand.vmem [shape: f32[2,48], index: 5, kind: output, shape index: {}]
  %s6 = sld [smem:[#allocation0]]
  $region30: #{neural_spline_forward.13} parent=0
    _
  %s8 = ssub.s32 1, %s6
  %s9 = scalar_select 0, %s8, %s6
  // Predicated region
  $region2: #{neural_spline_forward.13} parent=0 // pred_check
    _
  $region3: #{neural_spline_forward.13} parent=0 // pred_check_branch
    %11 = sbr.rel (0) target = $region5
  $region4: #{neural_spline_forward.13} parent=0 // pred_region
    _
  $region5: #{neural_spline_forward.13} parent=0 // pred_fallthru
    _
  // Predicated region
  $region6: #{neural_spline_forward.13} parent=0 // pred_check
    _
  $region7: #{neural_spline_forward.13} parent=0 // pred_check_branch
    %13 = sbr.rel (0) target = $region9
  $region8: #{neural_spline_forward.13} parent=0 // pred_region
    _
  $region9: #{neural_spline_forward.13} parent=0 // pred_fallthru
    _
  // Predicated region
  $region10: #{neural_spline_forward.13} parent=0 // pred_check
    _
  $region11: #{neural_spline_forward.13} parent=0 // pred_check_branch
    %15 = sbr.rel (0) target = $region13
  $region12: #{neural_spline_forward.13} parent=0 // pred_region
    _
  $region13: #{neural_spline_forward.13} parent=0 // pred_fallthru
    _
  // Predicated region
  $region14: #{neural_spline_forward.13} parent=0 // pred_check
    _
  $region15: #{neural_spline_forward.13} parent=0 // pred_check_branch
    %17 = sbr.rel (0) target = $region17
  $region16: #{neural_spline_forward.13} parent=0 // pred_region
    _
  $region17: #{neural_spline_forward.13} parent=0 // pred_fallthru
    _
  // Predicated region
  $region18: #{neural_spline_forward.13} parent=0 // pred_check
    _
  $region19: #{neural_spline_forward.13} parent=0 // pred_check_branch
    %19 = sbr.rel (0) target = $region21
  $region20: #{neural_spline_forward.13} parent=0 // pred_region
    _
  $region21: #{neural_spline_forward.13} parent=0 // pred_fallthru
    _
  %v20 = vld [vmem:[%s0] sm:$0x3]
  %v21 = vld [vmem:[%s1] sm:$0xff]
  %v22 = vld [vmem:[%s1 + $0x8] sm:$0xff]
  %v23 = vld [vmem:[%s1 + $0x10] sm:$0xff]
  %v24 = vld [vmem:[%s1 + $0x18] sm:$0xff]
  %v25 = vld [vmem:[%s1 + $0x20] sm:$0xff]
  %v26 = vld [vmem:[%s1 + $0x28] sm:$0xff]
  %v27 = vld [vmem:[%s1 + $0x30] sm:$0xff]
  %v28 = vld [vmem:[%s1 + $0x38] sm:$0xff]
  %v29 = vld [vmem:[%s1 + $0x40] sm:$0xff]
  %v30 = vld [vmem:[%s1 + $0x48] sm:$0xff]
  %v31 = vld [vmem:[%s1 + $0x50] sm:$0xff]
  %v32 = vld [vmem:[%s1 + $0x58] sm:$0xff]
  %v33 = vld [vmem:[%s1 + $0x60] sm:$0xff]
  %v34 = vld [vmem:[%s1 + $0x68] sm:$0xff]
  %v35 = vld [vmem:[%s1 + $0x70] sm:$0xff]
  %v36 = vld [vmem:[%s1 + $0x78] sm:$0xff]
  %v37 = vld [vmem:[%s2] sm:$0x1]
  %v39 = vlaneseq
  %v40 = vshrl.u32 %v39, 7
  %v41 = vsub.s32 0, %v40
  %v42 = vrot.slane %v37, %v41
  %44 = vmatprep.subr.mxu0 0.0
  %45 = vmatpush1.msra.mxu0 %v21
  %46 = vmatprep.subr.mxu0 0.0
  %47 = vmatpush1.msra.mxu0 %v22
  %48 = vmatprep.subr.mxu0 0.0
  %49 = vmatpush1.msra.mxu0 %v23
  %50 = vmatprep.subr.mxu0 0.0
  %51 = vmatpush1.msra.mxu0 %v24
  %52 = vmatprep.subr.mxu0 0.0
  %53 = vmatpush1.msra.mxu0 %v25
  %54 = vmatprep.subr.mxu0 0.0
  %55 = vmatpush1.msra.mxu0 %v26
  %56 = vmatprep.subr.mxu0 0.0
  %57 = vmatpush1.msra.mxu0 %v27
  %58 = vmatprep.subr.mxu0 0.0
  %59 = vmatpush1.msra.mxu0 %v28
  %60 = vmatprep.subr.mxu0 0.0
  %61 = vmatpush1.msra.mxu0 %v29
  %62 = vmatprep.subr.mxu0 0.0
  %63 = vmatpush1.msra.mxu0 %v30
  %64 = vmatprep.subr.mxu0 0.0
  %65 = vmatpush1.msra.mxu0 %v31
  %66 = vmatprep.subr.mxu0 0.0
  %67 = vmatpush1.msra.mxu0 %v32
  %68 = vmatprep.subr.mxu0 0.0
  %69 = vmatpush1.msra.mxu0 %v33
  %70 = vmatprep.subr.mxu0 0.0
  %71 = vmatpush1.msra.mxu0 %v34
  %72 = vmatprep.subr.mxu0 0.0
  %73 = vmatpush1.msra.mxu0 %v35
  %74 = vmatprep.subr.mxu0 0.0
  %75 = vmatpush1.msra.mxu0 %v36
  %76 = vmatprep.subr.mxu0 0.0
  %77 = vmatpush1.msra.mxu0 0.0
  %78 = vmatprep.subr.mxu0 0.0
  %79 = vmatpush1.msra.mxu0 0.0
  %80 = vmatprep.subr.mxu0 0.0
  %81 = vmatpush1.msra.mxu0 0.0
  %82 = vmatprep.subr.mxu0 0.0
  %83 = vmatpush1.msra.mxu0 0.0
  %84 = vmatprep.subr.mxu0 0.0
  %85 = vmatpush1.msra.mxu0 0.0
  %86 = vmatprep.subr.mxu0 0.0
  %87 = vmatpush1.msra.mxu0 0.0
  %88 = vmatprep.subr.mxu0 0.0
  %89 = vmatpush1.msra.mxu0 0.0
  %90 = vmatprep.subr.mxu0 0.0
  %91 = vmatpush1.msra.mxu0 0.0
  %92 = vmatprep.subr.mxu0 0.0
  %93 = vmatpush1.msra.mxu0 0.0
  %94 = vmatprep.subr.mxu0 0.0
  %95 = vmatpush1.msra.mxu0 0.0
  %96 = vmatprep.subr.mxu0 0.0
  %97 = vmatpush1.msra.mxu0 0.0
  %98 = vmatprep.subr.mxu0 0.0
  %99 = vmatpush1.msra.mxu0 0.0
  %100 = vmatprep.subr.mxu0 0.0
  %101 = vmatpush1.msra.mxu0 0.0
  %102 = vmatprep.subr.mxu0 0.0
  %103 = vmatpush1.msra.mxu0 0.0
  %104 = vmatprep.subr.mxu0 0.0
  %105 = vmatpush1.msra.mxu0 0.0
  %106 = vmatprep.subr.mxu0 0.0
  %107 = vmatpush1.msra.mxu0 0.0
  %108 = vmatprep.mubr.f32.mxu0 0.0
  %109 = vmatmul.mubr.f32.gmra.mrb[0].mxu0 %v20
  %v110 = vpop.f32.mrb[0].mxu0
  %v111 = vadd.f32 %v42, %v110
  %v112 = vpop.f32.mrb[0].mxu0
  %113 = vdwg.mxu0
  %v114 = vld [vmem:[%s3] sm:$0x1]
  %v116 = vlaneseq
  %v117 = vshrl.u32 %v116, 7
  %v118 = vsub.s32 0, %v117
  %v119 = vrot.slane %v114, %v118
  %v121 = vmul.f32 %v111, %v119
  %v122 = vld [vmem:[%s4] sm:$0x1]
  %v124 = vlaneseq
  %v125 = vshrl.u32 %v124, 7
  %v126 = vsub.s32 0, %v125
  %v127 = vrot.slane %v122, %v126
  %v129 = vadd.f32 %v121, %v127
  %vm130 = vcmask 386048
  %131 = vst.msk [vmem:[%s5] sm:$0x3] %vm130, %v129
  // Predicated region
  $region22: #{neural_spline_forward.13} parent=0 // pred_check
    _
  $region23: #{neural_spline_forward.13} parent=0 // pred_check_branch
    %133 = sbr.rel (0) target = $region25
  $region24: #{neural_spline_forward.13} parent=0 // pred_region
    _
  $region25: #{neural_spline_forward.13} parent=0 // pred_fallthru
    _
  // Predicated region
  $region26: #{neural_spline_forward.13} parent=0 // pred_check
    _
  $region27: #{neural_spline_forward.13} parent=0 // pred_check_branch
    %135 = sbr.rel (0) target = $region29
  $region28: #{neural_spline_forward.13} parent=0 // pred_region
    _
  $region29: #{neural_spline_forward.13} parent=0 // pred_fallthru
    _

// kernel: squeeze.4
$region0: #{squeeze.4}
  %s0 = inlined_call_operand.vmem [shape: f32[1,6,2,128], index: 0, kind: input, shape index: {}]
  %s1 = inlined_call_operand.hbm [shape: f32[2,3,16,16], index: 1, kind: output, shape index: {}]
  $region1: #{squeeze.4} parent=0
    #allocation0 [shape = 'u8[49152]{0}', space=vmem, size = 0xc000, scoped, tag = 'operand span for operand 1']
    #allocation1 [shape = 's32[1]{0}', space=sflag, size = 0x4, scoped, tag = 'scoped memory for squeeze.4']
    #allocation2 [shape = 'u8[24576]{0}', space=vmem, size = 0x6000, scoped, tag = 'scoped mem for input reshape']
    %2 = vsyncpa [#allocation1], 0
    %s4 = sshllo.u32 0, 2
    %s5 = smul.addr 2, 5
    %s6 = scalar_lea.vmem %s0, %s5
    %v7 = vld [vmem:[%s6] sm:%s4]
    %s8 = scalar_lea.vmem [#allocation2], 40
    %9 = vst [vmem:[%s8] sm:%s4] %v7
    %s10 = smul.addr 2, 4
    %s11 = scalar_lea.vmem %s0, %s10
    %v12 = vld [vmem:[%s11] sm:%s4]
    %s13 = scalar_lea.vmem [#allocation2], 32
    %14 = vst [vmem:[%s13] sm:%s4] %v12
    %s15 = smul.addr 2, 3
    %s16 = scalar_lea.vmem %s0, %s15
    %v17 = vld [vmem:[%s16] sm:%s4]
    %s18 = scalar_lea.vmem [#allocation2], 24
    %19 = vst [vmem:[%s18] sm:%s4] %v17
    %s20 = smul.addr 2, 2
    %s21 = scalar_lea.vmem %s0, %s20
    %v22 = vld [vmem:[%s21] sm:%s4]
    %s23 = scalar_lea.vmem [#allocation2], 16
    %24 = vst [vmem:[%s23] sm:%s4] %v22
    %s25 = scalar_lea.vmem %s0, 2
    %v26 = vld [vmem:[%s25] sm:%s4]
    %s27 = scalar_lea.vmem [#allocation2], 8
    %28 = vst [vmem:[%s27] sm:%s4] %v26
    %v29 = vld [vmem:[%s0] sm:%s4]
    %30 = vst [vmem:[#allocation2] sm:%s4] %v29
    %v31 = vld [vmem:[#allocation2] sm:$0x3]
    %vm32 = vcmask 130048
    %33 = vst.msk [vmem:[#allocation0] ss:$8 sm:$0x3] %vm32, %v31
    %s34 = scalar_lea.vmem [#allocation2], 8
    %v35 = vld [vmem:[%s34] sm:$0x3]
    %vm36 = vcmask 130048
    %s37 = scalar_lea.vmem [#allocation0], 16
    %38 = vst.msk [vmem:[%s37] ss:$8 sm:$0x3] %vm36, %v35
    %s39 = scalar_lea.vmem [#allocation2], 16
    %v40 = vld [vmem:[%s39] sm:$0x3]
    %vm41 = vcmask 130048
    %s42 = scalar_lea.vmem [#allocation0], 32
    %43 = vst.msk [vmem:[%s42] ss:$8 sm:$0x3] %vm41, %v40
    %s44 = scalar_lea.vmem [#allocation2], 24
    %v45 = vld [vmem:[%s44] sm:$0x3]
    %vm46 = vcmask 130048
    %s47 = scalar_lea.vmem [#allocation0], 48
    %48 = vst.msk [vmem:[%s47] ss:$8 sm:$0x3] %vm46, %v45
    %s49 = scalar_lea.vmem [#allocation2], 32
    %v50 = vld [vmem:[%s49] sm:$0x3]
    %vm51 = vcmask 130048
    %s52 = scalar_lea.vmem [#allocation0], 64
    %53 = vst.msk [vmem:[%s52] ss:$8 sm:$0x3] %vm51, %v50
    %s54 = scalar_lea.vmem [#allocation2], 40
    %v55 = vld [vmem:[%s54] sm:$0x3]
    %vm56 = vcmask 130048
    %s57 = scalar_lea.vmem [#allocation0], 80
    %58 = vst.msk [vmem:[%s57] ss:$8 sm:$0x3] %vm56, %v55
    %v59 = vld.sshfl [vmem:[#allocation2] sm:$0xff pattern:$0x99999810]
    %s60 = scalar_lea.vmem [#allocation2], 16
    %v61 = vld.sshfl [vmem:[%s60] sm:$0xff pattern:$0x98100000]
    %vm62 = vcmask 1047556
    %v63 = vsel %vm62, %v61, %v59
    %64 = vrot.lane.b32.xlu0 %v63, 112
    %v65 = vpop.permute.xlu0 %64
    %vm66 = vcmask 130048
    %s67 = scalar_lea.vmem [#allocation0], 1
    %68 = vst.msk [vmem:[%s67] ss:$8 sm:$0xf] %vm66, %v65
    %s69 = scalar_lea.vmem [#allocation0], 1
    %70 = vst.msk [vmem:[%s69] ss:$8 sm:$0xf0] %vm66, %v65
    %s71 = scalar_lea.vmem [#allocation2], 32
    %v72 = vld.sshfl [vmem:[%s71] sm:$0xff pattern:$0x99999810]
    %73 = vrot.lane.b32.xlu0 %v72, 112
    %v74 = vpop.permute.xlu0 %73
    %vm75 = vcmask 130048
    %s76 = scalar_lea.vmem [#allocation0], 65
    %77 = vst.msk [vmem:[%s76] ss:$8 sm:$0xf] %vm75, %v74
    %v78 = vld.sshfl [vmem:[#allocation2] sm:$0xff pattern:$0x99999810]
    %s79 = scalar_lea.vmem [#allocation2], 16
    %v80 = vld.sshfl [vmem:[%s79] sm:$0xff pattern:$0x98100000]
    %vm81 = vcmask 1047556
    %v82 = vsel %vm81, %v80, %v78
    %83 = vrot.lane.b32.xlu0 %v82, 96
    %v84 = vpop.permute.xlu0 %83
    %vm85 = vcmask 130048
    %s86 = scalar_lea.vmem [#allocation0], 2
    %87 = vst.msk [vmem:[%s86] ss:$8 sm:$0xf] %vm85, %v84
    %s88 = scalar_lea.vmem [#allocation0], 2
    %89 = vst.msk [vmem:[%s88] ss:$8 sm:$0xf0] %vm85, %v84
    %s90 = scalar_lea.vmem [#allocation2], 32
    %v91 = vld.sshfl [vmem:[%s90] sm:$0xff pattern:$0x99999810]
    %92 = vrot.lane.b32.xlu0 %v91, 96
    %v93 = vpop.permute.xlu0 %92
    %vm94 = vcmask 130048
    %s95 = scalar_lea.vmem [#allocation0], 66
    %96 = vst.msk [vmem:[%s95] ss:$8 sm:$0xf] %vm94, %v93
    %v97 = vld.sshfl [vmem:[#allocation2] sm:$0xff pattern:$0x99999810]
    %s98 = scalar_lea.vmem [#allocation2], 16
    %v99 = vld.sshfl [vmem:[%s98] sm:$0xff pattern:$0x98100000]
    %vm100 = vcmask 1047556
    %v101 = vsel %vm100, %v99, %v97
    %102 = vrot.lane.b32.xlu0 %v101, 80
    %v103 = vpop.permute.xlu0 %102
    %vm104 = vcmask 130048
    %s105 = scalar_lea.vmem [#allocation0], 3
    %106 = vst.msk [vmem:[%s105] ss:$8 sm:$0xf] %vm104, %v103
    %s107 = scalar_lea.vmem [#allocation0], 3
    %108 = vst.msk [vmem:[%s107] ss:$8 sm:$0xf0] %vm104, %v103
    %s109 = scalar_lea.vmem [#allocation2], 32
    %v110 = vld.sshfl [vmem:[%s109] sm:$0xff pattern:$0x99999810]
    %111 = vrot.lane.b32.xlu0 %v110, 80
    %v112 = vpop.permute.xlu0 %111
    %vm113 = vcmask 130048
    %s114 = scalar_lea.vmem [#allocation0], 67
    %115 = vst.msk [vmem:[%s114] ss:$8 sm:$0xf] %vm113, %v112
    %v116 = vld.sshfl [vmem:[#allocation2] sm:$0xff pattern:$0x99999810]
    %s117 = scalar_lea.vmem [#allocation2], 16
    %v118 = vld.sshfl [vmem:[%s117] sm:$0xff pattern:$0x98100000]
    %vm119 = vcmask 1047556
    %v120 = vsel %vm119, %v118, %v116
    %121 = vrot.lane.b32.xlu0 %v120, 64
    %v122 = vpop.permute.xlu0 %121
    %vm123 = vcmask 130048
    %s124 = scalar_lea.vmem [#allocation0], 4
    %125 = vst.msk [vmem:[%s124] ss:$8 sm:$0xf] %vm123, %v122
    %s126 = scalar_lea.vmem [#allocation0], 4
    %127 = vst.msk [vmem:[%s126] ss:$8 sm:$0xf0] %vm123, %v122
    %s128 = scalar_lea.vmem [#allocation2], 32
    %v129 = vld.sshfl [vmem:[%s128] sm:$0xff pattern:$0x99999810]
    %130 = vrot.lane.b32.xlu0 %v129, 64
    %v131 = vpop.permute.xlu0 %130
    %vm132 = vcmask 130048
    %s133 = scalar_lea.vmem [#allocation0], 68
    %134 = vst.msk [vmem:[%s133] ss:$8 sm:$0xf] %vm132, %v131
    %v135 = vld.sshfl [vmem:[#allocation2] sm:$0xff pattern:$0x99999810]
    %s136 = scalar_lea.vmem [#allocation2], 16
    %v137 = vld.sshfl [vmem:[%s136] sm:$0xff pattern:$0x98100000]
    %vm138 = vcmask 1047556
    %v139 = vsel %vm138, %v137, %v135
    %140 = vrot.lane.b32.xlu0 %v139, 48
    %v141 = vpop.permute.xlu0 %140
    %vm142 = vcmask 130048
    %s143 = scalar_lea.vmem [#allocation0], 5
    %144 = vst.msk [vmem:[%s143] ss:$8 sm:$0xf] %vm142, %v141
    %s145 = scalar_lea.vmem [#allocation0], 5
    %146 = vst.msk [vmem:[%s145] ss:$8 sm:$0xf0] %vm142, %v141
    %s147 = scalar_lea.vmem [#allocation2], 32
    %v148 = vld.sshfl [vmem:[%s147] sm:$0xff pattern:$0x99999810]
    %149 = vrot.lane.b32.xlu0 %v148, 48
    %v150 = vpop.permute.xlu0 %149
    %vm151 = vcmask 130048
    %s152 = scalar_lea.vmem [#allocation0], 69
    %153 = vst.msk [vmem:[%s152] ss:$8 sm:$0xf] %vm151, %v150
    %v154 = vld.sshfl [vmem:[#allocation2] sm:$0xff pattern:$0x99999810]
    %s155 = scalar_lea.vmem [#allocation2], 16
    %v156 = vld.sshfl [vmem:[%s155] sm:$0xff pattern:$0x98100000]
    %vm157 = vcmask 1047556
    %v158 = vsel %vm157, %v156, %v154
    %159 = vrot.lane.b32.xlu0 %v158, 32
    %v160 = vpop.permute.xlu0 %159
    %vm161 = vcmask 130048
    %s162 = scalar_lea.vmem [#allocation0], 6
    %163 = vst.msk [vmem:[%s162] ss:$8 sm:$0xf] %vm161, %v160
    %s164 = scalar_lea.vmem [#allocation0], 6
    %165 = vst.msk [vmem:[%s164] ss:$8 sm:$0xf0] %vm161, %v160
    %s166 = scalar_lea.vmem [#allocation2], 32
    %v167 = vld.sshfl [vmem:[%s166] sm:$0xff pattern:$0x99999810]
    %168 = vrot.lane.b32.xlu0 %v167, 32
    %v169 = vpop.permute.xlu0 %168
    %vm170 = vcmask 130048
    %s171 = scalar_lea.vmem [#allocation0], 70
    %172 = vst.msk [vmem:[%s171] ss:$8 sm:$0xf] %vm170, %v169
    %v173 = vld.sshfl [vmem:[#allocation2] sm:$0xff pattern:$0x99999810]
    %s174 = scalar_lea.vmem [#allocation2], 16
    %v175 = vld.sshfl [vmem:[%s174] sm:$0xff pattern:$0x98100000]
    %vm176 = vcmask 1047556
    %v177 = vsel %vm176, %v175, %v173
    %178 = vrot.lane.b32.xlu0 %v177, 16
    %v179 = vpop.permute.xlu0 %178
    %vm180 = vcmask 130048
    %s181 = scalar_lea.vmem [#allocation0], 7
    %182 = vst.msk [vmem:[%s181] ss:$8 sm:$0xf] %vm180, %v179
    %s183 = scalar_lea.vmem [#allocation0], 7
    %184 = vst.msk [vmem:[%s183] ss:$8 sm:$0xf0] %vm180, %v179
    %s185 = scalar_lea.vmem [#allocation2], 32
    %v186 = vld.sshfl [vmem:[%s185] sm:$0xff pattern:$0x99999810]
    %187 = vrot.lane.b32.xlu0 %v186, 16
    %v188 = vpop.permute.xlu0 %187
    %vm189 = vcmask 130048
    %s190 = scalar_lea.vmem [#allocation0], 71
    %191 = vst.msk [vmem:[%s190] ss:$8 sm:$0xf] %vm189, %v188
    %s193 = ssub.s32 1536, 1536
    %194 = vsyncadd [#allocation1], %s193
    %s196 = sshll.u32 [#allocation0], 4
    %s197 = int_to_ptr.vmem [resolvable:$true] %s196
    %199 = dma.vmem_to_hbm [thread:$0]  %s197, 1536, %s1, [#allocation1]
    %200 = dma.done [#allocation1], 1536
    %201 = vsyncpa [#allocation1], 1

// kernel: neural_spline_forward.14
$region0: #{neural_spline_forward.14}
  #allocation0 [shape = 'u32[]', space=smem, size = 0x4, offset = 0x4, fixed_abs, tag = 'smem constant byte address 0x4 - core index']
  #allocation1 [shape = 'u32[144,128]{1,0:T(1,128)}', space=vmem, size = 0x12000, scoped, tag = 'internal scratch']
  %s0 = inlined_call_operand.vmem [shape: f32[6,1,56], index: 0, kind: input, shape index: {}]
  %s1 = inlined_call_operand.vmem [shape: f32[6,2,128], index: 1, kind: input, shape index: {}]
  %s2 = inlined_call_operand.vmem [shape: f32[2,6,2,128], index: 2, kind: output, shape index: {}]
  %s3 = sld [smem:[#allocation0]]
  $region71: #{neural_spline_forward.14} parent=0
    _
  %s5 = ssub.s32 1, %s3
  %s6 = scalar_select 0, %s5, %s3
  $region1: #{neural_spline_forward.14} parent=0
    #allocation2 [shape = 'u8[4096]{0}', space=vmem, size = 0x1000, scoped, tag = 'output window, operand 0']
    loop: start=0, step=1, limit=8
    $region2: #{neural_spline_forward.14} parent=1 // loop_pre_header
      _
    $region3: #{neural_spline_forward.14} parent=1 // loop_header
      %s8 = sphi 0, %s12
      %p9 = scmp.ge.s32.totalorder %s8, 8
      %s15 = sphi 0, %s27
      %s16 = sphi 0, %s23
      %s17 = sphi 0, %s15
      %s18 = sphi 0, %s16
      %s19 = sphi 0, %s17
      %s20 = sphi 0, %s18
      %s30 = sphi 0, %s32
      %s33 = sphi 0, %s30
      %s34 = sphi 0, %s33
      %s50 = sphi 0, %s34
      %s58 = sphi 0, %s60
      %s61 = sphi 0, %s58
      %s62 = sphi 0, %s61
      %s78 = sphi 0, %s62
      %s86 = sphi 0, %s88
      %s89 = sphi 0, %s86
      %s90 = sphi 0, %s89
      %s106 = sphi 0, %s90
    $region4: #{neural_spline_forward.14} parent=1 // loop_header_branch
      %11 = sbr.rel (%p9) target = $region8
    $region5: #{neural_spline_forward.14} parent=1 // loop_body
      %s13 = ssub.s32 %s8, 1
      %s14 = ssub.s32 %s8, 2
      %s21 = sadd.s32 1, %s16
      %p22 = scmp.ge.s32.totalorder %s21, 1
      %s23 = scalar_select %p22, 0, %s21
      %s24 = sadd.s32 1, %s15
      %s25 = scalar_select %p22, %s24, %s15
      %p26 = scmp.ge.s32.totalorder %s25, 6
      %s27 = scalar_select %p26, 0, %s25
      %s28 = ssub.s32 %s15, %s27
      %p29 = scmp.eq.s32.totalorder %s28, 0
      %s31 = sadd.s32 %s30, 1
      %s32 = scalar_select %p29, %s30, %s31
      %p35 = pneg %p29
      %p36 = scmp.eq.s32.totalorder %s8, 5
      %p37 = por %p35, %p36
      %p38 = scmp.ne.s32.totalorder %s30, %s33
      %p39 = scmp.eq.s32.totalorder %s8, 0
      %p40 = por %p38, %p39
      %p41 = scmp.ne.s32.totalorder %s30, %s33
      %p42 = scmp.eq.s32.totalorder %s13, 5
      %p43 = por %p41, %p42
      %p44 = scmp.ne.s32.totalorder %s33, %s34
      %p45 = scmp.eq.s32.totalorder %s13, 0
      %p46 = por %p44, %p45
      %p47 = scmp.ne.s32.totalorder %s33, %s34
      %p48 = scmp.eq.s32.totalorder %s14, 5
      %p49 = por %p47, %p48
      %p51 = scmp.ne.s32.totalorder %s34, %s50
      %p52 = scmp.eq.s32.totalorder %s14, 0
      %p53 = por %p51, %p52
      %s54 = ssub.s32 %s15, %s27
      %s55 = ssub.s32 %s16, %s23
      %s56 = sor.u32 %s54, %s55
      %p57 = scmp.eq.s32.totalorder %s56, 0
      %s59 = sadd.s32 %s58, 1
      %s60 = scalar_select %p57, %s58, %s59
      %p63 = pneg %p57
      %p64 = scmp.eq.s32.totalorder %s8, 5
      %p65 = por %p63, %p64
      %p66 = scmp.ne.s32.totalorder %s58, %s61
      %p67 = scmp.eq.s32.totalorder %s8, 0
      %p68 = por %p66, %p67
      %p69 = scmp.ne.s32.totalorder %s58, %s61
      %p70 = scmp.eq.s32.totalorder %s13, 5
      %p71 = por %p69, %p70
      %p72 = scmp.ne.s32.totalorder %s61, %s62
      %p73 = scmp.eq.s32.totalorder %s13, 0
      %p74 = por %p72, %p73
      %p75 = scmp.ne.s32.totalorder %s61, %s62
      %p76 = scmp.eq.s32.totalorder %s14, 5
      %p77 = por %p75, %p76
      %p79 = scmp.ne.s32.totalorder %s62, %s78
      %p80 = scmp.eq.s32.totalorder %s14, 0
      %p81 = por %p79, %p80
      %s82 = ssub.s32 %s15, %s27
      %s83 = ssub.s32 %s16, %s23
      %s84 = sor.u32 %s82, %s83
      %p85 = scmp.eq.s32.totalorder %s84, 0
      %s87 = sadd.s32 %s86, 1
      %s88 = scalar_select %p85, %s86, %s87
      %p91 = pneg %p85
      %p92 = scmp.eq.s32.totalorder %s8, 5
      %p93 = por %p91, %p92
      %p94 = scmp.ne.s32.totalorder %s86, %s89
      %p95 = scmp.eq.s32.totalorder %s8, 0
      %p96 = por %p94, %p95
      %p97 = scmp.ne.s32.totalorder %s86, %s89
      %p98 = scmp.eq.s32.totalorder %s13, 5
      %p99 = por %p97, %p98
      %p100 = scmp.ne.s32.totalorder %s89, %s90
      %p101 = scmp.eq.s32.totalorder %s13, 0
      %p102 = por %p100, %p101
      %p103 = scmp.ne.s32.totalorder %s89, %s90
      %p104 = scmp.eq.s32.totalorder %s14, 5
      %p105 = por %p103, %p104
      %p107 = scmp.ne.s32.totalorder %s90, %s106
      %p108 = scmp.eq.s32.totalorder %s14, 0
      %p109 = por %p107, %p108
      %p110 = scmp.le.s32.totalorder 1, %s8
      %p111 = scmp.lt.s32.totalorder %s8, 7
      %p112 = pnand %p110, %p111
      %p113 = pneg %p112
      // Predicated region
      $region9: #{neural_spline_forward.14} parent=5 // pred_check
        _
      $region10: #{neural_spline_forward.14} parent=5 // pred_check_branch
        %115 = sbr.rel (%p112) target = $region12
      $region11: #{neural_spline_forward.14} parent=5 // pred_region
        %s116 = ssub.s32 %s8, 1
      $region12: #{neural_spline_forward.14} parent=5 // pred_fallthru
        _
      %p117 = scmp.lt.s32.totalorder %s8, 6
      // Predicated region
      $region13: #{neural_spline_forward.14} parent=5 // pred_check
        %p118 = pneg %p117
      $region14: #{neural_spline_forward.14} parent=5 // pred_check_branch
        %120 = sbr.rel (%p118) target = $region16
      $region15: #{neural_spline_forward.14} parent=5 // pred_region
        // Predicated region
        $region17: #{neural_spline_forward.14} parent=15 // pred_check
          %p121 = pneg %p40
        $region18: #{neural_spline_forward.14} parent=15 // pred_check_branch
          %123 = sbr.rel (%p121) target = $region20
        $region19: #{neural_spline_forward.14} parent=15 // pred_region
          %p124 = scmp.lt.s32.totalorder %s15, 5
          %s125 = scalar_select %p124, %s15, 5
          %s126 = scalar_lea.vmem %s0, %s125
        $region20: #{neural_spline_forward.14} parent=15 // pred_fallthru
          _
        // Predicated region
        $region21: #{neural_spline_forward.14} parent=15 // pred_check
          %p127 = pneg %p68
        $region22: #{neural_spline_forward.14} parent=15 // pred_check_branch
          %129 = sbr.rel (%p127) target = $region24
        $region23: #{neural_spline_forward.14} parent=15 // pred_region
          %p130 = scmp.lt.s32.totalorder %s15, 5
          %s131 = scalar_select %p130, %s15, 5
          %p132 = scmp.lt.s32.totalorder %s16, 0
          %s133 = scalar_select %p132, %s16, 0
          %s134 = sadd.s32 %s133, %s131
          %s135 = smul.addr %s134, 2
          %s136 = scalar_lea.vmem %s1, %s135
        $region24: #{neural_spline_forward.14} parent=15 // pred_fallthru
          _
      $region16: #{neural_spline_forward.14} parent=5 // pred_fallthru
        _
      %p137 = scmp.le.s32.totalorder 1, %s8
      %p138 = scmp.lt.s32.totalorder %s8, 7
      %p139 = pnand %p137, %p138
      %p140 = pneg %p139
      // Predicated region
      $region25: #{neural_spline_forward.14} parent=5 // pred_check
        _
      $region26: #{neural_spline_forward.14} parent=5 // pred_check_branch
        %142 = sbr.rel (%p139) target = $region28
      $region27: #{neural_spline_forward.14} parent=5 // pred_region
        %s143 = ssub.s32 %s8, 1
        %p144 = scmp.lt.s32.totalorder %s17, 5
        %s145 = scalar_select %p144, %s17, 5
        %s146 = scalar_lea.vmem %s0, %s145
        %p147 = pneg %p46
        %p148 = pneg %p43
        %p149 = scmp.lt.s32.totalorder %s17, 5
        %s150 = scalar_select %p149, %s17, 5
        %p151 = scmp.lt.s32.totalorder %s18, 0
        %s152 = scalar_select %p151, %s18, 0
        %s153 = sadd.s32 %s152, %s150
        %s154 = smul.addr %s153, 2
        %s155 = scalar_lea.vmem %s1, %s154
        %p156 = pneg %p74
        %p157 = pneg %p71
        %p158 = pneg %p102
        %p159 = pneg %p99
        %s160 = sand.u32 %s89, 1
        %s161 = sand.u32 %s89, 1
        %s162 = smul.addr %s161, 4
        %s163 = scalar_lea.vmem [#allocation2], %s162
        %p164 = scmp.lt.s32.totalorder %s17, 5
        %s165 = scalar_select %p164, %s17, 5
        %s166 = scalar_lea.vmem %s0, %s165
        %p167 = scmp.lt.s32.totalorder %s17, 5
        %s168 = scalar_select %p167, %s17, 5
        %p169 = scmp.lt.s32.totalorder %s18, 0
        %s170 = scalar_select %p169, %s18, 0
        %s171 = sadd.s32 %s170, %s168
        %s172 = smul.addr %s171, 2
        %s173 = scalar_lea.vmem %s1, %s172
        %v174 = vld [vmem:[%s173] sm:$0x3]
        %v175 = vmul.f32 %v174, 7.0
        %v176 = vfloor.f32 %v175
        %v177 = vmax.f32 %v176, 0.0
        %v178 = vmin.f32 %v177, 6.0
        %v179 = vmul.f32 %v178, 0.14285715
        %v180 = vsub.f32 %v174, %v179
        %v181 = vld [vmem:[%s166] sm:$0x1]
        %vm182 = vcmp.ge.f32.partialorder %v178, 1.0
        %vm183 = vcmp.ge.f32.partialorder %v178, 2.0
        %vm184 = vcmp.ge.f32.partialorder %v178, 3.0
        %vm185 = vcmp.ge.f32.partialorder %v178, 4.0
        %vm186 = vcmp.ge.f32.partialorder %v178, 5.0
        %vm187 = vcmp.ge.f32.partialorder %v178, 6.0
        %s188 = vtos %v181
        %v189 = vstv %s188
        %190 = vrot.lane.b32.xlu0 %v181, 127
        %v191 = vpop.permute.xlu0 %190
        %s192 = vtos %v191
        %v193 = vstv %s192
        %v194 = vsel %vm182, %v193, 0.0
        %v195 = vadd.f32 %v189, %v194
        %196 = vrot.lane.b32.xlu0 %v181, 126
        %v197 = vpop.permute.xlu0 %196
        %s198 = vtos %v197
        %v199 = vstv %s198
        %v200 = vsel %vm183, %v199, 0.0
        %v201 = vadd.f32 %v195, %v200
        %202 = vrot.lane.b32.xlu0 %v181, 125
        %v203 = vpop.permute.xlu0 %202
        %s204 = vtos %v203
        %v205 = vstv %s204
        %v206 = vsel %vm184, %v205, 0.0
        %v207 = vadd.f32 %v201, %v206
        %208 = vrot.lane.b32.xlu0 %v181, 124
        %v209 = vpop.permute.xlu0 %208
        %s210 = vtos %v209
        %v211 = vstv %s210
        %v212 = vsel %vm185, %v211, 0.0
        %v213 = vadd.f32 %v207, %v212
        %214 = vrot.lane.b32.xlu0 %v181, 123
        %v215 = vpop.permute.xlu0 %214
        %s216 = vtos %v215
        %v217 = vstv %s216
        %v218 = vsel %vm186, %v217, 0.0
        %v219 = vadd.f32 %v213, %v218
        %220 = vrot.lane.b32.xlu0 %v181, 122
        %v221 = vpop.permute.xlu0 %220
        %s222 = vtos %v221
        %v223 = vstv %s222
        %v224 = vsel %vm187, %v223, 0.0
        %v225 = vadd.f32 %v219, %v224
        %226 = vrot.lane.b32.xlu0 %v181, 121
        %v227 = vpop.permute.xlu0 %226
        %s228 = vtos %v227
        %v229 = vstv %s228
        %230 = vrot.lane.b32.xlu0 %v181, 120
        %v231 = vpop.permute.xlu0 %230
        %s232 = vtos %v231
        %v233 = vstv %s232
        %v234 = vsel %vm182, %v233, 0.0
        %v235 = vadd.f32 %v229, %v234
        %236 = vrot.lane.b32.xlu0 %v181, 119
        %v237 = vpop.permute.xlu0 %236
        %s238 = vtos %v237
        %v239 = vstv %s238
        %v240 = vsel %vm183, %v239, 0.0
        %v241 = vadd.f32 %v235, %v240
        %242 = vrot.lane.b32.xlu0 %v181, 118
        %v243 = vpop.permute.xlu0 %242
        %s244 = vtos %v243
        %v245 = vstv %s244
        %v246 = vsel %vm184, %v245, 0.0
        %v247 = vadd.f32 %v241, %v246
        %248 = vrot.lane.b32.xlu0 %v181, 117
        %v249 = vpop.permute.xlu0 %248
        %s250 = vtos %v249
        %v251 = vstv %s250
        %v252 = vsel %vm185, %v251, 0.0
        %v253 = vadd.f32 %v247, %v252
        %254 = vrot.lane.b32.xlu0 %v181, 116
        %v255 = vpop.permute.xlu0 %254
        %s256 = vtos %v255
        %v257 = vstv %s256
        %v258 = vsel %vm186, %v257, 0.0
        %v259 = vadd.f32 %v253, %v258
        %260 = vrot.lane.b32.xlu0 %v181, 115
        %v261 = vpop.permute.xlu0 %260
        %s262 = vtos %v261
        %v263 = vstv %s262
        %v264 = vsel %vm187, %v263, 0.0
        %v265 = vadd.f32 %v259, %v264
        %266 = vrot.lane.b32.xlu0 %v181, 114
        %v267 = vpop.permute.xlu0 %266
        %s268 = vtos %v267
        %v269 = vstv %s268
        %270 = vrot.lane.b32.xlu0 %v181, 113
        %v271 = vpop.permute.xlu0 %270
        %s272 = vtos %v271
        %v273 = vstv %s272
        %v274 = vsel %vm182, %v273, 0.0
        %v275 = vadd.f32 %v269, %v274
        %276 = vrot.lane.b32.xlu0 %v181, 112
        %v277 = vpop.permute.xlu0 %276
        %s278 = vtos %v277
        %v279 = vstv %s278
        %v280 = vsel %vm183, %v279, 0.0
        %v281 = vadd.f32 %v275, %v280
        %282 = vrot.lane.b32.xlu0 %v181, 111
        %v283 = vpop.permute.xlu0 %282
        %s284 = vtos %v283
        %v285 = vstv %s284
        %v286 = vsel %vm184, %v285, 0.0
        %v287 = vadd.f32 %v281, %v286
        %288 = vrot.lane.b32.xlu0 %v181, 110
        %v289 = vpop.permute.xlu0 %288
        %s290 = vtos %v289
        %v291 = vstv %s290
        %v292 = vsel %vm185, %v291, 0.0
        %v293 = vadd.f32 %v287, %v292
        %294 = vrot.lane.b32.xlu0 %v181, 109
        %v295 = vpop.permute.xlu0 %294
        %s296 = vtos %v295
        %v297 = vstv %s296
        %v298 = vsel %vm186, %v297, 0.0
        %v299 = vadd.f32 %v293, %v298
        %300 = vrot.lane.b32.xlu0 %v181, 108
        %v301 = vpop.permute.xlu0 %300
        %s302 = vtos %v301
        %v303 = vstv %s302
        %v304 = vsel %vm187, %v303, 0.0
        %v305 = vadd.f32 %v299, %v304
        %306 = vrot.lane.b32.xlu0 %v181, 107
        %v307 = vpop.permute.xlu0 %306
        %s308 = vtos %v307
        %v309 = vstv %s308
        %310 = vrot.lane.b32.xlu0 %v181, 106
        %v311 = vpop.permute.xlu0 %310
        %s312 = vtos %v311
        %v313 = vstv %s312
        %v314 = vsel %vm182, %v313, 0.0
        %v315 = vadd.f32 %v309, %v314
        %316 = vrot.lane.b32.xlu0 %v181, 105
        %v317 = vpop.permute.xlu0 %316
        %s318 = vtos %v317
        %v319 = vstv %s318
        %v320 = vsel %vm183, %v319, 0.0
        %v321 = vadd.f32 %v315, %v320
        %322 = vrot.lane.b32.xlu0 %v181, 104
        %v323 = vpop.permute.xlu0 %322
        %s324 = vtos %v323
        %v325 = vstv %s324
        %v326 = vsel %vm184, %v325, 0.0
        %v327 = vadd.f32 %v321, %v326
        %328 = vrot.lane.b32.xlu0 %v181, 103
        %v329 = vpop.permute.xlu0 %328
        %s330 = vtos %v329
        %v331 = vstv %s330
        %v332 = vsel %vm185, %v331, 0.0
        %v333 = vadd.f32 %v327, %v332
        %334 = vrot.lane.b32.xlu0 %v181, 102
        %v335 = vpop.permute.xlu0 %334
        %s336 = vtos %v335
        %v337 = vstv %s336
        %v338 = vsel %vm186, %v337, 0.0
        %v339 = vadd.f32 %v333, %v338
        %340 = vrot.lane.b32.xlu0 %v181, 101
        %v341 = vpop.permute.xlu0 %340
        %s342 = vtos %v341
        %v343 = vstv %s342
        %v344 = vsel %vm187, %v343, 0.0
        %v345 = vadd.f32 %v339, %v344
        %v346 = vmul.f32 %v225, %v180
        %v347 = vadd.f32 %v346, %v265
        %v348 = vmul.f32 %v347, %v180
        %v349 = vadd.f32 %v348, %v305
        %v350 = vmul.f32 %v349, %v180
        %v351 = vadd.f32 %v350, %v345
        %v352 = vmax.f32 %v351, 0.0
        %v353 = vmin.f32 %v352, 1.0
        %354 = vst [vmem:[%s163] sm:$0x3] %v353
        %355 = vrot.lane.b32.xlu0 %v181, 100
        %v356 = vpop.permute.xlu0 %355
        %s357 = vtos %v356
        %v358 = vstv %s357
        %359 = vrot.lane.b32.xlu0 %v181, 99
        %v360 = vpop.permute.xlu0 %359
        %s361 = vtos %v360
        %v362 = vstv %s361
        %v363 = vsel %vm182, %v362, 0.0
        %v364 = vadd.f32 %v358, %v363
        %365 = vrot.lane.b32.xlu0 %v181, 98
        %v366 = vpop.permute.xlu0 %365
        %s367 = vtos %v366
        %v368 = vstv %s367
        %v369 = vsel %vm183, %v368, 0.0
        %v370 = vadd.f32 %v364, %v369
        %371 = vrot.lane.b32.xlu0 %v181, 97
        %v372 = vpop.permute.xlu0 %371
        %s373 = vtos %v372
        %v374 = vstv %s373
        %v375 = vsel %vm184, %v374, 0.0
        %v376 = vadd.f32 %v370, %v375
        %377 = vrot.lane.b32.xlu0 %v181, 96
        %v378 = vpop.permute.xlu0 %377
        %s379 = vtos %v378
        %v380 = vstv %s379
        %v381 = vsel %vm185, %v380, 0.0
        %v382 = vadd.f32 %v376, %v381
        %383 = vrot.lane.b32.xlu0 %v181, 95
        %v384 = vpop.permute.xlu0 %383
        %s385 = vtos %v384
        %v386 = vstv %s385
        %v387 = vsel %vm186, %v386, 0.0
        %v388 = vadd.f32 %v382, %v387
        %389 = vrot.lane.b32.xlu0 %v181, 94
        %v390 = vpop.permute.xlu0 %389
        %s391 = vtos %v390
        %v392 = vstv %s391
        %v393 = vsel %vm187, %v392, 0.0
        %v394 = vadd.f32 %v388, %v393
        %395 = vrot.lane.b32.xlu0 %v181, 93
        %v396 = vpop.permute.xlu0 %395
        %s397 = vtos %v396
        %v398 = vstv %s397
        %399 = vrot.lane.b32.xlu0 %v181, 92
        %v400 = vpop.permute.xlu0 %399
        %s401 = vtos %v400
        %v402 = vstv %s401
        %v403 = vsel %vm182, %v402, 0.0
        %v404 = vadd.f32 %v398, %v403
        %405 = vrot.lane.b32.xlu0 %v181, 91
        %v406 = vpop.permute.xlu0 %405
        %s407 = vtos %v406
        %v408 = vstv %s407
        %v409 = vsel %vm183, %v408, 0.0
        %v410 = vadd.f32 %v404, %v409
        %411 = vrot.lane.b32.xlu0 %v181, 90
        %v412 = vpop.permute.xlu0 %411
        %s413 = vtos %v412
        %v414 = vstv %s413
        %v415 = vsel %vm184, %v414, 0.0
        %v416 = vadd.f32 %v410, %v415
        %417 = vrot.lane.b32.xlu0 %v181, 89
        %v418 = vpop.permute.xlu0 %417
        %s419 = vtos %v418
        %v420 = vstv %s419
        %v421 = vsel %vm185, %v420, 0.0
        %v422 = vadd.f32 %v416, %v421
        %423 = vrot.lane.b32.xlu0 %v181, 88
        %v424 = vpop.permute.xlu0 %423
        %s425 = vtos %v424
        %v426 = vstv %s425
        %v427 = vsel %vm186, %v426, 0.0
        %v428 = vadd.f32 %v422, %v427
        %429 = vrot.lane.b32.xlu0 %v181, 87
        %v430 = vpop.permute.xlu0 %429
        %s431 = vtos %v430
        %v432 = vstv %s431
        %v433 = vsel %vm187, %v432, 0.0
        %v434 = vadd.f32 %v428, %v433
        %435 = vrot.lane.b32.xlu0 %v181, 86
        %v436 = vpop.permute.xlu0 %435
        %s437 = vtos %v436
        %v438 = vstv %s437
        %439 = vrot.lane.b32.xlu0 %v181, 85
        %v440 = vpop.permute.xlu0 %439
        %s441 = vtos %v440
        %v442 = vstv %s441
        %v443 = vsel %vm182, %v442, 0.0
        %v444 = vadd.f32 %v438, %v443
        %445 = vrot.lane.b32.xlu0 %v181, 84
        %v446 = vpop.permute.xlu0 %445
        %s447 = vtos %v446
        %v448 = vstv %s447
        %v449 = vsel %vm183, %v448, 0.0
        %v450 = vadd.f32 %v444, %v449
        %451 = vrot.lane.b32.xlu0 %v181, 83
        %v452 = vpop.permute.xlu0 %451
        %s453 = vtos %v452
        %v454 = vstv %s453
        %v455 = vsel %vm184, %v454, 0.0
        %v456 = vadd.f32 %v450, %v455
        %457 = vrot.lane.b32.xlu0 %v181, 82
        %v458 = vpop.permute.xlu0 %457
        %s459 = vtos %v458
        %v460 = vstv %s459
        %v461 = vsel %vm185, %v460, 0.0
        %v462 = vadd.f32 %v456, %v461
        %463 = vrot.lane.b32.xlu0 %v181, 81
        %v464 = vpop.permute.xlu0 %463
        %s465 = vtos %v464
        %v466 = vstv %s465
        %v467 = vsel %vm186, %v466, 0.0
        %v468 = vadd.f32 %v462, %v467
        %469 = vrot.lane.b32.xlu0 %v181, 80
        %v470 = vpop.permute.xlu0 %469
        %s471 = vtos %v470
        %v472 = vstv %s471
        %v473 = vsel %vm187, %v472, 0.0
        %v474 = vadd.f32 %v468, %v473
        %475 = vrot.lane.b32.xlu0 %v181, 79
        %v476 = vpop.permute.xlu0 %475
        %s477 = vtos %v476
        %v478 = vstv %s477
        %479 = vrot.lane.b32.xlu0 %v181, 78
        %v480 = vpop.permute.xlu0 %479
        %s481 = vtos %v480
        %v482 = vstv %s481
        %v483 = vsel %vm182, %v482, 0.0
        %v484 = vadd.f32 %v478, %v483
        %485 = vrot.lane.b32.xlu0 %v181, 77
        %v486 = vpop.permute.xlu0 %485
        %s487 = vtos %v486
        %v488 = vstv %s487
        %v489 = vsel %vm183, %v488, 0.0
        %v490 = vadd.f32 %v484, %v489
        %491 = vrot.lane.b32.xlu0 %v181, 76
        %v492 = vpop.permute.xlu0 %491
        %s493 = vtos %v492
        %v494 = vstv %s493
        %v495 = vsel %vm184, %v494, 0.0
        %v496 = vadd.f32 %v490, %v495
        %497 = vrot.lane.b32.xlu0 %v181, 75
        %v498 = vpop.permute.xlu0 %497
        %s499 = vtos %v498
        %v500 = vstv %s499
        %v501 = vsel %vm185, %v500, 0.0
        %v502 = vadd.f32 %v496, %v501
        %503 = vrot.lane.b32.xlu0 %v181, 74
        %v504 = vpop.permute.xlu0 %503
        %s505 = vtos %v504
        %v506 = vstv %s505
        %v507 = vsel %vm186, %v506, 0.0
        %v508 = vadd.f32 %v502, %v507
        %509 = vrot.lane.b32.xlu0 %v181, 73
        %v510 = vpop.permute.xlu0 %509
        %s511 = vtos %v510
        %v512 = vstv %s511
        %v513 = vsel %vm187, %v512, 0.0
        %v514 = vadd.f32 %v508, %v513
        %v515 = vmul.f32 %v394, %v180
        %v516 = vadd.f32 %v515, %v434
        %v517 = vmul.f32 %v516, %v180
        %v518 = vadd.f32 %v517, %v474
        %v519 = vmul.f32 %v518, %v180
        %v520 = vadd.f32 %v519, %v514
        %v521 = vmax.f32 %v520, 0.0
        %v522 = vmin.f32 %v521, 1.0
        %s523 = scalar_lea.vmem %s163, 2 [#allocation2]
        %524 = vst [vmem:[%s523] sm:$0x3] %v522
        %s525 = sand.u32 %s89, 1
        %s526 = sand.u32 %s89, 1
        %s527 = smul.addr %s526, 4
        %s528 = scalar_lea.vmem [#allocation2], %s527
        // Predicated region
        $region29: #{neural_spline_forward.14} parent=27 // pred_check
          %p529 = pneg %p99
        $region30: #{neural_spline_forward.14} parent=27 // pred_check_branch
          %531 = sbr.rel (%p529) target = $region32
        $region31: #{neural_spline_forward.14} parent=27 // pred_region
          %s532 = sadd.s32 %s18, %s17
          %s533 = smul.addr %s532, 2
          %s534 = scalar_lea.vmem %s2, %s533
          // Predicated region
          $region33: #{neural_spline_forward.14} parent=31 // pred_check
            _
          $region34: #{neural_spline_forward.14} parent=31 // pred_check_branch
            %536 = sbr.rel (0) target = $region36
          $region35: #{neural_spline_forward.14} parent=31 // pred_region
            // Predicated region
            $region37: #{neural_spline_forward.14} parent=35 // pred_check
              _
            $region38: #{neural_spline_forward.14} parent=35 // pred_check_branch
              %538 = sbr.rel target = $region40
            $region39: #{neural_spline_forward.14} parent=35 // pred_region
              // Predicated region
              $region52: #{neural_spline_forward.14} parent=39 // pred_check
                _
              $region53: #{neural_spline_forward.14} parent=39 // pred_check_branch
                %555 = sbr.rel (0) target = $region55
              $region54: #{neural_spline_forward.14} parent=39 // pred_region
                loop: start=0, step=1, limit=1
                $region56: #{neural_spline_forward.14} parent=54 // loop_pre_header
                  _
                $region57: #{neural_spline_forward.14} parent=54 // loop_header
                  %s558 = sphi 0, %s562
                  %p559 = scmp.ge.s32.totalorder %s558, 1
                  %s563 = sphi %s528, %s528
                  %s564 = sphi %s534, %s534
                $region58: #{neural_spline_forward.14} parent=54 // loop_header_branch
                  %561 = sbr.rel (%p559) target = $region62
                $region59: #{neural_spline_forward.14} parent=54 // loop_body
                  %v565 = vld [vmem:[%s563] sm:$0x3]
                  %566 = vst [vmem:[%s564] sm:$0x3] %v565
                  %v567 = vld [vmem:[%s563 + $0x2] sm:$0x3]
                  %568 = vst [vmem:[%s564 + $0xc] sm:$0x3] %v567
                $region60: #{neural_spline_forward.14} parent=54 // loop_footer
                  %s562 = sadd.s32 1, %s558
                $region61: #{neural_spline_forward.14} parent=54 // loop_footer_branch
                  %557 = sbr.rel target = $region57
                $region62: #{neural_spline_forward.14} parent=54 // loop_exit
                  _
              $region55: #{neural_spline_forward.14} parent=39 // pred_fallthru
                _
            $region40: #{neural_spline_forward.14} parent=35 // pred_fallthru
              _
            // Predicated region
            $region41: #{neural_spline_forward.14} parent=35 // pred_check
              _
            $region42: #{neural_spline_forward.14} parent=35 // pred_check_branch
              %540 = sbr.rel (0) target = $region44
            $region43: #{neural_spline_forward.14} parent=35 // pred_region
              loop: start=0, step=1, limit=1
              $region45: #{neural_spline_forward.14} parent=43 // loop_pre_header
                _
              $region46: #{neural_spline_forward.14} parent=43 // loop_header
                %s543 = sphi 0, %s547
                %p544 = scmp.ge.s32.totalorder %s543, 1
                %s548 = sphi %s528, %s528
                %s549 = sphi %s534, %s534
              $region47: #{neural_spline_forward.14} parent=43 // loop_header_branch
                %546 = sbr.rel (%p544) target = $region51
              $region48: #{neural_spline_forward.14} parent=43 // loop_body
                %v550 = vld [vmem:[%s548] sm:$0x3]
                %551 = vst [vmem:[%s549] sm:$0x3] %v550
                %v552 = vld [vmem:[%s548 + $0x2] sm:$0x3]
                %553 = vst [vmem:[%s549 + $0xc] sm:$0x3] %v552
              $region49: #{neural_spline_forward.14} parent=43 // loop_footer
                %s547 = sadd.s32 1, %s543
              $region50: #{neural_spline_forward.14} parent=43 // loop_footer_branch
                %542 = sbr.rel target = $region46
              $region51: #{neural_spline_forward.14} parent=43 // loop_exit
                _
            $region44: #{neural_spline_forward.14} parent=35 // pred_fallthru
              _
          $region36: #{neural_spline_forward.14} parent=31 // pred_fallthru
            _
          %569 = vnop
        $region32: #{neural_spline_forward.14} parent=27 // pred_fallthru
          _
      $region28: #{neural_spline_forward.14} parent=5 // pred_fallthru
        _
      %p570 = scmp.le.s32.totalorder 2, %s8
      // Predicated region
      $region63: #{neural_spline_forward.14} parent=5 // pred_check
        %p571 = pneg %p570
      $region64: #{neural_spline_forward.14} parent=5 // pred_check_branch
        %573 = sbr.rel (%p571) target = $region66
      $region65: #{neural_spline_forward.14} parent=5 // pred_region
        %s574 = ssub.s32 %s8, 2
        // Predicated region
        $region67: #{neural_spline_forward.14} parent=65 // pred_check
          %p575 = pneg %p105
        $region68: #{neural_spline_forward.14} parent=65 // pred_check_branch
          %577 = sbr.rel (%p575) target = $region70
        $region69: #{neural_spline_forward.14} parent=65 // pred_region
          %s578 = sand.u32 %s90, 1
          %s579 = sand.u32 %s90, 1
          %s580 = smul.addr %s579, 4
          %s581 = scalar_lea.vmem [#allocation2], %s580
        $region70: #{neural_spline_forward.14} parent=65 // pred_fallthru
          _
      $region66: #{neural_spline_forward.14} parent=5 // pred_fallthru
        _
    $region6: #{neural_spline_forward.14} parent=1 // loop_footer
      %s12 = sadd.s32 1, %s8
    $region7: #{neural_spline_forward.14} parent=1 // loop_footer_branch
      %7 = sbr.rel target = $region3
    $region8: #{neural_spline_forward.14} parent=1 // loop_exit
      _

// kernel: squeeze.6
$region0: #{squeeze.6}
  %s0 = inlined_call_operand.vmem [shape: f32[6,255], index: 0, kind: input, shape index: {}]
  %s1 = inlined_call_operand.vmem [shape: f32[2,3,255], index: 1, kind: output, shape index: {}]
  $region1: #{squeeze.6} parent=0
    #allocation0 [shape = 'u8[16384]{0}', space=vmem, size = 0x4000, scoped, tag = 'scoped mem for output reshape']
    %s2 = scalar_lea.vmem %s0, 8
    %v3 = vld [vmem:[%s2] sm:$0x3f]
    %vm4 = vcmask 1039360
    %s5 = scalar_lea.vmem [#allocation0], 8
    %6 = vst.msk [vmem:[%s5] sm:$0x7] %vm4, %v3
    %s7 = scalar_lea.vmem [#allocation0], 21
    %8 = vst.msk [vmem:[%s7] sm:$0x38] %vm4, %v3
    %v9 = vld [vmem:[%s0] sm:$0x3f]
    %10 = vst [vmem:[#allocation0] sm:$0x7] %v9
    %s11 = scalar_lea.vmem [#allocation0], 13
    %12 = vst [vmem:[%s11] sm:$0x38] %v9
    %s14 = sshllo.u32 0, 4
    %v16 = vld [vmem:[#allocation0] sm:%s14]
    %s17 = sshllo.u32 0, 4
    %18 = vst [vmem:[%s1] sm:%s17] %v16
    %s19 = scalar_lea.vmem [#allocation0], 8
    %v20 = vld [vmem:[%s19] sm:%s14]
    %s21 = sshllo.u32 0, 4
    %s22 = scalar_lea.vmem %s1, 4
    %23 = vst [vmem:[%s22] sm:%s21] %v20
    %s24 = scalar_lea.vmem [#allocation0], 16
    %v25 = vld [vmem:[%s24] sm:%s14]
    %s26 = sshllo.u32 0, 4
    %s27 = smul.addr 4, 2
    %s28 = scalar_lea.vmem %s1, %s27
    %29 = vst [vmem:[%s28] sm:%s26] %v25
    %s30 = scalar_lea.vmem [#allocation0], 24
    %v31 = vld [vmem:[%s30] sm:%s14]
    %s32 = sshllo.u32 0, 4
    %s33 = smul.addr 4, 3
    %s34 = scalar_lea.vmem %s1, %s33
    %35 = vst [vmem:[%s34] sm:%s32] %v31

// kernel: neural_spline_forward.15
$region0: #{neural_spline_forward.15}
  #allocation0 [shape = 'u32[]', space=smem, size = 0x4, offset = 0x4, fixed_abs, tag = 'smem constant byte address 0x4 - core index']
  #allocation1 [shape = 'u32[144,128]{1,0:T(1,128)}', space=vmem, size = 0x12000, scoped, tag = 'internal scratch']
  %s0 = inlined_call_operand.vmem [shape: f32[6,1,56], index: 0, kind: input, shape index: {}]
  %s1 = inlined_call_operand.vmem [shape: f32[6,2,128], index: 1, kind: input, shape index: {}]
  %s2 = inlined_call_operand.vmem [shape: f32[2,6,2,128], index: 2, kind: output, shape index: {}]
  %s3 = sld [smem:[#allocation0]]
  $region71: #{neural_spline_forward.15} parent=0
    _
  %s5 = ssub.s32 1, %s3
  %s6 = scalar_select 0, %s5, %s3
  $region1: #{neural_spline_forward.15} parent=0
    #allocation2 [shape = 'u8[4096]{0}', space=vmem, size = 0x1000, scoped, tag = 'output window, operand 0']
    loop: start=0, step=1, limit=8
    $region2: #{neural_spline_forward.15} parent=1 // loop_pre_header
      _
    $region3: #{neural_spline_forward.15} parent=1 // loop_header
      %s8 = sphi 0, %s12
      %p9 = scmp.ge.s32.totalorder %s8, 8
      %s15 = sphi 0, %s27
      %s16 = sphi 0, %s23
      %s17 = sphi 0, %s15
      %s18 = sphi 0, %s16
      %s19 = sphi 0, %s17
      %s20 = sphi 0, %s18
      %s30 = sphi 0, %s32
      %s33 = sphi 0, %s30
      %s34 = sphi 0, %s33
      %s50 = sphi 0, %s34
      %s58 = sphi 0, %s60
      %s61 = sphi 0, %s58
      %s62 = sphi 0, %s61
      %s78 = sphi 0, %s62
      %s86 = sphi 0, %s88
      %s89 = sphi 0, %s86
      %s90 = sphi 0, %s89
      %s106 = sphi 0, %s90
    $region4: #{neural_spline_forward.15} parent=1 // loop_header_branch
      %11 = sbr.rel (%p9) target = $region8
    $region5: #{neural_spline_forward.15} parent=1 // loop_body
      %s13 = ssub.s32 %s8, 1
      %s14 = ssub.s32 %s8, 2
      %s21 = sadd.s32 1, %s16
      %p22 = scmp.ge.s32.totalorder %s21, 1
      %s23 = scalar_select %p22, 0, %s21
      %s24 = sadd.s32 1, %s15
      %s25 = scalar_select %p22, %s24, %s15
      %p26 = scmp.ge.s32.totalorder %s25, 6
      %s27 = scalar_select %p26, 0, %s25
      %s28 = ssub.s32 %s15, %s27
      %p29 = scmp.eq.s32.totalorder %s28, 0
      %s31 = sadd.s32 %s30, 1
      %s32 = scalar_select %p29, %s30, %s31
      %p35 = pneg %p29
      %p36 = scmp.eq.s32.totalorder %s8, 5
      %p37 = por %p35, %p36
      %p38 = scmp.ne.s32.totalorder %s30, %s33
      %p39 = scmp.eq.s32.totalorder %s8, 0
      %p40 = por %p38, %p39
      %p41 = scmp.ne.s32.totalorder %s30, %s33
      %p42 = scmp.eq.s32.totalorder %s13, 5
      %p43 = por %p41, %p42
      %p44 = scmp.ne.s32.totalorder %s33, %s34
      %p45 = scmp.eq.s32.totalorder %s13, 0
      %p46 = por %p44, %p45
      %p47 = scmp.ne.s32.totalorder %s33, %s34
      %p48 = scmp.eq.s32.totalorder %s14, 5
      %p49 = por %p47, %p48
      %p51 = scmp.ne.s32.totalorder %s34, %s50
      %p52 = scmp.eq.s32.totalorder %s14, 0
      %p53 = por %p51, %p52
      %s54 = ssub.s32 %s15, %s27
      %s55 = ssub.s32 %s16, %s23
      %s56 = sor.u32 %s54, %s55
      %p57 = scmp.eq.s32.totalorder %s56, 0
      %s59 = sadd.s32 %s58, 1
      %s60 = scalar_select %p57, %s58, %s59
      %p63 = pneg %p57
      %p64 = scmp.eq.s32.totalorder %s8, 5
      %p65 = por %p63, %p64
      %p66 = scmp.ne.s32.totalorder %s58, %s61
      %p67 = scmp.eq.s32.totalorder %s8, 0
      %p68 = por %p66, %p67
      %p69 = scmp.ne.s32.totalorder %s58, %s61
      %p70 = scmp.eq.s32.totalorder %s13, 5
      %p71 = por %p69, %p70
      %p72 = scmp.ne.s32.totalorder %s61, %s62
      %p73 = scmp.eq.s32.totalorder %s13, 0
      %p74 = por %p72, %p73
      %p75 = scmp.ne.s32.totalorder %s61, %s62
      %p76 = scmp.eq.s32.totalorder %s14, 5
      %p77 = por %p75, %p76
      %p79 = scmp.ne.s32.totalorder %s62, %s78
      %p80 = scmp.eq.s32.totalorder %s14, 0
      %p81 = por %p79, %p80
      %s82 = ssub.s32 %s15, %s27
      %s83 = ssub.s32 %s16, %s23
      %s84 = sor.u32 %s82, %s83
      %p85 = scmp.eq.s32.totalorder %s84, 0
      %s87 = sadd.s32 %s86, 1
      %s88 = scalar_select %p85, %s86, %s87
      %p91 = pneg %p85
      %p92 = scmp.eq.s32.totalorder %s8, 5
      %p93 = por %p91, %p92
      %p94 = scmp.ne.s32.totalorder %s86, %s89
      %p95 = scmp.eq.s32.totalorder %s8, 0
      %p96 = por %p94, %p95
      %p97 = scmp.ne.s32.totalorder %s86, %s89
      %p98 = scmp.eq.s32.totalorder %s13, 5
      %p99 = por %p97, %p98
      %p100 = scmp.ne.s32.totalorder %s89, %s90
      %p101 = scmp.eq.s32.totalorder %s13, 0
      %p102 = por %p100, %p101
      %p103 = scmp.ne.s32.totalorder %s89, %s90
      %p104 = scmp.eq.s32.totalorder %s14, 5
      %p105 = por %p103, %p104
      %p107 = scmp.ne.s32.totalorder %s90, %s106
      %p108 = scmp.eq.s32.totalorder %s14, 0
      %p109 = por %p107, %p108
      %p110 = scmp.le.s32.totalorder 1, %s8
      %p111 = scmp.lt.s32.totalorder %s8, 7
      %p112 = pnand %p110, %p111
      %p113 = pneg %p112
      // Predicated region
      $region9: #{neural_spline_forward.15} parent=5 // pred_check
        _
      $region10: #{neural_spline_forward.15} parent=5 // pred_check_branch
        %115 = sbr.rel (%p112) target = $region12
      $region11: #{neural_spline_forward.15} parent=5 // pred_region
        %s116 = ssub.s32 %s8, 1
      $region12: #{neural_spline_forward.15} parent=5 // pred_fallthru
        _
      %p117 = scmp.lt.s32.totalorder %s8, 6
      // Predicated region
      $region13: #{neural_spline_forward.15} parent=5 // pred_check
        %p118 = pneg %p117
      $region14: #{neural_spline_forward.15} parent=5 // pred_check_branch
        %120 = sbr.rel (%p118) target = $region16
      $region15: #{neural_spline_forward.15} parent=5 // pred_region
        // Predicated region
        $region17: #{neural_spline_forward.15} parent=15 // pred_check
          %p121 = pneg %p40
        $region18: #{neural_spline_forward.15} parent=15 // pred_check_branch
          %123 = sbr.rel (%p121) target = $region20
        $region19: #{neural_spline_forward.15} parent=15 // pred_region
          %p124 = scmp.lt.s32.totalorder %s15, 5
          %s125 = scalar_select %p124, %s15, 5
          %s126 = scalar_lea.vmem %s0, %s125
        $region20: #{neural_spline_forward.15} parent=15 // pred_fallthru
          _
        // Predicated region
        $region21: #{neural_spline_forward.15} parent=15 // pred_check
          %p127 = pneg %p68
        $region22: #{neural_spline_forward.15} parent=15 // pred_check_branch
          %129 = sbr.rel (%p127) target = $region24
        $region23: #{neural_spline_forward.15} parent=15 // pred_region
          %p130 = scmp.lt.s32.totalorder %s15, 5
          %s131 = scalar_select %p130, %s15, 5
          %p132 = scmp.lt.s32.totalorder %s16, 0
          %s133 = scalar_select %p132, %s16, 0
          %s134 = sadd.s32 %s133, %s131
          %s135 = smul.addr %s134, 2
          %s136 = scalar_lea.vmem %s1, %s135
        $region24: #{neural_spline_forward.15} parent=15 // pred_fallthru
          _
      $region16: #{neural_spline_forward.15} parent=5 // pred_fallthru
        _
      %p137 = scmp.le.s32.totalorder 1, %s8
      %p138 = scmp.lt.s32.totalorder %s8, 7
      %p139 = pnand %p137, %p138
      %p140 = pneg %p139
      // Predicated region
      $region25: #{neural_spline_forward.15} parent=5 // pred_check
        _
      $region26: #{neural_spline_forward.15} parent=5 // pred_check_branch
        %142 = sbr.rel (%p139) target = $region28
      $region27: #{neural_spline_forward.15} parent=5 // pred_region
        %s143 = ssub.s32 %s8, 1
        %p144 = scmp.lt.s32.totalorder %s17, 5
        %s145 = scalar_select %p144, %s17, 5
        %s146 = scalar_lea.vmem %s0, %s145
        %p147 = pneg %p46
        %p148 = pneg %p43
        %p149 = scmp.lt.s32.totalorder %s17, 5
        %s150 = scalar_select %p149, %s17, 5
        %p151 = scmp.lt.s32.totalorder %s18, 0
        %s152 = scalar_select %p151, %s18, 0
        %s153 = sadd.s32 %s152, %s150
        %s154 = smul.addr %s153, 2
        %s155 = scalar_lea.vmem %s1, %s154
        %p156 = pneg %p74
        %p157 = pneg %p71
        %p158 = pneg %p102
        %p159 = pneg %p99
        %s160 = sand.u32 %s89, 1
        %s161 = sand.u32 %s89, 1
        %s162 = smul.addr %s161, 4
        %s163 = scalar_lea.vmem [#allocation2], %s162
        %p164 = scmp.lt.s32.totalorder %s17, 5
        %s165 = scalar_select %p164, %s17, 5
        %s166 = scalar_lea.vmem %s0, %s165
        %p167 = scmp.lt.s32.totalorder %s17, 5
        %s168 = scalar_select %p167, %s17, 5
        %p169 = scmp.lt.s32.totalorder %s18, 0
        %s170 = scalar_select %p169, %s18, 0
        %s171 = sadd.s32 %s170, %s168
        %s172 = smul.addr %s171, 2
        %s173 = scalar_lea.vmem %s1, %s172
        %v174 = vld [vmem:[%s173] sm:$0x3]
        %v175 = vmul.f32 %v174, 7.0
        %v176 = vfloor.f32 %v175
        %v177 = vmax.f32 %v176, 0.0
        %v178 = vmin.f32 %v177, 6.0
        %v179 = vmul.f32 %v178, 0.14285715
        %v180 = vsub.f32 %v174, %v179
        %v181 = vld [vmem:[%s166] sm:$0x1]
        %vm182 = vcmp.ge.f32.partialorder %v178, 1.0
        %vm183 = vcmp.ge.f32.partialorder %v178, 2.0
        %vm184 = vcmp.ge.f32.partialorder %v178, 3.0
        %vm185 = vcmp.ge.f32.partialorder %v178, 4.0
        %vm186 = vcmp.ge.f32.partialorder %v178, 5.0
        %vm187 = vcmp.ge.f32.partialorder %v178, 6.0
        %s188 = vtos %v181
        %v189 = vstv %s188
        %190 = vrot.lane.b32.xlu0 %v181, 127
        %v191 = vpop.permute.xlu0 %190
        %s192 = vtos %v191
        %v193 = vstv %s192
        %v194 = vsel %vm182, %v193, 0.0
        %v195 = vadd.f32 %v189, %v194
        %196 = vrot.lane.b32.xlu0 %v181, 126
        %v197 = vpop.permute.xlu0 %196
        %s198 = vtos %v197
        %v199 = vstv %s198
        %v200 = vsel %vm183, %v199, 0.0
        %v201 = vadd.f32 %v195, %v200
        %202 = vrot.lane.b32.xlu0 %v181, 125
        %v203 = vpop.permute.xlu0 %202
        %s204 = vtos %v203
        %v205 = vstv %s204
        %v206 = vsel %vm184, %v205, 0.0
        %v207 = vadd.f32 %v201, %v206
        %208 = vrot.lane.b32.xlu0 %v181, 124
        %v209 = vpop.permute.xlu0 %208
        %s210 = vtos %v209
        %v211 = vstv %s210
        %v212 = vsel %vm185, %v211, 0.0
        %v213 = vadd.f32 %v207, %v212
        %214 = vrot.lane.b32.xlu0 %v181, 123
        %v215 = vpop.permute.xlu0 %214
        %s216 = vtos %v215
        %v217 = vstv %s216
        %v218 = vsel %vm186, %v217, 0.0
        %v219 = vadd.f32 %v213, %v218
        %220 = vrot.lane.b32.xlu0 %v181, 122
        %v221 = vpop.permute.xlu0 %220
        %s222 = vtos %v221
        %v223 = vstv %s222
        %v224 = vsel %vm187, %v223, 0.0
        %v225 = vadd.f32 %v219, %v224
        %226 = vrot.lane.b32.xlu0 %v181, 121
        %v227 = vpop.permute.xlu0 %226
        %s228 = vtos %v227
        %v229 = vstv %s228
        %230 = vrot.lane.b32.xlu0 %v181, 120
        %v231 = vpop.permute.xlu0 %230
        %s232 = vtos %v231
        %v233 = vstv %s232
        %v234 = vsel %vm182, %v233, 0.0
        %v235 = vadd.f32 %v229, %v234
        %236 = vrot.lane.b32.xlu0 %v181, 119
        %v237 = vpop.permute.xlu0 %236
        %s238 = vtos %v237
        %v239 = vstv %s238
        %v240 = vsel %vm183, %v239, 0.0
        %v241 = vadd.f32 %v235, %v240
        %242 = vrot.lane.b32.xlu0 %v181, 118
        %v243 = vpop.permute.xlu0 %242
        %s244 = vtos %v243
        %v245 = vstv %s244
        %v246 = vsel %vm184, %v245, 0.0
        %v247 = vadd.f32 %v241, %v246
        %248 = vrot.lane.b32.xlu0 %v181, 117
        %v249 = vpop.permute.xlu0 %248
        %s250 = vtos %v249
        %v251 = vstv %s250
        %v252 = vsel %vm185, %v251, 0.0
        %v253 = vadd.f32 %v247, %v252
        %254 = vrot.lane.b32.xlu0 %v181, 116
        %v255 = vpop.permute.xlu0 %254
        %s256 = vtos %v255
        %v257 = vstv %s256
        %v258 = vsel %vm186, %v257, 0.0
        %v259 = vadd.f32 %v253, %v258
        %260 = vrot.lane.b32.xlu0 %v181, 115
        %v261 = vpop.permute.xlu0 %260
        %s262 = vtos %v261
        %v263 = vstv %s262
        %v264 = vsel %vm187, %v263, 0.0
        %v265 = vadd.f32 %v259, %v264
        %266 = vrot.lane.b32.xlu0 %v181, 114
        %v267 = vpop.permute.xlu0 %266
        %s268 = vtos %v267
        %v269 = vstv %s268
        %270 = vrot.lane.b32.xlu0 %v181, 113
        %v271 = vpop.permute.xlu0 %270
        %s272 = vtos %v271
        %v273 = vstv %s272
        %v274 = vsel %vm182, %v273, 0.0
        %v275 = vadd.f32 %v269, %v274
        %276 = vrot.lane.b32.xlu0 %v181, 112
        %v277 = vpop.permute.xlu0 %276
        %s278 = vtos %v277
        %v279 = vstv %s278
        %v280 = vsel %vm183, %v279, 0.0
        %v281 = vadd.f32 %v275, %v280
        %282 = vrot.lane.b32.xlu0 %v181, 111
        %v283 = vpop.permute.xlu0 %282
        %s284 = vtos %v283
        %v285 = vstv %s284
        %v286 = vsel %vm184, %v285, 0.0
        %v287 = vadd.f32 %v281, %v286
        %288 = vrot.lane.b32.xlu0 %v181, 110
        %v289 = vpop.permute.xlu0 %288
        %s290 = vtos %v289
        %v291 = vstv %s290
        %v292 = vsel %vm185, %v291, 0.0
        %v293 = vadd.f32 %v287, %v292
        %294 = vrot.lane.b32.xlu0 %v181, 109
        %v295 = vpop.permute.xlu0 %294
        %s296 = vtos %v295
        %v297 = vstv %s296
        %v298 = vsel %vm186, %v297, 0.0
        %v299 = vadd.f32 %v293, %v298
        %300 = vrot.lane.b32.xlu0 %v181, 108
        %v301 = vpop.permute.xlu0 %300
        %s302 = vtos %v301
        %v303 = vstv %s302
        %v304 = vsel %vm187, %v303, 0.0
        %v305 = vadd.f32 %v299, %v304
        %306 = vrot.lane.b32.xlu0 %v181, 107
        %v307 = vpop.permute.xlu0 %306
        %s308 = vtos %v307
        %v309 = vstv %s308
        %310 = vrot.lane.b32.xlu0 %v181, 106
        %v311 = vpop.permute.xlu0 %310
        %s312 = vtos %v311
        %v313 = vstv %s312
        %v314 = vsel %vm182, %v313, 0.0
        %v315 = vadd.f32 %v309, %v314
        %316 = vrot.lane.b32.xlu0 %v181, 105
        %v317 = vpop.permute.xlu0 %316
        %s318 = vtos %v317
        %v319 = vstv %s318
        %v320 = vsel %vm183, %v319, 0.0
        %v321 = vadd.f32 %v315, %v320
        %322 = vrot.lane.b32.xlu0 %v181, 104
        %v323 = vpop.permute.xlu0 %322
        %s324 = vtos %v323
        %v325 = vstv %s324
        %v326 = vsel %vm184, %v325, 0.0
        %v327 = vadd.f32 %v321, %v326
        %328 = vrot.lane.b32.xlu0 %v181, 103
        %v329 = vpop.permute.xlu0 %328
        %s330 = vtos %v329
        %v331 = vstv %s330
        %v332 = vsel %vm185, %v331, 0.0
        %v333 = vadd.f32 %v327, %v332
        %334 = vrot.lane.b32.xlu0 %v181, 102
        %v335 = vpop.permute.xlu0 %334
        %s336 = vtos %v335
        %v337 = vstv %s336
        %v338 = vsel %vm186, %v337, 0.0
        %v339 = vadd.f32 %v333, %v338
        %340 = vrot.lane.b32.xlu0 %v181, 101
        %v341 = vpop.permute.xlu0 %340
        %s342 = vtos %v341
        %v343 = vstv %s342
        %v344 = vsel %vm187, %v343, 0.0
        %v345 = vadd.f32 %v339, %v344
        %v346 = vmul.f32 %v225, %v180
        %v347 = vadd.f32 %v346, %v265
        %v348 = vmul.f32 %v347, %v180
        %v349 = vadd.f32 %v348, %v305
        %v350 = vmul.f32 %v349, %v180
        %v351 = vadd.f32 %v350, %v345
        %352 = vst [vmem:[%s163] sm:$0x3] %v351
        %353 = vrot.lane.b32.xlu0 %v181, 100
        %v354 = vpop.permute.xlu0 %353
        %s355 = vtos %v354
        %v356 = vstv %s355
        %357 = vrot.lane.b32.xlu0 %v181, 99
        %v358 = vpop.permute.xlu0 %357
        %s359 = vtos %v358
        %v360 = vstv %s359
        %v361 = vsel %vm182, %v360, 0.0
        %v362 = vadd.f32 %v356, %v361
        %363 = vrot.lane.b32.xlu0 %v181, 98
        %v364 = vpop.permute.xlu0 %363
        %s365 = vtos %v364
        %v366 = vstv %s365
        %v367 = vsel %vm183, %v366, 0.0
        %v368 = vadd.f32 %v362, %v367
        %369 = vrot.lane.b32.xlu0 %v181, 97
        %v370 = vpop.permute.xlu0 %369
        %s371 = vtos %v370
        %v372 = vstv %s371
        %v373 = vsel %vm184, %v372, 0.0
        %v374 = vadd.f32 %v368, %v373
        %375 = vrot.lane.b32.xlu0 %v181, 96
        %v376 = vpop.permute.xlu0 %375
        %s377 = vtos %v376
        %v378 = vstv %s377
        %v379 = vsel %vm185, %v378, 0.0
        %v380 = vadd.f32 %v374, %v379
        %381 = vrot.lane.b32.xlu0 %v181, 95
        %v382 = vpop.permute.xlu0 %381
        %s383 = vtos %v382
        %v384 = vstv %s383
        %v385 = vsel %vm186, %v384, 0.0
        %v386 = vadd.f32 %v380, %v385
        %387 = vrot.lane.b32.xlu0 %v181, 94
        %v388 = vpop.permute.xlu0 %387
        %s389 = vtos %v388
        %v390 = vstv %s389
        %v391 = vsel %vm187, %v390, 0.0
        %v392 = vadd.f32 %v386, %v391
        %393 = vrot.lane.b32.xlu0 %v181, 93
        %v394 = vpop.permute.xlu0 %393
        %s395 = vtos %v394
        %v396 = vstv %s395
        %397 = vrot.lane.b32.xlu0 %v181, 92
        %v398 = vpop.permute.xlu0 %397
        %s399 = vtos %v398
        %v400 = vstv %s399
        %v401 = vsel %vm182, %v400, 0.0
        %v402 = vadd.f32 %v396, %v401
        %403 = vrot.lane.b32.xlu0 %v181, 91
        %v404 = vpop.permute.xlu0 %403
        %s405 = vtos %v404
        %v406 = vstv %s405
        %v407 = vsel %vm183, %v406, 0.0
        %v408 = vadd.f32 %v402, %v407
        %409 = vrot.lane.b32.xlu0 %v181, 90
        %v410 = vpop.permute.xlu0 %409
        %s411 = vtos %v410
        %v412 = vstv %s411
        %v413 = vsel %vm184, %v412, 0.0
        %v414 = vadd.f32 %v408, %v413
        %415 = vrot.lane.b32.xlu0 %v181, 89
        %v416 = vpop.permute.xlu0 %415
        %s417 = vtos %v416
        %v418 = vstv %s417
        %v419 = vsel %vm185, %v418, 0.0
        %v420 = vadd.f32 %v414, %v419
        %421 = vrot.lane.b32.xlu0 %v181, 88
        %v422 = vpop.permute.xlu0 %421
        %s423 = vtos %v422
        %v424 = vstv %s423
        %v425 = vsel %vm186, %v424, 0.0
        %v426 = vadd.f32 %v420, %v425
        %427 = vrot.lane.b32.xlu0 %v181, 87
        %v428 = vpop.permute.xlu0 %427
        %s429 = vtos %v428
        %v430 = vstv %s429
        %v431 = vsel %vm187, %v430, 0.0
        %v432 = vadd.f32 %v426, %v431
        %433 = vrot.lane.b32.xlu0 %v181, 86
        %v434 = vpop.permute.xlu0 %433
        %s435 = vtos %v434
        %v436 = vstv %s435
        %437 = vrot.lane.b32.xlu0 %v181, 85
        %v438 = vpop.permute.xlu0 %437
        %s439 = vtos %v438
        %v440 = vstv %s439
        %v441 = vsel %vm182, %v440, 0.0
        %v442 = vadd.f32 %v436, %v441
        %443 = vrot.lane.b32.xlu0 %v181, 84
        %v444 = vpop.permute.xlu0 %443
        %s445 = vtos %v444
        %v446 = vstv %s445
        %v447 = vsel %vm183, %v446, 0.0
        %v448 = vadd.f32 %v442, %v447
        %449 = vrot.lane.b32.xlu0 %v181, 83
        %v450 = vpop.permute.xlu0 %449
        %s451 = vtos %v450
        %v452 = vstv %s451
        %v453 = vsel %vm184, %v452, 0.0
        %v454 = vadd.f32 %v448, %v453
        %455 = vrot.lane.b32.xlu0 %v181, 82
        %v456 = vpop.permute.xlu0 %455
        %s457 = vtos %v456
        %v458 = vstv %s457
        %v459 = vsel %vm185, %v458, 0.0
        %v460 = vadd.f32 %v454, %v459
        %461 = vrot.lane.b32.xlu0 %v181, 81
        %v462 = vpop.permute.xlu0 %461
        %s463 = vtos %v462
        %v464 = vstv %s463
        %v465 = vsel %vm186, %v464, 0.0
        %v466 = vadd.f32 %v460, %v465
        %467 = vrot.lane.b32.xlu0 %v181, 80
        %v468 = vpop.permute.xlu0 %467
        %s469 = vtos %v468
        %v470 = vstv %s469
        %v471 = vsel %vm187, %v470, 0.0
        %v472 = vadd.f32 %v466, %v471
        %473 = vrot.lane.b32.xlu0 %v181, 79
        %v474 = vpop.permute.xlu0 %473
        %s475 = vtos %v474
        %v476 = vstv %s475
        %477 = vrot.lane.b32.xlu0 %v181, 78
        %v478 = vpop.permute.xlu0 %477
        %s479 = vtos %v478
        %v480 = vstv %s479
        %v481 = vsel %vm182, %v480, 0.0
        %v482 = vadd.f32 %v476, %v481
        %483 = vrot.lane.b32.xlu0 %v181, 77
        %v484 = vpop.permute.xlu0 %483
        %s485 = vtos %v484
        %v486 = vstv %s485
        %v487 = vsel %vm183, %v486, 0.0
        %v488 = vadd.f32 %v482, %v487
        %489 = vrot.lane.b32.xlu0 %v181, 76
        %v490 = vpop.permute.xlu0 %489
        %s491 = vtos %v490
        %v492 = vstv %s491
        %v493 = vsel %vm184, %v492, 0.0
        %v494 = vadd.f32 %v488, %v493
        %495 = vrot.lane.b32.xlu0 %v181, 75
        %v496 = vpop.permute.xlu0 %495
        %s497 = vtos %v496
        %v498 = vstv %s497
        %v499 = vsel %vm185, %v498, 0.0
        %v500 = vadd.f32 %v494, %v499
        %501 = vrot.lane.b32.xlu0 %v181, 74
        %v502 = vpop.permute.xlu0 %501
        %s503 = vtos %v502
        %v504 = vstv %s503
        %v505 = vsel %vm186, %v504, 0.0
        %v506 = vadd.f32 %v500, %v505
        %507 = vrot.lane.b32.xlu0 %v181, 73
        %v508 = vpop.permute.xlu0 %507
        %s509 = vtos %v508
        %v510 = vstv %s509
        %v511 = vsel %vm187, %v510, 0.0
        %v512 = vadd.f32 %v506, %v511
        %v513 = vmul.f32 %v392, %v180
        %v514 = vadd.f32 %v513, %v432
        %v515 = vmul.f32 %v514, %v180
        %v516 = vadd.f32 %v515, %v472
        %v517 = vmul.f32 %v516, %v180
        %v518 = vadd.f32 %v517, %v512
        %s519 = scalar_lea.vmem %s163, 2 [#allocation2]
        %520 = vst [vmem:[%s519] sm:$0x3] %v518
        %s521 = sand.u32 %s89, 1
        %s522 = sand.u32 %s89, 1
        %s523 = smul.addr %s522, 4
        %s524 = scalar_lea.vmem [#allocation2], %s523
        // Predicated region
        $region29: #{neural_spline_forward.15} parent=27 // pred_check
          %p525 = pneg %p99
        $region30: #{neural_spline_forward.15} parent=27 // pred_check_branch
          %527 = sbr.rel (%p525) target = $region32
        $region31: #{neural_spline_forward.15} parent=27 // pred_region
          %s528 = sadd.s32 %s18, %s17
          %s529 = smul.addr %s528, 2
          %s530 = scalar_lea.vmem %s2, %s529
          // Predicated region
          $region33: #{neural_spline_forward.15} parent=31 // pred_check
            _
          $region34: #{neural_spline_forward.15} parent=31 // pred_check_branch
            %532 = sbr.rel (0) target = $region36
          $region35: #{neural_spline_forward.15} parent=31 // pred_region
            // Predicated region
            $region37: #{neural_spline_forward.15} parent=35 // pred_check
              _
            $region38: #{neural_spline_forward.15} parent=35 // pred_check_branch
              %534 = sbr.rel target = $region40
            $region39: #{neural_spline_forward.15} parent=35 // pred_region
              // Predicated region
              $region52: #{neural_spline_forward.15} parent=39 // pred_check
                _
              $region53: #{neural_spline_forward.15} parent=39 // pred_check_branch
                %551 = sbr.rel (0) target = $region55
              $region54: #{neural_spline_forward.15} parent=39 // pred_region
                loop: start=0, step=1, limit=1
                $region56: #{neural_spline_forward.15} parent=54 // loop_pre_header
                  _
                $region57: #{neural_spline_forward.15} parent=54 // loop_header
                  %s554 = sphi 0, %s558
                  %p555 = scmp.ge.s32.totalorder %s554, 1
                  %s559 = sphi %s524, %s524
                  %s560 = sphi %s530, %s530
                $region58: #{neural_spline_forward.15} parent=54 // loop_header_branch
                  %557 = sbr.rel (%p555) target = $region62
                $region59: #{neural_spline_forward.15} parent=54 // loop_body
                  %v561 = vld [vmem:[%s559] sm:$0x3]
                  %562 = vst [vmem:[%s560] sm:$0x3] %v561
                  %v563 = vld [vmem:[%s559 + $0x2] sm:$0x3]
                  %564 = vst [vmem:[%s560 + $0xc] sm:$0x3] %v563
                $region60: #{neural_spline_forward.15} parent=54 // loop_footer
                  %s558 = sadd.s32 1, %s554
                $region61: #{neural_spline_forward.15} parent=54 // loop_footer_branch
                  %553 = sbr.rel target = $region57
                $region62: #{neural_spline_forward.15} parent=54 // loop_exit
                  _
              $region55: #{neural_spline_forward.15} parent=39 // pred_fallthru
                _
            $region40: #{neural_spline_forward.15} parent=35 // pred_fallthru
              _
            // Predicated region
            $region41: #{neural_spline_forward.15} parent=35 // pred_check
              _
            $region42: #{neural_spline_forward.15} parent=35 // pred_check_branch
              %536 = sbr.rel (0) target = $region44
            $region43: #{neural_spline_forward.15} parent=35 // pred_region
              loop: start=0, step=1, limit=1
              $region45: #{neural_spline_forward.15} parent=43 // loop_pre_header
                _
              $region46: #{neural_spline_forward.15} parent=43 // loop_header
                %s539 = sphi 0, %s543
                %p540 = scmp.ge.s32.totalorder %s539, 1
                %s544 = sphi %s524, %s524
                %s545 = sphi %s530, %s530
              $region47: #{neural_spline_forward.15} parent=43 // loop_header_branch
                %542 = sbr.rel (%p540) target = $region51
              $region48: #{neural_spline_forward.15} parent=43 // loop_body
                %v546 = vld [vmem:[%s544] sm:$0x3]
                %547 = vst [vmem:[%s545] sm:$0x3] %v546
                %v548 = vld [vmem:[%s544 + $0x2] sm:$0x3]
                %549 = vst [vmem:[%s545 + $0xc] sm:$0x3] %v548
              $region49: #{neural_spline_forward.15} parent=43 // loop_footer
                %s543 = sadd.s32 1, %s539
              $region50: #{neural_spline_forward.15} parent=43 // loop_footer_branch
                %538 = sbr.rel target = $region46
              $region51: #{neural_spline_forward.15} parent=43 // loop_exit
                _
            $region44: #{neural_spline_forward.15} parent=35 // pred_fallthru
              _
          $region36: #{neural_spline_forward.15} parent=31 // pred_fallthru
            _
          %565 = vnop
        $region32: #{neural_spline_forward.15} parent=27 // pred_fallthru
          _
      $region28: #{neural_spline_forward.15} parent=5 // pred_fallthru
        _
      %p566 = scmp.le.s32.totalorder 2, %s8
      // Predicated region
      $region63: #{neural_spline_forward.15} parent=5 // pred_check
        %p567 = pneg %p566
      $region64: #{neural_spline_forward.15} parent=5 // pred_check_branch
        %569 = sbr.rel (%p567) target = $region66
      $region65: #{neural_spline_forward.15} parent=5 // pred_region
        %s570 = ssub.s32 %s8, 2
        // Predicated region
        $region67: #{neural_spline_forward.15} parent=65 // pred_check
          %p571 = pneg %p105
        $region68: #{neural_spline_forward.15} parent=65 // pred_check_branch
          %573 = sbr.rel (%p571) target = $region70
        $region69: #{neural_spline_forward.15} parent=65 // pred_region
          %s574 = sand.u32 %s90, 1
          %s575 = sand.u32 %s90, 1
          %s576 = smul.addr %s575, 4
          %s577 = scalar_lea.vmem [#allocation2], %s576
        $region70: #{neural_spline_forward.15} parent=65 // pred_fallthru
          _
      $region66: #{neural_spline_forward.15} parent=5 // pred_fallthru
        _
    $region6: #{neural_spline_forward.15} parent=1 // loop_footer
      %s12 = sadd.s32 1, %s8
    $region7: #{neural_spline_forward.15} parent=1 // loop_footer_branch
      %7 = sbr.rel target = $region3
    $region8: #{neural_spline_forward.15} parent=1 // loop_exit
      _

</llo_original>
